<compile_context>
chip_gen: v7x
topology: tpu7x:2x2x1
jax: 0.10.0
libtpu: 0.0.40
codegen_flags: <defaults>
</compile_context>

<pallas_src>
import jax
import jax.numpy as jnp
from jax import lax
from jax.experimental import pallas as pl
from jax.experimental.pallas import tpu as pltpu


# ----------------------------------------------------------------------------
# Fused kernel: maxpool 2x2 -> conv3x3+BN+ReLU -> conv3x3+BN+ReLU
# (processes NB images per grid step)
# ----------------------------------------------------------------------------
def _down_fused_kernel(x_ref, w1_ref, t1_ref, w2_ref, t2_ref,
                       o_ref, xp1_ref, xp2_ref):
    # x_ref  : (NB, Ho, 2, Wo, 2, Cin)  one contiguous block of NB input images
    # w1_ref : (9, Cin,  Cout) bf16     conv1 weights (BN scale pre-folded)
    # w2_ref : (9, Cout, Cout) bf16     conv2 weights (BN scale pre-folded)
    # t1/t2  : (1, Cout) f32            folded BatchNorm shift
    # o_ref  : (NB*Ho*Wo, Cout)         flattened output slab (single store)
    # xp1/xp2: f32 VMEM halo scratch    (NB, Ho+2, Wo+2, C)
    NB, Ho, _, Wo, _, Cin = x_ref.shape
    M, Cout = o_ref.shape                       # M = NB * Ho * Wo

    # --- zero only the 1-px halo ring (NOT the full scratch) -----------------
    # The interiors are fully overwritten below each grid step; re-zeroing the
    # tiny ring every step keeps this correct even when the batch axis is
    # sharded across TensorCores (a program_id==0 gate would not).
    def zero_ring(xp):
        nb, hp, wp, c = xp.shape
        z_row = jnp.zeros((nb, 1, wp, c), xp.dtype)
        z_col = jnp.zeros((nb, hp, 1, c), xp.dtype)
        xp[:, 0:1, :, :] = z_row
        xp[:, hp - 1:hp, :, :] = z_row
        xp[:, :, 0:1, :] = z_col
        xp[:, :, wp - 1:wp, :] = z_col

    zero_ring(xp1_ref)
    zero_ring(xp2_ref)

    # --- fused 2x2 max pool on the VPU (in-VMEM, no extra DMAs) --------------
    xv = x_ref[...]                              # (NB, Ho, 2, Wo, 2, Cin)
    pooled = jnp.max(jnp.max(xv, axis=4), axis=2)  # (NB, Ho, Wo, Cin)
    xp1_ref[:, 1:Ho + 1, 1:Wo + 1, :] = pooled.astype(xp1_ref.dtype)

    # --- 3x3 conv as 9 accumulated MXU matmuls (no 9x im2col copy) -----------
    def conv3x3(xp_ref, w_ref):
        c = xp_ref.shape[-1]
        acc = jnp.zeros((M, Cout), jnp.float32)
        for dy in range(3):
            for dx in range(3):
                tap = xp_ref[:, dy:dy + Ho, dx:dx + Wo, :]
                tap = tap.astype(jnp.bfloat16).reshape(M, c)   # bf16 MXU operand
                acc = acc + jnp.dot(tap, w_ref[dy * 3 + dx],
                                    preferred_element_type=jnp.float32)
        return acc

    # conv1 + BN shift + ReLU (scale already folded into the weights)
    y1 = jnp.maximum(conv3x3(xp1_ref, w1_ref) + t1_ref[...], 0.0)
    xp2_ref[:, 1:Ho + 1, 1:Wo + 1, :] = (
        y1.reshape(NB, Ho, Wo, Cout).astype(xp2_ref.dtype))

    # conv2 + BN shift + ReLU
    y2 = jnp.maximum(conv3x3(xp2_ref, w2_ref) + t2_ref[...], 0.0)

    # Single whole-tile store.
    o_ref[...] = y2.astype(o_ref.dtype)


# ----------------------------------------------------------------------------
# Down block wrapper: NCHW in -> fused Pallas kernel -> NCHW out
# ----------------------------------------------------------------------------
def down_forward(x_nchw, params, block_n=None):
    N, Cin, H, W = x_nchw.shape
    assert H % 2 == 0 and W % 2 == 0, "MaxPool2d(2) floor-mode: use even H, W"
    Ho, Wo = H // 2, W // 2
    Cout = params["w1"].shape[-1]
    HW = Ho * Wo

    # Block several images per grid step so the matmul M dim is >= 128 at
    # small spatial sizes (amortizes per-step overhead, fills the MXU).
    if block_n is None:
        block_n = N
        for d in range(1, N + 1):
            if N % d == 0 and d * HW >= 128:
                block_n = d
                break
    assert N % block_n == 0
    grid_n = N // block_n

    # One boundary transpose NCHW -> NHWC (channels on the lane axis) and a
    # free metadata reshape exposing the 2x2 pooling windows; the whole image
    # group is then ONE contiguous row-major DMA per grid step.
    x = jnp.transpose(x_nchw, (0, 2, 3, 1)).reshape(N, Ho, 2, Wo, 2, Cin)

    # BN scale pre-folded into the weights (host side); weights in bf16.
    w1r = params["w1"].reshape(9, Cin, Cout).astype(jnp.bfloat16)
    w2r = params["w2"].reshape(9, Cout, Cout).astype(jnp.bfloat16)
    t1 = params["shift1"].reshape(1, Cout).astype(jnp.float32)
    t2 = params["shift2"].reshape(1, Cout).astype(jnp.float32)

    def rep_spec(shape):
        return pl.BlockSpec(shape, lambda n, _r=len(shape): (0,) * _r)

    out = pl.pallas_call(
        _down_fused_kernel,
        out_shape=jax.ShapeDtypeStruct((N * HW, Cout), x_nchw.dtype),
        grid=(grid_n,),
        in_specs=[
            pl.BlockSpec((block_n, Ho, 2, Wo, 2, Cin),
                         lambda n: (n, 0, 0, 0, 0, 0)),
            rep_spec((9, Cin, Cout)), rep_spec((1, Cout)),
            rep_spec((9, Cout, Cout)), rep_spec((1, Cout)),
        ],
        out_specs=pl.BlockSpec((block_n * HW, Cout), lambda n: (n, 0)),
        scratch_shapes=[
            pltpu.VMEM((block_n, Ho + 2, Wo + 2, Cin), jnp.float32),   # conv1 halo
            pltpu.VMEM((block_n, Ho + 2, Wo + 2, Cout), jnp.float32),  # conv2 halo
        ],
        compiler_params=pltpu.CompilerParams(
            dimension_semantics=("parallel",)),
    )(x, w1r, t1, w2r, t2)

    # Free reshape + one boundary transpose back to PyTorch NCHW.
    return jnp.transpose(out.reshape(N, Ho, Wo, Cout), (0, 3, 1, 2))


# ----------------------------------------------------------------------------
# Deterministic parameter setup (synthetic; mirrors the module's shapes)
# ----------------------------------------------------------------------------
def init_down_params(key, in_channels, out_channels, eps=1e-5):
    k1, k2, k3, k4 = jax.random.split(key, 4)

    def bn_raw(c, base):
        idx = jnp.arange(c, dtype=jnp.float32)
        gamma = 1.0 + 0.1 * jnp.cos(idx + base)
        beta = 0.05 * jnp.sin(idx - base)
        mean = 0.02 * idx - 0.05
        var = 1.0 + 0.1 * idx
        return gamma, beta, mean, var

    # Conv weights kept in HWIO (PyTorch stores OIHW; same math).
    w1 = 0.1 * jax.random.normal(k1, (3, 3, in_channels, out_channels), jnp.float32)
    b1 = 0.05 * jax.random.normal(k2, (out_channels,), jnp.float32)
    w2 = 0.1 * jax.random.normal(k3, (3, 3, out_channels, out_channels), jnp.float32)
    b2 = 0.05 * jax.random.normal(k4, (out_channels,), jnp.float32)
    bn1 = bn_raw(out_channels, 0.0)
    bn2 = bn_raw(out_channels, 1.0)

    def fold(w, b, gamma, beta, mean, var):
        s = gamma / jnp.sqrt(var + eps)          # (Cout,)
        w_folded = w * s                          # scale folded into weights
        shift = (b - mean) * s + beta             # remaining per-channel shift
        return w_folded, shift

    w1f, t1 = fold(w1, b1, *bn1)
    w2f, t2 = fold(w2, b2, *bn2)
    folded = dict(w1=w1f, shift1=t1, w2=w2f, shift2=t2)
    raw = [(w1, b1) + bn1, (w2, b2) + bn2]
    return folded, raw


# ----------------------------------------------------------------------------
# Pure-JAX (XLA) reference, mirroring the PyTorch forward in eval mode
# ----------------------------------------------------------------------------
def down_reference(x_nchw, raw, eps=1e-5):
    y = lax.reduce_window(x_nchw, -jnp.inf, lax.max,
                          window_dimensions=(1, 1, 2, 2),
                          window_strides=(1, 1, 2, 2), padding="VALID")
    for (w_hwio, b, gamma, beta, mean, var) in raw:
        w_oihw = jnp.transpose(w_hwio, (3, 2, 0, 1))
        y = lax.conv_general_dilated(y, w_oihw, window_strides=(1, 1),
                                     padding=((1, 1), (1, 1)),
                                     dimension_numbers=("NCHW", "OIHW", "NCHW"))
        y = y + b[None, :, None, None]
        y = (y - mean[None, :, None, None]) * (
            gamma[None, :, None, None] / jnp.sqrt(var[None, :, None, None] + eps))
        y = y + beta[None, :, None, None]
        y = jnp.maximum(y, 0.0)
    return y


if __name__ == "__main__":
    key = jax.random.PRNGKey(0)
    kx, kp = jax.random.split(key)

    # Small shapes consistent with Down(in_channels=4, out_channels=8).
    x = jax.random.normal(kx, (2, 4, 16, 16), jnp.float32)   # NCHW like PyTorch
    params, raw = init_down_params(kp, in_channels=4, out_channels=8)

    out = jax.jit(down_forward)(x, params)
    out = jax.block_until_ready(out)

    assert out.shape == (2, 8, 8, 8), out.shape

    ref = down_reference(x, raw)
    max_err = float(jnp.max(jnp.abs(out - ref)))
    # bf16 MXU operands (f32 accumulation): tolerance relaxed vs the f32 run.
    assert max_err < 5e-2, f"mismatch vs reference: {max_err}"

    print("KERNEL_OK")
</pallas_src>

<mosaic_0001>
module attributes {stable_mosaic.version = 11 : i64} {
  func.func @_down_fused_kernel(%arg0: i32, %arg1: memref<2x8x2x8x2x4xf32, #tpu.memory_space<vmem>>, %arg2: memref<9x4x8xbf16, #tpu.memory_space<vmem>>, %arg3: memref<1x8xf32, #tpu.memory_space<vmem>>, %arg4: memref<9x8x8xbf16, #tpu.memory_space<vmem>>, %arg5: memref<1x8xf32, #tpu.memory_space<vmem>>, %arg6: memref<128x8xf32, #tpu.memory_space<vmem>>, %arg7: memref<2x10x10x4xf32, #tpu.memory_space<vmem>>, %arg8: memref<2x10x10x8xf32, #tpu.memory_space<vmem>>) attributes {dimension_semantics = [#tpu.dimension_semantics<parallel>], iteration_bounds = array<i64: 1>, scalar_prefetch = 0 : i64, scratch_operands = 2 : i64, tpu.core_type = #tpu.core_type<tc>, window_params = [{transform_indices = @transform_0, window_bounds = array<i64: 2, 8, 2, 8, 2, 4>}, {pipeline_mode = #tpu.pipeline_mode<synchronous>, transform_indices = @transform_1, window_bounds = array<i64: 9, 4, 8>}, {pipeline_mode = #tpu.pipeline_mode<synchronous>, transform_indices = @transform_2, window_bounds = array<i64: 1, 8>}, {pipeline_mode = #tpu.pipeline_mode<synchronous>, transform_indices = @transform_3, window_bounds = array<i64: 9, 8, 8>}, {pipeline_mode = #tpu.pipeline_mode<synchronous>, transform_indices = @transform_4, window_bounds = array<i64: 1, 8>}, {transform_indices = @transform_5, window_bounds = array<i64: 128, 8>}]} {
    %cst = arith.constant 0.000000e+00 : f32
    %0 = vector.broadcast %cst : f32 to vector<2x1x10x4xf32>
    %cst_0 = arith.constant 0.000000e+00 : f32
    %1 = vector.broadcast %cst_0 : f32 to vector<2x10x1x4xf32>
    %c0 = arith.constant 0 : index
    %c0_1 = arith.constant 0 : index
    %c0_2 = arith.constant 0 : index
    %c0_3 = arith.constant 0 : index
    %2 = vector.load %arg7[%c0, %c0_1, %c0_2, %c0_3] : memref<2x10x10x4xf32, #tpu.memory_space<vmem>>, vector<2x1x10x4xf32>
    tpu.vector_store %arg7[%c0, %c0_1, %c0_2, %c0_3], %0 {strides = array<i32>} : memref<2x10x10x4xf32, #tpu.memory_space<vmem>>, vector<2x1x10x4xf32>,
    %c0_4 = arith.constant 0 : index
    %c9 = arith.constant 9 : index
    %c0_5 = arith.constant 0 : index
    %c0_6 = arith.constant 0 : index
    %3 = vector.load %arg7[%c0_4, %c9, %c0_5, %c0_6] : memref<2x10x10x4xf32, #tpu.memory_space<vmem>>, vector<2x1x10x4xf32>
    tpu.vector_store %arg7[%c0_4, %c9, %c0_5, %c0_6], %0 {strides = array<i32>} : memref<2x10x10x4xf32, #tpu.memory_space<vmem>>, vector<2x1x10x4xf32>,
    %c0_7 = arith.constant 0 : index
    %c0_8 = arith.constant 0 : index
    %c0_9 = arith.constant 0 : index
    %c0_10 = arith.constant 0 : index
    %4 = vector.load %arg7[%c0_7, %c0_8, %c0_9, %c0_10] : memref<2x10x10x4xf32, #tpu.memory_space<vmem>>, vector<2x10x1x4xf32>
    tpu.vector_store %arg7[%c0_7, %c0_8, %c0_9, %c0_10], %1 {strides = array<i32>} : memref<2x10x10x4xf32, #tpu.memory_space<vmem>>, vector<2x10x1x4xf32>,
    %c0_11 = arith.constant 0 : index
    %c0_12 = arith.constant 0 : index
    %c9_13 = arith.constant 9 : index
    %c0_14 = arith.constant 0 : index
    %5 = vector.load %arg7[%c0_11, %c0_12, %c9_13, %c0_14] : memref<2x10x10x4xf32, #tpu.memory_space<vmem>>, vector<2x10x1x4xf32>
    tpu.vector_store %arg7[%c0_11, %c0_12, %c9_13, %c0_14], %1 {strides = array<i32>} : memref<2x10x10x4xf32, #tpu.memory_space<vmem>>, vector<2x10x1x4xf32>,
    %cst_15 = arith.constant 0.000000e+00 : f32
    %6 = vector.broadcast %cst_15 : f32 to vector<2x1x10x8xf32>
    %cst_16 = arith.constant 0.000000e+00 : f32
    %7 = vector.broadcast %cst_16 : f32 to vector<2x10x1x8xf32>
    %c0_17 = arith.constant 0 : index
    %c0_18 = arith.constant 0 : index
    %c0_19 = arith.constant 0 : index
    %c0_20 = arith.constant 0 : index
    %8 = vector.load %arg8[%c0_17, %c0_18, %c0_19, %c0_20] : memref<2x10x10x8xf32, #tpu.memory_space<vmem>>, vector<2x1x10x8xf32>
    tpu.vector_store %arg8[%c0_17, %c0_18, %c0_19, %c0_20], %6 {strides = array<i32>} : memref<2x10x10x8xf32, #tpu.memory_space<vmem>>, vector<2x1x10x8xf32>,
    %c0_21 = arith.constant 0 : index
    %c9_22 = arith.constant 9 : index
    %c0_23 = arith.constant 0 : index
    %c0_24 = arith.constant 0 : index
    %9 = vector.load %arg8[%c0_21, %c9_22, %c0_23, %c0_24] : memref<2x10x10x8xf32, #tpu.memory_space<vmem>>, vector<2x1x10x8xf32>
    tpu.vector_store %arg8[%c0_21, %c9_22, %c0_23, %c0_24], %6 {strides = array<i32>} : memref<2x10x10x8xf32, #tpu.memory_space<vmem>>, vector<2x1x10x8xf32>,
    %c0_25 = arith.constant 0 : index
    %c0_26 = arith.constant 0 : index
    %c0_27 = arith.constant 0 : index
    %c0_28 = arith.constant 0 : index
    %10 = vector.load %arg8[%c0_25, %c0_26, %c0_27, %c0_28] : memref<2x10x10x8xf32, #tpu.memory_space<vmem>>, vector<2x10x1x8xf32>
    tpu.vector_store %arg8[%c0_25, %c0_26, %c0_27, %c0_28], %7 {strides = array<i32>} : memref<2x10x10x8xf32, #tpu.memory_space<vmem>>, vector<2x10x1x8xf32>,
    %c0_29 = arith.constant 0 : index
    %c0_30 = arith.constant 0 : index
    %c9_31 = arith.constant 9 : index
    %c0_32 = arith.constant 0 : index
    %11 = vector.load %arg8[%c0_29, %c0_30, %c9_31, %c0_32] : memref<2x10x10x8xf32, #tpu.memory_space<vmem>>, vector<2x10x1x8xf32>
    tpu.vector_store %arg8[%c0_29, %c0_30, %c9_31, %c0_32], %7 {strides = array<i32>} : memref<2x10x10x8xf32, #tpu.memory_space<vmem>>, vector<2x10x1x8xf32>,
    %c0_33 = arith.constant 0 : index
    %c0_34 = arith.constant 0 : index
    %c0_35 = arith.constant 0 : index
    %c0_36 = arith.constant 0 : index
    %c0_37 = arith.constant 0 : index
    %c0_38 = arith.constant 0 : index
    %12 = vector.load %arg1[%c0_33, %c0_34, %c0_35, %c0_36, %c0_37, %c0_38] : memref<2x8x2x8x2x4xf32, #tpu.memory_space<vmem>>, vector<2x8x2x8x2x4xf32>
    %cst_39 = arith.constant dense<0xFF800000> : vector<2x8x2x8x4xf32>
    %13 = vector.multi_reduction <maximumf>, %12, %cst_39 [4] : vector<2x8x2x8x2x4xf32> to vector<2x8x2x8x4xf32>
    %cst_40 = arith.constant dense<0xFF800000> : vector<2x8x8x4xf32>
    %14 = vector.multi_reduction <maximumf>, %13, %cst_40 [2] : vector<2x8x2x8x4xf32> to vector<2x8x8x4xf32>
    %c0_41 = arith.constant 0 : index
    %c1 = arith.constant 1 : index
    %c1_42 = arith.constant 1 : index
    %c0_43 = arith.constant 0 : index
    %15 = vector.load %arg7[%c0_41, %c1, %c1_42, %c0_43] : memref<2x10x10x4xf32, #tpu.memory_space<vmem>>, vector<2x8x8x4xf32>
    tpu.vector_store %arg7[%c0_41, %c1, %c1_42, %c0_43], %14 {strides = array<i32>} : memref<2x10x10x4xf32, #tpu.memory_space<vmem>>, vector<2x8x8x4xf32>,
    %cst_44 = arith.constant 0.000000e+00 : f32
    %16 = vector.broadcast %cst_44 : f32 to vector<128x8xf32>
    %c0_45 = arith.constant 0 : index
    %c0_46 = arith.constant 0 : index
    %c0_47 = arith.constant 0 : index
    %c0_48 = arith.constant 0 : index
    %17 = vector.load %arg7[%c0_45, %c0_46, %c0_47, %c0_48] : memref<2x10x10x4xf32, #tpu.memory_space<vmem>>, vector<2x8x8x4xf32>
    %18 = arith.truncf %17 : vector<2x8x8x4xf32> to vector<2x8x8x4xbf16>
    %19 = vector.shape_cast %18 : vector<2x8x8x4xbf16> to vector<128x4xbf16>
    %c0_49 = arith.constant 0 : index
    %c0_50 = arith.constant 0 : index
    %c0_51 = arith.constant 0 : index
    %20 = vector.load %arg2[%c0_49, %c0_50, %c0_51] : memref<9x4x8xbf16, #tpu.memory_space<vmem>>, vector<1x4x8xbf16>
    %21 = vector.shape_cast %20 : vector<1x4x8xbf16> to vector<4x8xbf16>
    %cst_52 = arith.constant dense<0.000000e+00> : vector<128x8xf32>
    %22 = tpu.matmul %19, %21, %cst_52 {dimension_numbers = #tpu.dot_dimension_numbers<[1], [0], [0], [1], [0, 0, 1, 1], [], []>} : vector<128x4xbf16>, vector<4x8xbf16>, vector<128x8xf32> -> vector<128x8xf32>
    %23 = arith.addf %16, %22 : vector<128x8xf32>
    %c0_53 = arith.constant 0 : index
    %c0_54 = arith.constant 0 : index
    %c1_55 = arith.constant 1 : index
    %c0_56 = arith.constant 0 : index
    %24 = vector.load %arg7[%c0_53, %c0_54, %c1_55, %c0_56] : memref<2x10x10x4xf32, #tpu.memory_space<vmem>>, vector<2x8x8x4xf32>
    %25 = arith.truncf %24 : vector<2x8x8x4xf32> to vector<2x8x8x4xbf16>
    %26 = vector.shape_cast %25 : vector<2x8x8x4xbf16> to vector<128x4xbf16>
    %c1_57 = arith.constant 1 : index
    %c0_58 = arith.constant 0 : index
    %c0_59 = arith.constant 0 : index
    %27 = vector.load %arg2[%c1_57, %c0_58, %c0_59] : memref<9x4x8xbf16, #tpu.memory_space<vmem>>, vector<1x4x8xbf16>
    %28 = vector.shape_cast %27 : vector<1x4x8xbf16> to vector<4x8xbf16>
    %cst_60 = arith.constant dense<0.000000e+00> : vector<128x8xf32>
    %29 = tpu.matmul %26, %28, %cst_60 {dimension_numbers = #tpu.dot_dimension_numbers<[1], [0], [0], [1], [0, 0, 1, 1], [], []>} : vector<128x4xbf16>, vector<4x8xbf16>, vector<128x8xf32> -> vector<128x8xf32>
    %30 = arith.addf %23, %29 : vector<128x8xf32>
    %c0_61 = arith.constant 0 : index
    %c0_62 = arith.constant 0 : index
    %c2 = arith.constant 2 : index
    %c0_63 = arith.constant 0 : index
    %31 = vector.load %arg7[%c0_61, %c0_62, %c2, %c0_63] : memref<2x10x10x4xf32, #tpu.memory_space<vmem>>, vector<2x8x8x4xf32>
    %32 = arith.truncf %31 : vector<2x8x8x4xf32> to vector<2x8x8x4xbf16>
    %33 = vector.shape_cast %32 : vector<2x8x8x4xbf16> to vector<128x4xbf16>
    %c2_64 = arith.constant 2 : index
    %c0_65 = arith.constant 0 : index
    %c0_66 = arith.constant 0 : index
    %34 = vector.load %arg2[%c2_64, %c0_65, %c0_66] : memref<9x4x8xbf16, #tpu.memory_space<vmem>>, vector<1x4x8xbf16>
    %35 = vector.shape_cast %34 : vector<1x4x8xbf16> to vector<4x8xbf16>
    %cst_67 = arith.constant dense<0.000000e+00> : vector<128x8xf32>
    %36 = tpu.matmul %33, %35, %cst_67 {dimension_numbers = #tpu.dot_dimension_numbers<[1], [0], [0], [1], [0, 0, 1, 1], [], []>} : vector<128x4xbf16>, vector<4x8xbf16>, vector<128x8xf32> -> vector<128x8xf32>
    %37 = arith.addf %30, %36 : vector<128x8xf32>
    %c0_68 = arith.constant 0 : index
    %c1_69 = arith.constant 1 : index
    %c0_70 = arith.constant 0 : index
    %c0_71 = arith.constant 0 : index
    %38 = vector.load %arg7[%c0_68, %c1_69, %c0_70, %c0_71] : memref<2x10x10x4xf32, #tpu.memory_space<vmem>>, vector<2x8x8x4xf32>
    %39 = arith.truncf %38 : vector<2x8x8x4xf32> to vector<2x8x8x4xbf16>
    %40 = vector.shape_cast %39 : vector<2x8x8x4xbf16> to vector<128x4xbf16>
    %c3 = arith.constant 3 : index
    %c0_72 = arith.constant 0 : index
    %c0_73 = arith.constant 0 : index
    %41 = vector.load %arg2[%c3, %c0_72, %c0_73] : memref<9x4x8xbf16, #tpu.memory_space<vmem>>, vector<1x4x8xbf16>
    %42 = vector.shape_cast %41 : vector<1x4x8xbf16> to vector<4x8xbf16>
    %cst_74 = arith.constant dense<0.000000e+00> : vector<128x8xf32>
    %43 = tpu.matmul %40, %42, %cst_74 {dimension_numbers = #tpu.dot_dimension_numbers<[1], [0], [0], [1], [0, 0, 1, 1], [], []>} : vector<128x4xbf16>, vector<4x8xbf16>, vector<128x8xf32> -> vector<128x8xf32>
    %44 = arith.addf %37, %43 : vector<128x8xf32>
    %c0_75 = arith.constant 0 : index
    %c1_76 = arith.constant 1 : index
    %c1_77 = arith.constant 1 : index
    %c0_78 = arith.constant 0 : index
    %45 = vector.load %arg7[%c0_75, %c1_76, %c1_77, %c0_78] : memref<2x10x10x4xf32, #tpu.memory_space<vmem>>, vector<2x8x8x4xf32>
    %46 = arith.truncf %45 : vector<2x8x8x4xf32> to vector<2x8x8x4xbf16>
    %47 = vector.shape_cast %46 : vector<2x8x8x4xbf16> to vector<128x4xbf16>
    %c4 = arith.constant 4 : index
    %c0_79 = arith.constant 0 : index
    %c0_80 = arith.constant 0 : index
    %48 = vector.load %arg2[%c4, %c0_79, %c0_80] : memref<9x4x8xbf16, #tpu.memory_space<vmem>>, vector<1x4x8xbf16>
    %49 = vector.shape_cast %48 : vector<1x4x8xbf16> to vector<4x8xbf16>
    %cst_81 = arith.constant dense<0.000000e+00> : vector<128x8xf32>
    %50 = tpu.matmul %47, %49, %cst_81 {dimension_numbers = #tpu.dot_dimension_numbers<[1], [0], [0], [1], [0, 0, 1, 1], [], []>} : vector<128x4xbf16>, vector<4x8xbf16>, vector<128x8xf32> -> vector<128x8xf32>
    %51 = arith.addf %44, %50 : vector<128x8xf32>
    %c0_82 = arith.constant 0 : index
    %c1_83 = arith.constant 1 : index
    %c2_84 = arith.constant 2 : index
    %c0_85 = arith.constant 0 : index
    %52 = vector.load %arg7[%c0_82, %c1_83, %c2_84, %c0_85] : memref<2x10x10x4xf32, #tpu.memory_space<vmem>>, vector<2x8x8x4xf32>
    %53 = arith.truncf %52 : vector<2x8x8x4xf32> to vector<2x8x8x4xbf16>
    %54 = vector.shape_cast %53 : vector<2x8x8x4xbf16> to vector<128x4xbf16>
    %c5 = arith.constant 5 : index
    %c0_86 = arith.constant 0 : index
    %c0_87 = arith.constant 0 : index
    %55 = vector.load %arg2[%c5, %c0_86, %c0_87] : memref<9x4x8xbf16, #tpu.memory_space<vmem>>, vector<1x4x8xbf16>
    %56 = vector.shape_cast %55 : vector<1x4x8xbf16> to vector<4x8xbf16>
    %cst_88 = arith.constant dense<0.000000e+00> : vector<128x8xf32>
    %57 = tpu.matmul %54, %56, %cst_88 {dimension_numbers = #tpu.dot_dimension_numbers<[1], [0], [0], [1], [0, 0, 1, 1], [], []>} : vector<128x4xbf16>, vector<4x8xbf16>, vector<128x8xf32> -> vector<128x8xf32>
    %58 = arith.addf %51, %57 : vector<128x8xf32>
    %c0_89 = arith.constant 0 : index
    %c2_90 = arith.constant 2 : index
    %c0_91 = arith.constant 0 : index
    %c0_92 = arith.constant 0 : index
    %59 = vector.load %arg7[%c0_89, %c2_90, %c0_91, %c0_92] : memref<2x10x10x4xf32, #tpu.memory_space<vmem>>, vector<2x8x8x4xf32>
    %60 = arith.truncf %59 : vector<2x8x8x4xf32> to vector<2x8x8x4xbf16>
    %61 = vector.shape_cast %60 : vector<2x8x8x4xbf16> to vector<128x4xbf16>
    %c6 = arith.constant 6 : index
    %c0_93 = arith.constant 0 : index
    %c0_94 = arith.constant 0 : index
    %62 = vector.load %arg2[%c6, %c0_93, %c0_94] : memref<9x4x8xbf16, #tpu.memory_space<vmem>>, vector<1x4x8xbf16>
    %63 = vector.shape_cast %62 : vector<1x4x8xbf16> to vector<4x8xbf16>
    %cst_95 = arith.constant dense<0.000000e+00> : vector<128x8xf32>
    %64 = tpu.matmul %61, %63, %cst_95 {dimension_numbers = #tpu.dot_dimension_numbers<[1], [0], [0], [1], [0, 0, 1, 1], [], []>} : vector<128x4xbf16>, vector<4x8xbf16>, vector<128x8xf32> -> vector<128x8xf32>
    %65 = arith.addf %58, %64 : vector<128x8xf32>
    %c0_96 = arith.constant 0 : index
    %c2_97 = arith.constant 2 : index
    %c1_98 = arith.constant 1 : index
    %c0_99 = arith.constant 0 : index
    %66 = vector.load %arg7[%c0_96, %c2_97, %c1_98, %c0_99] : memref<2x10x10x4xf32, #tpu.memory_space<vmem>>, vector<2x8x8x4xf32>
    %67 = arith.truncf %66 : vector<2x8x8x4xf32> to vector<2x8x8x4xbf16>
    %68 = vector.shape_cast %67 : vector<2x8x8x4xbf16> to vector<128x4xbf16>
    %c7 = arith.constant 7 : index
    %c0_100 = arith.constant 0 : index
    %c0_101 = arith.constant 0 : index
    %69 = vector.load %arg2[%c7, %c0_100, %c0_101] : memref<9x4x8xbf16, #tpu.memory_space<vmem>>, vector<1x4x8xbf16>
    %70 = vector.shape_cast %69 : vector<1x4x8xbf16> to vector<4x8xbf16>
    %cst_102 = arith.constant dense<0.000000e+00> : vector<128x8xf32>
    %71 = tpu.matmul %68, %70, %cst_102 {dimension_numbers = #tpu.dot_dimension_numbers<[1], [0], [0], [1], [0, 0, 1, 1], [], []>} : vector<128x4xbf16>, vector<4x8xbf16>, vector<128x8xf32> -> vector<128x8xf32>
    %72 = arith.addf %65, %71 : vector<128x8xf32>
    %c0_103 = arith.constant 0 : index
    %c2_104 = arith.constant 2 : index
    %c2_105 = arith.constant 2 : index
    %c0_106 = arith.constant 0 : index
    %73 = vector.load %arg7[%c0_103, %c2_104, %c2_105, %c0_106] : memref<2x10x10x4xf32, #tpu.memory_space<vmem>>, vector<2x8x8x4xf32>
    %74 = arith.truncf %73 : vector<2x8x8x4xf32> to vector<2x8x8x4xbf16>
    %75 = vector.shape_cast %74 : vector<2x8x8x4xbf16> to vector<128x4xbf16>
    %c8 = arith.constant 8 : index
    %c0_107 = arith.constant 0 : index
    %c0_108 = arith.constant 0 : index
    %76 = vector.load %arg2[%c8, %c0_107, %c0_108] : memref<9x4x8xbf16, #tpu.memory_space<vmem>>, vector<1x4x8xbf16>
    %77 = vector.shape_cast %76 : vector<1x4x8xbf16> to vector<4x8xbf16>
    %cst_109 = arith.constant dense<0.000000e+00> : vector<128x8xf32>
    %78 = tpu.matmul %75, %77, %cst_109 {dimension_numbers = #tpu.dot_dimension_numbers<[1], [0], [0], [1], [0, 0, 1, 1], [], []>} : vector<128x4xbf16>, vector<4x8xbf16>, vector<128x8xf32> -> vector<128x8xf32>
    %79 = arith.addf %72, %78 : vector<128x8xf32>
    %c0_110 = arith.constant 0 : index
    %c0_111 = arith.constant 0 : index
    %80 = vector.load %arg3[%c0_110, %c0_111] : memref<1x8xf32, #tpu.memory_space<vmem>>, vector<1x8xf32>
    %81 = vector.broadcast %80 : vector<1x8xf32> to vector<128x8xf32>
    %82 = arith.addf %79, %81 : vector<128x8xf32>
    %cst_112 = arith.constant 0.000000e+00 : f32
    %83 = vector.broadcast %cst_112 : f32 to vector<128x8xf32>
    %84 = arith.maximumf %82, %83 : vector<128x8xf32>
    %85 = vector.shape_cast %84 : vector<128x8xf32> to vector<2x8x8x8xf32>
    %c0_113 = arith.constant 0 : index
    %c1_114 = arith.constant 1 : index
    %c1_115 = arith.constant 1 : index
    %c0_116 = arith.constant 0 : index
    %86 = vector.load %arg8[%c0_113, %c1_114, %c1_115, %c0_116] : memref<2x10x10x8xf32, #tpu.memory_space<vmem>>, vector<2x8x8x8xf32>
    tpu.vector_store %arg8[%c0_113, %c1_114, %c1_115, %c0_116], %85 {strides = array<i32>} : memref<2x10x10x8xf32, #tpu.memory_space<vmem>>, vector<2x8x8x8xf32>,
    %cst_117 = arith.constant 0.000000e+00 : f32
    %87 = vector.broadcast %cst_117 : f32 to vector<128x8xf32>
    %c0_118 = arith.constant 0 : index
    %c0_119 = arith.constant 0 : index
    %c0_120 = arith.constant 0 : index
    %c0_121 = arith.constant 0 : index
    %88 = vector.load %arg8[%c0_118, %c0_119, %c0_120, %c0_121] : memref<2x10x10x8xf32, #tpu.memory_space<vmem>>, vector<2x8x8x8xf32>
    %89 = arith.truncf %88 : vector<2x8x8x8xf32> to vector<2x8x8x8xbf16>
    %90 = vector.shape_cast %89 : vector<2x8x8x8xbf16> to vector<128x8xbf16>
    %c0_122 = arith.constant 0 : index
    %c0_123 = arith.constant 0 : index
    %c0_124 = arith.constant 0 : index
    %91 = vector.load %arg4[%c0_122, %c0_123, %c0_124] : memref<9x8x8xbf16, #tpu.memory_space<vmem>>, vector<1x8x8xbf16>
    %92 = vector.shape_cast %91 : vector<1x8x8xbf16> to vector<8x8xbf16>
    %cst_125 = arith.constant dense<0.000000e+00> : vector<128x8xf32>
    %93 = tpu.matmul %90, %92, %cst_125 {dimension_numbers = #tpu.dot_dimension_numbers<[1], [0], [0], [1], [0, 0, 1, 1], [], []>} : vector<128x8xbf16>, vector<8x8xbf16>, vector<128x8xf32> -> vector<128x8xf32>
    %94 = arith.addf %87, %93 : vector<128x8xf32>
    %c0_126 = arith.constant 0 : index
    %c0_127 = arith.constant 0 : index
    %c1_128 = arith.constant 1 : index
    %c0_129 = arith.constant 0 : index
    %95 = vector.load %arg8[%c0_126, %c0_127, %c1_128, %c0_129] : memref<2x10x10x8xf32, #tpu.memory_space<vmem>>, vector<2x8x8x8xf32>
    %96 = arith.truncf %95 : vector<2x8x8x8xf32> to vector<2x8x8x8xbf16>
    %97 = vector.shape_cast %96 : vector<2x8x8x8xbf16> to vector<128x8xbf16>
    %c1_130 = arith.constant 1 : index
    %c0_131 = arith.constant 0 : index
    %c0_132 = arith.constant 0 : index
    %98 = vector.load %arg4[%c1_130, %c0_131, %c0_132] : memref<9x8x8xbf16, #tpu.memory_space<vmem>>, vector<1x8x8xbf16>
    %99 = vector.shape_cast %98 : vector<1x8x8xbf16> to vector<8x8xbf16>
    %cst_133 = arith.constant dense<0.000000e+00> : vector<128x8xf32>
    %100 = tpu.matmul %97, %99, %cst_133 {dimension_numbers = #tpu.dot_dimension_numbers<[1], [0], [0], [1], [0, 0, 1, 1], [], []>} : vector<128x8xbf16>, vector<8x8xbf16>, vector<128x8xf32> -> vector<128x8xf32>
    %101 = arith.addf %94, %100 : vector<128x8xf32>
    %c0_134 = arith.constant 0 : index
    %c0_135 = arith.constant 0 : index
    %c2_136 = arith.constant 2 : index
    %c0_137 = arith.constant 0 : index
    %102 = vector.load %arg8[%c0_134, %c0_135, %c2_136, %c0_137] : memref<2x10x10x8xf32, #tpu.memory_space<vmem>>, vector<2x8x8x8xf32>
    %103 = arith.truncf %102 : vector<2x8x8x8xf32> to vector<2x8x8x8xbf16>
    %104 = vector.shape_cast %103 : vector<2x8x8x8xbf16> to vector<128x8xbf16>
    %c2_138 = arith.constant 2 : index
    %c0_139 = arith.constant 0 : index
    %c0_140 = arith.constant 0 : index
    %105 = vector.load %arg4[%c2_138, %c0_139, %c0_140] : memref<9x8x8xbf16, #tpu.memory_space<vmem>>, vector<1x8x8xbf16>
    %106 = vector.shape_cast %105 : vector<1x8x8xbf16> to vector<8x8xbf16>
    %cst_141 = arith.constant dense<0.000000e+00> : vector<128x8xf32>
    %107 = tpu.matmul %104, %106, %cst_141 {dimension_numbers = #tpu.dot_dimension_numbers<[1], [0], [0], [1], [0, 0, 1, 1], [], []>} : vector<128x8xbf16>, vector<8x8xbf16>, vector<128x8xf32> -> vector<128x8xf32>
    %108 = arith.addf %101, %107 : vector<128x8xf32>
    %c0_142 = arith.constant 0 : index
    %c1_143 = arith.constant 1 : index
    %c0_144 = arith.constant 0 : index
    %c0_145 = arith.constant 0 : index
    %109 = vector.load %arg8[%c0_142, %c1_143, %c0_144, %c0_145] : memref<2x10x10x8xf32, #tpu.memory_space<vmem>>, vector<2x8x8x8xf32>
    %110 = arith.truncf %109 : vector<2x8x8x8xf32> to vector<2x8x8x8xbf16>
    %111 = vector.shape_cast %110 : vector<2x8x8x8xbf16> to vector<128x8xbf16>
    %c3_146 = arith.constant 3 : index
    %c0_147 = arith.constant 0 : index
    %c0_148 = arith.constant 0 : index
    %112 = vector.load %arg4[%c3_146, %c0_147, %c0_148] : memref<9x8x8xbf16, #tpu.memory_space<vmem>>, vector<1x8x8xbf16>
    %113 = vector.shape_cast %112 : vector<1x8x8xbf16> to vector<8x8xbf16>
    %cst_149 = arith.constant dense<0.000000e+00> : vector<128x8xf32>
    %114 = tpu.matmul %111, %113, %cst_149 {dimension_numbers = #tpu.dot_dimension_numbers<[1], [0], [0], [1], [0, 0, 1, 1], [], []>} : vector<128x8xbf16>, vector<8x8xbf16>, vector<128x8xf32> -> vector<128x8xf32>
    %115 = arith.addf %108, %114 : vector<128x8xf32>
    %c0_150 = arith.constant 0 : index
    %c1_151 = arith.constant 1 : index
    %c1_152 = arith.constant 1 : index
    %c0_153 = arith.constant 0 : index
    %116 = vector.load %arg8[%c0_150, %c1_151, %c1_152, %c0_153] : memref<2x10x10x8xf32, #tpu.memory_space<vmem>>, vector<2x8x8x8xf32>
    %117 = arith.truncf %116 : vector<2x8x8x8xf32> to vector<2x8x8x8xbf16>
    %118 = vector.shape_cast %117 : vector<2x8x8x8xbf16> to vector<128x8xbf16>
    %c4_154 = arith.constant 4 : index
    %c0_155 = arith.constant 0 : index
    %c0_156 = arith.constant 0 : index
    %119 = vector.load %arg4[%c4_154, %c0_155, %c0_156] : memref<9x8x8xbf16, #tpu.memory_space<vmem>>, vector<1x8x8xbf16>
    %120 = vector.shape_cast %119 : vector<1x8x8xbf16> to vector<8x8xbf16>
    %cst_157 = arith.constant dense<0.000000e+00> : vector<128x8xf32>
    %121 = tpu.matmul %118, %120, %cst_157 {dimension_numbers = #tpu.dot_dimension_numbers<[1], [0], [0], [1], [0, 0, 1, 1], [], []>} : vector<128x8xbf16>, vector<8x8xbf16>, vector<128x8xf32> -> vector<128x8xf32>
    %122 = arith.addf %115, %121 : vector<128x8xf32>
    %c0_158 = arith.constant 0 : index
    %c1_159 = arith.constant 1 : index
    %c2_160 = arith.constant 2 : index
    %c0_161 = arith.constant 0 : index
    %123 = vector.load %arg8[%c0_158, %c1_159, %c2_160, %c0_161] : memref<2x10x10x8xf32, #tpu.memory_space<vmem>>, vector<2x8x8x8xf32>
    %124 = arith.truncf %123 : vector<2x8x8x8xf32> to vector<2x8x8x8xbf16>
    %125 = vector.shape_cast %124 : vector<2x8x8x8xbf16> to vector<128x8xbf16>
    %c5_162 = arith.constant 5 : index
    %c0_163 = arith.constant 0 : index
    %c0_164 = arith.constant 0 : index
    %126 = vector.load %arg4[%c5_162, %c0_163, %c0_164] : memref<9x8x8xbf16, #tpu.memory_space<vmem>>, vector<1x8x8xbf16>
    %127 = vector.shape_cast %126 : vector<1x8x8xbf16> to vector<8x8xbf16>
    %cst_165 = arith.constant dense<0.000000e+00> : vector<128x8xf32>
    %128 = tpu.matmul %125, %127, %cst_165 {dimension_numbers = #tpu.dot_dimension_numbers<[1], [0], [0], [1], [0, 0, 1, 1], [], []>} : vector<128x8xbf16>, vector<8x8xbf16>, vector<128x8xf32> -> vector<128x8xf32>
    %129 = arith.addf %122, %128 : vector<128x8xf32>
    %c0_166 = arith.constant 0 : index
    %c2_167 = arith.constant 2 : index
    %c0_168 = arith.constant 0 : index
    %c0_169 = arith.constant 0 : index
    %130 = vector.load %arg8[%c0_166, %c2_167, %c0_168, %c0_169] : memref<2x10x10x8xf32, #tpu.memory_space<vmem>>, vector<2x8x8x8xf32>
    %131 = arith.truncf %130 : vector<2x8x8x8xf32> to vector<2x8x8x8xbf16>
    %132 = vector.shape_cast %131 : vector<2x8x8x8xbf16> to vector<128x8xbf16>
    %c6_170 = arith.constant 6 : index
    %c0_171 = arith.constant 0 : index
    %c0_172 = arith.constant 0 : index
    %133 = vector.load %arg4[%c6_170, %c0_171, %c0_172] : memref<9x8x8xbf16, #tpu.memory_space<vmem>>, vector<1x8x8xbf16>
    %134 = vector.shape_cast %133 : vector<1x8x8xbf16> to vector<8x8xbf16>
    %cst_173 = arith.constant dense<0.000000e+00> : vector<128x8xf32>
    %135 = tpu.matmul %132, %134, %cst_173 {dimension_numbers = #tpu.dot_dimension_numbers<[1], [0], [0], [1], [0, 0, 1, 1], [], []>} : vector<128x8xbf16>, vector<8x8xbf16>, vector<128x8xf32> -> vector<128x8xf32>
    %136 = arith.addf %129, %135 : vector<128x8xf32>
    %c0_174 = arith.constant 0 : index
    %c2_175 = arith.constant 2 : index
    %c1_176 = arith.constant 1 : index
    %c0_177 = arith.constant 0 : index
    %137 = vector.load %arg8[%c0_174, %c2_175, %c1_176, %c0_177] : memref<2x10x10x8xf32, #tpu.memory_space<vmem>>, vector<2x8x8x8xf32>
    %138 = arith.truncf %137 : vector<2x8x8x8xf32> to vector<2x8x8x8xbf16>
    %139 = vector.shape_cast %138 : vector<2x8x8x8xbf16> to vector<128x8xbf16>
    %c7_178 = arith.constant 7 : index
    %c0_179 = arith.constant 0 : index
    %c0_180 = arith.constant 0 : index
    %140 = vector.load %arg4[%c7_178, %c0_179, %c0_180] : memref<9x8x8xbf16, #tpu.memory_space<vmem>>, vector<1x8x8xbf16>
    %141 = vector.shape_cast %140 : vector<1x8x8xbf16> to vector<8x8xbf16>
    %cst_181 = arith.constant dense<0.000000e+00> : vector<128x8xf32>
    %142 = tpu.matmul %139, %141, %cst_181 {dimension_numbers = #tpu.dot_dimension_numbers<[1], [0], [0], [1], [0, 0, 1, 1], [], []>} : vector<128x8xbf16>, vector<8x8xbf16>, vector<128x8xf32> -> vector<128x8xf32>
    %143 = arith.addf %136, %142 : vector<128x8xf32>
    %c0_182 = arith.constant 0 : index
    %c2_183 = arith.constant 2 : index
    %c2_184 = arith.constant 2 : index
    %c0_185 = arith.constant 0 : index
    %144 = vector.load %arg8[%c0_182, %c2_183, %c2_184, %c0_185] : memref<2x10x10x8xf32, #tpu.memory_space<vmem>>, vector<2x8x8x8xf32>
    %145 = arith.truncf %144 : vector<2x8x8x8xf32> to vector<2x8x8x8xbf16>
    %146 = vector.shape_cast %145 : vector<2x8x8x8xbf16> to vector<128x8xbf16>
    %c8_186 = arith.constant 8 : index
    %c0_187 = arith.constant 0 : index
    %c0_188 = arith.constant 0 : index
    %147 = vector.load %arg4[%c8_186, %c0_187, %c0_188] : memref<9x8x8xbf16, #tpu.memory_space<vmem>>, vector<1x8x8xbf16>
    %148 = vector.shape_cast %147 : vector<1x8x8xbf16> to vector<8x8xbf16>
    %cst_189 = arith.constant dense<0.000000e+00> : vector<128x8xf32>
    %149 = tpu.matmul %146, %148, %cst_189 {dimension_numbers = #tpu.dot_dimension_numbers<[1], [0], [0], [1], [0, 0, 1, 1], [], []>} : vector<128x8xbf16>, vector<8x8xbf16>, vector<128x8xf32> -> vector<128x8xf32>
    %150 = arith.addf %143, %149 : vector<128x8xf32>
    %c0_190 = arith.constant 0 : index
    %c0_191 = arith.constant 0 : index
    %151 = vector.load %arg5[%c0_190, %c0_191] : memref<1x8xf32, #tpu.memory_space<vmem>>, vector<1x8xf32>
    %152 = vector.broadcast %151 : vector<1x8xf32> to vector<128x8xf32>
    %153 = arith.addf %150, %152 : vector<128x8xf32>
    %cst_192 = arith.constant 0.000000e+00 : f32
    %154 = vector.broadcast %cst_192 : f32 to vector<128x8xf32>
    %155 = arith.maximumf %153, %154 : vector<128x8xf32>
    %c0_193 = arith.constant 0 : index
    %c0_194 = arith.constant 0 : index
    %156 = vector.load %arg6[%c0_193, %c0_194] : memref<128x8xf32, #tpu.memory_space<vmem>>, vector<128x8xf32>
    tpu.vector_store %arg6[%c0_193, %c0_194], %155 {strides = array<i32>} : memref<128x8xf32, #tpu.memory_space<vmem>>, vector<128x8xf32>,
    return
  }
  func.func @transform_0(%arg0: i32) -> (i32, i32, i32, i32, i32, i32) {
    %c0_i32 = arith.constant 0 : i32
    %c0_i32_0 = arith.constant 0 : i32
    %c0_i32_1 = arith.constant 0 : i32
    %c0_i32_2 = arith.constant 0 : i32
    %c0_i32_3 = arith.constant 0 : i32
    %c0_i32_4 = arith.constant 0 : i32
    return %arg0, %c0_i32, %c0_i32_0, %c0_i32_1, %c0_i32_2, %c0_i32_3 : i32, i32, i32, i32, i32, i32
  }
  func.func @transform_1(%arg0: i32) -> (i32, i32, i32) {
    %c0_i32 = arith.constant 0 : i32
    %c0_i32_0 = arith.constant 0 : i32
    %c0_i32_1 = arith.constant 0 : i32
    %c0_i32_2 = arith.constant 0 : i32
    return %c0_i32, %c0_i32_0, %c0_i32_1 : i32, i32, i32
  }
  func.func @transform_2(%arg0: i32) -> (i32, i32) {
    %c0_i32 = arith.constant 0 : i32
    %c0_i32_0 = arith.constant 0 : i32
    %c0_i32_1 = arith.constant 0 : i32
    return %c0_i32, %c0_i32_0 : i32, i32
  }
  func.func @transform_3(%arg0: i32) -> (i32, i32, i32) {
    %c0_i32 = arith.constant 0 : i32
    %c0_i32_0 = arith.constant 0 : i32
    %c0_i32_1 = arith.constant 0 : i32
    %c0_i32_2 = arith.constant 0 : i32
    return %c0_i32, %c0_i32_0, %c0_i32_1 : i32, i32, i32
  }
  func.func @transform_4(%arg0: i32) -> (i32, i32) {
    %c0_i32 = arith.constant 0 : i32
    %c0_i32_0 = arith.constant 0 : i32
    %c0_i32_1 = arith.constant 0 : i32
    return %c0_i32, %c0_i32_0 : i32, i32
  }
  func.func @transform_5(%arg0: i32) -> (i32, i32) {
    %c0_i32 = arith.constant 0 : i32
    %c0_i32_0 = arith.constant 0 : i32
    return %arg0, %c0_i32 : i32, i32
  }
}

</mosaic_0001>

<llo_original>
// kernel: down_forward.1
$region0: #{down_forward.1}
  #allocation0 [shape = 'u32[]', space=smem, size = 0x4, offset = 0x4, fixed_abs, tag = 'smem constant byte address 0x4 - core index']
  #allocation1 [shape = 'u32[144,128]{1,0:T(1,128)}', space=vmem, size = 0x12000, scoped, tag = 'internal scratch']
  #allocation2 [shape = 'f32[2,10,10,4]{3,2,1,0:T(8,128)}', space=vmem, size = 0x28000, scoped, tag = 'scratch operand']
  #allocation3 [shape = 'f32[2,10,10,8]{3,2,1,0:T(8,128)}', space=vmem, size = 0x28000, scoped, tag = 'scratch operand']
  %s0 = inlined_call_operand.vmem [shape: f32[2,8,2,8,2,4], index: 0, kind: input, shape index: {}]
  %s1 = inlined_call_operand.vmem [shape: bf16[9,4,8], index: 1, kind: input, shape index: {}]
  %s2 = inlined_call_operand.vmem [shape: f32[1,8], index: 2, kind: input, shape index: {}]
  %s3 = inlined_call_operand.vmem [shape: bf16[9,8,8], index: 3, kind: input, shape index: {}]
  %s4 = inlined_call_operand.vmem [shape: f32[1,8], index: 4, kind: input, shape index: {}]
  %s5 = inlined_call_operand.vmem [shape: f32[128,8], index: 5, kind: output, shape index: {}]
  %s6 = sld [smem:[#allocation0]]
  $region30: #{down_forward.1} parent=0
    _
  %s8 = ssub.s32 1, %s6
  %s9 = scalar_select 0, %s8, %s6
  // Predicated region
  $region2: #{down_forward.1} parent=0 // pred_check
    _
  $region3: #{down_forward.1} parent=0 // pred_check_branch
    %11 = sbr.rel (0) target = $region5
  $region4: #{down_forward.1} parent=0 // pred_region
    _
  $region5: #{down_forward.1} parent=0 // pred_fallthru
    _
  // Predicated region
  $region6: #{down_forward.1} parent=0 // pred_check
    _
  $region7: #{down_forward.1} parent=0 // pred_check_branch
    %13 = sbr.rel (0) target = $region9
  $region8: #{down_forward.1} parent=0 // pred_region
    _
  $region9: #{down_forward.1} parent=0 // pred_fallthru
    _
  // Predicated region
  $region10: #{down_forward.1} parent=0 // pred_check
    _
  $region11: #{down_forward.1} parent=0 // pred_check_branch
    %15 = sbr.rel (0) target = $region13
  $region12: #{down_forward.1} parent=0 // pred_region
    _
  $region13: #{down_forward.1} parent=0 // pred_fallthru
    _
  // Predicated region
  $region14: #{down_forward.1} parent=0 // pred_check
    _
  $region15: #{down_forward.1} parent=0 // pred_check_branch
    %17 = sbr.rel (0) target = $region17
  $region16: #{down_forward.1} parent=0 // pred_region
    _
  $region17: #{down_forward.1} parent=0 // pred_fallthru
    _
  // Predicated region
  $region18: #{down_forward.1} parent=0 // pred_check
    _
  $region19: #{down_forward.1} parent=0 // pred_check_branch
    %19 = sbr.rel (0) target = $region21
  $region20: #{down_forward.1} parent=0 // pred_region
    _
  $region21: #{down_forward.1} parent=0 // pred_fallthru
    _
  %vm21 = vcmask 31744
  %22 = vst.msk [vmem:[#allocation2] sm:$0xff] %vm21, 0.0
  %vm23 = vcmask 25600
  %24 = vst.msk [vmem:[#allocation2 + $0x8] sm:$0x3] %vm23, 0.0
  %25 = vst.msk [vmem:[#allocation2 + $0xa0] sm:$0xff] %vm21, 0.0
  %26 = vst.msk [vmem:[#allocation2 + $0xa8] sm:$0x3] %vm23, 0.0
  %s27 = scalar_lea.vmem [#allocation2], 144
  %28 = vst.msk [vmem:[%s27] sm:$0xff] %vm21, 0.0
  %29 = vst.msk [vmem:[%s27 + $0x8] sm:$0x3] %vm23, 0.0
  %30 = vst.msk [vmem:[%s27 + $0xa0] sm:$0xff] %vm21, 0.0
  %31 = vst.msk [vmem:[%s27 + $0xa8] sm:$0x3] %vm23, 0.0
  %vm32 = vcmask 24576
  %33 = vst.msk [vmem:[#allocation2] sm:$0x1] %vm32, 0.0
  %34 = vst.msk [vmem:[#allocation2 + $0x10] sm:$0x1] %vm32, 0.0
  %35 = vst.msk [vmem:[#allocation2 + $0x20] sm:$0x1] %vm32, 0.0
  %36 = vst.msk [vmem:[#allocation2 + $0x30] sm:$0x1] %vm32, 0.0
  %37 = vst.msk [vmem:[#allocation2 + $0x40] sm:$0x1] %vm32, 0.0
  %38 = vst.msk [vmem:[#allocation2 + $0x50] sm:$0x1] %vm32, 0.0
  %39 = vst.msk [vmem:[#allocation2 + $0x60] sm:$0x1] %vm32, 0.0
  %40 = vst.msk [vmem:[#allocation2 + $0x70] sm:$0x1] %vm32, 0.0
  %41 = vst.msk [vmem:[#allocation2 + $0x80] sm:$0x1] %vm32, 0.0
  %42 = vst.msk [vmem:[#allocation2 + $0x90] sm:$0x1] %vm32, 0.0
  %43 = vst.msk [vmem:[#allocation2 + $0xa0] sm:$0x1] %vm32, 0.0
  %44 = vst.msk [vmem:[#allocation2 + $0xb0] sm:$0x1] %vm32, 0.0
  %45 = vst.msk [vmem:[#allocation2 + $0xc0] sm:$0x1] %vm32, 0.0
  %46 = vst.msk [vmem:[#allocation2 + $0xd0] sm:$0x1] %vm32, 0.0
  %47 = vst.msk [vmem:[#allocation2 + $0xe0] sm:$0x1] %vm32, 0.0
  %48 = vst.msk [vmem:[#allocation2 + $0xf0] sm:$0x1] %vm32, 0.0
  %49 = vst.msk [vmem:[#allocation2 + $0x100] sm:$0x1] %vm32, 0.0
  %50 = vst.msk [vmem:[#allocation2 + $0x110] sm:$0x1] %vm32, 0.0
  %51 = vst.msk [vmem:[#allocation2 + $0x120] sm:$0x1] %vm32, 0.0
  %52 = vst.msk [vmem:[#allocation2 + $0x130] sm:$0x1] %vm32, 0.0
  %53 = vst.msk [vmem:[#allocation2 + $0x9] sm:$0x1] %vm32, 0.0
  %54 = vst.msk [vmem:[#allocation2 + $0x19] sm:$0x1] %vm32, 0.0
  %55 = vst.msk [vmem:[#allocation2 + $0x29] sm:$0x1] %vm32, 0.0
  %56 = vst.msk [vmem:[#allocation2 + $0x39] sm:$0x1] %vm32, 0.0
  %57 = vst.msk [vmem:[#allocation2 + $0x49] sm:$0x1] %vm32, 0.0
  %58 = vst.msk [vmem:[#allocation2 + $0x59] sm:$0x1] %vm32, 0.0
  %59 = vst.msk [vmem:[#allocation2 + $0x69] sm:$0x1] %vm32, 0.0
  %60 = vst.msk [vmem:[#allocation2 + $0x79] sm:$0x1] %vm32, 0.0
  %61 = vst.msk [vmem:[#allocation2 + $0x89] sm:$0x1] %vm32, 0.0
  %62 = vst.msk [vmem:[#allocation2 + $0x99] sm:$0x1] %vm32, 0.0
  %63 = vst.msk [vmem:[#allocation2 + $0xa9] sm:$0x1] %vm32, 0.0
  %64 = vst.msk [vmem:[#allocation2 + $0xb9] sm:$0x1] %vm32, 0.0
  %65 = vst.msk [vmem:[#allocation2 + $0xc9] sm:$0x1] %vm32, 0.0
  %66 = vst.msk [vmem:[#allocation2 + $0xd9] sm:$0x1] %vm32, 0.0
  %67 = vst.msk [vmem:[#allocation2 + $0xe9] sm:$0x1] %vm32, 0.0
  %68 = vst.msk [vmem:[#allocation2 + $0xf9] sm:$0x1] %vm32, 0.0
  %69 = vst.msk [vmem:[#allocation2 + $0x109] sm:$0x1] %vm32, 0.0
  %70 = vst.msk [vmem:[#allocation2 + $0x119] sm:$0x1] %vm32, 0.0
  %71 = vst.msk [vmem:[#allocation2 + $0x129] sm:$0x1] %vm32, 0.0
  %72 = vst.msk [vmem:[#allocation2 + $0x139] sm:$0x1] %vm32, 0.0
  %vm73 = vcmask 64512
  %74 = vst.msk [vmem:[#allocation3] sm:$0xff] %vm73, 0.0
  %vm75 = vcmask 58368
  %76 = vst.msk [vmem:[#allocation3 + $0x8] sm:$0x3] %vm75, 0.0
  %77 = vst.msk [vmem:[#allocation3 + $0xa0] sm:$0xff] %vm73, 0.0
  %78 = vst.msk [vmem:[#allocation3 + $0xa8] sm:$0x3] %vm75, 0.0
  %s79 = scalar_lea.vmem [#allocation3], 144
  %80 = vst.msk [vmem:[%s79] sm:$0xff] %vm73, 0.0
  %81 = vst.msk [vmem:[%s79 + $0x8] sm:$0x3] %vm75, 0.0
  %82 = vst.msk [vmem:[%s79 + $0xa0] sm:$0xff] %vm73, 0.0
  %83 = vst.msk [vmem:[%s79 + $0xa8] sm:$0x3] %vm75, 0.0
  %vm84 = vcmask 57344
  %85 = vst.msk [vmem:[#allocation3] sm:$0x1] %vm84, 0.0
  %86 = vst.msk [vmem:[#allocation3 + $0x10] sm:$0x1] %vm84, 0.0
  %87 = vst.msk [vmem:[#allocation3 + $0x20] sm:$0x1] %vm84, 0.0
  %88 = vst.msk [vmem:[#allocation3 + $0x30] sm:$0x1] %vm84, 0.0
  %89 = vst.msk [vmem:[#allocation3 + $0x40] sm:$0x1] %vm84, 0.0
  %90 = vst.msk [vmem:[#allocation3 + $0x50] sm:$0x1] %vm84, 0.0
  %91 = vst.msk [vmem:[#allocation3 + $0x60] sm:$0x1] %vm84, 0.0
  %92 = vst.msk [vmem:[#allocation3 + $0x70] sm:$0x1] %vm84, 0.0
  %93 = vst.msk [vmem:[#allocation3 + $0x80] sm:$0x1] %vm84, 0.0
  %94 = vst.msk [vmem:[#allocation3 + $0x90] sm:$0x1] %vm84, 0.0
  %95 = vst.msk [vmem:[#allocation3 + $0xa0] sm:$0x1] %vm84, 0.0
  %96 = vst.msk [vmem:[#allocation3 + $0xb0] sm:$0x1] %vm84, 0.0
  %97 = vst.msk [vmem:[#allocation3 + $0xc0] sm:$0x1] %vm84, 0.0
  %98 = vst.msk [vmem:[#allocation3 + $0xd0] sm:$0x1] %vm84, 0.0
  %99 = vst.msk [vmem:[#allocation3 + $0xe0] sm:$0x1] %vm84, 0.0
  %100 = vst.msk [vmem:[#allocation3 + $0xf0] sm:$0x1] %vm84, 0.0
  %101 = vst.msk [vmem:[#allocation3 + $0x100] sm:$0x1] %vm84, 0.0
  %102 = vst.msk [vmem:[#allocation3 + $0x110] sm:$0x1] %vm84, 0.0
  %103 = vst.msk [vmem:[#allocation3 + $0x120] sm:$0x1] %vm84, 0.0
  %104 = vst.msk [vmem:[#allocation3 + $0x130] sm:$0x1] %vm84, 0.0
  %105 = vst.msk [vmem:[#allocation3 + $0x9] sm:$0x1] %vm84, 0.0
  %106 = vst.msk [vmem:[#allocation3 + $0x19] sm:$0x1] %vm84, 0.0
  %107 = vst.msk [vmem:[#allocation3 + $0x29] sm:$0x1] %vm84, 0.0
  %108 = vst.msk [vmem:[#allocation3 + $0x39] sm:$0x1] %vm84, 0.0
  %109 = vst.msk [vmem:[#allocation3 + $0x49] sm:$0x1] %vm84, 0.0
  %110 = vst.msk [vmem:[#allocation3 + $0x59] sm:$0x1] %vm84, 0.0
  %111 = vst.msk [vmem:[#allocation3 + $0x69] sm:$0x1] %vm84, 0.0
  %112 = vst.msk [vmem:[#allocation3 + $0x79] sm:$0x1] %vm84, 0.0
  %113 = vst.msk [vmem:[#allocation3 + $0x89] sm:$0x1] %vm84, 0.0
  %114 = vst.msk [vmem:[#allocation3 + $0x99] sm:$0x1] %vm84, 0.0
  %115 = vst.msk [vmem:[#allocation3 + $0xa9] sm:$0x1] %vm84, 0.0
  %116 = vst.msk [vmem:[#allocation3 + $0xb9] sm:$0x1] %vm84, 0.0
  %117 = vst.msk [vmem:[#allocation3 + $0xc9] sm:$0x1] %vm84, 0.0
  %118 = vst.msk [vmem:[#allocation3 + $0xd9] sm:$0x1] %vm84, 0.0
  %119 = vst.msk [vmem:[#allocation3 + $0xe9] sm:$0x1] %vm84, 0.0
  %120 = vst.msk [vmem:[#allocation3 + $0xf9] sm:$0x1] %vm84, 0.0
  %121 = vst.msk [vmem:[#allocation3 + $0x109] sm:$0x1] %vm84, 0.0
  %122 = vst.msk [vmem:[#allocation3 + $0x119] sm:$0x1] %vm84, 0.0
  %123 = vst.msk [vmem:[#allocation3 + $0x129] sm:$0x1] %vm84, 0.0
  %124 = vst.msk [vmem:[#allocation3 + $0x139] sm:$0x1] %vm84, 0.0
  %v125 = vld [vmem:[%s0] sm:$0x3]
  %v126 = vld [vmem:[%s0 + $0x2] sm:$0x3]
  %v127 = vld [vmem:[%s0 + $0x4] sm:$0x3]
  %v128 = vld [vmem:[%s0 + $0x6] sm:$0x3]
  %v129 = vld [vmem:[%s0 + $0x8] sm:$0x3]
  %v130 = vld [vmem:[%s0 + $0xa] sm:$0x3]
  %v131 = vld [vmem:[%s0 + $0xc] sm:$0x3]
  %v132 = vld [vmem:[%s0 + $0xe] sm:$0x3]
  %v133 = vld [vmem:[%s0 + $0x10] sm:$0x3]
  %v134 = vld [vmem:[%s0 + $0x12] sm:$0x3]
  %v135 = vld [vmem:[%s0 + $0x14] sm:$0x3]
  %v136 = vld [vmem:[%s0 + $0x16] sm:$0x3]
  %v137 = vld [vmem:[%s0 + $0x18] sm:$0x3]
  %v138 = vld [vmem:[%s0 + $0x1a] sm:$0x3]
  %v139 = vld [vmem:[%s0 + $0x1c] sm:$0x3]
  %v140 = vld [vmem:[%s0 + $0x1e] sm:$0x3]
  %v141 = vld [vmem:[%s0 + $0x20] sm:$0x3]
  %v142 = vld [vmem:[%s0 + $0x22] sm:$0x3]
  %v143 = vld [vmem:[%s0 + $0x24] sm:$0x3]
  %v144 = vld [vmem:[%s0 + $0x26] sm:$0x3]
  %v145 = vld [vmem:[%s0 + $0x28] sm:$0x3]
  %v146 = vld [vmem:[%s0 + $0x2a] sm:$0x3]
  %v147 = vld [vmem:[%s0 + $0x2c] sm:$0x3]
  %v148 = vld [vmem:[%s0 + $0x2e] sm:$0x3]
  %v149 = vld [vmem:[%s0 + $0x30] sm:$0x3]
  %v150 = vld [vmem:[%s0 + $0x32] sm:$0x3]
  %v151 = vld [vmem:[%s0 + $0x34] sm:$0x3]
  %v152 = vld [vmem:[%s0 + $0x36] sm:$0x3]
  %v153 = vld [vmem:[%s0 + $0x38] sm:$0x3]
  %v154 = vld [vmem:[%s0 + $0x3a] sm:$0x3]
  %v155 = vld [vmem:[%s0 + $0x3c] sm:$0x3]
  %v156 = vld [vmem:[%s0 + $0x3e] sm:$0x3]
  %v157 = vld [vmem:[%s0 + $0x40] sm:$0x3]
  %v158 = vld [vmem:[%s0 + $0x42] sm:$0x3]
  %v159 = vld [vmem:[%s0 + $0x44] sm:$0x3]
  %v160 = vld [vmem:[%s0 + $0x46] sm:$0x3]
  %v161 = vld [vmem:[%s0 + $0x48] sm:$0x3]
  %v162 = vld [vmem:[%s0 + $0x4a] sm:$0x3]
  %v163 = vld [vmem:[%s0 + $0x4c] sm:$0x3]
  %v164 = vld [vmem:[%s0 + $0x4e] sm:$0x3]
  %v165 = vld [vmem:[%s0 + $0x50] sm:$0x3]
  %v166 = vld [vmem:[%s0 + $0x52] sm:$0x3]
  %v167 = vld [vmem:[%s0 + $0x54] sm:$0x3]
  %v168 = vld [vmem:[%s0 + $0x56] sm:$0x3]
  %v169 = vld [vmem:[%s0 + $0x58] sm:$0x3]
  %v170 = vld [vmem:[%s0 + $0x5a] sm:$0x3]
  %v171 = vld [vmem:[%s0 + $0x5c] sm:$0x3]
  %v172 = vld [vmem:[%s0 + $0x5e] sm:$0x3]
  %v173 = vld [vmem:[%s0 + $0x60] sm:$0x3]
  %v174 = vld [vmem:[%s0 + $0x62] sm:$0x3]
  %v175 = vld [vmem:[%s0 + $0x64] sm:$0x3]
  %v176 = vld [vmem:[%s0 + $0x66] sm:$0x3]
  %v177 = vld [vmem:[%s0 + $0x68] sm:$0x3]
  %v178 = vld [vmem:[%s0 + $0x6a] sm:$0x3]
  %v179 = vld [vmem:[%s0 + $0x6c] sm:$0x3]
  %v180 = vld [vmem:[%s0 + $0x6e] sm:$0x3]
  %v181 = vld [vmem:[%s0 + $0x70] sm:$0x3]
  %v182 = vld [vmem:[%s0 + $0x72] sm:$0x3]
  %v183 = vld [vmem:[%s0 + $0x74] sm:$0x3]
  %v184 = vld [vmem:[%s0 + $0x76] sm:$0x3]
  %v185 = vld [vmem:[%s0 + $0x78] sm:$0x3]
  %v186 = vld [vmem:[%s0 + $0x7a] sm:$0x3]
  %v187 = vld [vmem:[%s0 + $0x7c] sm:$0x3]
  %v188 = vld [vmem:[%s0 + $0x7e] sm:$0x3]
  %v189 = vld [vmem:[%s0 + $0x80] sm:$0x3]
  %v190 = vld [vmem:[%s0 + $0x82] sm:$0x3]
  %v191 = vld [vmem:[%s0 + $0x84] sm:$0x3]
  %v192 = vld [vmem:[%s0 + $0x86] sm:$0x3]
  %v193 = vld [vmem:[%s0 + $0x88] sm:$0x3]
  %v194 = vld [vmem:[%s0 + $0x8a] sm:$0x3]
  %v195 = vld [vmem:[%s0 + $0x8c] sm:$0x3]
  %v196 = vld [vmem:[%s0 + $0x8e] sm:$0x3]
  %v197 = vld [vmem:[%s0 + $0x90] sm:$0x3]
  %v198 = vld [vmem:[%s0 + $0x92] sm:$0x3]
  %v199 = vld [vmem:[%s0 + $0x94] sm:$0x3]
  %v200 = vld [vmem:[%s0 + $0x96] sm:$0x3]
  %v201 = vld [vmem:[%s0 + $0x98] sm:$0x3]
  %v202 = vld [vmem:[%s0 + $0x9a] sm:$0x3]
  %v203 = vld [vmem:[%s0 + $0x9c] sm:$0x3]
  %v204 = vld [vmem:[%s0 + $0x9e] sm:$0x3]
  %v205 = vld [vmem:[%s0 + $0xa0] sm:$0x3]
  %v206 = vld [vmem:[%s0 + $0xa2] sm:$0x3]
  %v207 = vld [vmem:[%s0 + $0xa4] sm:$0x3]
  %v208 = vld [vmem:[%s0 + $0xa6] sm:$0x3]
  %v209 = vld [vmem:[%s0 + $0xa8] sm:$0x3]
  %v210 = vld [vmem:[%s0 + $0xaa] sm:$0x3]
  %v211 = vld [vmem:[%s0 + $0xac] sm:$0x3]
  %v212 = vld [vmem:[%s0 + $0xae] sm:$0x3]
  %v213 = vld [vmem:[%s0 + $0xb0] sm:$0x3]
  %v214 = vld [vmem:[%s0 + $0xb2] sm:$0x3]
  %v215 = vld [vmem:[%s0 + $0xb4] sm:$0x3]
  %v216 = vld [vmem:[%s0 + $0xb6] sm:$0x3]
  %v217 = vld [vmem:[%s0 + $0xb8] sm:$0x3]
  %v218 = vld [vmem:[%s0 + $0xba] sm:$0x3]
  %v219 = vld [vmem:[%s0 + $0xbc] sm:$0x3]
  %v220 = vld [vmem:[%s0 + $0xbe] sm:$0x3]
  %v221 = vld [vmem:[%s0 + $0xc0] sm:$0x3]
  %v222 = vld [vmem:[%s0 + $0xc2] sm:$0x3]
  %v223 = vld [vmem:[%s0 + $0xc4] sm:$0x3]
  %v224 = vld [vmem:[%s0 + $0xc6] sm:$0x3]
  %v225 = vld [vmem:[%s0 + $0xc8] sm:$0x3]
  %v226 = vld [vmem:[%s0 + $0xca] sm:$0x3]
  %v227 = vld [vmem:[%s0 + $0xcc] sm:$0x3]
  %v228 = vld [vmem:[%s0 + $0xce] sm:$0x3]
  %v229 = vld [vmem:[%s0 + $0xd0] sm:$0x3]
  %v230 = vld [vmem:[%s0 + $0xd2] sm:$0x3]
  %v231 = vld [vmem:[%s0 + $0xd4] sm:$0x3]
  %v232 = vld [vmem:[%s0 + $0xd6] sm:$0x3]
  %v233 = vld [vmem:[%s0 + $0xd8] sm:$0x3]
  %v234 = vld [vmem:[%s0 + $0xda] sm:$0x3]
  %v235 = vld [vmem:[%s0 + $0xdc] sm:$0x3]
  %v236 = vld [vmem:[%s0 + $0xde] sm:$0x3]
  %v237 = vld [vmem:[%s0 + $0xe0] sm:$0x3]
  %v238 = vld [vmem:[%s0 + $0xe2] sm:$0x3]
  %v239 = vld [vmem:[%s0 + $0xe4] sm:$0x3]
  %v240 = vld [vmem:[%s0 + $0xe6] sm:$0x3]
  %v241 = vld [vmem:[%s0 + $0xe8] sm:$0x3]
  %v242 = vld [vmem:[%s0 + $0xea] sm:$0x3]
  %v243 = vld [vmem:[%s0 + $0xec] sm:$0x3]
  %v244 = vld [vmem:[%s0 + $0xee] sm:$0x3]
  %v245 = vld [vmem:[%s0 + $0xf0] sm:$0x3]
  %v246 = vld [vmem:[%s0 + $0xf2] sm:$0x3]
  %v247 = vld [vmem:[%s0 + $0xf4] sm:$0x3]
  %v248 = vld [vmem:[%s0 + $0xf6] sm:$0x3]
  %v249 = vld [vmem:[%s0 + $0xf8] sm:$0x3]
  %v250 = vld [vmem:[%s0 + $0xfa] sm:$0x3]
  %v251 = vld [vmem:[%s0 + $0xfc] sm:$0x3]
  %v252 = vld [vmem:[%s0 + $0xfe] sm:$0x3]
  %v253 = vld [vmem:[%s0 + $0x100] sm:$0x3]
  %v254 = vld [vmem:[%s0 + $0x102] sm:$0x3]
  %v255 = vld [vmem:[%s0 + $0x104] sm:$0x3]
  %v256 = vld [vmem:[%s0 + $0x106] sm:$0x3]
  %v257 = vld [vmem:[%s0 + $0x108] sm:$0x3]
  %v258 = vld [vmem:[%s0 + $0x10a] sm:$0x3]
  %v259 = vld [vmem:[%s0 + $0x10c] sm:$0x3]
  %v260 = vld [vmem:[%s0 + $0x10e] sm:$0x3]
  %v261 = vld [vmem:[%s0 + $0x110] sm:$0x3]
  %v262 = vld [vmem:[%s0 + $0x112] sm:$0x3]
  %v263 = vld [vmem:[%s0 + $0x114] sm:$0x3]
  %v264 = vld [vmem:[%s0 + $0x116] sm:$0x3]
  %v265 = vld [vmem:[%s0 + $0x118] sm:$0x3]
  %v266 = vld [vmem:[%s0 + $0x11a] sm:$0x3]
  %v267 = vld [vmem:[%s0 + $0x11c] sm:$0x3]
  %v268 = vld [vmem:[%s0 + $0x11e] sm:$0x3]
  %v269 = vld [vmem:[%s0 + $0x120] sm:$0x3]
  %v270 = vld [vmem:[%s0 + $0x122] sm:$0x3]
  %v271 = vld [vmem:[%s0 + $0x124] sm:$0x3]
  %v272 = vld [vmem:[%s0 + $0x126] sm:$0x3]
  %v273 = vld [vmem:[%s0 + $0x128] sm:$0x3]
  %v274 = vld [vmem:[%s0 + $0x12a] sm:$0x3]
  %v275 = vld [vmem:[%s0 + $0x12c] sm:$0x3]
  %v276 = vld [vmem:[%s0 + $0x12e] sm:$0x3]
  %v277 = vld [vmem:[%s0 + $0x130] sm:$0x3]
  %v278 = vld [vmem:[%s0 + $0x132] sm:$0x3]
  %v279 = vld [vmem:[%s0 + $0x134] sm:$0x3]
  %v280 = vld [vmem:[%s0 + $0x136] sm:$0x3]
  %v281 = vld [vmem:[%s0 + $0x138] sm:$0x3]
  %v282 = vld [vmem:[%s0 + $0x13a] sm:$0x3]
  %v283 = vld [vmem:[%s0 + $0x13c] sm:$0x3]
  %v284 = vld [vmem:[%s0 + $0x13e] sm:$0x3]
  %v285 = vld [vmem:[%s0 + $0x140] sm:$0x3]
  %v286 = vld [vmem:[%s0 + $0x142] sm:$0x3]
  %v287 = vld [vmem:[%s0 + $0x144] sm:$0x3]
  %v288 = vld [vmem:[%s0 + $0x146] sm:$0x3]
  %v289 = vld [vmem:[%s0 + $0x148] sm:$0x3]
  %v290 = vld [vmem:[%s0 + $0x14a] sm:$0x3]
  %v291 = vld [vmem:[%s0 + $0x14c] sm:$0x3]
  %v292 = vld [vmem:[%s0 + $0x14e] sm:$0x3]
  %v293 = vld [vmem:[%s0 + $0x150] sm:$0x3]
  %v294 = vld [vmem:[%s0 + $0x152] sm:$0x3]
  %v295 = vld [vmem:[%s0 + $0x154] sm:$0x3]
  %v296 = vld [vmem:[%s0 + $0x156] sm:$0x3]
  %v297 = vld [vmem:[%s0 + $0x158] sm:$0x3]
  %v298 = vld [vmem:[%s0 + $0x15a] sm:$0x3]
  %v299 = vld [vmem:[%s0 + $0x15c] sm:$0x3]
  %v300 = vld [vmem:[%s0 + $0x15e] sm:$0x3]
  %v301 = vld [vmem:[%s0 + $0x160] sm:$0x3]
  %v302 = vld [vmem:[%s0 + $0x162] sm:$0x3]
  %v303 = vld [vmem:[%s0 + $0x164] sm:$0x3]
  %v304 = vld [vmem:[%s0 + $0x166] sm:$0x3]
  %v305 = vld [vmem:[%s0 + $0x168] sm:$0x3]
  %v306 = vld [vmem:[%s0 + $0x16a] sm:$0x3]
  %v307 = vld [vmem:[%s0 + $0x16c] sm:$0x3]
  %v308 = vld [vmem:[%s0 + $0x16e] sm:$0x3]
  %v309 = vld [vmem:[%s0 + $0x170] sm:$0x3]
  %v310 = vld [vmem:[%s0 + $0x172] sm:$0x3]
  %v311 = vld [vmem:[%s0 + $0x174] sm:$0x3]
  %v312 = vld [vmem:[%s0 + $0x176] sm:$0x3]
  %v313 = vld [vmem:[%s0 + $0x178] sm:$0x3]
  %v314 = vld [vmem:[%s0 + $0x17a] sm:$0x3]
  %v315 = vld [vmem:[%s0 + $0x17c] sm:$0x3]
  %v316 = vld [vmem:[%s0 + $0x17e] sm:$0x3]
  %v317 = vld [vmem:[%s0 + $0x180] sm:$0x3]
  %v318 = vld [vmem:[%s0 + $0x182] sm:$0x3]
  %v319 = vld [vmem:[%s0 + $0x184] sm:$0x3]
  %v320 = vld [vmem:[%s0 + $0x186] sm:$0x3]
  %v321 = vld [vmem:[%s0 + $0x188] sm:$0x3]
  %v322 = vld [vmem:[%s0 + $0x18a] sm:$0x3]
  %v323 = vld [vmem:[%s0 + $0x18c] sm:$0x3]
  %v324 = vld [vmem:[%s0 + $0x18e] sm:$0x3]
  %v325 = vld [vmem:[%s0 + $0x190] sm:$0x3]
  %v326 = vld [vmem:[%s0 + $0x192] sm:$0x3]
  %v327 = vld [vmem:[%s0 + $0x194] sm:$0x3]
  %v328 = vld [vmem:[%s0 + $0x196] sm:$0x3]
  %v329 = vld [vmem:[%s0 + $0x198] sm:$0x3]
  %v330 = vld [vmem:[%s0 + $0x19a] sm:$0x3]
  %v331 = vld [vmem:[%s0 + $0x19c] sm:$0x3]
  %v332 = vld [vmem:[%s0 + $0x19e] sm:$0x3]
  %v333 = vld [vmem:[%s0 + $0x1a0] sm:$0x3]
  %v334 = vld [vmem:[%s0 + $0x1a2] sm:$0x3]
  %v335 = vld [vmem:[%s0 + $0x1a4] sm:$0x3]
  %v336 = vld [vmem:[%s0 + $0x1a6] sm:$0x3]
  %v337 = vld [vmem:[%s0 + $0x1a8] sm:$0x3]
  %v338 = vld [vmem:[%s0 + $0x1aa] sm:$0x3]
  %v339 = vld [vmem:[%s0 + $0x1ac] sm:$0x3]
  %v340 = vld [vmem:[%s0 + $0x1ae] sm:$0x3]
  %v341 = vld [vmem:[%s0 + $0x1b0] sm:$0x3]
  %v342 = vld [vmem:[%s0 + $0x1b2] sm:$0x3]
  %v343 = vld [vmem:[%s0 + $0x1b4] sm:$0x3]
  %v344 = vld [vmem:[%s0 + $0x1b6] sm:$0x3]
  %v345 = vld [vmem:[%s0 + $0x1b8] sm:$0x3]
  %v346 = vld [vmem:[%s0 + $0x1ba] sm:$0x3]
  %v347 = vld [vmem:[%s0 + $0x1bc] sm:$0x3]
  %v348 = vld [vmem:[%s0 + $0x1be] sm:$0x3]
  %v349 = vld [vmem:[%s0 + $0x1c0] sm:$0x3]
  %v350 = vld [vmem:[%s0 + $0x1c2] sm:$0x3]
  %v351 = vld [vmem:[%s0 + $0x1c4] sm:$0x3]
  %v352 = vld [vmem:[%s0 + $0x1c6] sm:$0x3]
  %v353 = vld [vmem:[%s0 + $0x1c8] sm:$0x3]
  %v354 = vld [vmem:[%s0 + $0x1ca] sm:$0x3]
  %v355 = vld [vmem:[%s0 + $0x1cc] sm:$0x3]
  %v356 = vld [vmem:[%s0 + $0x1ce] sm:$0x3]
  %v357 = vld [vmem:[%s0 + $0x1d0] sm:$0x3]
  %v358 = vld [vmem:[%s0 + $0x1d2] sm:$0x3]
  %v359 = vld [vmem:[%s0 + $0x1d4] sm:$0x3]
  %v360 = vld [vmem:[%s0 + $0x1d6] sm:$0x3]
  %v361 = vld [vmem:[%s0 + $0x1d8] sm:$0x3]
  %v362 = vld [vmem:[%s0 + $0x1da] sm:$0x3]
  %v363 = vld [vmem:[%s0 + $0x1dc] sm:$0x3]
  %v364 = vld [vmem:[%s0 + $0x1de] sm:$0x3]
  %v365 = vld [vmem:[%s0 + $0x1e0] sm:$0x3]
  %v366 = vld [vmem:[%s0 + $0x1e2] sm:$0x3]
  %v367 = vld [vmem:[%s0 + $0x1e4] sm:$0x3]
  %v368 = vld [vmem:[%s0 + $0x1e6] sm:$0x3]
  %v369 = vld [vmem:[%s0 + $0x1e8] sm:$0x3]
  %v370 = vld [vmem:[%s0 + $0x1ea] sm:$0x3]
  %v371 = vld [vmem:[%s0 + $0x1ec] sm:$0x3]
  %v372 = vld [vmem:[%s0 + $0x1ee] sm:$0x3]
  %v373 = vld [vmem:[%s0 + $0x1f0] sm:$0x3]
  %v374 = vld [vmem:[%s0 + $0x1f2] sm:$0x3]
  %v375 = vld [vmem:[%s0 + $0x1f4] sm:$0x3]
  %v376 = vld [vmem:[%s0 + $0x1f6] sm:$0x3]
  %v377 = vld [vmem:[%s0 + $0x1f8] sm:$0x3]
  %v378 = vld [vmem:[%s0 + $0x1fa] sm:$0x3]
  %v379 = vld [vmem:[%s0 + $0x1fc] sm:$0x3]
  %v380 = vld [vmem:[%s0 + $0x1fe] sm:$0x3]
  %v381 = vsel %vm23, %v125, -inf
  %v382 = vrot.slane %v381, 4
  %v383 = vmax.f32 %v381, %v382
  %v384 = vrot.slane %v383, 2
  %v385 = vmax.f32 %v383, %v384
  %v386 = vrot.slane %v385, 1
  %v387 = vmax.f32 %v385, %v386
  %v388 = vsel %vm23, %v126, -inf
  %v389 = vrot.slane %v388, 4
  %v390 = vmax.f32 %v388, %v389
  %v391 = vrot.slane %v390, 2
  %v392 = vmax.f32 %v390, %v391
  %v393 = vrot.slane %v392, 1
  %v394 = vmax.f32 %v392, %v393
  %v395 = vsel %vm23, %v127, -inf
  %v396 = vrot.slane %v395, 4
  %v397 = vmax.f32 %v395, %v396
  %v398 = vrot.slane %v397, 2
  %v399 = vmax.f32 %v397, %v398
  %v400 = vrot.slane %v399, 1
  %v401 = vmax.f32 %v399, %v400
  %v402 = vsel %vm23, %v128, -inf
  %v403 = vrot.slane %v402, 4
  %v404 = vmax.f32 %v402, %v403
  %v405 = vrot.slane %v404, 2
  %v406 = vmax.f32 %v404, %v405
  %v407 = vrot.slane %v406, 1
  %v408 = vmax.f32 %v406, %v407
  %v409 = vsel %vm23, %v129, -inf
  %v410 = vrot.slane %v409, 4
  %v411 = vmax.f32 %v409, %v410
  %v412 = vrot.slane %v411, 2
  %v413 = vmax.f32 %v411, %v412
  %v414 = vrot.slane %v413, 1
  %v415 = vmax.f32 %v413, %v414
  %v416 = vsel %vm23, %v130, -inf
  %v417 = vrot.slane %v416, 4
  %v418 = vmax.f32 %v416, %v417
  %v419 = vrot.slane %v418, 2
  %v420 = vmax.f32 %v418, %v419
  %v421 = vrot.slane %v420, 1
  %v422 = vmax.f32 %v420, %v421
  %v423 = vsel %vm23, %v131, -inf
  %v424 = vrot.slane %v423, 4
  %v425 = vmax.f32 %v423, %v424
  %v426 = vrot.slane %v425, 2
  %v427 = vmax.f32 %v425, %v426
  %v428 = vrot.slane %v427, 1
  %v429 = vmax.f32 %v427, %v428
  %v430 = vsel %vm23, %v132, -inf
  %v431 = vrot.slane %v430, 4
  %v432 = vmax.f32 %v430, %v431
  %v433 = vrot.slane %v432, 2
  %v434 = vmax.f32 %v432, %v433
  %v435 = vrot.slane %v434, 1
  %v436 = vmax.f32 %v434, %v435
  %v437 = vsel %vm23, %v133, -inf
  %v438 = vrot.slane %v437, 4
  %v439 = vmax.f32 %v437, %v438
  %v440 = vrot.slane %v439, 2
  %v441 = vmax.f32 %v439, %v440
  %v442 = vrot.slane %v441, 1
  %v443 = vmax.f32 %v441, %v442
  %v444 = vsel %vm23, %v134, -inf
  %v445 = vrot.slane %v444, 4
  %v446 = vmax.f32 %v444, %v445
  %v447 = vrot.slane %v446, 2
  %v448 = vmax.f32 %v446, %v447
  %v449 = vrot.slane %v448, 1
  %v450 = vmax.f32 %v448, %v449
  %v451 = vsel %vm23, %v135, -inf
  %v452 = vrot.slane %v451, 4
  %v453 = vmax.f32 %v451, %v452
  %v454 = vrot.slane %v453, 2
  %v455 = vmax.f32 %v453, %v454
  %v456 = vrot.slane %v455, 1
  %v457 = vmax.f32 %v455, %v456
  %v458 = vsel %vm23, %v136, -inf
  %v459 = vrot.slane %v458, 4
  %v460 = vmax.f32 %v458, %v459
  %v461 = vrot.slane %v460, 2
  %v462 = vmax.f32 %v460, %v461
  %v463 = vrot.slane %v462, 1
  %v464 = vmax.f32 %v462, %v463
  %v465 = vsel %vm23, %v137, -inf
  %v466 = vrot.slane %v465, 4
  %v467 = vmax.f32 %v465, %v466
  %v468 = vrot.slane %v467, 2
  %v469 = vmax.f32 %v467, %v468
  %v470 = vrot.slane %v469, 1
  %v471 = vmax.f32 %v469, %v470
  %v472 = vsel %vm23, %v138, -inf
  %v473 = vrot.slane %v472, 4
  %v474 = vmax.f32 %v472, %v473
  %v475 = vrot.slane %v474, 2
  %v476 = vmax.f32 %v474, %v475
  %v477 = vrot.slane %v476, 1
  %v478 = vmax.f32 %v476, %v477
  %v479 = vsel %vm23, %v139, -inf
  %v480 = vrot.slane %v479, 4
  %v481 = vmax.f32 %v479, %v480
  %v482 = vrot.slane %v481, 2
  %v483 = vmax.f32 %v481, %v482
  %v484 = vrot.slane %v483, 1
  %v485 = vmax.f32 %v483, %v484
  %v486 = vsel %vm23, %v140, -inf
  %v487 = vrot.slane %v486, 4
  %v488 = vmax.f32 %v486, %v487
  %v489 = vrot.slane %v488, 2
  %v490 = vmax.f32 %v488, %v489
  %v491 = vrot.slane %v490, 1
  %v492 = vmax.f32 %v490, %v491
  %v493 = vsel %vm23, %v141, -inf
  %v494 = vrot.slane %v493, 4
  %v495 = vmax.f32 %v493, %v494
  %v496 = vrot.slane %v495, 2
  %v497 = vmax.f32 %v495, %v496
  %v498 = vrot.slane %v497, 1
  %v499 = vmax.f32 %v497, %v498
  %v500 = vsel %vm23, %v142, -inf
  %v501 = vrot.slane %v500, 4
  %v502 = vmax.f32 %v500, %v501
  %v503 = vrot.slane %v502, 2
  %v504 = vmax.f32 %v502, %v503
  %v505 = vrot.slane %v504, 1
  %v506 = vmax.f32 %v504, %v505
  %v507 = vsel %vm23, %v143, -inf
  %v508 = vrot.slane %v507, 4
  %v509 = vmax.f32 %v507, %v508
  %v510 = vrot.slane %v509, 2
  %v511 = vmax.f32 %v509, %v510
  %v512 = vrot.slane %v511, 1
  %v513 = vmax.f32 %v511, %v512
  %v514 = vsel %vm23, %v144, -inf
  %v515 = vrot.slane %v514, 4
  %v516 = vmax.f32 %v514, %v515
  %v517 = vrot.slane %v516, 2
  %v518 = vmax.f32 %v516, %v517
  %v519 = vrot.slane %v518, 1
  %v520 = vmax.f32 %v518, %v519
  %v521 = vsel %vm23, %v145, -inf
  %v522 = vrot.slane %v521, 4
  %v523 = vmax.f32 %v521, %v522
  %v524 = vrot.slane %v523, 2
  %v525 = vmax.f32 %v523, %v524
  %v526 = vrot.slane %v525, 1
  %v527 = vmax.f32 %v525, %v526
  %v528 = vsel %vm23, %v146, -inf
  %v529 = vrot.slane %v528, 4
  %v530 = vmax.f32 %v528, %v529
  %v531 = vrot.slane %v530, 2
  %v532 = vmax.f32 %v530, %v531
  %v533 = vrot.slane %v532, 1
  %v534 = vmax.f32 %v532, %v533
  %v535 = vsel %vm23, %v147, -inf
  %v536 = vrot.slane %v535, 4
  %v537 = vmax.f32 %v535, %v536
  %v538 = vrot.slane %v537, 2
  %v539 = vmax.f32 %v537, %v538
  %v540 = vrot.slane %v539, 1
  %v541 = vmax.f32 %v539, %v540
  %v542 = vsel %vm23, %v148, -inf
  %v543 = vrot.slane %v542, 4
  %v544 = vmax.f32 %v542, %v543
  %v545 = vrot.slane %v544, 2
  %v546 = vmax.f32 %v544, %v545
  %v547 = vrot.slane %v546, 1
  %v548 = vmax.f32 %v546, %v547
  %v549 = vsel %vm23, %v149, -inf
  %v550 = vrot.slane %v549, 4
  %v551 = vmax.f32 %v549, %v550
  %v552 = vrot.slane %v551, 2
  %v553 = vmax.f32 %v551, %v552
  %v554 = vrot.slane %v553, 1
  %v555 = vmax.f32 %v553, %v554
  %v556 = vsel %vm23, %v150, -inf
  %v557 = vrot.slane %v556, 4
  %v558 = vmax.f32 %v556, %v557
  %v559 = vrot.slane %v558, 2
  %v560 = vmax.f32 %v558, %v559
  %v561 = vrot.slane %v560, 1
  %v562 = vmax.f32 %v560, %v561
  %v563 = vsel %vm23, %v151, -inf
  %v564 = vrot.slane %v563, 4
  %v565 = vmax.f32 %v563, %v564
  %v566 = vrot.slane %v565, 2
  %v567 = vmax.f32 %v565, %v566
  %v568 = vrot.slane %v567, 1
  %v569 = vmax.f32 %v567, %v568
  %v570 = vsel %vm23, %v152, -inf
  %v571 = vrot.slane %v570, 4
  %v572 = vmax.f32 %v570, %v571
  %v573 = vrot.slane %v572, 2
  %v574 = vmax.f32 %v572, %v573
  %v575 = vrot.slane %v574, 1
  %v576 = vmax.f32 %v574, %v575
  %v577 = vsel %vm23, %v153, -inf
  %v578 = vrot.slane %v577, 4
  %v579 = vmax.f32 %v577, %v578
  %v580 = vrot.slane %v579, 2
  %v581 = vmax.f32 %v579, %v580
  %v582 = vrot.slane %v581, 1
  %v583 = vmax.f32 %v581, %v582
  %v584 = vsel %vm23, %v154, -inf
  %v585 = vrot.slane %v584, 4
  %v586 = vmax.f32 %v584, %v585
  %v587 = vrot.slane %v586, 2
  %v588 = vmax.f32 %v586, %v587
  %v589 = vrot.slane %v588, 1
  %v590 = vmax.f32 %v588, %v589
  %v591 = vsel %vm23, %v155, -inf
  %v592 = vrot.slane %v591, 4
  %v593 = vmax.f32 %v591, %v592
  %v594 = vrot.slane %v593, 2
  %v595 = vmax.f32 %v593, %v594
  %v596 = vrot.slane %v595, 1
  %v597 = vmax.f32 %v595, %v596
  %v598 = vsel %vm23, %v156, -inf
  %v599 = vrot.slane %v598, 4
  %v600 = vmax.f32 %v598, %v599
  %v601 = vrot.slane %v600, 2
  %v602 = vmax.f32 %v600, %v601
  %v603 = vrot.slane %v602, 1
  %v604 = vmax.f32 %v602, %v603
  %v605 = vsel %vm23, %v157, -inf
  %v606 = vrot.slane %v605, 4
  %v607 = vmax.f32 %v605, %v606
  %v608 = vrot.slane %v607, 2
  %v609 = vmax.f32 %v607, %v608
  %v610 = vrot.slane %v609, 1
  %v611 = vmax.f32 %v609, %v610
  %v612 = vsel %vm23, %v158, -inf
  %v613 = vrot.slane %v612, 4
  %v614 = vmax.f32 %v612, %v613
  %v615 = vrot.slane %v614, 2
  %v616 = vmax.f32 %v614, %v615
  %v617 = vrot.slane %v616, 1
  %v618 = vmax.f32 %v616, %v617
  %v619 = vsel %vm23, %v159, -inf
  %v620 = vrot.slane %v619, 4
  %v621 = vmax.f32 %v619, %v620
  %v622 = vrot.slane %v621, 2
  %v623 = vmax.f32 %v621, %v622
  %v624 = vrot.slane %v623, 1
  %v625 = vmax.f32 %v623, %v624
  %v626 = vsel %vm23, %v160, -inf
  %v627 = vrot.slane %v626, 4
  %v628 = vmax.f32 %v626, %v627
  %v629 = vrot.slane %v628, 2
  %v630 = vmax.f32 %v628, %v629
  %v631 = vrot.slane %v630, 1
  %v632 = vmax.f32 %v630, %v631
  %v633 = vsel %vm23, %v161, -inf
  %v634 = vrot.slane %v633, 4
  %v635 = vmax.f32 %v633, %v634
  %v636 = vrot.slane %v635, 2
  %v637 = vmax.f32 %v635, %v636
  %v638 = vrot.slane %v637, 1
  %v639 = vmax.f32 %v637, %v638
  %v640 = vsel %vm23, %v162, -inf
  %v641 = vrot.slane %v640, 4
  %v642 = vmax.f32 %v640, %v641
  %v643 = vrot.slane %v642, 2
  %v644 = vmax.f32 %v642, %v643
  %v645 = vrot.slane %v644, 1
  %v646 = vmax.f32 %v644, %v645
  %v647 = vsel %vm23, %v163, -inf
  %v648 = vrot.slane %v647, 4
  %v649 = vmax.f32 %v647, %v648
  %v650 = vrot.slane %v649, 2
  %v651 = vmax.f32 %v649, %v650
  %v652 = vrot.slane %v651, 1
  %v653 = vmax.f32 %v651, %v652
  %v654 = vsel %vm23, %v164, -inf
  %v655 = vrot.slane %v654, 4
  %v656 = vmax.f32 %v654, %v655
  %v657 = vrot.slane %v656, 2
  %v658 = vmax.f32 %v656, %v657
  %v659 = vrot.slane %v658, 1
  %v660 = vmax.f32 %v658, %v659
  %v661 = vsel %vm23, %v165, -inf
  %v662 = vrot.slane %v661, 4
  %v663 = vmax.f32 %v661, %v662
  %v664 = vrot.slane %v663, 2
  %v665 = vmax.f32 %v663, %v664
  %v666 = vrot.slane %v665, 1
  %v667 = vmax.f32 %v665, %v666
  %v668 = vsel %vm23, %v166, -inf
  %v669 = vrot.slane %v668, 4
  %v670 = vmax.f32 %v668, %v669
  %v671 = vrot.slane %v670, 2
  %v672 = vmax.f32 %v670, %v671
  %v673 = vrot.slane %v672, 1
  %v674 = vmax.f32 %v672, %v673
  %v675 = vsel %vm23, %v167, -inf
  %v676 = vrot.slane %v675, 4
  %v677 = vmax.f32 %v675, %v676
  %v678 = vrot.slane %v677, 2
  %v679 = vmax.f32 %v677, %v678
  %v680 = vrot.slane %v679, 1
  %v681 = vmax.f32 %v679, %v680
  %v682 = vsel %vm23, %v168, -inf
  %v683 = vrot.slane %v682, 4
  %v684 = vmax.f32 %v682, %v683
  %v685 = vrot.slane %v684, 2
  %v686 = vmax.f32 %v684, %v685
  %v687 = vrot.slane %v686, 1
  %v688 = vmax.f32 %v686, %v687
  %v689 = vsel %vm23, %v169, -inf
  %v690 = vrot.slane %v689, 4
  %v691 = vmax.f32 %v689, %v690
  %v692 = vrot.slane %v691, 2
  %v693 = vmax.f32 %v691, %v692
  %v694 = vrot.slane %v693, 1
  %v695 = vmax.f32 %v693, %v694
  %v696 = vsel %vm23, %v170, -inf
  %v697 = vrot.slane %v696, 4
  %v698 = vmax.f32 %v696, %v697
  %v699 = vrot.slane %v698, 2
  %v700 = vmax.f32 %v698, %v699
  %v701 = vrot.slane %v700, 1
  %v702 = vmax.f32 %v700, %v701
  %v703 = vsel %vm23, %v171, -inf
  %v704 = vrot.slane %v703, 4
  %v705 = vmax.f32 %v703, %v704
  %v706 = vrot.slane %v705, 2
  %v707 = vmax.f32 %v705, %v706
  %v708 = vrot.slane %v707, 1
  %v709 = vmax.f32 %v707, %v708
  %v710 = vsel %vm23, %v172, -inf
  %v711 = vrot.slane %v710, 4
  %v712 = vmax.f32 %v710, %v711
  %v713 = vrot.slane %v712, 2
  %v714 = vmax.f32 %v712, %v713
  %v715 = vrot.slane %v714, 1
  %v716 = vmax.f32 %v714, %v715
  %v717 = vsel %vm23, %v173, -inf
  %v718 = vrot.slane %v717, 4
  %v719 = vmax.f32 %v717, %v718
  %v720 = vrot.slane %v719, 2
  %v721 = vmax.f32 %v719, %v720
  %v722 = vrot.slane %v721, 1
  %v723 = vmax.f32 %v721, %v722
  %v724 = vsel %vm23, %v174, -inf
  %v725 = vrot.slane %v724, 4
  %v726 = vmax.f32 %v724, %v725
  %v727 = vrot.slane %v726, 2
  %v728 = vmax.f32 %v726, %v727
  %v729 = vrot.slane %v728, 1
  %v730 = vmax.f32 %v728, %v729
  %v731 = vsel %vm23, %v175, -inf
  %v732 = vrot.slane %v731, 4
  %v733 = vmax.f32 %v731, %v732
  %v734 = vrot.slane %v733, 2
  %v735 = vmax.f32 %v733, %v734
  %v736 = vrot.slane %v735, 1
  %v737 = vmax.f32 %v735, %v736
  %v738 = vsel %vm23, %v176, -inf
  %v739 = vrot.slane %v738, 4
  %v740 = vmax.f32 %v738, %v739
  %v741 = vrot.slane %v740, 2
  %v742 = vmax.f32 %v740, %v741
  %v743 = vrot.slane %v742, 1
  %v744 = vmax.f32 %v742, %v743
  %v745 = vsel %vm23, %v177, -inf
  %v746 = vrot.slane %v745, 4
  %v747 = vmax.f32 %v745, %v746
  %v748 = vrot.slane %v747, 2
  %v749 = vmax.f32 %v747, %v748
  %v750 = vrot.slane %v749, 1
  %v751 = vmax.f32 %v749, %v750
  %v752 = vsel %vm23, %v178, -inf
  %v753 = vrot.slane %v752, 4
  %v754 = vmax.f32 %v752, %v753
  %v755 = vrot.slane %v754, 2
  %v756 = vmax.f32 %v754, %v755
  %v757 = vrot.slane %v756, 1
  %v758 = vmax.f32 %v756, %v757
  %v759 = vsel %vm23, %v179, -inf
  %v760 = vrot.slane %v759, 4
  %v761 = vmax.f32 %v759, %v760
  %v762 = vrot.slane %v761, 2
  %v763 = vmax.f32 %v761, %v762
  %v764 = vrot.slane %v763, 1
  %v765 = vmax.f32 %v763, %v764
  %v766 = vsel %vm23, %v180, -inf
  %v767 = vrot.slane %v766, 4
  %v768 = vmax.f32 %v766, %v767
  %v769 = vrot.slane %v768, 2
  %v770 = vmax.f32 %v768, %v769
  %v771 = vrot.slane %v770, 1
  %v772 = vmax.f32 %v770, %v771
  %v773 = vsel %vm23, %v181, -inf
  %v774 = vrot.slane %v773, 4
  %v775 = vmax.f32 %v773, %v774
  %v776 = vrot.slane %v775, 2
  %v777 = vmax.f32 %v775, %v776
  %v778 = vrot.slane %v777, 1
  %v779 = vmax.f32 %v777, %v778
  %v780 = vsel %vm23, %v182, -inf
  %v781 = vrot.slane %v780, 4
  %v782 = vmax.f32 %v780, %v781
  %v783 = vrot.slane %v782, 2
  %v784 = vmax.f32 %v782, %v783
  %v785 = vrot.slane %v784, 1
  %v786 = vmax.f32 %v784, %v785
  %v787 = vsel %vm23, %v183, -inf
  %v788 = vrot.slane %v787, 4
  %v789 = vmax.f32 %v787, %v788
  %v790 = vrot.slane %v789, 2
  %v791 = vmax.f32 %v789, %v790
  %v792 = vrot.slane %v791, 1
  %v793 = vmax.f32 %v791, %v792
  %v794 = vsel %vm23, %v184, -inf
  %v795 = vrot.slane %v794, 4
  %v796 = vmax.f32 %v794, %v795
  %v797 = vrot.slane %v796, 2
  %v798 = vmax.f32 %v796, %v797
  %v799 = vrot.slane %v798, 1
  %v800 = vmax.f32 %v798, %v799
  %v801 = vsel %vm23, %v185, -inf
  %v802 = vrot.slane %v801, 4
  %v803 = vmax.f32 %v801, %v802
  %v804 = vrot.slane %v803, 2
  %v805 = vmax.f32 %v803, %v804
  %v806 = vrot.slane %v805, 1
  %v807 = vmax.f32 %v805, %v806
  %v808 = vsel %vm23, %v186, -inf
  %v809 = vrot.slane %v808, 4
  %v810 = vmax.f32 %v808, %v809
  %v811 = vrot.slane %v810, 2
  %v812 = vmax.f32 %v810, %v811
  %v813 = vrot.slane %v812, 1
  %v814 = vmax.f32 %v812, %v813
  %v815 = vsel %vm23, %v187, -inf
  %v816 = vrot.slane %v815, 4
  %v817 = vmax.f32 %v815, %v816
  %v818 = vrot.slane %v817, 2
  %v819 = vmax.f32 %v817, %v818
  %v820 = vrot.slane %v819, 1
  %v821 = vmax.f32 %v819, %v820
  %v822 = vsel %vm23, %v188, -inf
  %v823 = vrot.slane %v822, 4
  %v824 = vmax.f32 %v822, %v823
  %v825 = vrot.slane %v824, 2
  %v826 = vmax.f32 %v824, %v825
  %v827 = vrot.slane %v826, 1
  %v828 = vmax.f32 %v826, %v827
  %v829 = vsel %vm23, %v189, -inf
  %v830 = vrot.slane %v829, 4
  %v831 = vmax.f32 %v829, %v830
  %v832 = vrot.slane %v831, 2
  %v833 = vmax.f32 %v831, %v832
  %v834 = vrot.slane %v833, 1
  %v835 = vmax.f32 %v833, %v834
  %v836 = vsel %vm23, %v190, -inf
  %v837 = vrot.slane %v836, 4
  %v838 = vmax.f32 %v836, %v837
  %v839 = vrot.slane %v838, 2
  %v840 = vmax.f32 %v838, %v839
  %v841 = vrot.slane %v840, 1
  %v842 = vmax.f32 %v840, %v841
  %v843 = vsel %vm23, %v191, -inf
  %v844 = vrot.slane %v843, 4
  %v845 = vmax.f32 %v843, %v844
  %v846 = vrot.slane %v845, 2
  %v847 = vmax.f32 %v845, %v846
  %v848 = vrot.slane %v847, 1
  %v849 = vmax.f32 %v847, %v848
  %v850 = vsel %vm23, %v192, -inf
  %v851 = vrot.slane %v850, 4
  %v852 = vmax.f32 %v850, %v851
  %v853 = vrot.slane %v852, 2
  %v854 = vmax.f32 %v852, %v853
  %v855 = vrot.slane %v854, 1
  %v856 = vmax.f32 %v854, %v855
  %v857 = vsel %vm23, %v193, -inf
  %v858 = vrot.slane %v857, 4
  %v859 = vmax.f32 %v857, %v858
  %v860 = vrot.slane %v859, 2
  %v861 = vmax.f32 %v859, %v860
  %v862 = vrot.slane %v861, 1
  %v863 = vmax.f32 %v861, %v862
  %v864 = vsel %vm23, %v194, -inf
  %v865 = vrot.slane %v864, 4
  %v866 = vmax.f32 %v864, %v865
  %v867 = vrot.slane %v866, 2
  %v868 = vmax.f32 %v866, %v867
  %v869 = vrot.slane %v868, 1
  %v870 = vmax.f32 %v868, %v869
  %v871 = vsel %vm23, %v195, -inf
  %v872 = vrot.slane %v871, 4
  %v873 = vmax.f32 %v871, %v872
  %v874 = vrot.slane %v873, 2
  %v875 = vmax.f32 %v873, %v874
  %v876 = vrot.slane %v875, 1
  %v877 = vmax.f32 %v875, %v876
  %v878 = vsel %vm23, %v196, -inf
  %v879 = vrot.slane %v878, 4
  %v880 = vmax.f32 %v878, %v879
  %v881 = vrot.slane %v880, 2
  %v882 = vmax.f32 %v880, %v881
  %v883 = vrot.slane %v882, 1
  %v884 = vmax.f32 %v882, %v883
  %v885 = vsel %vm23, %v197, -inf
  %v886 = vrot.slane %v885, 4
  %v887 = vmax.f32 %v885, %v886
  %v888 = vrot.slane %v887, 2
  %v889 = vmax.f32 %v887, %v888
  %v890 = vrot.slane %v889, 1
  %v891 = vmax.f32 %v889, %v890
  %v892 = vsel %vm23, %v198, -inf
  %v893 = vrot.slane %v892, 4
  %v894 = vmax.f32 %v892, %v893
  %v895 = vrot.slane %v894, 2
  %v896 = vmax.f32 %v894, %v895
  %v897 = vrot.slane %v896, 1
  %v898 = vmax.f32 %v896, %v897
  %v899 = vsel %vm23, %v199, -inf
  %v900 = vrot.slane %v899, 4
  %v901 = vmax.f32 %v899, %v900
  %v902 = vrot.slane %v901, 2
  %v903 = vmax.f32 %v901, %v902
  %v904 = vrot.slane %v903, 1
  %v905 = vmax.f32 %v903, %v904
  %v906 = vsel %vm23, %v200, -inf
  %v907 = vrot.slane %v906, 4
  %v908 = vmax.f32 %v906, %v907
  %v909 = vrot.slane %v908, 2
  %v910 = vmax.f32 %v908, %v909
  %v911 = vrot.slane %v910, 1
  %v912 = vmax.f32 %v910, %v911
  %v913 = vsel %vm23, %v201, -inf
  %v914 = vrot.slane %v913, 4
  %v915 = vmax.f32 %v913, %v914
  %v916 = vrot.slane %v915, 2
  %v917 = vmax.f32 %v915, %v916
  %v918 = vrot.slane %v917, 1
  %v919 = vmax.f32 %v917, %v918
  %v920 = vsel %vm23, %v202, -inf
  %v921 = vrot.slane %v920, 4
  %v922 = vmax.f32 %v920, %v921
  %v923 = vrot.slane %v922, 2
  %v924 = vmax.f32 %v922, %v923
  %v925 = vrot.slane %v924, 1
  %v926 = vmax.f32 %v924, %v925
  %v927 = vsel %vm23, %v203, -inf
  %v928 = vrot.slane %v927, 4
  %v929 = vmax.f32 %v927, %v928
  %v930 = vrot.slane %v929, 2
  %v931 = vmax.f32 %v929, %v930
  %v932 = vrot.slane %v931, 1
  %v933 = vmax.f32 %v931, %v932
  %v934 = vsel %vm23, %v204, -inf
  %v935 = vrot.slane %v934, 4
  %v936 = vmax.f32 %v934, %v935
  %v937 = vrot.slane %v936, 2
  %v938 = vmax.f32 %v936, %v937
  %v939 = vrot.slane %v938, 1
  %v940 = vmax.f32 %v938, %v939
  %v941 = vsel %vm23, %v205, -inf
  %v942 = vrot.slane %v941, 4
  %v943 = vmax.f32 %v941, %v942
  %v944 = vrot.slane %v943, 2
  %v945 = vmax.f32 %v943, %v944
  %v946 = vrot.slane %v945, 1
  %v947 = vmax.f32 %v945, %v946
  %v948 = vsel %vm23, %v206, -inf
  %v949 = vrot.slane %v948, 4
  %v950 = vmax.f32 %v948, %v949
  %v951 = vrot.slane %v950, 2
  %v952 = vmax.f32 %v950, %v951
  %v953 = vrot.slane %v952, 1
  %v954 = vmax.f32 %v952, %v953
  %v955 = vsel %vm23, %v207, -inf
  %v956 = vrot.slane %v955, 4
  %v957 = vmax.f32 %v955, %v956
  %v958 = vrot.slane %v957, 2
  %v959 = vmax.f32 %v957, %v958
  %v960 = vrot.slane %v959, 1
  %v961 = vmax.f32 %v959, %v960
  %v962 = vsel %vm23, %v208, -inf
  %v963 = vrot.slane %v962, 4
  %v964 = vmax.f32 %v962, %v963
  %v965 = vrot.slane %v964, 2
  %v966 = vmax.f32 %v964, %v965
  %v967 = vrot.slane %v966, 1
  %v968 = vmax.f32 %v966, %v967
  %v969 = vsel %vm23, %v209, -inf
  %v970 = vrot.slane %v969, 4
  %v971 = vmax.f32 %v969, %v970
  %v972 = vrot.slane %v971, 2
  %v973 = vmax.f32 %v971, %v972
  %v974 = vrot.slane %v973, 1
  %v975 = vmax.f32 %v973, %v974
  %v976 = vsel %vm23, %v210, -inf
  %v977 = vrot.slane %v976, 4
  %v978 = vmax.f32 %v976, %v977
  %v979 = vrot.slane %v978, 2
  %v980 = vmax.f32 %v978, %v979
  %v981 = vrot.slane %v980, 1
  %v982 = vmax.f32 %v980, %v981
  %v983 = vsel %vm23, %v211, -inf
  %v984 = vrot.slane %v983, 4
  %v985 = vmax.f32 %v983, %v984
  %v986 = vrot.slane %v985, 2
  %v987 = vmax.f32 %v985, %v986
  %v988 = vrot.slane %v987, 1
  %v989 = vmax.f32 %v987, %v988
  %v990 = vsel %vm23, %v212, -inf
  %v991 = vrot.slane %v990, 4
  %v992 = vmax.f32 %v990, %v991
  %v993 = vrot.slane %v992, 2
  %v994 = vmax.f32 %v992, %v993
  %v995 = vrot.slane %v994, 1
  %v996 = vmax.f32 %v994, %v995
  %v997 = vsel %vm23, %v213, -inf
  %v998 = vrot.slane %v997, 4
  %v999 = vmax.f32 %v997, %v998
  %v1000 = vrot.slane %v999, 2
  %v1001 = vmax.f32 %v999, %v1000
  %v1002 = vrot.slane %v1001, 1
  %v1003 = vmax.f32 %v1001, %v1002
  %v1004 = vsel %vm23, %v214, -inf
  %v1005 = vrot.slane %v1004, 4
  %v1006 = vmax.f32 %v1004, %v1005
  %v1007 = vrot.slane %v1006, 2
  %v1008 = vmax.f32 %v1006, %v1007
  %v1009 = vrot.slane %v1008, 1
  %v1010 = vmax.f32 %v1008, %v1009
  %v1011 = vsel %vm23, %v215, -inf
  %v1012 = vrot.slane %v1011, 4
  %v1013 = vmax.f32 %v1011, %v1012
  %v1014 = vrot.slane %v1013, 2
  %v1015 = vmax.f32 %v1013, %v1014
  %v1016 = vrot.slane %v1015, 1
  %v1017 = vmax.f32 %v1015, %v1016
  %v1018 = vsel %vm23, %v216, -inf
  %v1019 = vrot.slane %v1018, 4
  %v1020 = vmax.f32 %v1018, %v1019
  %v1021 = vrot.slane %v1020, 2
  %v1022 = vmax.f32 %v1020, %v1021
  %v1023 = vrot.slane %v1022, 1
  %v1024 = vmax.f32 %v1022, %v1023
  %v1025 = vsel %vm23, %v217, -inf
  %v1026 = vrot.slane %v1025, 4
  %v1027 = vmax.f32 %v1025, %v1026
  %v1028 = vrot.slane %v1027, 2
  %v1029 = vmax.f32 %v1027, %v1028
  %v1030 = vrot.slane %v1029, 1
  %v1031 = vmax.f32 %v1029, %v1030
  %v1032 = vsel %vm23, %v218, -inf
  %v1033 = vrot.slane %v1032, 4
  %v1034 = vmax.f32 %v1032, %v1033
  %v1035 = vrot.slane %v1034, 2
  %v1036 = vmax.f32 %v1034, %v1035
  %v1037 = vrot.slane %v1036, 1
  %v1038 = vmax.f32 %v1036, %v1037
  %v1039 = vsel %vm23, %v219, -inf
  %v1040 = vrot.slane %v1039, 4
  %v1041 = vmax.f32 %v1039, %v1040
  %v1042 = vrot.slane %v1041, 2
  %v1043 = vmax.f32 %v1041, %v1042
  %v1044 = vrot.slane %v1043, 1
  %v1045 = vmax.f32 %v1043, %v1044
  %v1046 = vsel %vm23, %v220, -inf
  %v1047 = vrot.slane %v1046, 4
  %v1048 = vmax.f32 %v1046, %v1047
  %v1049 = vrot.slane %v1048, 2
  %v1050 = vmax.f32 %v1048, %v1049
  %v1051 = vrot.slane %v1050, 1
  %v1052 = vmax.f32 %v1050, %v1051
  %v1053 = vsel %vm23, %v221, -inf
  %v1054 = vrot.slane %v1053, 4
  %v1055 = vmax.f32 %v1053, %v1054
  %v1056 = vrot.slane %v1055, 2
  %v1057 = vmax.f32 %v1055, %v1056
  %v1058 = vrot.slane %v1057, 1
  %v1059 = vmax.f32 %v1057, %v1058
  %v1060 = vsel %vm23, %v222, -inf
  %v1061 = vrot.slane %v1060, 4
  %v1062 = vmax.f32 %v1060, %v1061
  %v1063 = vrot.slane %v1062, 2
  %v1064 = vmax.f32 %v1062, %v1063
  %v1065 = vrot.slane %v1064, 1
  %v1066 = vmax.f32 %v1064, %v1065
  %v1067 = vsel %vm23, %v223, -inf
  %v1068 = vrot.slane %v1067, 4
  %v1069 = vmax.f32 %v1067, %v1068
  %v1070 = vrot.slane %v1069, 2
  %v1071 = vmax.f32 %v1069, %v1070
  %v1072 = vrot.slane %v1071, 1
  %v1073 = vmax.f32 %v1071, %v1072
  %v1074 = vsel %vm23, %v224, -inf
  %v1075 = vrot.slane %v1074, 4
  %v1076 = vmax.f32 %v1074, %v1075
  %v1077 = vrot.slane %v1076, 2
  %v1078 = vmax.f32 %v1076, %v1077
  %v1079 = vrot.slane %v1078, 1
  %v1080 = vmax.f32 %v1078, %v1079
  %v1081 = vsel %vm23, %v225, -inf
  %v1082 = vrot.slane %v1081, 4
  %v1083 = vmax.f32 %v1081, %v1082
  %v1084 = vrot.slane %v1083, 2
  %v1085 = vmax.f32 %v1083, %v1084
  %v1086 = vrot.slane %v1085, 1
  %v1087 = vmax.f32 %v1085, %v1086
  %v1088 = vsel %vm23, %v226, -inf
  %v1089 = vrot.slane %v1088, 4
  %v1090 = vmax.f32 %v1088, %v1089
  %v1091 = vrot.slane %v1090, 2
  %v1092 = vmax.f32 %v1090, %v1091
  %v1093 = vrot.slane %v1092, 1
  %v1094 = vmax.f32 %v1092, %v1093
  %v1095 = vsel %vm23, %v227, -inf
  %v1096 = vrot.slane %v1095, 4
  %v1097 = vmax.f32 %v1095, %v1096
  %v1098 = vrot.slane %v1097, 2
  %v1099 = vmax.f32 %v1097, %v1098
  %v1100 = vrot.slane %v1099, 1
  %v1101 = vmax.f32 %v1099, %v1100
  %v1102 = vsel %vm23, %v228, -inf
  %v1103 = vrot.slane %v1102, 4
  %v1104 = vmax.f32 %v1102, %v1103
  %v1105 = vrot.slane %v1104, 2
  %v1106 = vmax.f32 %v1104, %v1105
  %v1107 = vrot.slane %v1106, 1
  %v1108 = vmax.f32 %v1106, %v1107
  %v1109 = vsel %vm23, %v229, -inf
  %v1110 = vrot.slane %v1109, 4
  %v1111 = vmax.f32 %v1109, %v1110
  %v1112 = vrot.slane %v1111, 2
  %v1113 = vmax.f32 %v1111, %v1112
  %v1114 = vrot.slane %v1113, 1
  %v1115 = vmax.f32 %v1113, %v1114
  %v1116 = vsel %vm23, %v230, -inf
  %v1117 = vrot.slane %v1116, 4
  %v1118 = vmax.f32 %v1116, %v1117
  %v1119 = vrot.slane %v1118, 2
  %v1120 = vmax.f32 %v1118, %v1119
  %v1121 = vrot.slane %v1120, 1
  %v1122 = vmax.f32 %v1120, %v1121
  %v1123 = vsel %vm23, %v231, -inf
  %v1124 = vrot.slane %v1123, 4
  %v1125 = vmax.f32 %v1123, %v1124
  %v1126 = vrot.slane %v1125, 2
  %v1127 = vmax.f32 %v1125, %v1126
  %v1128 = vrot.slane %v1127, 1
  %v1129 = vmax.f32 %v1127, %v1128
  %v1130 = vsel %vm23, %v232, -inf
  %v1131 = vrot.slane %v1130, 4
  %v1132 = vmax.f32 %v1130, %v1131
  %v1133 = vrot.slane %v1132, 2
  %v1134 = vmax.f32 %v1132, %v1133
  %v1135 = vrot.slane %v1134, 1
  %v1136 = vmax.f32 %v1134, %v1135
  %v1137 = vsel %vm23, %v233, -inf
  %v1138 = vrot.slane %v1137, 4
  %v1139 = vmax.f32 %v1137, %v1138
  %v1140 = vrot.slane %v1139, 2
  %v1141 = vmax.f32 %v1139, %v1140
  %v1142 = vrot.slane %v1141, 1
  %v1143 = vmax.f32 %v1141, %v1142
  %v1144 = vsel %vm23, %v234, -inf
  %v1145 = vrot.slane %v1144, 4
  %v1146 = vmax.f32 %v1144, %v1145
  %v1147 = vrot.slane %v1146, 2
  %v1148 = vmax.f32 %v1146, %v1147
  %v1149 = vrot.slane %v1148, 1
  %v1150 = vmax.f32 %v1148, %v1149
  %v1151 = vsel %vm23, %v235, -inf
  %v1152 = vrot.slane %v1151, 4
  %v1153 = vmax.f32 %v1151, %v1152
  %v1154 = vrot.slane %v1153, 2
  %v1155 = vmax.f32 %v1153, %v1154
  %v1156 = vrot.slane %v1155, 1
  %v1157 = vmax.f32 %v1155, %v1156
  %v1158 = vsel %vm23, %v236, -inf
  %v1159 = vrot.slane %v1158, 4
  %v1160 = vmax.f32 %v1158, %v1159
  %v1161 = vrot.slane %v1160, 2
  %v1162 = vmax.f32 %v1160, %v1161
  %v1163 = vrot.slane %v1162, 1
  %v1164 = vmax.f32 %v1162, %v1163
  %v1165 = vsel %vm23, %v237, -inf
  %v1166 = vrot.slane %v1165, 4
  %v1167 = vmax.f32 %v1165, %v1166
  %v1168 = vrot.slane %v1167, 2
  %v1169 = vmax.f32 %v1167, %v1168
  %v1170 = vrot.slane %v1169, 1
  %v1171 = vmax.f32 %v1169, %v1170
  %v1172 = vsel %vm23, %v238, -inf
  %v1173 = vrot.slane %v1172, 4
  %v1174 = vmax.f32 %v1172, %v1173
  %v1175 = vrot.slane %v1174, 2
  %v1176 = vmax.f32 %v1174, %v1175
  %v1177 = vrot.slane %v1176, 1
  %v1178 = vmax.f32 %v1176, %v1177
  %v1179 = vsel %vm23, %v239, -inf
  %v1180 = vrot.slane %v1179, 4
  %v1181 = vmax.f32 %v1179, %v1180
  %v1182 = vrot.slane %v1181, 2
  %v1183 = vmax.f32 %v1181, %v1182
  %v1184 = vrot.slane %v1183, 1
  %v1185 = vmax.f32 %v1183, %v1184
  %v1186 = vsel %vm23, %v240, -inf
  %v1187 = vrot.slane %v1186, 4
  %v1188 = vmax.f32 %v1186, %v1187
  %v1189 = vrot.slane %v1188, 2
  %v1190 = vmax.f32 %v1188, %v1189
  %v1191 = vrot.slane %v1190, 1
  %v1192 = vmax.f32 %v1190, %v1191
  %v1193 = vsel %vm23, %v241, -inf
  %v1194 = vrot.slane %v1193, 4
  %v1195 = vmax.f32 %v1193, %v1194
  %v1196 = vrot.slane %v1195, 2
  %v1197 = vmax.f32 %v1195, %v1196
  %v1198 = vrot.slane %v1197, 1
  %v1199 = vmax.f32 %v1197, %v1198
  %v1200 = vsel %vm23, %v242, -inf
  %v1201 = vrot.slane %v1200, 4
  %v1202 = vmax.f32 %v1200, %v1201
  %v1203 = vrot.slane %v1202, 2
  %v1204 = vmax.f32 %v1202, %v1203
  %v1205 = vrot.slane %v1204, 1
  %v1206 = vmax.f32 %v1204, %v1205
  %v1207 = vsel %vm23, %v243, -inf
  %v1208 = vrot.slane %v1207, 4
  %v1209 = vmax.f32 %v1207, %v1208
  %v1210 = vrot.slane %v1209, 2
  %v1211 = vmax.f32 %v1209, %v1210
  %v1212 = vrot.slane %v1211, 1
  %v1213 = vmax.f32 %v1211, %v1212
  %v1214 = vsel %vm23, %v244, -inf
  %v1215 = vrot.slane %v1214, 4
  %v1216 = vmax.f32 %v1214, %v1215
  %v1217 = vrot.slane %v1216, 2
  %v1218 = vmax.f32 %v1216, %v1217
  %v1219 = vrot.slane %v1218, 1
  %v1220 = vmax.f32 %v1218, %v1219
  %v1221 = vsel %vm23, %v245, -inf
  %v1222 = vrot.slane %v1221, 4
  %v1223 = vmax.f32 %v1221, %v1222
  %v1224 = vrot.slane %v1223, 2
  %v1225 = vmax.f32 %v1223, %v1224
  %v1226 = vrot.slane %v1225, 1
  %v1227 = vmax.f32 %v1225, %v1226
  %v1228 = vsel %vm23, %v246, -inf
  %v1229 = vrot.slane %v1228, 4
  %v1230 = vmax.f32 %v1228, %v1229
  %v1231 = vrot.slane %v1230, 2
  %v1232 = vmax.f32 %v1230, %v1231
  %v1233 = vrot.slane %v1232, 1
  %v1234 = vmax.f32 %v1232, %v1233
  %v1235 = vsel %vm23, %v247, -inf
  %v1236 = vrot.slane %v1235, 4
  %v1237 = vmax.f32 %v1235, %v1236
  %v1238 = vrot.slane %v1237, 2
  %v1239 = vmax.f32 %v1237, %v1238
  %v1240 = vrot.slane %v1239, 1
  %v1241 = vmax.f32 %v1239, %v1240
  %v1242 = vsel %vm23, %v248, -inf
  %v1243 = vrot.slane %v1242, 4
  %v1244 = vmax.f32 %v1242, %v1243
  %v1245 = vrot.slane %v1244, 2
  %v1246 = vmax.f32 %v1244, %v1245
  %v1247 = vrot.slane %v1246, 1
  %v1248 = vmax.f32 %v1246, %v1247
  %v1249 = vsel %vm23, %v249, -inf
  %v1250 = vrot.slane %v1249, 4
  %v1251 = vmax.f32 %v1249, %v1250
  %v1252 = vrot.slane %v1251, 2
  %v1253 = vmax.f32 %v1251, %v1252
  %v1254 = vrot.slane %v1253, 1
  %v1255 = vmax.f32 %v1253, %v1254
  %v1256 = vsel %vm23, %v250, -inf
  %v1257 = vrot.slane %v1256, 4
  %v1258 = vmax.f32 %v1256, %v1257
  %v1259 = vrot.slane %v1258, 2
  %v1260 = vmax.f32 %v1258, %v1259
  %v1261 = vrot.slane %v1260, 1
  %v1262 = vmax.f32 %v1260, %v1261
  %v1263 = vsel %vm23, %v251, -inf
  %v1264 = vrot.slane %v1263, 4
  %v1265 = vmax.f32 %v1263, %v1264
  %v1266 = vrot.slane %v1265, 2
  %v1267 = vmax.f32 %v1265, %v1266
  %v1268 = vrot.slane %v1267, 1
  %v1269 = vmax.f32 %v1267, %v1268
  %v1270 = vsel %vm23, %v252, -inf
  %v1271 = vrot.slane %v1270, 4
  %v1272 = vmax.f32 %v1270, %v1271
  %v1273 = vrot.slane %v1272, 2
  %v1274 = vmax.f32 %v1272, %v1273
  %v1275 = vrot.slane %v1274, 1
  %v1276 = vmax.f32 %v1274, %v1275
  %v1277 = vsel %vm23, %v253, -inf
  %v1278 = vrot.slane %v1277, 4
  %v1279 = vmax.f32 %v1277, %v1278
  %v1280 = vrot.slane %v1279, 2
  %v1281 = vmax.f32 %v1279, %v1280
  %v1282 = vrot.slane %v1281, 1
  %v1283 = vmax.f32 %v1281, %v1282
  %v1284 = vsel %vm23, %v254, -inf
  %v1285 = vrot.slane %v1284, 4
  %v1286 = vmax.f32 %v1284, %v1285
  %v1287 = vrot.slane %v1286, 2
  %v1288 = vmax.f32 %v1286, %v1287
  %v1289 = vrot.slane %v1288, 1
  %v1290 = vmax.f32 %v1288, %v1289
  %v1291 = vsel %vm23, %v255, -inf
  %v1292 = vrot.slane %v1291, 4
  %v1293 = vmax.f32 %v1291, %v1292
  %v1294 = vrot.slane %v1293, 2
  %v1295 = vmax.f32 %v1293, %v1294
  %v1296 = vrot.slane %v1295, 1
  %v1297 = vmax.f32 %v1295, %v1296
  %v1298 = vsel %vm23, %v256, -inf
  %v1299 = vrot.slane %v1298, 4
  %v1300 = vmax.f32 %v1298, %v1299
  %v1301 = vrot.slane %v1300, 2
  %v1302 = vmax.f32 %v1300, %v1301
  %v1303 = vrot.slane %v1302, 1
  %v1304 = vmax.f32 %v1302, %v1303
  %v1305 = vsel %vm23, %v257, -inf
  %v1306 = vrot.slane %v1305, 4
  %v1307 = vmax.f32 %v1305, %v1306
  %v1308 = vrot.slane %v1307, 2
  %v1309 = vmax.f32 %v1307, %v1308
  %v1310 = vrot.slane %v1309, 1
  %v1311 = vmax.f32 %v1309, %v1310
  %v1312 = vsel %vm23, %v258, -inf
  %v1313 = vrot.slane %v1312, 4
  %v1314 = vmax.f32 %v1312, %v1313
  %v1315 = vrot.slane %v1314, 2
  %v1316 = vmax.f32 %v1314, %v1315
  %v1317 = vrot.slane %v1316, 1
  %v1318 = vmax.f32 %v1316, %v1317
  %v1319 = vsel %vm23, %v259, -inf
  %v1320 = vrot.slane %v1319, 4
  %v1321 = vmax.f32 %v1319, %v1320
  %v1322 = vrot.slane %v1321, 2
  %v1323 = vmax.f32 %v1321, %v1322
  %v1324 = vrot.slane %v1323, 1
  %v1325 = vmax.f32 %v1323, %v1324
  %v1326 = vsel %vm23, %v260, -inf
  %v1327 = vrot.slane %v1326, 4
  %v1328 = vmax.f32 %v1326, %v1327
  %v1329 = vrot.slane %v1328, 2
  %v1330 = vmax.f32 %v1328, %v1329
  %v1331 = vrot.slane %v1330, 1
  %v1332 = vmax.f32 %v1330, %v1331
  %v1333 = vsel %vm23, %v261, -inf
  %v1334 = vrot.slane %v1333, 4
  %v1335 = vmax.f32 %v1333, %v1334
  %v1336 = vrot.slane %v1335, 2
  %v1337 = vmax.f32 %v1335, %v1336
  %v1338 = vrot.slane %v1337, 1
  %v1339 = vmax.f32 %v1337, %v1338
  %v1340 = vsel %vm23, %v262, -inf
  %v1341 = vrot.slane %v1340, 4
  %v1342 = vmax.f32 %v1340, %v1341
  %v1343 = vrot.slane %v1342, 2
  %v1344 = vmax.f32 %v1342, %v1343
  %v1345 = vrot.slane %v1344, 1
  %v1346 = vmax.f32 %v1344, %v1345
  %v1347 = vsel %vm23, %v263, -inf
  %v1348 = vrot.slane %v1347, 4
  %v1349 = vmax.f32 %v1347, %v1348
  %v1350 = vrot.slane %v1349, 2
  %v1351 = vmax.f32 %v1349, %v1350
  %v1352 = vrot.slane %v1351, 1
  %v1353 = vmax.f32 %v1351, %v1352
  %v1354 = vsel %vm23, %v264, -inf
  %v1355 = vrot.slane %v1354, 4
  %v1356 = vmax.f32 %v1354, %v1355
  %v1357 = vrot.slane %v1356, 2
  %v1358 = vmax.f32 %v1356, %v1357
  %v1359 = vrot.slane %v1358, 1
  %v1360 = vmax.f32 %v1358, %v1359
  %v1361 = vsel %vm23, %v265, -inf
  %v1362 = vrot.slane %v1361, 4
  %v1363 = vmax.f32 %v1361, %v1362
  %v1364 = vrot.slane %v1363, 2
  %v1365 = vmax.f32 %v1363, %v1364
  %v1366 = vrot.slane %v1365, 1
  %v1367 = vmax.f32 %v1365, %v1366
  %v1368 = vsel %vm23, %v266, -inf
  %v1369 = vrot.slane %v1368, 4
  %v1370 = vmax.f32 %v1368, %v1369
  %v1371 = vrot.slane %v1370, 2
  %v1372 = vmax.f32 %v1370, %v1371
  %v1373 = vrot.slane %v1372, 1
  %v1374 = vmax.f32 %v1372, %v1373
  %v1375 = vsel %vm23, %v267, -inf
  %v1376 = vrot.slane %v1375, 4
  %v1377 = vmax.f32 %v1375, %v1376
  %v1378 = vrot.slane %v1377, 2
  %v1379 = vmax.f32 %v1377, %v1378
  %v1380 = vrot.slane %v1379, 1
  %v1381 = vmax.f32 %v1379, %v1380
  %v1382 = vsel %vm23, %v268, -inf
  %v1383 = vrot.slane %v1382, 4
  %v1384 = vmax.f32 %v1382, %v1383
  %v1385 = vrot.slane %v1384, 2
  %v1386 = vmax.f32 %v1384, %v1385
  %v1387 = vrot.slane %v1386, 1
  %v1388 = vmax.f32 %v1386, %v1387
  %v1389 = vsel %vm23, %v269, -inf
  %v1390 = vrot.slane %v1389, 4
  %v1391 = vmax.f32 %v1389, %v1390
  %v1392 = vrot.slane %v1391, 2
  %v1393 = vmax.f32 %v1391, %v1392
  %v1394 = vrot.slane %v1393, 1
  %v1395 = vmax.f32 %v1393, %v1394
  %v1396 = vsel %vm23, %v270, -inf
  %v1397 = vrot.slane %v1396, 4
  %v1398 = vmax.f32 %v1396, %v1397
  %v1399 = vrot.slane %v1398, 2
  %v1400 = vmax.f32 %v1398, %v1399
  %v1401 = vrot.slane %v1400, 1
  %v1402 = vmax.f32 %v1400, %v1401
  %v1403 = vsel %vm23, %v271, -inf
  %v1404 = vrot.slane %v1403, 4
  %v1405 = vmax.f32 %v1403, %v1404
  %v1406 = vrot.slane %v1405, 2
  %v1407 = vmax.f32 %v1405, %v1406
  %v1408 = vrot.slane %v1407, 1
  %v1409 = vmax.f32 %v1407, %v1408
  %v1410 = vsel %vm23, %v272, -inf
  %v1411 = vrot.slane %v1410, 4
  %v1412 = vmax.f32 %v1410, %v1411
  %v1413 = vrot.slane %v1412, 2
  %v1414 = vmax.f32 %v1412, %v1413
  %v1415 = vrot.slane %v1414, 1
  %v1416 = vmax.f32 %v1414, %v1415
  %v1417 = vsel %vm23, %v273, -inf
  %v1418 = vrot.slane %v1417, 4
  %v1419 = vmax.f32 %v1417, %v1418
  %v1420 = vrot.slane %v1419, 2
  %v1421 = vmax.f32 %v1419, %v1420
  %v1422 = vrot.slane %v1421, 1
  %v1423 = vmax.f32 %v1421, %v1422
  %v1424 = vsel %vm23, %v274, -inf
  %v1425 = vrot.slane %v1424, 4
  %v1426 = vmax.f32 %v1424, %v1425
  %v1427 = vrot.slane %v1426, 2
  %v1428 = vmax.f32 %v1426, %v1427
  %v1429 = vrot.slane %v1428, 1
  %v1430 = vmax.f32 %v1428, %v1429
  %v1431 = vsel %vm23, %v275, -inf
  %v1432 = vrot.slane %v1431, 4
  %v1433 = vmax.f32 %v1431, %v1432
  %v1434 = vrot.slane %v1433, 2
  %v1435 = vmax.f32 %v1433, %v1434
  %v1436 = vrot.slane %v1435, 1
  %v1437 = vmax.f32 %v1435, %v1436
  %v1438 = vsel %vm23, %v276, -inf
  %v1439 = vrot.slane %v1438, 4
  %v1440 = vmax.f32 %v1438, %v1439
  %v1441 = vrot.slane %v1440, 2
  %v1442 = vmax.f32 %v1440, %v1441
  %v1443 = vrot.slane %v1442, 1
  %v1444 = vmax.f32 %v1442, %v1443
  %v1445 = vsel %vm23, %v277, -inf
  %v1446 = vrot.slane %v1445, 4
  %v1447 = vmax.f32 %v1445, %v1446
  %v1448 = vrot.slane %v1447, 2
  %v1449 = vmax.f32 %v1447, %v1448
  %v1450 = vrot.slane %v1449, 1
  %v1451 = vmax.f32 %v1449, %v1450
  %v1452 = vsel %vm23, %v278, -inf
  %v1453 = vrot.slane %v1452, 4
  %v1454 = vmax.f32 %v1452, %v1453
  %v1455 = vrot.slane %v1454, 2
  %v1456 = vmax.f32 %v1454, %v1455
  %v1457 = vrot.slane %v1456, 1
  %v1458 = vmax.f32 %v1456, %v1457
  %v1459 = vsel %vm23, %v279, -inf
  %v1460 = vrot.slane %v1459, 4
  %v1461 = vmax.f32 %v1459, %v1460
  %v1462 = vrot.slane %v1461, 2
  %v1463 = vmax.f32 %v1461, %v1462
  %v1464 = vrot.slane %v1463, 1
  %v1465 = vmax.f32 %v1463, %v1464
  %v1466 = vsel %vm23, %v280, -inf
  %v1467 = vrot.slane %v1466, 4
  %v1468 = vmax.f32 %v1466, %v1467
  %v1469 = vrot.slane %v1468, 2
  %v1470 = vmax.f32 %v1468, %v1469
  %v1471 = vrot.slane %v1470, 1
  %v1472 = vmax.f32 %v1470, %v1471
  %v1473 = vsel %vm23, %v281, -inf
  %v1474 = vrot.slane %v1473, 4
  %v1475 = vmax.f32 %v1473, %v1474
  %v1476 = vrot.slane %v1475, 2
  %v1477 = vmax.f32 %v1475, %v1476
  %v1478 = vrot.slane %v1477, 1
  %v1479 = vmax.f32 %v1477, %v1478
  %v1480 = vsel %vm23, %v282, -inf
  %v1481 = vrot.slane %v1480, 4
  %v1482 = vmax.f32 %v1480, %v1481
  %v1483 = vrot.slane %v1482, 2
  %v1484 = vmax.f32 %v1482, %v1483
  %v1485 = vrot.slane %v1484, 1
  %v1486 = vmax.f32 %v1484, %v1485
  %v1487 = vsel %vm23, %v283, -inf
  %v1488 = vrot.slane %v1487, 4
  %v1489 = vmax.f32 %v1487, %v1488
  %v1490 = vrot.slane %v1489, 2
  %v1491 = vmax.f32 %v1489, %v1490
  %v1492 = vrot.slane %v1491, 1
  %v1493 = vmax.f32 %v1491, %v1492
  %v1494 = vsel %vm23, %v284, -inf
  %v1495 = vrot.slane %v1494, 4
  %v1496 = vmax.f32 %v1494, %v1495
  %v1497 = vrot.slane %v1496, 2
  %v1498 = vmax.f32 %v1496, %v1497
  %v1499 = vrot.slane %v1498, 1
  %v1500 = vmax.f32 %v1498, %v1499
  %v1501 = vsel %vm23, %v285, -inf
  %v1502 = vrot.slane %v1501, 4
  %v1503 = vmax.f32 %v1501, %v1502
  %v1504 = vrot.slane %v1503, 2
  %v1505 = vmax.f32 %v1503, %v1504
  %v1506 = vrot.slane %v1505, 1
  %v1507 = vmax.f32 %v1505, %v1506
  %v1508 = vsel %vm23, %v286, -inf
  %v1509 = vrot.slane %v1508, 4
  %v1510 = vmax.f32 %v1508, %v1509
  %v1511 = vrot.slane %v1510, 2
  %v1512 = vmax.f32 %v1510, %v1511
  %v1513 = vrot.slane %v1512, 1
  %v1514 = vmax.f32 %v1512, %v1513
  %v1515 = vsel %vm23, %v287, -inf
  %v1516 = vrot.slane %v1515, 4
  %v1517 = vmax.f32 %v1515, %v1516
  %v1518 = vrot.slane %v1517, 2
  %v1519 = vmax.f32 %v1517, %v1518
  %v1520 = vrot.slane %v1519, 1
  %v1521 = vmax.f32 %v1519, %v1520
  %v1522 = vsel %vm23, %v288, -inf
  %v1523 = vrot.slane %v1522, 4
  %v1524 = vmax.f32 %v1522, %v1523
  %v1525 = vrot.slane %v1524, 2
  %v1526 = vmax.f32 %v1524, %v1525
  %v1527 = vrot.slane %v1526, 1
  %v1528 = vmax.f32 %v1526, %v1527
  %v1529 = vsel %vm23, %v289, -inf
  %v1530 = vrot.slane %v1529, 4
  %v1531 = vmax.f32 %v1529, %v1530
  %v1532 = vrot.slane %v1531, 2
  %v1533 = vmax.f32 %v1531, %v1532
  %v1534 = vrot.slane %v1533, 1
  %v1535 = vmax.f32 %v1533, %v1534
  %v1536 = vsel %vm23, %v290, -inf
  %v1537 = vrot.slane %v1536, 4
  %v1538 = vmax.f32 %v1536, %v1537
  %v1539 = vrot.slane %v1538, 2
  %v1540 = vmax.f32 %v1538, %v1539
  %v1541 = vrot.slane %v1540, 1
  %v1542 = vmax.f32 %v1540, %v1541
  %v1543 = vsel %vm23, %v291, -inf
  %v1544 = vrot.slane %v1543, 4
  %v1545 = vmax.f32 %v1543, %v1544
  %v1546 = vrot.slane %v1545, 2
  %v1547 = vmax.f32 %v1545, %v1546
  %v1548 = vrot.slane %v1547, 1
  %v1549 = vmax.f32 %v1547, %v1548
  %v1550 = vsel %vm23, %v292, -inf
  %v1551 = vrot.slane %v1550, 4
  %v1552 = vmax.f32 %v1550, %v1551
  %v1553 = vrot.slane %v1552, 2
  %v1554 = vmax.f32 %v1552, %v1553
  %v1555 = vrot.slane %v1554, 1
  %v1556 = vmax.f32 %v1554, %v1555
  %v1557 = vsel %vm23, %v293, -inf
  %v1558 = vrot.slane %v1557, 4
  %v1559 = vmax.f32 %v1557, %v1558
  %v1560 = vrot.slane %v1559, 2
  %v1561 = vmax.f32 %v1559, %v1560
  %v1562 = vrot.slane %v1561, 1
  %v1563 = vmax.f32 %v1561, %v1562
  %v1564 = vsel %vm23, %v294, -inf
  %v1565 = vrot.slane %v1564, 4
  %v1566 = vmax.f32 %v1564, %v1565
  %v1567 = vrot.slane %v1566, 2
  %v1568 = vmax.f32 %v1566, %v1567
  %v1569 = vrot.slane %v1568, 1
  %v1570 = vmax.f32 %v1568, %v1569
  %v1571 = vsel %vm23, %v295, -inf
  %v1572 = vrot.slane %v1571, 4
  %v1573 = vmax.f32 %v1571, %v1572
  %v1574 = vrot.slane %v1573, 2
  %v1575 = vmax.f32 %v1573, %v1574
  %v1576 = vrot.slane %v1575, 1
  %v1577 = vmax.f32 %v1575, %v1576
  %v1578 = vsel %vm23, %v296, -inf
  %v1579 = vrot.slane %v1578, 4
  %v1580 = vmax.f32 %v1578, %v1579
  %v1581 = vrot.slane %v1580, 2
  %v1582 = vmax.f32 %v1580, %v1581
  %v1583 = vrot.slane %v1582, 1
  %v1584 = vmax.f32 %v1582, %v1583
  %v1585 = vsel %vm23, %v297, -inf
  %v1586 = vrot.slane %v1585, 4
  %v1587 = vmax.f32 %v1585, %v1586
  %v1588 = vrot.slane %v1587, 2
  %v1589 = vmax.f32 %v1587, %v1588
  %v1590 = vrot.slane %v1589, 1
  %v1591 = vmax.f32 %v1589, %v1590
  %v1592 = vsel %vm23, %v298, -inf
  %v1593 = vrot.slane %v1592, 4
  %v1594 = vmax.f32 %v1592, %v1593
  %v1595 = vrot.slane %v1594, 2
  %v1596 = vmax.f32 %v1594, %v1595
  %v1597 = vrot.slane %v1596, 1
  %v1598 = vmax.f32 %v1596, %v1597
  %v1599 = vsel %vm23, %v299, -inf
  %v1600 = vrot.slane %v1599, 4
  %v1601 = vmax.f32 %v1599, %v1600
  %v1602 = vrot.slane %v1601, 2
  %v1603 = vmax.f32 %v1601, %v1602
  %v1604 = vrot.slane %v1603, 1
  %v1605 = vmax.f32 %v1603, %v1604
  %v1606 = vsel %vm23, %v300, -inf
  %v1607 = vrot.slane %v1606, 4
  %v1608 = vmax.f32 %v1606, %v1607
  %v1609 = vrot.slane %v1608, 2
  %v1610 = vmax.f32 %v1608, %v1609
  %v1611 = vrot.slane %v1610, 1
  %v1612 = vmax.f32 %v1610, %v1611
  %v1613 = vsel %vm23, %v301, -inf
  %v1614 = vrot.slane %v1613, 4
  %v1615 = vmax.f32 %v1613, %v1614
  %v1616 = vrot.slane %v1615, 2
  %v1617 = vmax.f32 %v1615, %v1616
  %v1618 = vrot.slane %v1617, 1
  %v1619 = vmax.f32 %v1617, %v1618
  %v1620 = vsel %vm23, %v302, -inf
  %v1621 = vrot.slane %v1620, 4
  %v1622 = vmax.f32 %v1620, %v1621
  %v1623 = vrot.slane %v1622, 2
  %v1624 = vmax.f32 %v1622, %v1623
  %v1625 = vrot.slane %v1624, 1
  %v1626 = vmax.f32 %v1624, %v1625
  %v1627 = vsel %vm23, %v303, -inf
  %v1628 = vrot.slane %v1627, 4
  %v1629 = vmax.f32 %v1627, %v1628
  %v1630 = vrot.slane %v1629, 2
  %v1631 = vmax.f32 %v1629, %v1630
  %v1632 = vrot.slane %v1631, 1
  %v1633 = vmax.f32 %v1631, %v1632
  %v1634 = vsel %vm23, %v304, -inf
  %v1635 = vrot.slane %v1634, 4
  %v1636 = vmax.f32 %v1634, %v1635
  %v1637 = vrot.slane %v1636, 2
  %v1638 = vmax.f32 %v1636, %v1637
  %v1639 = vrot.slane %v1638, 1
  %v1640 = vmax.f32 %v1638, %v1639
  %v1641 = vsel %vm23, %v305, -inf
  %v1642 = vrot.slane %v1641, 4
  %v1643 = vmax.f32 %v1641, %v1642
  %v1644 = vrot.slane %v1643, 2
  %v1645 = vmax.f32 %v1643, %v1644
  %v1646 = vrot.slane %v1645, 1
  %v1647 = vmax.f32 %v1645, %v1646
  %v1648 = vsel %vm23, %v306, -inf
  %v1649 = vrot.slane %v1648, 4
  %v1650 = vmax.f32 %v1648, %v1649
  %v1651 = vrot.slane %v1650, 2
  %v1652 = vmax.f32 %v1650, %v1651
  %v1653 = vrot.slane %v1652, 1
  %v1654 = vmax.f32 %v1652, %v1653
  %v1655 = vsel %vm23, %v307, -inf
  %v1656 = vrot.slane %v1655, 4
  %v1657 = vmax.f32 %v1655, %v1656
  %v1658 = vrot.slane %v1657, 2
  %v1659 = vmax.f32 %v1657, %v1658
  %v1660 = vrot.slane %v1659, 1
  %v1661 = vmax.f32 %v1659, %v1660
  %v1662 = vsel %vm23, %v308, -inf
  %v1663 = vrot.slane %v1662, 4
  %v1664 = vmax.f32 %v1662, %v1663
  %v1665 = vrot.slane %v1664, 2
  %v1666 = vmax.f32 %v1664, %v1665
  %v1667 = vrot.slane %v1666, 1
  %v1668 = vmax.f32 %v1666, %v1667
  %v1669 = vsel %vm23, %v309, -inf
  %v1670 = vrot.slane %v1669, 4
  %v1671 = vmax.f32 %v1669, %v1670
  %v1672 = vrot.slane %v1671, 2
  %v1673 = vmax.f32 %v1671, %v1672
  %v1674 = vrot.slane %v1673, 1
  %v1675 = vmax.f32 %v1673, %v1674
  %v1676 = vsel %vm23, %v310, -inf
  %v1677 = vrot.slane %v1676, 4
  %v1678 = vmax.f32 %v1676, %v1677
  %v1679 = vrot.slane %v1678, 2
  %v1680 = vmax.f32 %v1678, %v1679
  %v1681 = vrot.slane %v1680, 1
  %v1682 = vmax.f32 %v1680, %v1681
  %v1683 = vsel %vm23, %v311, -inf
  %v1684 = vrot.slane %v1683, 4
  %v1685 = vmax.f32 %v1683, %v1684
  %v1686 = vrot.slane %v1685, 2
  %v1687 = vmax.f32 %v1685, %v1686
  %v1688 = vrot.slane %v1687, 1
  %v1689 = vmax.f32 %v1687, %v1688
  %v1690 = vsel %vm23, %v312, -inf
  %v1691 = vrot.slane %v1690, 4
  %v1692 = vmax.f32 %v1690, %v1691
  %v1693 = vrot.slane %v1692, 2
  %v1694 = vmax.f32 %v1692, %v1693
  %v1695 = vrot.slane %v1694, 1
  %v1696 = vmax.f32 %v1694, %v1695
  %v1697 = vsel %vm23, %v313, -inf
  %v1698 = vrot.slane %v1697, 4
  %v1699 = vmax.f32 %v1697, %v1698
  %v1700 = vrot.slane %v1699, 2
  %v1701 = vmax.f32 %v1699, %v1700
  %v1702 = vrot.slane %v1701, 1
  %v1703 = vmax.f32 %v1701, %v1702
  %v1704 = vsel %vm23, %v314, -inf
  %v1705 = vrot.slane %v1704, 4
  %v1706 = vmax.f32 %v1704, %v1705
  %v1707 = vrot.slane %v1706, 2
  %v1708 = vmax.f32 %v1706, %v1707
  %v1709 = vrot.slane %v1708, 1
  %v1710 = vmax.f32 %v1708, %v1709
  %v1711 = vsel %vm23, %v315, -inf
  %v1712 = vrot.slane %v1711, 4
  %v1713 = vmax.f32 %v1711, %v1712
  %v1714 = vrot.slane %v1713, 2
  %v1715 = vmax.f32 %v1713, %v1714
  %v1716 = vrot.slane %v1715, 1
  %v1717 = vmax.f32 %v1715, %v1716
  %v1718 = vsel %vm23, %v316, -inf
  %v1719 = vrot.slane %v1718, 4
  %v1720 = vmax.f32 %v1718, %v1719
  %v1721 = vrot.slane %v1720, 2
  %v1722 = vmax.f32 %v1720, %v1721
  %v1723 = vrot.slane %v1722, 1
  %v1724 = vmax.f32 %v1722, %v1723
  %v1725 = vsel %vm23, %v317, -inf
  %v1726 = vrot.slane %v1725, 4
  %v1727 = vmax.f32 %v1725, %v1726
  %v1728 = vrot.slane %v1727, 2
  %v1729 = vmax.f32 %v1727, %v1728
  %v1730 = vrot.slane %v1729, 1
  %v1731 = vmax.f32 %v1729, %v1730
  %v1732 = vsel %vm23, %v318, -inf
  %v1733 = vrot.slane %v1732, 4
  %v1734 = vmax.f32 %v1732, %v1733
  %v1735 = vrot.slane %v1734, 2
  %v1736 = vmax.f32 %v1734, %v1735
  %v1737 = vrot.slane %v1736, 1
  %v1738 = vmax.f32 %v1736, %v1737
  %v1739 = vsel %vm23, %v319, -inf
  %v1740 = vrot.slane %v1739, 4
  %v1741 = vmax.f32 %v1739, %v1740
  %v1742 = vrot.slane %v1741, 2
  %v1743 = vmax.f32 %v1741, %v1742
  %v1744 = vrot.slane %v1743, 1
  %v1745 = vmax.f32 %v1743, %v1744
  %v1746 = vsel %vm23, %v320, -inf
  %v1747 = vrot.slane %v1746, 4
  %v1748 = vmax.f32 %v1746, %v1747
  %v1749 = vrot.slane %v1748, 2
  %v1750 = vmax.f32 %v1748, %v1749
  %v1751 = vrot.slane %v1750, 1
  %v1752 = vmax.f32 %v1750, %v1751
  %v1753 = vsel %vm23, %v321, -inf
  %v1754 = vrot.slane %v1753, 4
  %v1755 = vmax.f32 %v1753, %v1754
  %v1756 = vrot.slane %v1755, 2
  %v1757 = vmax.f32 %v1755, %v1756
  %v1758 = vrot.slane %v1757, 1
  %v1759 = vmax.f32 %v1757, %v1758
  %v1760 = vsel %vm23, %v322, -inf
  %v1761 = vrot.slane %v1760, 4
  %v1762 = vmax.f32 %v1760, %v1761
  %v1763 = vrot.slane %v1762, 2
  %v1764 = vmax.f32 %v1762, %v1763
  %v1765 = vrot.slane %v1764, 1
  %v1766 = vmax.f32 %v1764, %v1765
  %v1767 = vsel %vm23, %v323, -inf
  %v1768 = vrot.slane %v1767, 4
  %v1769 = vmax.f32 %v1767, %v1768
  %v1770 = vrot.slane %v1769, 2
  %v1771 = vmax.f32 %v1769, %v1770
  %v1772 = vrot.slane %v1771, 1
  %v1773 = vmax.f32 %v1771, %v1772
  %v1774 = vsel %vm23, %v324, -inf
  %v1775 = vrot.slane %v1774, 4
  %v1776 = vmax.f32 %v1774, %v1775
  %v1777 = vrot.slane %v1776, 2
  %v1778 = vmax.f32 %v1776, %v1777
  %v1779 = vrot.slane %v1778, 1
  %v1780 = vmax.f32 %v1778, %v1779
  %v1781 = vsel %vm23, %v325, -inf
  %v1782 = vrot.slane %v1781, 4
  %v1783 = vmax.f32 %v1781, %v1782
  %v1784 = vrot.slane %v1783, 2
  %v1785 = vmax.f32 %v1783, %v1784
  %v1786 = vrot.slane %v1785, 1
  %v1787 = vmax.f32 %v1785, %v1786
  %v1788 = vsel %vm23, %v326, -inf
  %v1789 = vrot.slane %v1788, 4
  %v1790 = vmax.f32 %v1788, %v1789
  %v1791 = vrot.slane %v1790, 2
  %v1792 = vmax.f32 %v1790, %v1791
  %v1793 = vrot.slane %v1792, 1
  %v1794 = vmax.f32 %v1792, %v1793
  %v1795 = vsel %vm23, %v327, -inf
  %v1796 = vrot.slane %v1795, 4
  %v1797 = vmax.f32 %v1795, %v1796
  %v1798 = vrot.slane %v1797, 2
  %v1799 = vmax.f32 %v1797, %v1798
  %v1800 = vrot.slane %v1799, 1
  %v1801 = vmax.f32 %v1799, %v1800
  %v1802 = vsel %vm23, %v328, -inf
  %v1803 = vrot.slane %v1802, 4
  %v1804 = vmax.f32 %v1802, %v1803
  %v1805 = vrot.slane %v1804, 2
  %v1806 = vmax.f32 %v1804, %v1805
  %v1807 = vrot.slane %v1806, 1
  %v1808 = vmax.f32 %v1806, %v1807
  %v1809 = vsel %vm23, %v329, -inf
  %v1810 = vrot.slane %v1809, 4
  %v1811 = vmax.f32 %v1809, %v1810
  %v1812 = vrot.slane %v1811, 2
  %v1813 = vmax.f32 %v1811, %v1812
  %v1814 = vrot.slane %v1813, 1
  %v1815 = vmax.f32 %v1813, %v1814
  %v1816 = vsel %vm23, %v330, -inf
  %v1817 = vrot.slane %v1816, 4
  %v1818 = vmax.f32 %v1816, %v1817
  %v1819 = vrot.slane %v1818, 2
  %v1820 = vmax.f32 %v1818, %v1819
  %v1821 = vrot.slane %v1820, 1
  %v1822 = vmax.f32 %v1820, %v1821
  %v1823 = vsel %vm23, %v331, -inf
  %v1824 = vrot.slane %v1823, 4
  %v1825 = vmax.f32 %v1823, %v1824
  %v1826 = vrot.slane %v1825, 2
  %v1827 = vmax.f32 %v1825, %v1826
  %v1828 = vrot.slane %v1827, 1
  %v1829 = vmax.f32 %v1827, %v1828
  %v1830 = vsel %vm23, %v332, -inf
  %v1831 = vrot.slane %v1830, 4
  %v1832 = vmax.f32 %v1830, %v1831
  %v1833 = vrot.slane %v1832, 2
  %v1834 = vmax.f32 %v1832, %v1833
  %v1835 = vrot.slane %v1834, 1
  %v1836 = vmax.f32 %v1834, %v1835
  %v1837 = vsel %vm23, %v333, -inf
  %v1838 = vrot.slane %v1837, 4
  %v1839 = vmax.f32 %v1837, %v1838
  %v1840 = vrot.slane %v1839, 2
  %v1841 = vmax.f32 %v1839, %v1840
  %v1842 = vrot.slane %v1841, 1
  %v1843 = vmax.f32 %v1841, %v1842
  %v1844 = vsel %vm23, %v334, -inf
  %v1845 = vrot.slane %v1844, 4
  %v1846 = vmax.f32 %v1844, %v1845
  %v1847 = vrot.slane %v1846, 2
  %v1848 = vmax.f32 %v1846, %v1847
  %v1849 = vrot.slane %v1848, 1
  %v1850 = vmax.f32 %v1848, %v1849
  %v1851 = vsel %vm23, %v335, -inf
  %v1852 = vrot.slane %v1851, 4
  %v1853 = vmax.f32 %v1851, %v1852
  %v1854 = vrot.slane %v1853, 2
  %v1855 = vmax.f32 %v1853, %v1854
  %v1856 = vrot.slane %v1855, 1
  %v1857 = vmax.f32 %v1855, %v1856
  %v1858 = vsel %vm23, %v336, -inf
  %v1859 = vrot.slane %v1858, 4
  %v1860 = vmax.f32 %v1858, %v1859
  %v1861 = vrot.slane %v1860, 2
  %v1862 = vmax.f32 %v1860, %v1861
  %v1863 = vrot.slane %v1862, 1
  %v1864 = vmax.f32 %v1862, %v1863
  %v1865 = vsel %vm23, %v337, -inf
  %v1866 = vrot.slane %v1865, 4
  %v1867 = vmax.f32 %v1865, %v1866
  %v1868 = vrot.slane %v1867, 2
  %v1869 = vmax.f32 %v1867, %v1868
  %v1870 = vrot.slane %v1869, 1
  %v1871 = vmax.f32 %v1869, %v1870
  %v1872 = vsel %vm23, %v338, -inf
  %v1873 = vrot.slane %v1872, 4
  %v1874 = vmax.f32 %v1872, %v1873
  %v1875 = vrot.slane %v1874, 2
  %v1876 = vmax.f32 %v1874, %v1875
  %v1877 = vrot.slane %v1876, 1
  %v1878 = vmax.f32 %v1876, %v1877
  %v1879 = vsel %vm23, %v339, -inf
  %v1880 = vrot.slane %v1879, 4
  %v1881 = vmax.f32 %v1879, %v1880
  %v1882 = vrot.slane %v1881, 2
  %v1883 = vmax.f32 %v1881, %v1882
  %v1884 = vrot.slane %v1883, 1
  %v1885 = vmax.f32 %v1883, %v1884
  %v1886 = vsel %vm23, %v340, -inf
  %v1887 = vrot.slane %v1886, 4
  %v1888 = vmax.f32 %v1886, %v1887
  %v1889 = vrot.slane %v1888, 2
  %v1890 = vmax.f32 %v1888, %v1889
  %v1891 = vrot.slane %v1890, 1
  %v1892 = vmax.f32 %v1890, %v1891
  %v1893 = vsel %vm23, %v341, -inf
  %v1894 = vrot.slane %v1893, 4
  %v1895 = vmax.f32 %v1893, %v1894
  %v1896 = vrot.slane %v1895, 2
  %v1897 = vmax.f32 %v1895, %v1896
  %v1898 = vrot.slane %v1897, 1
  %v1899 = vmax.f32 %v1897, %v1898
  %v1900 = vsel %vm23, %v342, -inf
  %v1901 = vrot.slane %v1900, 4
  %v1902 = vmax.f32 %v1900, %v1901
  %v1903 = vrot.slane %v1902, 2
  %v1904 = vmax.f32 %v1902, %v1903
  %v1905 = vrot.slane %v1904, 1
  %v1906 = vmax.f32 %v1904, %v1905
  %v1907 = vsel %vm23, %v343, -inf
  %v1908 = vrot.slane %v1907, 4
  %v1909 = vmax.f32 %v1907, %v1908
  %v1910 = vrot.slane %v1909, 2
  %v1911 = vmax.f32 %v1909, %v1910
  %v1912 = vrot.slane %v1911, 1
  %v1913 = vmax.f32 %v1911, %v1912
  %v1914 = vsel %vm23, %v344, -inf
  %v1915 = vrot.slane %v1914, 4
  %v1916 = vmax.f32 %v1914, %v1915
  %v1917 = vrot.slane %v1916, 2
  %v1918 = vmax.f32 %v1916, %v1917
  %v1919 = vrot.slane %v1918, 1
  %v1920 = vmax.f32 %v1918, %v1919
  %v1921 = vsel %vm23, %v345, -inf
  %v1922 = vrot.slane %v1921, 4
  %v1923 = vmax.f32 %v1921, %v1922
  %v1924 = vrot.slane %v1923, 2
  %v1925 = vmax.f32 %v1923, %v1924
  %v1926 = vrot.slane %v1925, 1
  %v1927 = vmax.f32 %v1925, %v1926
  %v1928 = vsel %vm23, %v346, -inf
  %v1929 = vrot.slane %v1928, 4
  %v1930 = vmax.f32 %v1928, %v1929
  %v1931 = vrot.slane %v1930, 2
  %v1932 = vmax.f32 %v1930, %v1931
  %v1933 = vrot.slane %v1932, 1
  %v1934 = vmax.f32 %v1932, %v1933
  %v1935 = vsel %vm23, %v347, -inf
  %v1936 = vrot.slane %v1935, 4
  %v1937 = vmax.f32 %v1935, %v1936
  %v1938 = vrot.slane %v1937, 2
  %v1939 = vmax.f32 %v1937, %v1938
  %v1940 = vrot.slane %v1939, 1
  %v1941 = vmax.f32 %v1939, %v1940
  %v1942 = vsel %vm23, %v348, -inf
  %v1943 = vrot.slane %v1942, 4
  %v1944 = vmax.f32 %v1942, %v1943
  %v1945 = vrot.slane %v1944, 2
  %v1946 = vmax.f32 %v1944, %v1945
  %v1947 = vrot.slane %v1946, 1
  %v1948 = vmax.f32 %v1946, %v1947
  %v1949 = vsel %vm23, %v349, -inf
  %v1950 = vrot.slane %v1949, 4
  %v1951 = vmax.f32 %v1949, %v1950
  %v1952 = vrot.slane %v1951, 2
  %v1953 = vmax.f32 %v1951, %v1952
  %v1954 = vrot.slane %v1953, 1
  %v1955 = vmax.f32 %v1953, %v1954
  %v1956 = vsel %vm23, %v350, -inf
  %v1957 = vrot.slane %v1956, 4
  %v1958 = vmax.f32 %v1956, %v1957
  %v1959 = vrot.slane %v1958, 2
  %v1960 = vmax.f32 %v1958, %v1959
  %v1961 = vrot.slane %v1960, 1
  %v1962 = vmax.f32 %v1960, %v1961
  %v1963 = vsel %vm23, %v351, -inf
  %v1964 = vrot.slane %v1963, 4
  %v1965 = vmax.f32 %v1963, %v1964
  %v1966 = vrot.slane %v1965, 2
  %v1967 = vmax.f32 %v1965, %v1966
  %v1968 = vrot.slane %v1967, 1
  %v1969 = vmax.f32 %v1967, %v1968
  %v1970 = vsel %vm23, %v352, -inf
  %v1971 = vrot.slane %v1970, 4
  %v1972 = vmax.f32 %v1970, %v1971
  %v1973 = vrot.slane %v1972, 2
  %v1974 = vmax.f32 %v1972, %v1973
  %v1975 = vrot.slane %v1974, 1
  %v1976 = vmax.f32 %v1974, %v1975
  %v1977 = vsel %vm23, %v353, -inf
  %v1978 = vrot.slane %v1977, 4
  %v1979 = vmax.f32 %v1977, %v1978
  %v1980 = vrot.slane %v1979, 2
  %v1981 = vmax.f32 %v1979, %v1980
  %v1982 = vrot.slane %v1981, 1
  %v1983 = vmax.f32 %v1981, %v1982
  %v1984 = vsel %vm23, %v354, -inf
  %v1985 = vrot.slane %v1984, 4
  %v1986 = vmax.f32 %v1984, %v1985
  %v1987 = vrot.slane %v1986, 2
  %v1988 = vmax.f32 %v1986, %v1987
  %v1989 = vrot.slane %v1988, 1
  %v1990 = vmax.f32 %v1988, %v1989
  %v1991 = vsel %vm23, %v355, -inf
  %v1992 = vrot.slane %v1991, 4
  %v1993 = vmax.f32 %v1991, %v1992
  %v1994 = vrot.slane %v1993, 2
  %v1995 = vmax.f32 %v1993, %v1994
  %v1996 = vrot.slane %v1995, 1
  %v1997 = vmax.f32 %v1995, %v1996
  %v1998 = vsel %vm23, %v356, -inf
  %v1999 = vrot.slane %v1998, 4
  %v2000 = vmax.f32 %v1998, %v1999
  %v2001 = vrot.slane %v2000, 2
  %v2002 = vmax.f32 %v2000, %v2001
  %v2003 = vrot.slane %v2002, 1
  %v2004 = vmax.f32 %v2002, %v2003
  %v2005 = vsel %vm23, %v357, -inf
  %v2006 = vrot.slane %v2005, 4
  %v2007 = vmax.f32 %v2005, %v2006
  %v2008 = vrot.slane %v2007, 2
  %v2009 = vmax.f32 %v2007, %v2008
  %v2010 = vrot.slane %v2009, 1
  %v2011 = vmax.f32 %v2009, %v2010
  %v2012 = vsel %vm23, %v358, -inf
  %v2013 = vrot.slane %v2012, 4
  %v2014 = vmax.f32 %v2012, %v2013
  %v2015 = vrot.slane %v2014, 2
  %v2016 = vmax.f32 %v2014, %v2015
  %v2017 = vrot.slane %v2016, 1
  %v2018 = vmax.f32 %v2016, %v2017
  %v2019 = vsel %vm23, %v359, -inf
  %v2020 = vrot.slane %v2019, 4
  %v2021 = vmax.f32 %v2019, %v2020
  %v2022 = vrot.slane %v2021, 2
  %v2023 = vmax.f32 %v2021, %v2022
  %v2024 = vrot.slane %v2023, 1
  %v2025 = vmax.f32 %v2023, %v2024
  %v2026 = vsel %vm23, %v360, -inf
  %v2027 = vrot.slane %v2026, 4
  %v2028 = vmax.f32 %v2026, %v2027
  %v2029 = vrot.slane %v2028, 2
  %v2030 = vmax.f32 %v2028, %v2029
  %v2031 = vrot.slane %v2030, 1
  %v2032 = vmax.f32 %v2030, %v2031
  %v2033 = vsel %vm23, %v361, -inf
  %v2034 = vrot.slane %v2033, 4
  %v2035 = vmax.f32 %v2033, %v2034
  %v2036 = vrot.slane %v2035, 2
  %v2037 = vmax.f32 %v2035, %v2036
  %v2038 = vrot.slane %v2037, 1
  %v2039 = vmax.f32 %v2037, %v2038
  %v2040 = vsel %vm23, %v362, -inf
  %v2041 = vrot.slane %v2040, 4
  %v2042 = vmax.f32 %v2040, %v2041
  %v2043 = vrot.slane %v2042, 2
  %v2044 = vmax.f32 %v2042, %v2043
  %v2045 = vrot.slane %v2044, 1
  %v2046 = vmax.f32 %v2044, %v2045
  %v2047 = vsel %vm23, %v363, -inf
  %v2048 = vrot.slane %v2047, 4
  %v2049 = vmax.f32 %v2047, %v2048
  %v2050 = vrot.slane %v2049, 2
  %v2051 = vmax.f32 %v2049, %v2050
  %v2052 = vrot.slane %v2051, 1
  %v2053 = vmax.f32 %v2051, %v2052
  %v2054 = vsel %vm23, %v364, -inf
  %v2055 = vrot.slane %v2054, 4
  %v2056 = vmax.f32 %v2054, %v2055
  %v2057 = vrot.slane %v2056, 2
  %v2058 = vmax.f32 %v2056, %v2057
  %v2059 = vrot.slane %v2058, 1
  %v2060 = vmax.f32 %v2058, %v2059
  %v2061 = vsel %vm23, %v365, -inf
  %v2062 = vrot.slane %v2061, 4
  %v2063 = vmax.f32 %v2061, %v2062
  %v2064 = vrot.slane %v2063, 2
  %v2065 = vmax.f32 %v2063, %v2064
  %v2066 = vrot.slane %v2065, 1
  %v2067 = vmax.f32 %v2065, %v2066
  %v2068 = vsel %vm23, %v366, -inf
  %v2069 = vrot.slane %v2068, 4
  %v2070 = vmax.f32 %v2068, %v2069
  %v2071 = vrot.slane %v2070, 2
  %v2072 = vmax.f32 %v2070, %v2071
  %v2073 = vrot.slane %v2072, 1
  %v2074 = vmax.f32 %v2072, %v2073
  %v2075 = vsel %vm23, %v367, -inf
  %v2076 = vrot.slane %v2075, 4
  %v2077 = vmax.f32 %v2075, %v2076
  %v2078 = vrot.slane %v2077, 2
  %v2079 = vmax.f32 %v2077, %v2078
  %v2080 = vrot.slane %v2079, 1
  %v2081 = vmax.f32 %v2079, %v2080
  %v2082 = vsel %vm23, %v368, -inf
  %v2083 = vrot.slane %v2082, 4
  %v2084 = vmax.f32 %v2082, %v2083
  %v2085 = vrot.slane %v2084, 2
  %v2086 = vmax.f32 %v2084, %v2085
  %v2087 = vrot.slane %v2086, 1
  %v2088 = vmax.f32 %v2086, %v2087
  %v2089 = vsel %vm23, %v369, -inf
  %v2090 = vrot.slane %v2089, 4
  %v2091 = vmax.f32 %v2089, %v2090
  %v2092 = vrot.slane %v2091, 2
  %v2093 = vmax.f32 %v2091, %v2092
  %v2094 = vrot.slane %v2093, 1
  %v2095 = vmax.f32 %v2093, %v2094
  %v2096 = vsel %vm23, %v370, -inf
  %v2097 = vrot.slane %v2096, 4
  %v2098 = vmax.f32 %v2096, %v2097
  %v2099 = vrot.slane %v2098, 2
  %v2100 = vmax.f32 %v2098, %v2099
  %v2101 = vrot.slane %v2100, 1
  %v2102 = vmax.f32 %v2100, %v2101
  %v2103 = vsel %vm23, %v371, -inf
  %v2104 = vrot.slane %v2103, 4
  %v2105 = vmax.f32 %v2103, %v2104
  %v2106 = vrot.slane %v2105, 2
  %v2107 = vmax.f32 %v2105, %v2106
  %v2108 = vrot.slane %v2107, 1
  %v2109 = vmax.f32 %v2107, %v2108
  %v2110 = vsel %vm23, %v372, -inf
  %v2111 = vrot.slane %v2110, 4
  %v2112 = vmax.f32 %v2110, %v2111
  %v2113 = vrot.slane %v2112, 2
  %v2114 = vmax.f32 %v2112, %v2113
  %v2115 = vrot.slane %v2114, 1
  %v2116 = vmax.f32 %v2114, %v2115
  %v2117 = vsel %vm23, %v373, -inf
  %v2118 = vrot.slane %v2117, 4
  %v2119 = vmax.f32 %v2117, %v2118
  %v2120 = vrot.slane %v2119, 2
  %v2121 = vmax.f32 %v2119, %v2120
  %v2122 = vrot.slane %v2121, 1
  %v2123 = vmax.f32 %v2121, %v2122
  %v2124 = vsel %vm23, %v374, -inf
  %v2125 = vrot.slane %v2124, 4
  %v2126 = vmax.f32 %v2124, %v2125
  %v2127 = vrot.slane %v2126, 2
  %v2128 = vmax.f32 %v2126, %v2127
  %v2129 = vrot.slane %v2128, 1
  %v2130 = vmax.f32 %v2128, %v2129
  %v2131 = vsel %vm23, %v375, -inf
  %v2132 = vrot.slane %v2131, 4
  %v2133 = vmax.f32 %v2131, %v2132
  %v2134 = vrot.slane %v2133, 2
  %v2135 = vmax.f32 %v2133, %v2134
  %v2136 = vrot.slane %v2135, 1
  %v2137 = vmax.f32 %v2135, %v2136
  %v2138 = vsel %vm23, %v376, -inf
  %v2139 = vrot.slane %v2138, 4
  %v2140 = vmax.f32 %v2138, %v2139
  %v2141 = vrot.slane %v2140, 2
  %v2142 = vmax.f32 %v2140, %v2141
  %v2143 = vrot.slane %v2142, 1
  %v2144 = vmax.f32 %v2142, %v2143
  %v2145 = vsel %vm23, %v377, -inf
  %v2146 = vrot.slane %v2145, 4
  %v2147 = vmax.f32 %v2145, %v2146
  %v2148 = vrot.slane %v2147, 2
  %v2149 = vmax.f32 %v2147, %v2148
  %v2150 = vrot.slane %v2149, 1
  %v2151 = vmax.f32 %v2149, %v2150
  %v2152 = vsel %vm23, %v378, -inf
  %v2153 = vrot.slane %v2152, 4
  %v2154 = vmax.f32 %v2152, %v2153
  %v2155 = vrot.slane %v2154, 2
  %v2156 = vmax.f32 %v2154, %v2155
  %v2157 = vrot.slane %v2156, 1
  %v2158 = vmax.f32 %v2156, %v2157
  %v2159 = vsel %vm23, %v379, -inf
  %v2160 = vrot.slane %v2159, 4
  %v2161 = vmax.f32 %v2159, %v2160
  %v2162 = vrot.slane %v2161, 2
  %v2163 = vmax.f32 %v2161, %v2162
  %v2164 = vrot.slane %v2163, 1
  %v2165 = vmax.f32 %v2163, %v2164
  %v2166 = vsel %vm23, %v380, -inf
  %v2167 = vrot.slane %v2166, 4
  %v2168 = vmax.f32 %v2166, %v2167
  %v2169 = vrot.slane %v2168, 2
  %v2170 = vmax.f32 %v2168, %v2169
  %v2171 = vrot.slane %v2170, 1
  %v2172 = vmax.f32 %v2170, %v2171
  %v2173 = vsel %vm21, %v387, -inf
  %v2174 = vsel %vm21, %v443, -inf
  %v2175 = vmax.f32 %v2173, %v2174
  %v2176 = vsel %vm21, %v394, -inf
  %v2177 = vsel %vm21, %v450, -inf
  %v2178 = vmax.f32 %v2176, %v2177
  %v2179 = vsel %vm21, %v401, -inf
  %v2180 = vsel %vm21, %v457, -inf
  %v2181 = vmax.f32 %v2179, %v2180
  %v2182 = vsel %vm21, %v408, -inf
  %v2183 = vsel %vm21, %v464, -inf
  %v2184 = vmax.f32 %v2182, %v2183
  %v2185 = vsel %vm21, %v415, -inf
  %v2186 = vsel %vm21, %v471, -inf
  %v2187 = vmax.f32 %v2185, %v2186
  %v2188 = vsel %vm21, %v422, -inf
  %v2189 = vsel %vm21, %v478, -inf
  %v2190 = vmax.f32 %v2188, %v2189
  %v2191 = vsel %vm21, %v429, -inf
  %v2192 = vsel %vm21, %v485, -inf
  %v2193 = vmax.f32 %v2191, %v2192
  %v2194 = vsel %vm21, %v436, -inf
  %v2195 = vsel %vm21, %v492, -inf
  %v2196 = vmax.f32 %v2194, %v2195
  %v2197 = vsel %vm21, %v499, -inf
  %v2198 = vsel %vm21, %v555, -inf
  %v2199 = vmax.f32 %v2197, %v2198
  %v2200 = vsel %vm21, %v506, -inf
  %v2201 = vsel %vm21, %v562, -inf
  %v2202 = vmax.f32 %v2200, %v2201
  %v2203 = vsel %vm21, %v513, -inf
  %v2204 = vsel %vm21, %v569, -inf
  %v2205 = vmax.f32 %v2203, %v2204
  %v2206 = vsel %vm21, %v520, -inf
  %v2207 = vsel %vm21, %v576, -inf
  %v2208 = vmax.f32 %v2206, %v2207
  %v2209 = vsel %vm21, %v527, -inf
  %v2210 = vsel %vm21, %v583, -inf
  %v2211 = vmax.f32 %v2209, %v2210
  %v2212 = vsel %vm21, %v534, -inf
  %v2213 = vsel %vm21, %v590, -inf
  %v2214 = vmax.f32 %v2212, %v2213
  %v2215 = vsel %vm21, %v541, -inf
  %v2216 = vsel %vm21, %v597, -inf
  %v2217 = vmax.f32 %v2215, %v2216
  %v2218 = vsel %vm21, %v548, -inf
  %v2219 = vsel %vm21, %v604, -inf
  %v2220 = vmax.f32 %v2218, %v2219
  %v2221 = vsel %vm21, %v611, -inf
  %v2222 = vsel %vm21, %v667, -inf
  %v2223 = vmax.f32 %v2221, %v2222
  %v2224 = vsel %vm21, %v618, -inf
  %v2225 = vsel %vm21, %v674, -inf
  %v2226 = vmax.f32 %v2224, %v2225
  %v2227 = vsel %vm21, %v625, -inf
  %v2228 = vsel %vm21, %v681, -inf
  %v2229 = vmax.f32 %v2227, %v2228
  %v2230 = vsel %vm21, %v632, -inf
  %v2231 = vsel %vm21, %v688, -inf
  %v2232 = vmax.f32 %v2230, %v2231
  %v2233 = vsel %vm21, %v639, -inf
  %v2234 = vsel %vm21, %v695, -inf
  %v2235 = vmax.f32 %v2233, %v2234
  %v2236 = vsel %vm21, %v646, -inf
  %v2237 = vsel %vm21, %v702, -inf
  %v2238 = vmax.f32 %v2236, %v2237
  %v2239 = vsel %vm21, %v653, -inf
  %v2240 = vsel %vm21, %v709, -inf
  %v2241 = vmax.f32 %v2239, %v2240
  %v2242 = vsel %vm21, %v660, -inf
  %v2243 = vsel %vm21, %v716, -inf
  %v2244 = vmax.f32 %v2242, %v2243
  %v2245 = vsel %vm21, %v723, -inf
  %v2246 = vsel %vm21, %v779, -inf
  %v2247 = vmax.f32 %v2245, %v2246
  %v2248 = vsel %vm21, %v730, -inf
  %v2249 = vsel %vm21, %v786, -inf
  %v2250 = vmax.f32 %v2248, %v2249
  %v2251 = vsel %vm21, %v737, -inf
  %v2252 = vsel %vm21, %v793, -inf
  %v2253 = vmax.f32 %v2251, %v2252
  %v2254 = vsel %vm21, %v744, -inf
  %v2255 = vsel %vm21, %v800, -inf
  %v2256 = vmax.f32 %v2254, %v2255
  %v2257 = vsel %vm21, %v751, -inf
  %v2258 = vsel %vm21, %v807, -inf
  %v2259 = vmax.f32 %v2257, %v2258
  %v2260 = vsel %vm21, %v758, -inf
  %v2261 = vsel %vm21, %v814, -inf
  %v2262 = vmax.f32 %v2260, %v2261
  %v2263 = vsel %vm21, %v765, -inf
  %v2264 = vsel %vm21, %v821, -inf
  %v2265 = vmax.f32 %v2263, %v2264
  %v2266 = vsel %vm21, %v772, -inf
  %v2267 = vsel %vm21, %v828, -inf
  %v2268 = vmax.f32 %v2266, %v2267
  %v2269 = vsel %vm21, %v835, -inf
  %v2270 = vsel %vm21, %v891, -inf
  %v2271 = vmax.f32 %v2269, %v2270
  %v2272 = vsel %vm21, %v842, -inf
  %v2273 = vsel %vm21, %v898, -inf
  %v2274 = vmax.f32 %v2272, %v2273
  %v2275 = vsel %vm21, %v849, -inf
  %v2276 = vsel %vm21, %v905, -inf
  %v2277 = vmax.f32 %v2275, %v2276
  %v2278 = vsel %vm21, %v856, -inf
  %v2279 = vsel %vm21, %v912, -inf
  %v2280 = vmax.f32 %v2278, %v2279
  %v2281 = vsel %vm21, %v863, -inf
  %v2282 = vsel %vm21, %v919, -inf
  %v2283 = vmax.f32 %v2281, %v2282
  %v2284 = vsel %vm21, %v870, -inf
  %v2285 = vsel %vm21, %v926, -inf
  %v2286 = vmax.f32 %v2284, %v2285
  %v2287 = vsel %vm21, %v877, -inf
  %v2288 = vsel %vm21, %v933, -inf
  %v2289 = vmax.f32 %v2287, %v2288
  %v2290 = vsel %vm21, %v884, -inf
  %v2291 = vsel %vm21, %v940, -inf
  %v2292 = vmax.f32 %v2290, %v2291
  %v2293 = vsel %vm21, %v947, -inf
  %v2294 = vsel %vm21, %v1003, -inf
  %v2295 = vmax.f32 %v2293, %v2294
  %v2296 = vsel %vm21, %v954, -inf
  %v2297 = vsel %vm21, %v1010, -inf
  %v2298 = vmax.f32 %v2296, %v2297
  %v2299 = vsel %vm21, %v961, -inf
  %v2300 = vsel %vm21, %v1017, -inf
  %v2301 = vmax.f32 %v2299, %v2300
  %v2302 = vsel %vm21, %v968, -inf
  %v2303 = vsel %vm21, %v1024, -inf
  %v2304 = vmax.f32 %v2302, %v2303
  %v2305 = vsel %vm21, %v975, -inf
  %v2306 = vsel %vm21, %v1031, -inf
  %v2307 = vmax.f32 %v2305, %v2306
  %v2308 = vsel %vm21, %v982, -inf
  %v2309 = vsel %vm21, %v1038, -inf
  %v2310 = vmax.f32 %v2308, %v2309
  %v2311 = vsel %vm21, %v989, -inf
  %v2312 = vsel %vm21, %v1045, -inf
  %v2313 = vmax.f32 %v2311, %v2312
  %v2314 = vsel %vm21, %v996, -inf
  %v2315 = vsel %vm21, %v1052, -inf
  %v2316 = vmax.f32 %v2314, %v2315
  %v2317 = vsel %vm21, %v1059, -inf
  %v2318 = vsel %vm21, %v1115, -inf
  %v2319 = vmax.f32 %v2317, %v2318
  %v2320 = vsel %vm21, %v1066, -inf
  %v2321 = vsel %vm21, %v1122, -inf
  %v2322 = vmax.f32 %v2320, %v2321
  %v2323 = vsel %vm21, %v1073, -inf
  %v2324 = vsel %vm21, %v1129, -inf
  %v2325 = vmax.f32 %v2323, %v2324
  %v2326 = vsel %vm21, %v1080, -inf
  %v2327 = vsel %vm21, %v1136, -inf
  %v2328 = vmax.f32 %v2326, %v2327
  %v2329 = vsel %vm21, %v1087, -inf
  %v2330 = vsel %vm21, %v1143, -inf
  %v2331 = vmax.f32 %v2329, %v2330
  %v2332 = vsel %vm21, %v1094, -inf
  %v2333 = vsel %vm21, %v1150, -inf
  %v2334 = vmax.f32 %v2332, %v2333
  %v2335 = vsel %vm21, %v1101, -inf
  %v2336 = vsel %vm21, %v1157, -inf
  %v2337 = vmax.f32 %v2335, %v2336
  %v2338 = vsel %vm21, %v1108, -inf
  %v2339 = vsel %vm21, %v1164, -inf
  %v2340 = vmax.f32 %v2338, %v2339
  %v2341 = vsel %vm21, %v1171, -inf
  %v2342 = vsel %vm21, %v1227, -inf
  %v2343 = vmax.f32 %v2341, %v2342
  %v2344 = vsel %vm21, %v1178, -inf
  %v2345 = vsel %vm21, %v1234, -inf
  %v2346 = vmax.f32 %v2344, %v2345
  %v2347 = vsel %vm21, %v1185, -inf
  %v2348 = vsel %vm21, %v1241, -inf
  %v2349 = vmax.f32 %v2347, %v2348
  %v2350 = vsel %vm21, %v1192, -inf
  %v2351 = vsel %vm21, %v1248, -inf
  %v2352 = vmax.f32 %v2350, %v2351
  %v2353 = vsel %vm21, %v1199, -inf
  %v2354 = vsel %vm21, %v1255, -inf
  %v2355 = vmax.f32 %v2353, %v2354
  %v2356 = vsel %vm21, %v1206, -inf
  %v2357 = vsel %vm21, %v1262, -inf
  %v2358 = vmax.f32 %v2356, %v2357
  %v2359 = vsel %vm21, %v1213, -inf
  %v2360 = vsel %vm21, %v1269, -inf
  %v2361 = vmax.f32 %v2359, %v2360
  %v2362 = vsel %vm21, %v1220, -inf
  %v2363 = vsel %vm21, %v1276, -inf
  %v2364 = vmax.f32 %v2362, %v2363
  %v2365 = vsel %vm21, %v1283, -inf
  %v2366 = vsel %vm21, %v1339, -inf
  %v2367 = vmax.f32 %v2365, %v2366
  %v2368 = vsel %vm21, %v1290, -inf
  %v2369 = vsel %vm21, %v1346, -inf
  %v2370 = vmax.f32 %v2368, %v2369
  %v2371 = vsel %vm21, %v1297, -inf
  %v2372 = vsel %vm21, %v1353, -inf
  %v2373 = vmax.f32 %v2371, %v2372
  %v2374 = vsel %vm21, %v1304, -inf
  %v2375 = vsel %vm21, %v1360, -inf
  %v2376 = vmax.f32 %v2374, %v2375
  %v2377 = vsel %vm21, %v1311, -inf
  %v2378 = vsel %vm21, %v1367, -inf
  %v2379 = vmax.f32 %v2377, %v2378
  %v2380 = vsel %vm21, %v1318, -inf
  %v2381 = vsel %vm21, %v1374, -inf
  %v2382 = vmax.f32 %v2380, %v2381
  %v2383 = vsel %vm21, %v1325, -inf
  %v2384 = vsel %vm21, %v1381, -inf
  %v2385 = vmax.f32 %v2383, %v2384
  %v2386 = vsel %vm21, %v1332, -inf
  %v2387 = vsel %vm21, %v1388, -inf
  %v2388 = vmax.f32 %v2386, %v2387
  %v2389 = vsel %vm21, %v1395, -inf
  %v2390 = vsel %vm21, %v1451, -inf
  %v2391 = vmax.f32 %v2389, %v2390
  %v2392 = vsel %vm21, %v1402, -inf
  %v2393 = vsel %vm21, %v1458, -inf
  %v2394 = vmax.f32 %v2392, %v2393
  %v2395 = vsel %vm21, %v1409, -inf
  %v2396 = vsel %vm21, %v1465, -inf
  %v2397 = vmax.f32 %v2395, %v2396
  %v2398 = vsel %vm21, %v1416, -inf
  %v2399 = vsel %vm21, %v1472, -inf
  %v2400 = vmax.f32 %v2398, %v2399
  %v2401 = vsel %vm21, %v1423, -inf
  %v2402 = vsel %vm21, %v1479, -inf
  %v2403 = vmax.f32 %v2401, %v2402
  %v2404 = vsel %vm21, %v1430, -inf
  %v2405 = vsel %vm21, %v1486, -inf
  %v2406 = vmax.f32 %v2404, %v2405
  %v2407 = vsel %vm21, %v1437, -inf
  %v2408 = vsel %vm21, %v1493, -inf
  %v2409 = vmax.f32 %v2407, %v2408
  %v2410 = vsel %vm21, %v1444, -inf
  %v2411 = vsel %vm21, %v1500, -inf
  %v2412 = vmax.f32 %v2410, %v2411
  %v2413 = vsel %vm21, %v1507, -inf
  %v2414 = vsel %vm21, %v1563, -inf
  %v2415 = vmax.f32 %v2413, %v2414
  %v2416 = vsel %vm21, %v1514, -inf
  %v2417 = vsel %vm21, %v1570, -inf
  %v2418 = vmax.f32 %v2416, %v2417
  %v2419 = vsel %vm21, %v1521, -inf
  %v2420 = vsel %vm21, %v1577, -inf
  %v2421 = vmax.f32 %v2419, %v2420
  %v2422 = vsel %vm21, %v1528, -inf
  %v2423 = vsel %vm21, %v1584, -inf
  %v2424 = vmax.f32 %v2422, %v2423
  %v2425 = vsel %vm21, %v1535, -inf
  %v2426 = vsel %vm21, %v1591, -inf
  %v2427 = vmax.f32 %v2425, %v2426
  %v2428 = vsel %vm21, %v1542, -inf
  %v2429 = vsel %vm21, %v1598, -inf
  %v2430 = vmax.f32 %v2428, %v2429
  %v2431 = vsel %vm21, %v1549, -inf
  %v2432 = vsel %vm21, %v1605, -inf
  %v2433 = vmax.f32 %v2431, %v2432
  %v2434 = vsel %vm21, %v1556, -inf
  %v2435 = vsel %vm21, %v1612, -inf
  %v2436 = vmax.f32 %v2434, %v2435
  %v2437 = vsel %vm21, %v1619, -inf
  %v2438 = vsel %vm21, %v1675, -inf
  %v2439 = vmax.f32 %v2437, %v2438
  %v2440 = vsel %vm21, %v1626, -inf
  %v2441 = vsel %vm21, %v1682, -inf
  %v2442 = vmax.f32 %v2440, %v2441
  %v2443 = vsel %vm21, %v1633, -inf
  %v2444 = vsel %vm21, %v1689, -inf
  %v2445 = vmax.f32 %v2443, %v2444
  %v2446 = vsel %vm21, %v1640, -inf
  %v2447 = vsel %vm21, %v1696, -inf
  %v2448 = vmax.f32 %v2446, %v2447
  %v2449 = vsel %vm21, %v1647, -inf
  %v2450 = vsel %vm21, %v1703, -inf
  %v2451 = vmax.f32 %v2449, %v2450
  %v2452 = vsel %vm21, %v1654, -inf
  %v2453 = vsel %vm21, %v1710, -inf
  %v2454 = vmax.f32 %v2452, %v2453
  %v2455 = vsel %vm21, %v1661, -inf
  %v2456 = vsel %vm21, %v1717, -inf
  %v2457 = vmax.f32 %v2455, %v2456
  %v2458 = vsel %vm21, %v1668, -inf
  %v2459 = vsel %vm21, %v1724, -inf
  %v2460 = vmax.f32 %v2458, %v2459
  %v2461 = vsel %vm21, %v1731, -inf
  %v2462 = vsel %vm21, %v1787, -inf
  %v2463 = vmax.f32 %v2461, %v2462
  %v2464 = vsel %vm21, %v1738, -inf
  %v2465 = vsel %vm21, %v1794, -inf
  %v2466 = vmax.f32 %v2464, %v2465
  %v2467 = vsel %vm21, %v1745, -inf
  %v2468 = vsel %vm21, %v1801, -inf
  %v2469 = vmax.f32 %v2467, %v2468
  %v2470 = vsel %vm21, %v1752, -inf
  %v2471 = vsel %vm21, %v1808, -inf
  %v2472 = vmax.f32 %v2470, %v2471
  %v2473 = vsel %vm21, %v1759, -inf
  %v2474 = vsel %vm21, %v1815, -inf
  %v2475 = vmax.f32 %v2473, %v2474
  %v2476 = vsel %vm21, %v1766, -inf
  %v2477 = vsel %vm21, %v1822, -inf
  %v2478 = vmax.f32 %v2476, %v2477
  %v2479 = vsel %vm21, %v1773, -inf
  %v2480 = vsel %vm21, %v1829, -inf
  %v2481 = vmax.f32 %v2479, %v2480
  %v2482 = vsel %vm21, %v1780, -inf
  %v2483 = vsel %vm21, %v1836, -inf
  %v2484 = vmax.f32 %v2482, %v2483
  %v2485 = vsel %vm21, %v1843, -inf
  %v2486 = vsel %vm21, %v1899, -inf
  %v2487 = vmax.f32 %v2485, %v2486
  %v2488 = vsel %vm21, %v1850, -inf
  %v2489 = vsel %vm21, %v1906, -inf
  %v2490 = vmax.f32 %v2488, %v2489
  %v2491 = vsel %vm21, %v1857, -inf
  %v2492 = vsel %vm21, %v1913, -inf
  %v2493 = vmax.f32 %v2491, %v2492
  %v2494 = vsel %vm21, %v1864, -inf
  %v2495 = vsel %vm21, %v1920, -inf
  %v2496 = vmax.f32 %v2494, %v2495
  %v2497 = vsel %vm21, %v1871, -inf
  %v2498 = vsel %vm21, %v1927, -inf
  %v2499 = vmax.f32 %v2497, %v2498
  %v2500 = vsel %vm21, %v1878, -inf
  %v2501 = vsel %vm21, %v1934, -inf
  %v2502 = vmax.f32 %v2500, %v2501
  %v2503 = vsel %vm21, %v1885, -inf
  %v2504 = vsel %vm21, %v1941, -inf
  %v2505 = vmax.f32 %v2503, %v2504
  %v2506 = vsel %vm21, %v1892, -inf
  %v2507 = vsel %vm21, %v1948, -inf
  %v2508 = vmax.f32 %v2506, %v2507
  %v2509 = vsel %vm21, %v1955, -inf
  %v2510 = vsel %vm21, %v2011, -inf
  %v2511 = vmax.f32 %v2509, %v2510
  %v2512 = vsel %vm21, %v1962, -inf
  %v2513 = vsel %vm21, %v2018, -inf
  %v2514 = vmax.f32 %v2512, %v2513
  %v2515 = vsel %vm21, %v1969, -inf
  %v2516 = vsel %vm21, %v2025, -inf
  %v2517 = vmax.f32 %v2515, %v2516
  %v2518 = vsel %vm21, %v1976, -inf
  %v2519 = vsel %vm21, %v2032, -inf
  %v2520 = vmax.f32 %v2518, %v2519
  %v2521 = vsel %vm21, %v1983, -inf
  %v2522 = vsel %vm21, %v2039, -inf
  %v2523 = vmax.f32 %v2521, %v2522
  %v2524 = vsel %vm21, %v1990, -inf
  %v2525 = vsel %vm21, %v2046, -inf
  %v2526 = vmax.f32 %v2524, %v2525
  %v2527 = vsel %vm21, %v1997, -inf
  %v2528 = vsel %vm21, %v2053, -inf
  %v2529 = vmax.f32 %v2527, %v2528
  %v2530 = vsel %vm21, %v2004, -inf
  %v2531 = vsel %vm21, %v2060, -inf
  %v2532 = vmax.f32 %v2530, %v2531
  %v2533 = vsel %vm21, %v2067, -inf
  %v2534 = vsel %vm21, %v2123, -inf
  %v2535 = vmax.f32 %v2533, %v2534
  %v2536 = vsel %vm21, %v2074, -inf
  %v2537 = vsel %vm21, %v2130, -inf
  %v2538 = vmax.f32 %v2536, %v2537
  %v2539 = vsel %vm21, %v2081, -inf
  %v2540 = vsel %vm21, %v2137, -inf
  %v2541 = vmax.f32 %v2539, %v2540
  %v2542 = vsel %vm21, %v2088, -inf
  %v2543 = vsel %vm21, %v2144, -inf
  %v2544 = vmax.f32 %v2542, %v2543
  %v2545 = vsel %vm21, %v2095, -inf
  %v2546 = vsel %vm21, %v2151, -inf
  %v2547 = vmax.f32 %v2545, %v2546
  %v2548 = vsel %vm21, %v2102, -inf
  %v2549 = vsel %vm21, %v2158, -inf
  %v2550 = vmax.f32 %v2548, %v2549
  %v2551 = vsel %vm21, %v2109, -inf
  %v2552 = vsel %vm21, %v2165, -inf
  %v2553 = vmax.f32 %v2551, %v2552
  %v2554 = vsel %vm21, %v2116, -inf
  %v2555 = vsel %vm21, %v2172, -inf
  %v2556 = vmax.f32 %v2554, %v2555
  %vm2685 = vcmask 1041409
  %v2686 = vsel %vm2685, %v2178, %v2175
  %vm2687 = vcmask 1042434
  %v2688 = vsel %vm2687, %v2181, %v2686
  %vm2689 = vcmask 1043459
  %v2690 = vsel %vm2689, %v2184, %v2688
  %vm2691 = vcmask 1044484
  %v2692 = vsel %vm2691, %v2187, %v2690
  %vm2693 = vcmask 1045509
  %v2694 = vsel %vm2693, %v2190, %v2692
  %vm2695 = vcmask 1046534
  %v2696 = vsel %vm2695, %v2193, %v2694
  %vm2697 = vcmask 1047559
  %v2698 = vsel %vm2697, %v2196, %v2696
  %v2699 = vsel %vm2685, %v2202, %v2199
  %v2700 = vsel %vm2687, %v2205, %v2699
  %v2701 = vsel %vm2689, %v2208, %v2700
  %v2702 = vsel %vm2691, %v2211, %v2701
  %v2703 = vsel %vm2693, %v2214, %v2702
  %v2704 = vsel %vm2695, %v2217, %v2703
  %v2705 = vsel %vm2697, %v2220, %v2704
  %v2706 = vsel %vm2685, %v2226, %v2223
  %v2707 = vsel %vm2687, %v2229, %v2706
  %v2708 = vsel %vm2689, %v2232, %v2707
  %v2709 = vsel %vm2691, %v2235, %v2708
  %v2710 = vsel %vm2693, %v2238, %v2709
  %v2711 = vsel %vm2695, %v2241, %v2710
  %v2712 = vsel %vm2697, %v2244, %v2711
  %v2713 = vsel %vm2685, %v2250, %v2247
  %v2714 = vsel %vm2687, %v2253, %v2713
  %v2715 = vsel %vm2689, %v2256, %v2714
  %v2716 = vsel %vm2691, %v2259, %v2715
  %v2717 = vsel %vm2693, %v2262, %v2716
  %v2718 = vsel %vm2695, %v2265, %v2717
  %v2719 = vsel %vm2697, %v2268, %v2718
  %v2720 = vsel %vm2685, %v2274, %v2271
  %v2721 = vsel %vm2687, %v2277, %v2720
  %v2722 = vsel %vm2689, %v2280, %v2721
  %v2723 = vsel %vm2691, %v2283, %v2722
  %v2724 = vsel %vm2693, %v2286, %v2723
  %v2725 = vsel %vm2695, %v2289, %v2724
  %v2726 = vsel %vm2697, %v2292, %v2725
  %v2727 = vsel %vm2685, %v2298, %v2295
  %v2728 = vsel %vm2687, %v2301, %v2727
  %v2729 = vsel %vm2689, %v2304, %v2728
  %v2730 = vsel %vm2691, %v2307, %v2729
  %v2731 = vsel %vm2693, %v2310, %v2730
  %v2732 = vsel %vm2695, %v2313, %v2731
  %v2733 = vsel %vm2697, %v2316, %v2732
  %v2734 = vsel %vm2685, %v2322, %v2319
  %v2735 = vsel %vm2687, %v2325, %v2734
  %v2736 = vsel %vm2689, %v2328, %v2735
  %v2737 = vsel %vm2691, %v2331, %v2736
  %v2738 = vsel %vm2693, %v2334, %v2737
  %v2739 = vsel %vm2695, %v2337, %v2738
  %v2740 = vsel %vm2697, %v2340, %v2739
  %v2741 = vsel %vm2685, %v2346, %v2343
  %v2742 = vsel %vm2687, %v2349, %v2741
  %v2743 = vsel %vm2689, %v2352, %v2742
  %v2744 = vsel %vm2691, %v2355, %v2743
  %v2745 = vsel %vm2693, %v2358, %v2744
  %v2746 = vsel %vm2695, %v2361, %v2745
  %v2747 = vsel %vm2697, %v2364, %v2746
  %v2748 = vsel %vm2685, %v2370, %v2367
  %v2749 = vsel %vm2687, %v2373, %v2748
  %v2750 = vsel %vm2689, %v2376, %v2749
  %v2751 = vsel %vm2691, %v2379, %v2750
  %v2752 = vsel %vm2693, %v2382, %v2751
  %v2753 = vsel %vm2695, %v2385, %v2752
  %v2754 = vsel %vm2697, %v2388, %v2753
  %v2755 = vsel %vm2685, %v2394, %v2391
  %v2756 = vsel %vm2687, %v2397, %v2755
  %v2757 = vsel %vm2689, %v2400, %v2756
  %v2758 = vsel %vm2691, %v2403, %v2757
  %v2759 = vsel %vm2693, %v2406, %v2758
  %v2760 = vsel %vm2695, %v2409, %v2759
  %v2761 = vsel %vm2697, %v2412, %v2760
  %v2762 = vsel %vm2685, %v2418, %v2415
  %v2763 = vsel %vm2687, %v2421, %v2762
  %v2764 = vsel %vm2689, %v2424, %v2763
  %v2765 = vsel %vm2691, %v2427, %v2764
  %v2766 = vsel %vm2693, %v2430, %v2765
  %v2767 = vsel %vm2695, %v2433, %v2766
  %v2768 = vsel %vm2697, %v2436, %v2767
  %v2769 = vsel %vm2685, %v2442, %v2439
  %v2770 = vsel %vm2687, %v2445, %v2769
  %v2771 = vsel %vm2689, %v2448, %v2770
  %v2772 = vsel %vm2691, %v2451, %v2771
  %v2773 = vsel %vm2693, %v2454, %v2772
  %v2774 = vsel %vm2695, %v2457, %v2773
  %v2775 = vsel %vm2697, %v2460, %v2774
  %v2776 = vsel %vm2685, %v2466, %v2463
  %v2777 = vsel %vm2687, %v2469, %v2776
  %v2778 = vsel %vm2689, %v2472, %v2777
  %v2779 = vsel %vm2691, %v2475, %v2778
  %v2780 = vsel %vm2693, %v2478, %v2779
  %v2781 = vsel %vm2695, %v2481, %v2780
  %v2782 = vsel %vm2697, %v2484, %v2781
  %v2783 = vsel %vm2685, %v2490, %v2487
  %v2784 = vsel %vm2687, %v2493, %v2783
  %v2785 = vsel %vm2689, %v2496, %v2784
  %v2786 = vsel %vm2691, %v2499, %v2785
  %v2787 = vsel %vm2693, %v2502, %v2786
  %v2788 = vsel %vm2695, %v2505, %v2787
  %v2789 = vsel %vm2697, %v2508, %v2788
  %v2790 = vsel %vm2685, %v2514, %v2511
  %v2791 = vsel %vm2687, %v2517, %v2790
  %v2792 = vsel %vm2689, %v2520, %v2791
  %v2793 = vsel %vm2691, %v2523, %v2792
  %v2794 = vsel %vm2693, %v2526, %v2793
  %v2795 = vsel %vm2695, %v2529, %v2794
  %v2796 = vsel %vm2697, %v2532, %v2795
  %v2797 = vsel %vm2685, %v2538, %v2535
  %v2798 = vsel %vm2687, %v2541, %v2797
  %v2799 = vsel %vm2689, %v2544, %v2798
  %v2800 = vsel %vm2691, %v2547, %v2799
  %v2801 = vsel %vm2693, %v2550, %v2800
  %v2802 = vsel %vm2695, %v2553, %v2801
  %v2803 = vsel %vm2697, %v2556, %v2802
  %s2820 = scalar_lea.vmem [#allocation2], 16
  %2821 = vst.msk [vmem:[%s2820 + $0x1] sm:$0xff] %vm21, %v2698
  %2822 = vst.msk [vmem:[%s2820 + $0x11] sm:$0xff] %vm21, %v2705
  %2823 = vst.msk [vmem:[%s2820 + $0x21] sm:$0xff] %vm21, %v2712
  %2824 = vst.msk [vmem:[%s2820 + $0x31] sm:$0xff] %vm21, %v2719
  %2825 = vst.msk [vmem:[%s2820 + $0x41] sm:$0xff] %vm21, %v2726
  %2826 = vst.msk [vmem:[%s2820 + $0x51] sm:$0xff] %vm21, %v2733
  %2827 = vst.msk [vmem:[%s2820 + $0x61] sm:$0xff] %vm21, %v2740
  %2828 = vst.msk [vmem:[%s2820 + $0x71] sm:$0xff] %vm21, %v2747
  %2829 = vst.msk [vmem:[%s2820 + $0xa1] sm:$0xff] %vm21, %v2754
  %2830 = vst.msk [vmem:[%s2820 + $0xb1] sm:$0xff] %vm21, %v2761
  %2831 = vst.msk [vmem:[%s2820 + $0xc1] sm:$0xff] %vm21, %v2768
  %2832 = vst.msk [vmem:[%s2820 + $0xd1] sm:$0xff] %vm21, %v2775
  %2833 = vst.msk [vmem:[%s2820 + $0xe1] sm:$0xff] %vm21, %v2782
  %2834 = vst.msk [vmem:[%s2820 + $0xf1] sm:$0xff] %vm21, %v2789
  %2835 = vst.msk [vmem:[%s2820 + $0x101] sm:$0xff] %vm21, %v2796
  %2836 = vst.msk [vmem:[%s2820 + $0x111] sm:$0xff] %vm21, %v2803
  %v2837 = vld [vmem:[#allocation2] sm:$0xff]
  %v2838 = vld [vmem:[#allocation2 + $0x10] sm:$0xff]
  %v2839 = vld [vmem:[#allocation2 + $0x20] sm:$0xff]
  %v2840 = vld [vmem:[#allocation2 + $0x30] sm:$0xff]
  %v2841 = vld [vmem:[#allocation2 + $0x40] sm:$0xff]
  %v2842 = vld [vmem:[#allocation2 + $0x50] sm:$0xff]
  %v2843 = vld [vmem:[#allocation2 + $0x60] sm:$0xff]
  %v2844 = vld [vmem:[#allocation2 + $0x70] sm:$0xff]
  %v2845 = vld [vmem:[#allocation2 + $0xa0] sm:$0xff]
  %v2846 = vld [vmem:[#allocation2 + $0xb0] sm:$0xff]
  %v2847 = vld [vmem:[#allocation2 + $0xc0] sm:$0xff]
  %v2848 = vld [vmem:[#allocation2 + $0xd0] sm:$0xff]
  %v2849 = vld [vmem:[#allocation2 + $0xe0] sm:$0xff]
  %v2850 = vld [vmem:[#allocation2 + $0xf0] sm:$0xff]
  %v2851 = vld [vmem:[#allocation2 + $0x100] sm:$0xff]
  %v2852 = vld [vmem:[#allocation2 + $0x110] sm:$0xff]
  %v2853 = vpack.c.bf16 %v2837, %v2837
  %v2854 = vpack.c.bf16 %v2838, %v2838
  %v2855 = vpack.c.bf16 %v2839, %v2839
  %v2856 = vpack.c.bf16 %v2840, %v2840
  %v2857 = vpack.c.bf16 %v2841, %v2841
  %v2858 = vpack.c.bf16 %v2842, %v2842
  %v2859 = vpack.c.bf16 %v2843, %v2843
  %v2860 = vpack.c.bf16 %v2844, %v2844
  %v2861 = vpack.c.bf16 %v2845, %v2845
  %v2862 = vpack.c.bf16 %v2846, %v2846
  %v2863 = vpack.c.bf16 %v2847, %v2847
  %v2864 = vpack.c.bf16 %v2848, %v2848
  %v2865 = vpack.c.bf16 %v2849, %v2849
  %v2866 = vpack.c.bf16 %v2850, %v2850
  %v2867 = vpack.c.bf16 %v2851, %v2851
  %v2868 = vpack.c.bf16 %v2852, %v2852
  %v2869 = vld [vmem:[%s1] sm:$0x3]
  %v2870 = vld [vmem:[#allocation2 + $0x1] sm:$0xff]
  %v2871 = vld [vmem:[#allocation2 + $0x11] sm:$0xff]
  %v2872 = vld [vmem:[#allocation2 + $0x21] sm:$0xff]
  %v2873 = vld [vmem:[#allocation2 + $0x31] sm:$0xff]
  %v2874 = vld [vmem:[#allocation2 + $0x41] sm:$0xff]
  %v2875 = vld [vmem:[#allocation2 + $0x51] sm:$0xff]
  %v2876 = vld [vmem:[#allocation2 + $0x61] sm:$0xff]
  %v2877 = vld [vmem:[#allocation2 + $0x71] sm:$0xff]
  %v2878 = vld [vmem:[#allocation2 + $0xa1] sm:$0xff]
  %v2879 = vld [vmem:[#allocation2 + $0xb1] sm:$0xff]
  %v2880 = vld [vmem:[#allocation2 + $0xc1] sm:$0xff]
  %v2881 = vld [vmem:[#allocation2 + $0xd1] sm:$0xff]
  %v2882 = vld [vmem:[#allocation2 + $0xe1] sm:$0xff]
  %v2883 = vld [vmem:[#allocation2 + $0xf1] sm:$0xff]
  %v2884 = vld [vmem:[#allocation2 + $0x101] sm:$0xff]
  %v2885 = vld [vmem:[#allocation2 + $0x111] sm:$0xff]
  %v2886 = vpack.c.bf16 %v2870, %v2870
  %v2887 = vpack.c.bf16 %v2871, %v2871
  %v2888 = vpack.c.bf16 %v2872, %v2872
  %v2889 = vpack.c.bf16 %v2873, %v2873
  %v2890 = vpack.c.bf16 %v2874, %v2874
  %v2891 = vpack.c.bf16 %v2875, %v2875
  %v2892 = vpack.c.bf16 %v2876, %v2876
  %v2893 = vpack.c.bf16 %v2877, %v2877
  %v2894 = vpack.c.bf16 %v2878, %v2878
  %v2895 = vpack.c.bf16 %v2879, %v2879
  %v2896 = vpack.c.bf16 %v2880, %v2880
  %v2897 = vpack.c.bf16 %v2881, %v2881
  %v2898 = vpack.c.bf16 %v2882, %v2882
  %v2899 = vpack.c.bf16 %v2883, %v2883
  %v2900 = vpack.c.bf16 %v2884, %v2884
  %v2901 = vpack.c.bf16 %v2885, %v2885
  %s2902 = scalar_lea.vmem %s1, 2
  %v2903 = vld [vmem:[%s2902] sm:$0x3]
  %v2920 = vunpack.c.l.b16 %v2886
  %v2921 = vunpack.c.l.b16 %v2887
  %v2922 = vunpack.c.l.b16 %v2888
  %v2923 = vunpack.c.l.b16 %v2889
  %v2924 = vunpack.c.l.b16 %v2890
  %v2925 = vunpack.c.l.b16 %v2891
  %v2926 = vunpack.c.l.b16 %v2892
  %v2927 = vunpack.c.l.b16 %v2893
  %v2928 = vunpack.c.l.b16 %v2894
  %v2929 = vunpack.c.l.b16 %v2895
  %v2930 = vunpack.c.l.b16 %v2896
  %v2931 = vunpack.c.l.b16 %v2897
  %v2932 = vunpack.c.l.b16 %v2898
  %v2933 = vunpack.c.l.b16 %v2899
  %v2934 = vunpack.c.l.b16 %v2900
  %v2935 = vunpack.c.l.b16 %v2901
  %v2936 = vpack.c.b16 %v2921, %v2920
  %v2937 = vpack.c.b16 %v2923, %v2922
  %v2938 = vpack.c.b16 %v2925, %v2924
  %v2939 = vpack.c.b16 %v2927, %v2926
  %v2940 = vpack.c.b16 %v2929, %v2928
  %v2941 = vpack.c.b16 %v2931, %v2930
  %v2942 = vpack.c.b16 %v2933, %v2932
  %v2943 = vpack.c.b16 %v2935, %v2934
  %v2945 = vsel %vm21, %v2936, 0
  %v2948 = vsel %vm21, %v2937, 0
  %v2951 = vsel %vm21, %v2938, 0
  %v2954 = vsel %vm21, %v2939, 0
  %v2957 = vsel %vm21, %v2940, 0
  %v2960 = vsel %vm21, %v2941, 0
  %v2963 = vsel %vm21, %v2942, 0
  %v2966 = vsel %vm21, %v2943, 0
  %vm2968 = vcmask 1041408
  %v2970 = vsel %vm2968, %v2903, 0
  %2972 = vmatprep.subr.bf16.mxu0 0
  %2973 = vmatpush1.bf16.msra.mxu0 %v2970
  %2974 = vmatprep.subr.bf16.mxu0 0
  %2975 = vmatpush1.bf16.msra.mxu0 0
  %2976 = vmatprep.subr.bf16.mxu0 0
  %2977 = vmatpush1.bf16.msra.mxu0 0
  %2978 = vmatprep.subr.bf16.mxu0 0
  %2979 = vmatpush1.bf16.msra.mxu0 0
  %2980 = vmatprep.subr.bf16.mxu0 0
  %2981 = vmatpush1.bf16.msra.mxu0 0
  %2982 = vmatprep.subr.bf16.mxu0 0
  %2983 = vmatpush1.bf16.msra.mxu0 0
  %2984 = vmatprep.subr.bf16.mxu0 0
  %2985 = vmatpush1.bf16.msra.mxu0 0
  %2986 = vmatprep.subr.bf16.mxu0 0
  %2987 = vmatpush1.bf16.msra.mxu0 0
  %2988 = vmatprep.subr.bf16.mxu0 0
  %2989 = vmatpush1.bf16.msra.mxu0 0
  %2990 = vmatprep.subr.bf16.mxu0 0
  %2991 = vmatpush1.bf16.msra.mxu0 0
  %2992 = vmatprep.subr.bf16.mxu0 0
  %2993 = vmatpush1.bf16.msra.mxu0 0
  %2994 = vmatprep.subr.bf16.mxu0 0
  %2995 = vmatpush1.bf16.msra.mxu0 0
  %2996 = vmatprep.subr.bf16.mxu0 0
  %2997 = vmatpush1.bf16.msra.mxu0 0
  %2998 = vmatprep.subr.bf16.mxu0 0
  %2999 = vmatpush1.bf16.msra.mxu0 0
  %3000 = vmatprep.subr.bf16.mxu0 0
  %3001 = vmatpush1.bf16.msra.mxu0 0
  %3002 = vmatprep.subr.bf16.mxu0 0
  %3003 = vmatpush1.bf16.msra.mxu0 0
  %3004 = vmatprep.mubr.bf16.mxu0 0
  %3005 = vmatmul.mubr.bf16.gmra.mrb[0].mxu0 %v2945
  %v3006 = vpop.f32.mrb[0].mxu0
  %v3007 = vadd.f32 0.0, %v3006
  %v3008 = vpop.f32.mrb[0].mxu0
  %v3009 = vpop.f32.mrb[0].mxu0
  %v3010 = vadd.f32 0.0, %v3009
  %v3011 = vpop.f32.mrb[0].mxu0
  %3012 = vmatprep.mubr.bf16.mxu0 0
  %3013 = vmatmul.mubr.bf16.gmra.mrb[0].mxu0 %v2948
  %v3014 = vpop.f32.mrb[0].mxu0
  %v3015 = vadd.f32 0.0, %v3014
  %v3016 = vpop.f32.mrb[0].mxu0
  %v3017 = vpop.f32.mrb[0].mxu0
  %v3018 = vadd.f32 0.0, %v3017
  %v3019 = vpop.f32.mrb[0].mxu0
  %3020 = vmatprep.mubr.bf16.mxu0 0
  %3021 = vmatmul.mubr.bf16.gmra.mrb[0].mxu0 %v2951
  %v3022 = vpop.f32.mrb[0].mxu0
  %v3023 = vadd.f32 0.0, %v3022
  %v3024 = vpop.f32.mrb[0].mxu0
  %v3025 = vpop.f32.mrb[0].mxu0
  %v3026 = vadd.f32 0.0, %v3025
  %v3027 = vpop.f32.mrb[0].mxu0
  %3028 = vmatprep.mubr.bf16.mxu0 0
  %3029 = vmatmul.mubr.bf16.gmra.mrb[0].mxu0 %v2954
  %v3030 = vpop.f32.mrb[0].mxu0
  %v3031 = vadd.f32 0.0, %v3030
  %v3032 = vpop.f32.mrb[0].mxu0
  %v3033 = vpop.f32.mrb[0].mxu0
  %v3034 = vadd.f32 0.0, %v3033
  %v3035 = vpop.f32.mrb[0].mxu0
  %3036 = vmatprep.mubr.bf16.mxu0 0
  %3037 = vmatmul.mubr.bf16.gmra.mrb[0].mxu0 %v2957
  %v3038 = vpop.f32.mrb[0].mxu0
  %v3039 = vadd.f32 0.0, %v3038
  %v3040 = vpop.f32.mrb[0].mxu0
  %v3041 = vpop.f32.mrb[0].mxu0
  %v3042 = vadd.f32 0.0, %v3041
  %v3043 = vpop.f32.mrb[0].mxu0
  %3044 = vmatprep.mubr.bf16.mxu0 0
  %3045 = vmatmul.mubr.bf16.gmra.mrb[0].mxu0 %v2960
  %v3046 = vpop.f32.mrb[0].mxu0
  %v3047 = vadd.f32 0.0, %v3046
  %v3048 = vpop.f32.mrb[0].mxu0
  %v3049 = vpop.f32.mrb[0].mxu0
  %v3050 = vadd.f32 0.0, %v3049
  %v3051 = vpop.f32.mrb[0].mxu0
  %3052 = vmatprep.mubr.bf16.mxu0 0
  %3053 = vmatmul.mubr.bf16.gmra.mrb[0].mxu0 %v2963
  %v3054 = vpop.f32.mrb[0].mxu0
  %v3055 = vadd.f32 0.0, %v3054
  %v3056 = vpop.f32.mrb[0].mxu0
  %v3057 = vpop.f32.mrb[0].mxu0
  %v3058 = vadd.f32 0.0, %v3057
  %v3059 = vpop.f32.mrb[0].mxu0
  %3060 = vmatprep.mubr.bf16.mxu0 0
  %3061 = vmatmul.mubr.bf16.gmra.mrb[0].mxu0 %v2966
  %v3062 = vpop.f32.mrb[0].mxu0
  %v3063 = vadd.f32 0.0, %v3062
  %v3064 = vpop.f32.mrb[0].mxu0
  %v3065 = vpop.f32.mrb[0].mxu0
  %v3066 = vadd.f32 0.0, %v3065
  %v3067 = vpop.f32.mrb[0].mxu0
  %3068 = vdwg.mxu0
  %v3085 = vunpack.c.l.b16 %v2853
  %v3086 = vunpack.c.l.b16 %v2854
  %v3087 = vunpack.c.l.b16 %v2855
  %v3088 = vunpack.c.l.b16 %v2856
  %v3089 = vunpack.c.l.b16 %v2857
  %v3090 = vunpack.c.l.b16 %v2858
  %v3091 = vunpack.c.l.b16 %v2859
  %v3092 = vunpack.c.l.b16 %v2860
  %v3093 = vunpack.c.l.b16 %v2861
  %v3094 = vunpack.c.l.b16 %v2862
  %v3095 = vunpack.c.l.b16 %v2863
  %v3096 = vunpack.c.l.b16 %v2864
  %v3097 = vunpack.c.l.b16 %v2865
  %v3098 = vunpack.c.l.b16 %v2866
  %v3099 = vunpack.c.l.b16 %v2867
  %v3100 = vunpack.c.l.b16 %v2868
  %v3101 = vpack.c.b16 %v3086, %v3085
  %v3102 = vpack.c.b16 %v3088, %v3087
  %v3103 = vpack.c.b16 %v3090, %v3089
  %v3104 = vpack.c.b16 %v3092, %v3091
  %v3105 = vpack.c.b16 %v3094, %v3093
  %v3106 = vpack.c.b16 %v3096, %v3095
  %v3107 = vpack.c.b16 %v3098, %v3097
  %v3108 = vpack.c.b16 %v3100, %v3099
  %v3110 = vsel %vm21, %v3101, 0
  %v3113 = vsel %vm21, %v3102, 0
  %v3116 = vsel %vm21, %v3103, 0
  %v3119 = vsel %vm21, %v3104, 0
  %v3122 = vsel %vm21, %v3105, 0
  %v3125 = vsel %vm21, %v3106, 0
  %v3128 = vsel %vm21, %v3107, 0
  %v3131 = vsel %vm21, %v3108, 0
  %v3134 = vsel %vm2968, %v2869, 0
  %3136 = vmatprep.subr.bf16.mxu0 0
  %3137 = vmatpush1.bf16.msra.mxu0 %v3134
  %3138 = vmatprep.subr.bf16.mxu0 0
  %3139 = vmatpush1.bf16.msra.mxu0 0
  %3140 = vmatprep.subr.bf16.mxu0 0
  %3141 = vmatpush1.bf16.msra.mxu0 0
  %3142 = vmatprep.subr.bf16.mxu0 0
  %3143 = vmatpush1.bf16.msra.mxu0 0
  %3144 = vmatprep.subr.bf16.mxu0 0
  %3145 = vmatpush1.bf16.msra.mxu0 0
  %3146 = vmatprep.subr.bf16.mxu0 0
  %3147 = vmatpush1.bf16.msra.mxu0 0
  %3148 = vmatprep.subr.bf16.mxu0 0
  %3149 = vmatpush1.bf16.msra.mxu0 0
  %3150 = vmatprep.subr.bf16.mxu0 0
  %3151 = vmatpush1.bf16.msra.mxu0 0
  %3152 = vmatprep.subr.bf16.mxu0 0
  %3153 = vmatpush1.bf16.msra.mxu0 0
  %3154 = vmatprep.subr.bf16.mxu0 0
  %3155 = vmatpush1.bf16.msra.mxu0 0
  %3156 = vmatprep.subr.bf16.mxu0 0
  %3157 = vmatpush1.bf16.msra.mxu0 0
  %3158 = vmatprep.subr.bf16.mxu0 0
  %3159 = vmatpush1.bf16.msra.mxu0 0
  %3160 = vmatprep.subr.bf16.mxu0 0
  %3161 = vmatpush1.bf16.msra.mxu0 0
  %3162 = vmatprep.subr.bf16.mxu0 0
  %3163 = vmatpush1.bf16.msra.mxu0 0
  %3164 = vmatprep.subr.bf16.mxu0 0
  %3165 = vmatpush1.bf16.msra.mxu0 0
  %3166 = vmatprep.subr.bf16.mxu0 0
  %3167 = vmatpush1.bf16.msra.mxu0 0
  %3168 = vmatprep.mubr.bf16.mxu0 0
  %3169 = vmatmul.mubr.bf16.gmra.mrb[0].mxu0 %v3110
  %v3170 = vpop.f32.mrb[0].mxu0
  %v3171 = vadd.f32 %v3007, %v3170
  %v3172 = vpop.f32.mrb[0].mxu0
  %v3173 = vpop.f32.mrb[0].mxu0
  %v3174 = vadd.f32 %v3010, %v3173
  %v3175 = vpop.f32.mrb[0].mxu0
  %3176 = vmatprep.mubr.bf16.mxu0 0
  %3177 = vmatmul.mubr.bf16.gmra.mrb[0].mxu0 %v3113
  %v3178 = vpop.f32.mrb[0].mxu0
  %v3179 = vadd.f32 %v3015, %v3178
  %v3180 = vpop.f32.mrb[0].mxu0
  %v3181 = vpop.f32.mrb[0].mxu0
  %v3182 = vadd.f32 %v3018, %v3181
  %v3183 = vpop.f32.mrb[0].mxu0
  %3184 = vmatprep.mubr.bf16.mxu0 0
  %3185 = vmatmul.mubr.bf16.gmra.mrb[0].mxu0 %v3116
  %v3186 = vpop.f32.mrb[0].mxu0
  %v3187 = vadd.f32 %v3023, %v3186
  %v3188 = vpop.f32.mrb[0].mxu0
  %v3189 = vpop.f32.mrb[0].mxu0
  %v3190 = vadd.f32 %v3026, %v3189
  %v3191 = vpop.f32.mrb[0].mxu0
  %3192 = vmatprep.mubr.bf16.mxu0 0
  %3193 = vmatmul.mubr.bf16.gmra.mrb[0].mxu0 %v3119
  %v3194 = vpop.f32.mrb[0].mxu0
  %v3195 = vadd.f32 %v3031, %v3194
  %v3196 = vpop.f32.mrb[0].mxu0
  %v3197 = vpop.f32.mrb[0].mxu0
  %v3198 = vadd.f32 %v3034, %v3197
  %v3199 = vpop.f32.mrb[0].mxu0
  %3200 = vmatprep.mubr.bf16.mxu0 0
  %3201 = vmatmul.mubr.bf16.gmra.mrb[0].mxu0 %v3122
  %v3202 = vpop.f32.mrb[0].mxu0
  %v3203 = vadd.f32 %v3039, %v3202
  %v3204 = vpop.f32.mrb[0].mxu0
  %v3205 = vpop.f32.mrb[0].mxu0
  %v3206 = vadd.f32 %v3042, %v3205
  %v3207 = vpop.f32.mrb[0].mxu0
  %3208 = vmatprep.mubr.bf16.mxu0 0
  %3209 = vmatmul.mubr.bf16.gmra.mrb[0].mxu0 %v3125
  %v3210 = vpop.f32.mrb[0].mxu0
  %v3211 = vadd.f32 %v3047, %v3210
  %v3212 = vpop.f32.mrb[0].mxu0
  %v3213 = vpop.f32.mrb[0].mxu0
  %v3214 = vadd.f32 %v3050, %v3213
  %v3215 = vpop.f32.mrb[0].mxu0
  %3216 = vmatprep.mubr.bf16.mxu0 0
  %3217 = vmatmul.mubr.bf16.gmra.mrb[0].mxu0 %v3128
  %v3218 = vpop.f32.mrb[0].mxu0
  %v3219 = vadd.f32 %v3055, %v3218
  %v3220 = vpop.f32.mrb[0].mxu0
  %v3221 = vpop.f32.mrb[0].mxu0
  %v3222 = vadd.f32 %v3058, %v3221
  %v3223 = vpop.f32.mrb[0].mxu0
  %3224 = vmatprep.mubr.bf16.mxu0 0
  %3225 = vmatmul.mubr.bf16.gmra.mrb[0].mxu0 %v3131
  %v3226 = vpop.f32.mrb[0].mxu0
  %v3227 = vadd.f32 %v3063, %v3226
  %v3228 = vpop.f32.mrb[0].mxu0
  %v3229 = vpop.f32.mrb[0].mxu0
  %v3230 = vadd.f32 %v3066, %v3229
  %v3231 = vpop.f32.mrb[0].mxu0
  %3232 = vdwg.mxu0
  %v3233 = vld [vmem:[#allocation2 + $0x2] sm:$0xff]
  %v3234 = vld [vmem:[#allocation2 + $0x12] sm:$0xff]
  %v3235 = vld [vmem:[#allocation2 + $0x22] sm:$0xff]
  %v3236 = vld [vmem:[#allocation2 + $0x32] sm:$0xff]
  %v3237 = vld [vmem:[#allocation2 + $0x42] sm:$0xff]
  %v3238 = vld [vmem:[#allocation2 + $0x52] sm:$0xff]
  %v3239 = vld [vmem:[#allocation2 + $0x62] sm:$0xff]
  %v3240 = vld [vmem:[#allocation2 + $0x72] sm:$0xff]
  %v3241 = vld [vmem:[#allocation2 + $0xa2] sm:$0xff]
  %v3242 = vld [vmem:[#allocation2 + $0xb2] sm:$0xff]
  %v3243 = vld [vmem:[#allocation2 + $0xc2] sm:$0xff]
  %v3244 = vld [vmem:[#allocation2 + $0xd2] sm:$0xff]
  %v3245 = vld [vmem:[#allocation2 + $0xe2] sm:$0xff]
  %v3246 = vld [vmem:[#allocation2 + $0xf2] sm:$0xff]
  %v3247 = vld [vmem:[#allocation2 + $0x102] sm:$0xff]
  %v3248 = vld [vmem:[#allocation2 + $0x112] sm:$0xff]
  %v3249 = vpack.c.bf16 %v3233, %v3233
  %v3250 = vpack.c.bf16 %v3234, %v3234
  %v3251 = vpack.c.bf16 %v3235, %v3235
  %v3252 = vpack.c.bf16 %v3236, %v3236
  %v3253 = vpack.c.bf16 %v3237, %v3237
  %v3254 = vpack.c.bf16 %v3238, %v3238
  %v3255 = vpack.c.bf16 %v3239, %v3239
  %v3256 = vpack.c.bf16 %v3240, %v3240
  %v3257 = vpack.c.bf16 %v3241, %v3241
  %v3258 = vpack.c.bf16 %v3242, %v3242
  %v3259 = vpack.c.bf16 %v3243, %v3243
  %v3260 = vpack.c.bf16 %v3244, %v3244
  %v3261 = vpack.c.bf16 %v3245, %v3245
  %v3262 = vpack.c.bf16 %v3246, %v3246
  %v3263 = vpack.c.bf16 %v3247, %v3247
  %v3264 = vpack.c.bf16 %v3248, %v3248
  %s3265 = scalar_lea.vmem %s1, 4
  %v3266 = vld [vmem:[%s3265] sm:$0x3]
  %v3283 = vunpack.c.l.b16 %v3249
  %v3284 = vunpack.c.l.b16 %v3250
  %v3285 = vunpack.c.l.b16 %v3251
  %v3286 = vunpack.c.l.b16 %v3252
  %v3287 = vunpack.c.l.b16 %v3253
  %v3288 = vunpack.c.l.b16 %v3254
  %v3289 = vunpack.c.l.b16 %v3255
  %v3290 = vunpack.c.l.b16 %v3256
  %v3291 = vunpack.c.l.b16 %v3257
  %v3292 = vunpack.c.l.b16 %v3258
  %v3293 = vunpack.c.l.b16 %v3259
  %v3294 = vunpack.c.l.b16 %v3260
  %v3295 = vunpack.c.l.b16 %v3261
  %v3296 = vunpack.c.l.b16 %v3262
  %v3297 = vunpack.c.l.b16 %v3263
  %v3298 = vunpack.c.l.b16 %v3264
  %v3299 = vpack.c.b16 %v3284, %v3283
  %v3300 = vpack.c.b16 %v3286, %v3285
  %v3301 = vpack.c.b16 %v3288, %v3287
  %v3302 = vpack.c.b16 %v3290, %v3289
  %v3303 = vpack.c.b16 %v3292, %v3291
  %v3304 = vpack.c.b16 %v3294, %v3293
  %v3305 = vpack.c.b16 %v3296, %v3295
  %v3306 = vpack.c.b16 %v3298, %v3297
  %v3308 = vsel %vm21, %v3299, 0
  %v3311 = vsel %vm21, %v3300, 0
  %v3314 = vsel %vm21, %v3301, 0
  %v3317 = vsel %vm21, %v3302, 0
  %v3320 = vsel %vm21, %v3303, 0
  %v3323 = vsel %vm21, %v3304, 0
  %v3326 = vsel %vm21, %v3305, 0
  %v3329 = vsel %vm21, %v3306, 0
  %v3332 = vsel %vm2968, %v3266, 0
  %3334 = vmatprep.subr.bf16.mxu0 0
  %3335 = vmatpush1.bf16.msra.mxu0 %v3332
  %3336 = vmatprep.subr.bf16.mxu0 0
  %3337 = vmatpush1.bf16.msra.mxu0 0
  %3338 = vmatprep.subr.bf16.mxu0 0
  %3339 = vmatpush1.bf16.msra.mxu0 0
  %3340 = vmatprep.subr.bf16.mxu0 0
  %3341 = vmatpush1.bf16.msra.mxu0 0
  %3342 = vmatprep.subr.bf16.mxu0 0
  %3343 = vmatpush1.bf16.msra.mxu0 0
  %3344 = vmatprep.subr.bf16.mxu0 0
  %3345 = vmatpush1.bf16.msra.mxu0 0
  %3346 = vmatprep.subr.bf16.mxu0 0
  %3347 = vmatpush1.bf16.msra.mxu0 0
  %3348 = vmatprep.subr.bf16.mxu0 0
  %3349 = vmatpush1.bf16.msra.mxu0 0
  %3350 = vmatprep.subr.bf16.mxu0 0
  %3351 = vmatpush1.bf16.msra.mxu0 0
  %3352 = vmatprep.subr.bf16.mxu0 0
  %3353 = vmatpush1.bf16.msra.mxu0 0
  %3354 = vmatprep.subr.bf16.mxu0 0
  %3355 = vmatpush1.bf16.msra.mxu0 0
  %3356 = vmatprep.subr.bf16.mxu0 0
  %3357 = vmatpush1.bf16.msra.mxu0 0
  %3358 = vmatprep.subr.bf16.mxu0 0
  %3359 = vmatpush1.bf16.msra.mxu0 0
  %3360 = vmatprep.subr.bf16.mxu0 0
  %3361 = vmatpush1.bf16.msra.mxu0 0
  %3362 = vmatprep.subr.bf16.mxu0 0
  %3363 = vmatpush1.bf16.msra.mxu0 0
  %3364 = vmatprep.subr.bf16.mxu0 0
  %3365 = vmatpush1.bf16.msra.mxu0 0
  %3366 = vmatprep.mubr.bf16.mxu0 0
  %3367 = vmatmul.mubr.bf16.gmra.mrb[0].mxu0 %v3308
  %v3368 = vpop.f32.mrb[0].mxu0
  %v3369 = vadd.f32 0.0, %v3368
  %v3370 = vpop.f32.mrb[0].mxu0
  %v3371 = vpop.f32.mrb[0].mxu0
  %v3372 = vadd.f32 0.0, %v3371
  %v3373 = vpop.f32.mrb[0].mxu0
  %3374 = vmatprep.mubr.bf16.mxu0 0
  %3375 = vmatmul.mubr.bf16.gmra.mrb[0].mxu0 %v3311
  %v3376 = vpop.f32.mrb[0].mxu0
  %v3377 = vadd.f32 0.0, %v3376
  %v3378 = vpop.f32.mrb[0].mxu0
  %v3379 = vpop.f32.mrb[0].mxu0
  %v3380 = vadd.f32 0.0, %v3379
  %v3381 = vpop.f32.mrb[0].mxu0
  %3382 = vmatprep.mubr.bf16.mxu0 0
  %3383 = vmatmul.mubr.bf16.gmra.mrb[0].mxu0 %v3314
  %v3384 = vpop.f32.mrb[0].mxu0
  %v3385 = vadd.f32 0.0, %v3384
  %v3386 = vpop.f32.mrb[0].mxu0
  %v3387 = vpop.f32.mrb[0].mxu0
  %v3388 = vadd.f32 0.0, %v3387
  %v3389 = vpop.f32.mrb[0].mxu0
  %3390 = vmatprep.mubr.bf16.mxu0 0
  %3391 = vmatmul.mubr.bf16.gmra.mrb[0].mxu0 %v3317
  %v3392 = vpop.f32.mrb[0].mxu0
  %v3393 = vadd.f32 0.0, %v3392
  %v3394 = vpop.f32.mrb[0].mxu0
  %v3395 = vpop.f32.mrb[0].mxu0
  %v3396 = vadd.f32 0.0, %v3395
  %v3397 = vpop.f32.mrb[0].mxu0
  %3398 = vmatprep.mubr.bf16.mxu0 0
  %3399 = vmatmul.mubr.bf16.gmra.mrb[0].mxu0 %v3320
  %v3400 = vpop.f32.mrb[0].mxu0
  %v3401 = vadd.f32 0.0, %v3400
  %v3402 = vpop.f32.mrb[0].mxu0
  %v3403 = vpop.f32.mrb[0].mxu0
  %v3404 = vadd.f32 0.0, %v3403
  %v3405 = vpop.f32.mrb[0].mxu0
  %3406 = vmatprep.mubr.bf16.mxu0 0
  %3407 = vmatmul.mubr.bf16.gmra.mrb[0].mxu0 %v3323
  %v3408 = vpop.f32.mrb[0].mxu0
  %v3409 = vadd.f32 0.0, %v3408
  %v3410 = vpop.f32.mrb[0].mxu0
  %v3411 = vpop.f32.mrb[0].mxu0
  %v3412 = vadd.f32 0.0, %v3411
  %v3413 = vpop.f32.mrb[0].mxu0
  %3414 = vmatprep.mubr.bf16.mxu0 0
  %3415 = vmatmul.mubr.bf16.gmra.mrb[0].mxu0 %v3326
  %v3416 = vpop.f32.mrb[0].mxu0
  %v3417 = vadd.f32 0.0, %v3416
  %v3418 = vpop.f32.mrb[0].mxu0
  %v3419 = vpop.f32.mrb[0].mxu0
  %v3420 = vadd.f32 0.0, %v3419
  %v3421 = vpop.f32.mrb[0].mxu0
  %3422 = vmatprep.mubr.bf16.mxu0 0
  %3423 = vmatmul.mubr.bf16.gmra.mrb[0].mxu0 %v3329
  %v3424 = vpop.f32.mrb[0].mxu0
  %v3425 = vadd.f32 0.0, %v3424
  %v3426 = vpop.f32.mrb[0].mxu0
  %v3427 = vpop.f32.mrb[0].mxu0
  %v3428 = vadd.f32 0.0, %v3427
  %v3429 = vpop.f32.mrb[0].mxu0
  %3430 = vdwg.mxu0
  %v3431 = vadd.f32 %v3171, %v3369
  %v3432 = vadd.f32 %v3174, %v3372
  %v3433 = vadd.f32 %v3179, %v3377
  %v3434 = vadd.f32 %v3182, %v3380
  %v3435 = vadd.f32 %v3187, %v3385
  %v3436 = vadd.f32 %v3190, %v3388
  %v3437 = vadd.f32 %v3195, %v3393
  %v3438 = vadd.f32 %v3198, %v3396
  %v3439 = vadd.f32 %v3203, %v3401
  %v3440 = vadd.f32 %v3206, %v3404
  %v3441 = vadd.f32 %v3211, %v3409
  %v3442 = vadd.f32 %v3214, %v3412
  %v3443 = vadd.f32 %v3219, %v3417
  %v3444 = vadd.f32 %v3222, %v3420
  %v3445 = vadd.f32 %v3227, %v3425
  %v3446 = vadd.f32 %v3230, %v3428
  %v3447 = vld [vmem:[%s2820] sm:$0xff]
  %v3448 = vld [vmem:[%s2820 + $0x10] sm:$0xff]
  %v3449 = vld [vmem:[%s2820 + $0x20] sm:$0xff]
  %v3450 = vld [vmem:[%s2820 + $0x30] sm:$0xff]
  %v3451 = vld [vmem:[%s2820 + $0x40] sm:$0xff]
  %v3452 = vld [vmem:[%s2820 + $0x50] sm:$0xff]
  %v3453 = vld [vmem:[%s2820 + $0x60] sm:$0xff]
  %v3454 = vld [vmem:[%s2820 + $0x70] sm:$0xff]
  %v3455 = vld [vmem:[%s2820 + $0xa0] sm:$0xff]
  %v3456 = vld [vmem:[%s2820 + $0xb0] sm:$0xff]
  %v3457 = vld [vmem:[%s2820 + $0xc0] sm:$0xff]
  %v3458 = vld [vmem:[%s2820 + $0xd0] sm:$0xff]
  %v3459 = vld [vmem:[%s2820 + $0xe0] sm:$0xff]
  %v3460 = vld [vmem:[%s2820 + $0xf0] sm:$0xff]
  %v3461 = vld [vmem:[%s2820 + $0x100] sm:$0xff]
  %v3462 = vld [vmem:[%s2820 + $0x110] sm:$0xff]
  %v3463 = vpack.c.bf16 %v3447, %v3447
  %v3464 = vpack.c.bf16 %v3448, %v3448
  %v3465 = vpack.c.bf16 %v3449, %v3449
  %v3466 = vpack.c.bf16 %v3450, %v3450
  %v3467 = vpack.c.bf16 %v3451, %v3451
  %v3468 = vpack.c.bf16 %v3452, %v3452
  %v3469 = vpack.c.bf16 %v3453, %v3453
  %v3470 = vpack.c.bf16 %v3454, %v3454
  %v3471 = vpack.c.bf16 %v3455, %v3455
  %v3472 = vpack.c.bf16 %v3456, %v3456
  %v3473 = vpack.c.bf16 %v3457, %v3457
  %v3474 = vpack.c.bf16 %v3458, %v3458
  %v3475 = vpack.c.bf16 %v3459, %v3459
  %v3476 = vpack.c.bf16 %v3460, %v3460
  %v3477 = vpack.c.bf16 %v3461, %v3461
  %v3478 = vpack.c.bf16 %v3462, %v3462
  %s3479 = scalar_lea.vmem %s1, 6
  %v3480 = vld [vmem:[%s3479] sm:$0x3]
  %v3497 = vunpack.c.l.b16 %v3463
  %v3498 = vunpack.c.l.b16 %v3464
  %v3499 = vunpack.c.l.b16 %v3465
  %v3500 = vunpack.c.l.b16 %v3466
  %v3501 = vunpack.c.l.b16 %v3467
  %v3502 = vunpack.c.l.b16 %v3468
  %v3503 = vunpack.c.l.b16 %v3469
  %v3504 = vunpack.c.l.b16 %v3470
  %v3505 = vunpack.c.l.b16 %v3471
  %v3506 = vunpack.c.l.b16 %v3472
  %v3507 = vunpack.c.l.b16 %v3473
  %v3508 = vunpack.c.l.b16 %v3474
  %v3509 = vunpack.c.l.b16 %v3475
  %v3510 = vunpack.c.l.b16 %v3476
  %v3511 = vunpack.c.l.b16 %v3477
  %v3512 = vunpack.c.l.b16 %v3478
  %v3513 = vpack.c.b16 %v3498, %v3497
  %v3514 = vpack.c.b16 %v3500, %v3499
  %v3515 = vpack.c.b16 %v3502, %v3501
  %v3516 = vpack.c.b16 %v3504, %v3503
  %v3517 = vpack.c.b16 %v3506, %v3505
  %v3518 = vpack.c.b16 %v3508, %v3507
  %v3519 = vpack.c.b16 %v3510, %v3509
  %v3520 = vpack.c.b16 %v3512, %v3511
  %v3522 = vsel %vm21, %v3513, 0
  %v3525 = vsel %vm21, %v3514, 0
  %v3528 = vsel %vm21, %v3515, 0
  %v3531 = vsel %vm21, %v3516, 0
  %v3534 = vsel %vm21, %v3517, 0
  %v3537 = vsel %vm21, %v3518, 0
  %v3540 = vsel %vm21, %v3519, 0
  %v3543 = vsel %vm21, %v3520, 0
  %v3546 = vsel %vm2968, %v3480, 0
  %3548 = vmatprep.subr.bf16.mxu0 0
  %3549 = vmatpush1.bf16.msra.mxu0 %v3546
  %3550 = vmatprep.subr.bf16.mxu0 0
  %3551 = vmatpush1.bf16.msra.mxu0 0
  %3552 = vmatprep.subr.bf16.mxu0 0
  %3553 = vmatpush1.bf16.msra.mxu0 0
  %3554 = vmatprep.subr.bf16.mxu0 0
  %3555 = vmatpush1.bf16.msra.mxu0 0
  %3556 = vmatprep.subr.bf16.mxu0 0
  %3557 = vmatpush1.bf16.msra.mxu0 0
  %3558 = vmatprep.subr.bf16.mxu0 0
  %3559 = vmatpush1.bf16.msra.mxu0 0
  %3560 = vmatprep.subr.bf16.mxu0 0
  %3561 = vmatpush1.bf16.msra.mxu0 0
  %3562 = vmatprep.subr.bf16.mxu0 0
  %3563 = vmatpush1.bf16.msra.mxu0 0
  %3564 = vmatprep.subr.bf16.mxu0 0
  %3565 = vmatpush1.bf16.msra.mxu0 0
  %3566 = vmatprep.subr.bf16.mxu0 0
  %3567 = vmatpush1.bf16.msra.mxu0 0
  %3568 = vmatprep.subr.bf16.mxu0 0
  %3569 = vmatpush1.bf16.msra.mxu0 0
  %3570 = vmatprep.subr.bf16.mxu0 0
  %3571 = vmatpush1.bf16.msra.mxu0 0
  %3572 = vmatprep.subr.bf16.mxu0 0
  %3573 = vmatpush1.bf16.msra.mxu0 0
  %3574 = vmatprep.subr.bf16.mxu0 0
  %3575 = vmatpush1.bf16.msra.mxu0 0
  %3576 = vmatprep.subr.bf16.mxu0 0
  %3577 = vmatpush1.bf16.msra.mxu0 0
  %3578 = vmatprep.subr.bf16.mxu0 0
  %3579 = vmatpush1.bf16.msra.mxu0 0
  %3580 = vmatprep.mubr.bf16.mxu0 0
  %3581 = vmatmul.mubr.bf16.gmra.mrb[0].mxu0 %v3522
  %v3582 = vpop.f32.mrb[0].mxu0
  %v3583 = vadd.f32 0.0, %v3582
  %v3584 = vpop.f32.mrb[0].mxu0
  %v3585 = vpop.f32.mrb[0].mxu0
  %v3586 = vadd.f32 0.0, %v3585
  %v3587 = vpop.f32.mrb[0].mxu0
  %3588 = vmatprep.mubr.bf16.mxu0 0
  %3589 = vmatmul.mubr.bf16.gmra.mrb[0].mxu0 %v3525
  %v3590 = vpop.f32.mrb[0].mxu0
  %v3591 = vadd.f32 0.0, %v3590
  %v3592 = vpop.f32.mrb[0].mxu0
  %v3593 = vpop.f32.mrb[0].mxu0
  %v3594 = vadd.f32 0.0, %v3593
  %v3595 = vpop.f32.mrb[0].mxu0
  %3596 = vmatprep.mubr.bf16.mxu0 0
  %3597 = vmatmul.mubr.bf16.gmra.mrb[0].mxu0 %v3528
  %v3598 = vpop.f32.mrb[0].mxu0
  %v3599 = vadd.f32 0.0, %v3598
  %v3600 = vpop.f32.mrb[0].mxu0
  %v3601 = vpop.f32.mrb[0].mxu0
  %v3602 = vadd.f32 0.0, %v3601
  %v3603 = vpop.f32.mrb[0].mxu0
  %3604 = vmatprep.mubr.bf16.mxu0 0
  %3605 = vmatmul.mubr.bf16.gmra.mrb[0].mxu0 %v3531
  %v3606 = vpop.f32.mrb[0].mxu0
  %v3607 = vadd.f32 0.0, %v3606
  %v3608 = vpop.f32.mrb[0].mxu0
  %v3609 = vpop.f32.mrb[0].mxu0
  %v3610 = vadd.f32 0.0, %v3609
  %v3611 = vpop.f32.mrb[0].mxu0
  %3612 = vmatprep.mubr.bf16.mxu0 0
  %3613 = vmatmul.mubr.bf16.gmra.mrb[0].mxu0 %v3534
  %v3614 = vpop.f32.mrb[0].mxu0
  %v3615 = vadd.f32 0.0, %v3614
  %v3616 = vpop.f32.mrb[0].mxu0
  %v3617 = vpop.f32.mrb[0].mxu0
  %v3618 = vadd.f32 0.0, %v3617
  %v3619 = vpop.f32.mrb[0].mxu0
  %3620 = vmatprep.mubr.bf16.mxu0 0
  %3621 = vmatmul.mubr.bf16.gmra.mrb[0].mxu0 %v3537
  %v3622 = vpop.f32.mrb[0].mxu0
  %v3623 = vadd.f32 0.0, %v3622
  %v3624 = vpop.f32.mrb[0].mxu0
  %v3625 = vpop.f32.mrb[0].mxu0
  %v3626 = vadd.f32 0.0, %v3625
  %v3627 = vpop.f32.mrb[0].mxu0
  %3628 = vmatprep.mubr.bf16.mxu0 0
  %3629 = vmatmul.mubr.bf16.gmra.mrb[0].mxu0 %v3540
  %v3630 = vpop.f32.mrb[0].mxu0
  %v3631 = vadd.f32 0.0, %v3630
  %v3632 = vpop.f32.mrb[0].mxu0
  %v3633 = vpop.f32.mrb[0].mxu0
  %v3634 = vadd.f32 0.0, %v3633
  %v3635 = vpop.f32.mrb[0].mxu0
  %3636 = vmatprep.mubr.bf16.mxu0 0
  %3637 = vmatmul.mubr.bf16.gmra.mrb[0].mxu0 %v3543
  %v3638 = vpop.f32.mrb[0].mxu0
  %v3639 = vadd.f32 0.0, %v3638
  %v3640 = vpop.f32.mrb[0].mxu0
  %v3641 = vpop.f32.mrb[0].mxu0
  %v3642 = vadd.f32 0.0, %v3641
  %v3643 = vpop.f32.mrb[0].mxu0
  %3644 = vdwg.mxu0
  %v3645 = vadd.f32 %v3431, %v3583
  %v3646 = vadd.f32 %v3432, %v3586
  %v3647 = vadd.f32 %v3433, %v3591
  %v3648 = vadd.f32 %v3434, %v3594
  %v3649 = vadd.f32 %v3435, %v3599
  %v3650 = vadd.f32 %v3436, %v3602
  %v3651 = vadd.f32 %v3437, %v3607
  %v3652 = vadd.f32 %v3438, %v3610
  %v3653 = vadd.f32 %v3439, %v3615
  %v3654 = vadd.f32 %v3440, %v3618
  %v3655 = vadd.f32 %v3441, %v3623
  %v3656 = vadd.f32 %v3442, %v3626
  %v3657 = vadd.f32 %v3443, %v3631
  %v3658 = vadd.f32 %v3444, %v3634
  %v3659 = vadd.f32 %v3445, %v3639
  %v3660 = vadd.f32 %v3446, %v3642
  %v3661 = vld [vmem:[%s2820 + $0x1] sm:$0xff]
  %v3662 = vld [vmem:[%s2820 + $0x11] sm:$0xff]
  %v3663 = vld [vmem:[%s2820 + $0x21] sm:$0xff]
  %v3664 = vld [vmem:[%s2820 + $0x31] sm:$0xff]
  %v3665 = vld [vmem:[%s2820 + $0x41] sm:$0xff]
  %v3666 = vld [vmem:[%s2820 + $0x51] sm:$0xff]
  %v3667 = vld [vmem:[%s2820 + $0x61] sm:$0xff]
  %v3668 = vld [vmem:[%s2820 + $0x71] sm:$0xff]
  %v3669 = vld [vmem:[%s2820 + $0xa1] sm:$0xff]
  %v3670 = vld [vmem:[%s2820 + $0xb1] sm:$0xff]
  %v3671 = vld [vmem:[%s2820 + $0xc1] sm:$0xff]
  %v3672 = vld [vmem:[%s2820 + $0xd1] sm:$0xff]
  %v3673 = vld [vmem:[%s2820 + $0xe1] sm:$0xff]
  %v3674 = vld [vmem:[%s2820 + $0xf1] sm:$0xff]
  %v3675 = vld [vmem:[%s2820 + $0x101] sm:$0xff]
  %v3676 = vld [vmem:[%s2820 + $0x111] sm:$0xff]
  %v3677 = vpack.c.bf16 %v3661, %v3661
  %v3678 = vpack.c.bf16 %v3662, %v3662
  %v3679 = vpack.c.bf16 %v3663, %v3663
  %v3680 = vpack.c.bf16 %v3664, %v3664
  %v3681 = vpack.c.bf16 %v3665, %v3665
  %v3682 = vpack.c.bf16 %v3666, %v3666
  %v3683 = vpack.c.bf16 %v3667, %v3667
  %v3684 = vpack.c.bf16 %v3668, %v3668
  %v3685 = vpack.c.bf16 %v3669, %v3669
  %v3686 = vpack.c.bf16 %v3670, %v3670
  %v3687 = vpack.c.bf16 %v3671, %v3671
  %v3688 = vpack.c.bf16 %v3672, %v3672
  %v3689 = vpack.c.bf16 %v3673, %v3673
  %v3690 = vpack.c.bf16 %v3674, %v3674
  %v3691 = vpack.c.bf16 %v3675, %v3675
  %v3692 = vpack.c.bf16 %v3676, %v3676
  %s3693 = scalar_lea.vmem %s1, 8
  %v3694 = vld [vmem:[%s3693] sm:$0x3]
  %v3711 = vunpack.c.l.b16 %v3677
  %v3712 = vunpack.c.l.b16 %v3678
  %v3713 = vunpack.c.l.b16 %v3679
  %v3714 = vunpack.c.l.b16 %v3680
  %v3715 = vunpack.c.l.b16 %v3681
  %v3716 = vunpack.c.l.b16 %v3682
  %v3717 = vunpack.c.l.b16 %v3683
  %v3718 = vunpack.c.l.b16 %v3684
  %v3719 = vunpack.c.l.b16 %v3685
  %v3720 = vunpack.c.l.b16 %v3686
  %v3721 = vunpack.c.l.b16 %v3687
  %v3722 = vunpack.c.l.b16 %v3688
  %v3723 = vunpack.c.l.b16 %v3689
  %v3724 = vunpack.c.l.b16 %v3690
  %v3725 = vunpack.c.l.b16 %v3691
  %v3726 = vunpack.c.l.b16 %v3692
  %v3727 = vpack.c.b16 %v3712, %v3711
  %v3728 = vpack.c.b16 %v3714, %v3713
  %v3729 = vpack.c.b16 %v3716, %v3715
  %v3730 = vpack.c.b16 %v3718, %v3717
  %v3731 = vpack.c.b16 %v3720, %v3719
  %v3732 = vpack.c.b16 %v3722, %v3721
  %v3733 = vpack.c.b16 %v3724, %v3723
  %v3734 = vpack.c.b16 %v3726, %v3725
  %v3736 = vsel %vm21, %v3727, 0
  %v3739 = vsel %vm21, %v3728, 0
  %v3742 = vsel %vm21, %v3729, 0
  %v3745 = vsel %vm21, %v3730, 0
  %v3748 = vsel %vm21, %v3731, 0
  %v3751 = vsel %vm21, %v3732, 0
  %v3754 = vsel %vm21, %v3733, 0
  %v3757 = vsel %vm21, %v3734, 0
  %v3760 = vsel %vm2968, %v3694, 0
  %3762 = vmatprep.subr.bf16.mxu0 0
  %3763 = vmatpush1.bf16.msra.mxu0 %v3760
  %3764 = vmatprep.subr.bf16.mxu0 0
  %3765 = vmatpush1.bf16.msra.mxu0 0
  %3766 = vmatprep.subr.bf16.mxu0 0
  %3767 = vmatpush1.bf16.msra.mxu0 0
  %3768 = vmatprep.subr.bf16.mxu0 0
  %3769 = vmatpush1.bf16.msra.mxu0 0
  %3770 = vmatprep.subr.bf16.mxu0 0
  %3771 = vmatpush1.bf16.msra.mxu0 0
  %3772 = vmatprep.subr.bf16.mxu0 0
  %3773 = vmatpush1.bf16.msra.mxu0 0
  %3774 = vmatprep.subr.bf16.mxu0 0
  %3775 = vmatpush1.bf16.msra.mxu0 0
  %3776 = vmatprep.subr.bf16.mxu0 0
  %3777 = vmatpush1.bf16.msra.mxu0 0
  %3778 = vmatprep.subr.bf16.mxu0 0
  %3779 = vmatpush1.bf16.msra.mxu0 0
  %3780 = vmatprep.subr.bf16.mxu0 0
  %3781 = vmatpush1.bf16.msra.mxu0 0
  %3782 = vmatprep.subr.bf16.mxu0 0
  %3783 = vmatpush1.bf16.msra.mxu0 0
  %3784 = vmatprep.subr.bf16.mxu0 0
  %3785 = vmatpush1.bf16.msra.mxu0 0
  %3786 = vmatprep.subr.bf16.mxu0 0
  %3787 = vmatpush1.bf16.msra.mxu0 0
  %3788 = vmatprep.subr.bf16.mxu0 0
  %3789 = vmatpush1.bf16.msra.mxu0 0
  %3790 = vmatprep.subr.bf16.mxu0 0
  %3791 = vmatpush1.bf16.msra.mxu0 0
  %3792 = vmatprep.subr.bf16.mxu0 0
  %3793 = vmatpush1.bf16.msra.mxu0 0
  %3794 = vmatprep.mubr.bf16.mxu0 0
  %3795 = vmatmul.mubr.bf16.gmra.mrb[0].mxu0 %v3736
  %v3796 = vpop.f32.mrb[0].mxu0
  %v3797 = vadd.f32 0.0, %v3796
  %v3798 = vpop.f32.mrb[0].mxu0
  %v3799 = vpop.f32.mrb[0].mxu0
  %v3800 = vadd.f32 0.0, %v3799
  %v3801 = vpop.f32.mrb[0].mxu0
  %3802 = vmatprep.mubr.bf16.mxu0 0
  %3803 = vmatmul.mubr.bf16.gmra.mrb[0].mxu0 %v3739
  %v3804 = vpop.f32.mrb[0].mxu0
  %v3805 = vadd.f32 0.0, %v3804
  %v3806 = vpop.f32.mrb[0].mxu0
  %v3807 = vpop.f32.mrb[0].mxu0
  %v3808 = vadd.f32 0.0, %v3807
  %v3809 = vpop.f32.mrb[0].mxu0
  %3810 = vmatprep.mubr.bf16.mxu0 0
  %3811 = vmatmul.mubr.bf16.gmra.mrb[0].mxu0 %v3742
  %v3812 = vpop.f32.mrb[0].mxu0
  %v3813 = vadd.f32 0.0, %v3812
  %v3814 = vpop.f32.mrb[0].mxu0
  %v3815 = vpop.f32.mrb[0].mxu0
  %v3816 = vadd.f32 0.0, %v3815
  %v3817 = vpop.f32.mrb[0].mxu0
  %3818 = vmatprep.mubr.bf16.mxu0 0
  %3819 = vmatmul.mubr.bf16.gmra.mrb[0].mxu0 %v3745
  %v3820 = vpop.f32.mrb[0].mxu0
  %v3821 = vadd.f32 0.0, %v3820
  %v3822 = vpop.f32.mrb[0].mxu0
  %v3823 = vpop.f32.mrb[0].mxu0
  %v3824 = vadd.f32 0.0, %v3823
  %v3825 = vpop.f32.mrb[0].mxu0
  %3826 = vmatprep.mubr.bf16.mxu0 0
  %3827 = vmatmul.mubr.bf16.gmra.mrb[0].mxu0 %v3748
  %v3828 = vpop.f32.mrb[0].mxu0
  %v3829 = vadd.f32 0.0, %v3828
  %v3830 = vpop.f32.mrb[0].mxu0
  %v3831 = vpop.f32.mrb[0].mxu0
  %v3832 = vadd.f32 0.0, %v3831
  %v3833 = vpop.f32.mrb[0].mxu0
  %3834 = vmatprep.mubr.bf16.mxu0 0
  %3835 = vmatmul.mubr.bf16.gmra.mrb[0].mxu0 %v3751
  %v3836 = vpop.f32.mrb[0].mxu0
  %v3837 = vadd.f32 0.0, %v3836
  %v3838 = vpop.f32.mrb[0].mxu0
  %v3839 = vpop.f32.mrb[0].mxu0
  %v3840 = vadd.f32 0.0, %v3839
  %v3841 = vpop.f32.mrb[0].mxu0
  %3842 = vmatprep.mubr.bf16.mxu0 0
  %3843 = vmatmul.mubr.bf16.gmra.mrb[0].mxu0 %v3754
  %v3844 = vpop.f32.mrb[0].mxu0
  %v3845 = vadd.f32 0.0, %v3844
  %v3846 = vpop.f32.mrb[0].mxu0
  %v3847 = vpop.f32.mrb[0].mxu0
  %v3848 = vadd.f32 0.0, %v3847
  %v3849 = vpop.f32.mrb[0].mxu0
  %3850 = vmatprep.mubr.bf16.mxu0 0
  %3851 = vmatmul.mubr.bf16.gmra.mrb[0].mxu0 %v3757
  %v3852 = vpop.f32.mrb[0].mxu0
  %v3853 = vadd.f32 0.0, %v3852
  %v3854 = vpop.f32.mrb[0].mxu0
  %v3855 = vpop.f32.mrb[0].mxu0
  %v3856 = vadd.f32 0.0, %v3855
  %v3857 = vpop.f32.mrb[0].mxu0
  %3858 = vdwg.mxu0
  %v3859 = vadd.f32 %v3645, %v3797
  %v3860 = vadd.f32 %v3646, %v3800
  %v3861 = vadd.f32 %v3647, %v3805
  %v3862 = vadd.f32 %v3648, %v3808
  %v3863 = vadd.f32 %v3649, %v3813
  %v3864 = vadd.f32 %v3650, %v3816
  %v3865 = vadd.f32 %v3651, %v3821
  %v3866 = vadd.f32 %v3652, %v3824
  %v3867 = vadd.f32 %v3653, %v3829
  %v3868 = vadd.f32 %v3654, %v3832
  %v3869 = vadd.f32 %v3655, %v3837
  %v3870 = vadd.f32 %v3656, %v3840
  %v3871 = vadd.f32 %v3657, %v3845
  %v3872 = vadd.f32 %v3658, %v3848
  %v3873 = vadd.f32 %v3659, %v3853
  %v3874 = vadd.f32 %v3660, %v3856
  %v3875 = vld [vmem:[%s2820 + $0x2] sm:$0xff]
  %v3876 = vld [vmem:[%s2820 + $0x12] sm:$0xff]
  %v3877 = vld [vmem:[%s2820 + $0x22] sm:$0xff]
  %v3878 = vld [vmem:[%s2820 + $0x32] sm:$0xff]
  %v3879 = vld [vmem:[%s2820 + $0x42] sm:$0xff]
  %v3880 = vld [vmem:[%s2820 + $0x52] sm:$0xff]
  %v3881 = vld [vmem:[%s2820 + $0x62] sm:$0xff]
  %v3882 = vld [vmem:[%s2820 + $0x72] sm:$0xff]
  %v3883 = vld [vmem:[%s2820 + $0xa2] sm:$0xff]
  %v3884 = vld [vmem:[%s2820 + $0xb2] sm:$0xff]
  %v3885 = vld [vmem:[%s2820 + $0xc2] sm:$0xff]
  %v3886 = vld [vmem:[%s2820 + $0xd2] sm:$0xff]
  %v3887 = vld [vmem:[%s2820 + $0xe2] sm:$0xff]
  %v3888 = vld [vmem:[%s2820 + $0xf2] sm:$0xff]
  %v3889 = vld [vmem:[%s2820 + $0x102] sm:$0xff]
  %v3890 = vld [vmem:[%s2820 + $0x112] sm:$0xff]
  %v3891 = vpack.c.bf16 %v3875, %v3875
  %v3892 = vpack.c.bf16 %v3876, %v3876
  %v3893 = vpack.c.bf16 %v3877, %v3877
  %v3894 = vpack.c.bf16 %v3878, %v3878
  %v3895 = vpack.c.bf16 %v3879, %v3879
  %v3896 = vpack.c.bf16 %v3880, %v3880
  %v3897 = vpack.c.bf16 %v3881, %v3881
  %v3898 = vpack.c.bf16 %v3882, %v3882
  %v3899 = vpack.c.bf16 %v3883, %v3883
  %v3900 = vpack.c.bf16 %v3884, %v3884
  %v3901 = vpack.c.bf16 %v3885, %v3885
  %v3902 = vpack.c.bf16 %v3886, %v3886
  %v3903 = vpack.c.bf16 %v3887, %v3887
  %v3904 = vpack.c.bf16 %v3888, %v3888
  %v3905 = vpack.c.bf16 %v3889, %v3889
  %v3906 = vpack.c.bf16 %v3890, %v3890
  %s3907 = scalar_lea.vmem %s1, 10
  %v3908 = vld [vmem:[%s3907] sm:$0x3]
  %v3925 = vunpack.c.l.b16 %v3891
  %v3926 = vunpack.c.l.b16 %v3892
  %v3927 = vunpack.c.l.b16 %v3893
  %v3928 = vunpack.c.l.b16 %v3894
  %v3929 = vunpack.c.l.b16 %v3895
  %v3930 = vunpack.c.l.b16 %v3896
  %v3931 = vunpack.c.l.b16 %v3897
  %v3932 = vunpack.c.l.b16 %v3898
  %v3933 = vunpack.c.l.b16 %v3899
  %v3934 = vunpack.c.l.b16 %v3900
  %v3935 = vunpack.c.l.b16 %v3901
  %v3936 = vunpack.c.l.b16 %v3902
  %v3937 = vunpack.c.l.b16 %v3903
  %v3938 = vunpack.c.l.b16 %v3904
  %v3939 = vunpack.c.l.b16 %v3905
  %v3940 = vunpack.c.l.b16 %v3906
  %v3941 = vpack.c.b16 %v3926, %v3925
  %v3942 = vpack.c.b16 %v3928, %v3927
  %v3943 = vpack.c.b16 %v3930, %v3929
  %v3944 = vpack.c.b16 %v3932, %v3931
  %v3945 = vpack.c.b16 %v3934, %v3933
  %v3946 = vpack.c.b16 %v3936, %v3935
  %v3947 = vpack.c.b16 %v3938, %v3937
  %v3948 = vpack.c.b16 %v3940, %v3939
  %v3950 = vsel %vm21, %v3941, 0
  %v3953 = vsel %vm21, %v3942, 0
  %v3956 = vsel %vm21, %v3943, 0
  %v3959 = vsel %vm21, %v3944, 0
  %v3962 = vsel %vm21, %v3945, 0
  %v3965 = vsel %vm21, %v3946, 0
  %v3968 = vsel %vm21, %v3947, 0
  %v3971 = vsel %vm21, %v3948, 0
  %v3974 = vsel %vm2968, %v3908, 0
  %3976 = vmatprep.subr.bf16.mxu0 0
  %3977 = vmatpush1.bf16.msra.mxu0 %v3974
  %3978 = vmatprep.subr.bf16.mxu0 0
  %3979 = vmatpush1.bf16.msra.mxu0 0
  %3980 = vmatprep.subr.bf16.mxu0 0
  %3981 = vmatpush1.bf16.msra.mxu0 0
  %3982 = vmatprep.subr.bf16.mxu0 0
  %3983 = vmatpush1.bf16.msra.mxu0 0
  %3984 = vmatprep.subr.bf16.mxu0 0
  %3985 = vmatpush1.bf16.msra.mxu0 0
  %3986 = vmatprep.subr.bf16.mxu0 0
  %3987 = vmatpush1.bf16.msra.mxu0 0
  %3988 = vmatprep.subr.bf16.mxu0 0
  %3989 = vmatpush1.bf16.msra.mxu0 0
  %3990 = vmatprep.subr.bf16.mxu0 0
  %3991 = vmatpush1.bf16.msra.mxu0 0
  %3992 = vmatprep.subr.bf16.mxu0 0
  %3993 = vmatpush1.bf16.msra.mxu0 0
  %3994 = vmatprep.subr.bf16.mxu0 0
  %3995 = vmatpush1.bf16.msra.mxu0 0
  %3996 = vmatprep.subr.bf16.mxu0 0
  %3997 = vmatpush1.bf16.msra.mxu0 0
  %3998 = vmatprep.subr.bf16.mxu0 0
  %3999 = vmatpush1.bf16.msra.mxu0 0
  %4000 = vmatprep.subr.bf16.mxu0 0
  %4001 = vmatpush1.bf16.msra.mxu0 0
  %4002 = vmatprep.subr.bf16.mxu0 0
  %4003 = vmatpush1.bf16.msra.mxu0 0
  %4004 = vmatprep.subr.bf16.mxu0 0
  %4005 = vmatpush1.bf16.msra.mxu0 0
  %4006 = vmatprep.subr.bf16.mxu0 0
  %4007 = vmatpush1.bf16.msra.mxu0 0
  %4008 = vmatprep.mubr.bf16.mxu0 0
  %4009 = vmatmul.mubr.bf16.gmra.mrb[0].mxu0 %v3950
  %v4010 = vpop.f32.mrb[0].mxu0
  %v4011 = vadd.f32 0.0, %v4010
  %v4012 = vpop.f32.mrb[0].mxu0
  %v4013 = vpop.f32.mrb[0].mxu0
  %v4014 = vadd.f32 0.0, %v4013
  %v4015 = vpop.f32.mrb[0].mxu0
  %4016 = vmatprep.mubr.bf16.mxu0 0
  %4017 = vmatmul.mubr.bf16.gmra.mrb[0].mxu0 %v3953
  %v4018 = vpop.f32.mrb[0].mxu0
  %v4019 = vadd.f32 0.0, %v4018
  %v4020 = vpop.f32.mrb[0].mxu0
  %v4021 = vpop.f32.mrb[0].mxu0
  %v4022 = vadd.f32 0.0, %v4021
  %v4023 = vpop.f32.mrb[0].mxu0
  %4024 = vmatprep.mubr.bf16.mxu0 0
  %4025 = vmatmul.mubr.bf16.gmra.mrb[0].mxu0 %v3956
  %v4026 = vpop.f32.mrb[0].mxu0
  %v4027 = vadd.f32 0.0, %v4026
  %v4028 = vpop.f32.mrb[0].mxu0
  %v4029 = vpop.f32.mrb[0].mxu0
  %v4030 = vadd.f32 0.0, %v4029
  %v4031 = vpop.f32.mrb[0].mxu0
  %4032 = vmatprep.mubr.bf16.mxu0 0
  %4033 = vmatmul.mubr.bf16.gmra.mrb[0].mxu0 %v3959
  %v4034 = vpop.f32.mrb[0].mxu0
  %v4035 = vadd.f32 0.0, %v4034
  %v4036 = vpop.f32.mrb[0].mxu0
  %v4037 = vpop.f32.mrb[0].mxu0
  %v4038 = vadd.f32 0.0, %v4037
  %v4039 = vpop.f32.mrb[0].mxu0
  %4040 = vmatprep.mubr.bf16.mxu0 0
  %4041 = vmatmul.mubr.bf16.gmra.mrb[0].mxu0 %v3962
  %v4042 = vpop.f32.mrb[0].mxu0
  %v4043 = vadd.f32 0.0, %v4042
  %v4044 = vpop.f32.mrb[0].mxu0
  %v4045 = vpop.f32.mrb[0].mxu0
  %v4046 = vadd.f32 0.0, %v4045
  %v4047 = vpop.f32.mrb[0].mxu0
  %4048 = vmatprep.mubr.bf16.mxu0 0
  %4049 = vmatmul.mubr.bf16.gmra.mrb[0].mxu0 %v3965
  %v4050 = vpop.f32.mrb[0].mxu0
  %v4051 = vadd.f32 0.0, %v4050
  %v4052 = vpop.f32.mrb[0].mxu0
  %v4053 = vpop.f32.mrb[0].mxu0
  %v4054 = vadd.f32 0.0, %v4053
  %v4055 = vpop.f32.mrb[0].mxu0
  %4056 = vmatprep.mubr.bf16.mxu0 0
  %4057 = vmatmul.mubr.bf16.gmra.mrb[0].mxu0 %v3968
  %v4058 = vpop.f32.mrb[0].mxu0
  %v4059 = vadd.f32 0.0, %v4058
  %v4060 = vpop.f32.mrb[0].mxu0
  %v4061 = vpop.f32.mrb[0].mxu0
  %v4062 = vadd.f32 0.0, %v4061
  %v4063 = vpop.f32.mrb[0].mxu0
  %4064 = vmatprep.mubr.bf16.mxu0 0
  %4065 = vmatmul.mubr.bf16.gmra.mrb[0].mxu0 %v3971
  %v4066 = vpop.f32.mrb[0].mxu0
  %v4067 = vadd.f32 0.0, %v4066
  %v4068 = vpop.f32.mrb[0].mxu0
  %v4069 = vpop.f32.mrb[0].mxu0
  %v4070 = vadd.f32 0.0, %v4069
  %v4071 = vpop.f32.mrb[0].mxu0
  %4072 = vdwg.mxu0
  %v4073 = vadd.f32 %v3859, %v4011
  %v4074 = vadd.f32 %v3860, %v4014
  %v4075 = vadd.f32 %v3861, %v4019
  %v4076 = vadd.f32 %v3862, %v4022
  %v4077 = vadd.f32 %v3863, %v4027
  %v4078 = vadd.f32 %v3864, %v4030
  %v4079 = vadd.f32 %v3865, %v4035
  %v4080 = vadd.f32 %v3866, %v4038
  %v4081 = vadd.f32 %v3867, %v4043
  %v4082 = vadd.f32 %v3868, %v4046
  %v4083 = vadd.f32 %v3869, %v4051
  %v4084 = vadd.f32 %v3870, %v4054
  %v4085 = vadd.f32 %v3871, %v4059
  %v4086 = vadd.f32 %v3872, %v4062
  %v4087 = vadd.f32 %v3873, %v4067
  %v4088 = vadd.f32 %v3874, %v4070
  %s4089 = scalar_lea.vmem [#allocation2], 32
  %v4090 = vld [vmem:[%s4089] sm:$0xff]
  %v4091 = vld [vmem:[%s4089 + $0x10] sm:$0xff]
  %v4092 = vld [vmem:[%s4089 + $0x20] sm:$0xff]
  %v4093 = vld [vmem:[%s4089 + $0x30] sm:$0xff]
  %v4094 = vld [vmem:[%s4089 + $0x40] sm:$0xff]
  %v4095 = vld [vmem:[%s4089 + $0x50] sm:$0xff]
  %v4096 = vld [vmem:[%s4089 + $0x60] sm:$0xff]
  %v4097 = vld [vmem:[%s4089 + $0x70] sm:$0xff]
  %v4098 = vld [vmem:[%s4089 + $0xa0] sm:$0xff]
  %v4099 = vld [vmem:[%s4089 + $0xb0] sm:$0xff]
  %v4100 = vld [vmem:[%s4089 + $0xc0] sm:$0xff]
  %v4101 = vld [vmem:[%s4089 + $0xd0] sm:$0xff]
  %v4102 = vld [vmem:[%s4089 + $0xe0] sm:$0xff]
  %v4103 = vld [vmem:[%s4089 + $0xf0] sm:$0xff]
  %v4104 = vld [vmem:[%s4089 + $0x100] sm:$0xff]
  %v4105 = vld [vmem:[%s4089 + $0x110] sm:$0xff]
  %v4106 = vpack.c.bf16 %v4090, %v4090
  %v4107 = vpack.c.bf16 %v4091, %v4091
  %v4108 = vpack.c.bf16 %v4092, %v4092
  %v4109 = vpack.c.bf16 %v4093, %v4093
  %v4110 = vpack.c.bf16 %v4094, %v4094
  %v4111 = vpack.c.bf16 %v4095, %v4095
  %v4112 = vpack.c.bf16 %v4096, %v4096
  %v4113 = vpack.c.bf16 %v4097, %v4097
  %v4114 = vpack.c.bf16 %v4098, %v4098
  %v4115 = vpack.c.bf16 %v4099, %v4099
  %v4116 = vpack.c.bf16 %v4100, %v4100
  %v4117 = vpack.c.bf16 %v4101, %v4101
  %v4118 = vpack.c.bf16 %v4102, %v4102
  %v4119 = vpack.c.bf16 %v4103, %v4103
  %v4120 = vpack.c.bf16 %v4104, %v4104
  %v4121 = vpack.c.bf16 %v4105, %v4105
  %s4122 = scalar_lea.vmem %s1, 12
  %v4123 = vld [vmem:[%s4122] sm:$0x3]
  %v4140 = vunpack.c.l.b16 %v4106
  %v4141 = vunpack.c.l.b16 %v4107
  %v4142 = vunpack.c.l.b16 %v4108
  %v4143 = vunpack.c.l.b16 %v4109
  %v4144 = vunpack.c.l.b16 %v4110
  %v4145 = vunpack.c.l.b16 %v4111
  %v4146 = vunpack.c.l.b16 %v4112
  %v4147 = vunpack.c.l.b16 %v4113
  %v4148 = vunpack.c.l.b16 %v4114
  %v4149 = vunpack.c.l.b16 %v4115
  %v4150 = vunpack.c.l.b16 %v4116
  %v4151 = vunpack.c.l.b16 %v4117
  %v4152 = vunpack.c.l.b16 %v4118
  %v4153 = vunpack.c.l.b16 %v4119
  %v4154 = vunpack.c.l.b16 %v4120
  %v4155 = vunpack.c.l.b16 %v4121
  %v4156 = vpack.c.b16 %v4141, %v4140
  %v4157 = vpack.c.b16 %v4143, %v4142
  %v4158 = vpack.c.b16 %v4145, %v4144
  %v4159 = vpack.c.b16 %v4147, %v4146
  %v4160 = vpack.c.b16 %v4149, %v4148
  %v4161 = vpack.c.b16 %v4151, %v4150
  %v4162 = vpack.c.b16 %v4153, %v4152
  %v4163 = vpack.c.b16 %v4155, %v4154
  %v4165 = vsel %vm21, %v4156, 0
  %v4168 = vsel %vm21, %v4157, 0
  %v4171 = vsel %vm21, %v4158, 0
  %v4174 = vsel %vm21, %v4159, 0
  %v4177 = vsel %vm21, %v4160, 0
  %v4180 = vsel %vm21, %v4161, 0
  %v4183 = vsel %vm21, %v4162, 0
  %v4186 = vsel %vm21, %v4163, 0
  %v4189 = vsel %vm2968, %v4123, 0
  %4191 = vmatprep.subr.bf16.mxu0 0
  %4192 = vmatpush1.bf16.msra.mxu0 %v4189
  %4193 = vmatprep.subr.bf16.mxu0 0
  %4194 = vmatpush1.bf16.msra.mxu0 0
  %4195 = vmatprep.subr.bf16.mxu0 0
  %4196 = vmatpush1.bf16.msra.mxu0 0
  %4197 = vmatprep.subr.bf16.mxu0 0
  %4198 = vmatpush1.bf16.msra.mxu0 0
  %4199 = vmatprep.subr.bf16.mxu0 0
  %4200 = vmatpush1.bf16.msra.mxu0 0
  %4201 = vmatprep.subr.bf16.mxu0 0
  %4202 = vmatpush1.bf16.msra.mxu0 0
  %4203 = vmatprep.subr.bf16.mxu0 0
  %4204 = vmatpush1.bf16.msra.mxu0 0
  %4205 = vmatprep.subr.bf16.mxu0 0
  %4206 = vmatpush1.bf16.msra.mxu0 0
  %4207 = vmatprep.subr.bf16.mxu0 0
  %4208 = vmatpush1.bf16.msra.mxu0 0
  %4209 = vmatprep.subr.bf16.mxu0 0
  %4210 = vmatpush1.bf16.msra.mxu0 0
  %4211 = vmatprep.subr.bf16.mxu0 0
  %4212 = vmatpush1.bf16.msra.mxu0 0
  %4213 = vmatprep.subr.bf16.mxu0 0
  %4214 = vmatpush1.bf16.msra.mxu0 0
  %4215 = vmatprep.subr.bf16.mxu0 0
  %4216 = vmatpush1.bf16.msra.mxu0 0
  %4217 = vmatprep.subr.bf16.mxu0 0
  %4218 = vmatpush1.bf16.msra.mxu0 0
  %4219 = vmatprep.subr.bf16.mxu0 0
  %4220 = vmatpush1.bf16.msra.mxu0 0
  %4221 = vmatprep.subr.bf16.mxu0 0
  %4222 = vmatpush1.bf16.msra.mxu0 0
  %4223 = vmatprep.mubr.bf16.mxu0 0
  %4224 = vmatmul.mubr.bf16.gmra.mrb[0].mxu0 %v4165
  %v4225 = vpop.f32.mrb[0].mxu0
  %v4226 = vadd.f32 0.0, %v4225
  %v4227 = vpop.f32.mrb[0].mxu0
  %v4228 = vpop.f32.mrb[0].mxu0
  %v4229 = vadd.f32 0.0, %v4228
  %v4230 = vpop.f32.mrb[0].mxu0
  %4231 = vmatprep.mubr.bf16.mxu0 0
  %4232 = vmatmul.mubr.bf16.gmra.mrb[0].mxu0 %v4168
  %v4233 = vpop.f32.mrb[0].mxu0
  %v4234 = vadd.f32 0.0, %v4233
  %v4235 = vpop.f32.mrb[0].mxu0
  %v4236 = vpop.f32.mrb[0].mxu0
  %v4237 = vadd.f32 0.0, %v4236
  %v4238 = vpop.f32.mrb[0].mxu0
  %4239 = vmatprep.mubr.bf16.mxu0 0
  %4240 = vmatmul.mubr.bf16.gmra.mrb[0].mxu0 %v4171
  %v4241 = vpop.f32.mrb[0].mxu0
  %v4242 = vadd.f32 0.0, %v4241
  %v4243 = vpop.f32.mrb[0].mxu0
  %v4244 = vpop.f32.mrb[0].mxu0
  %v4245 = vadd.f32 0.0, %v4244
  %v4246 = vpop.f32.mrb[0].mxu0
  %4247 = vmatprep.mubr.bf16.mxu0 0
  %4248 = vmatmul.mubr.bf16.gmra.mrb[0].mxu0 %v4174
  %v4249 = vpop.f32.mrb[0].mxu0
  %v4250 = vadd.f32 0.0, %v4249
  %v4251 = vpop.f32.mrb[0].mxu0
  %v4252 = vpop.f32.mrb[0].mxu0
  %v4253 = vadd.f32 0.0, %v4252
  %v4254 = vpop.f32.mrb[0].mxu0
  %4255 = vmatprep.mubr.bf16.mxu0 0
  %4256 = vmatmul.mubr.bf16.gmra.mrb[0].mxu0 %v4177
  %v4257 = vpop.f32.mrb[0].mxu0
  %v4258 = vadd.f32 0.0, %v4257
  %v4259 = vpop.f32.mrb[0].mxu0
  %v4260 = vpop.f32.mrb[0].mxu0
  %v4261 = vadd.f32 0.0, %v4260
  %v4262 = vpop.f32.mrb[0].mxu0
  %4263 = vmatprep.mubr.bf16.mxu0 0
  %4264 = vmatmul.mubr.bf16.gmra.mrb[0].mxu0 %v4180
  %v4265 = vpop.f32.mrb[0].mxu0
  %v4266 = vadd.f32 0.0, %v4265
  %v4267 = vpop.f32.mrb[0].mxu0
  %v4268 = vpop.f32.mrb[0].mxu0
  %v4269 = vadd.f32 0.0, %v4268
  %v4270 = vpop.f32.mrb[0].mxu0
  %4271 = vmatprep.mubr.bf16.mxu0 0
  %4272 = vmatmul.mubr.bf16.gmra.mrb[0].mxu0 %v4183
  %v4273 = vpop.f32.mrb[0].mxu0
  %v4274 = vadd.f32 0.0, %v4273
  %v4275 = vpop.f32.mrb[0].mxu0
  %v4276 = vpop.f32.mrb[0].mxu0
  %v4277 = vadd.f32 0.0, %v4276
  %v4278 = vpop.f32.mrb[0].mxu0
  %4279 = vmatprep.mubr.bf16.mxu0 0
  %4280 = vmatmul.mubr.bf16.gmra.mrb[0].mxu0 %v4186
  %v4281 = vpop.f32.mrb[0].mxu0
  %v4282 = vadd.f32 0.0, %v4281
  %v4283 = vpop.f32.mrb[0].mxu0
  %v4284 = vpop.f32.mrb[0].mxu0
  %v4285 = vadd.f32 0.0, %v4284
  %v4286 = vpop.f32.mrb[0].mxu0
  %4287 = vdwg.mxu0
  %v4288 = vadd.f32 %v4073, %v4226
  %v4289 = vadd.f32 %v4074, %v4229
  %v4290 = vadd.f32 %v4075, %v4234
  %v4291 = vadd.f32 %v4076, %v4237
  %v4292 = vadd.f32 %v4077, %v4242
  %v4293 = vadd.f32 %v4078, %v4245
  %v4294 = vadd.f32 %v4079, %v4250
  %v4295 = vadd.f32 %v4080, %v4253
  %v4296 = vadd.f32 %v4081, %v4258
  %v4297 = vadd.f32 %v4082, %v4261
  %v4298 = vadd.f32 %v4083, %v4266
  %v4299 = vadd.f32 %v4084, %v4269
  %v4300 = vadd.f32 %v4085, %v4274
  %v4301 = vadd.f32 %v4086, %v4277
  %v4302 = vadd.f32 %v4087, %v4282
  %v4303 = vadd.f32 %v4088, %v4285
  %v4304 = vld [vmem:[%s4089 + $0x1] sm:$0xff]
  %v4305 = vld [vmem:[%s4089 + $0x11] sm:$0xff]
  %v4306 = vld [vmem:[%s4089 + $0x21] sm:$0xff]
  %v4307 = vld [vmem:[%s4089 + $0x31] sm:$0xff]
  %v4308 = vld [vmem:[%s4089 + $0x41] sm:$0xff]
  %v4309 = vld [vmem:[%s4089 + $0x51] sm:$0xff]
  %v4310 = vld [vmem:[%s4089 + $0x61] sm:$0xff]
  %v4311 = vld [vmem:[%s4089 + $0x71] sm:$0xff]
  %v4312 = vld [vmem:[%s4089 + $0xa1] sm:$0xff]
  %v4313 = vld [vmem:[%s4089 + $0xb1] sm:$0xff]
  %v4314 = vld [vmem:[%s4089 + $0xc1] sm:$0xff]
  %v4315 = vld [vmem:[%s4089 + $0xd1] sm:$0xff]
  %v4316 = vld [vmem:[%s4089 + $0xe1] sm:$0xff]
  %v4317 = vld [vmem:[%s4089 + $0xf1] sm:$0xff]
  %v4318 = vld [vmem:[%s4089 + $0x101] sm:$0xff]
  %v4319 = vld [vmem:[%s4089 + $0x111] sm:$0xff]
  %v4320 = vpack.c.bf16 %v4304, %v4304
  %v4321 = vpack.c.bf16 %v4305, %v4305
  %v4322 = vpack.c.bf16 %v4306, %v4306
  %v4323 = vpack.c.bf16 %v4307, %v4307
  %v4324 = vpack.c.bf16 %v4308, %v4308
  %v4325 = vpack.c.bf16 %v4309, %v4309
  %v4326 = vpack.c.bf16 %v4310, %v4310
  %v4327 = vpack.c.bf16 %v4311, %v4311
  %v4328 = vpack.c.bf16 %v4312, %v4312
  %v4329 = vpack.c.bf16 %v4313, %v4313
  %v4330 = vpack.c.bf16 %v4314, %v4314
  %v4331 = vpack.c.bf16 %v4315, %v4315
  %v4332 = vpack.c.bf16 %v4316, %v4316
  %v4333 = vpack.c.bf16 %v4317, %v4317
  %v4334 = vpack.c.bf16 %v4318, %v4318
  %v4335 = vpack.c.bf16 %v4319, %v4319
  %s4336 = scalar_lea.vmem %s1, 14
  %v4337 = vld [vmem:[%s4336] sm:$0x3]
  %v4354 = vunpack.c.l.b16 %v4320
  %v4355 = vunpack.c.l.b16 %v4321
  %v4356 = vunpack.c.l.b16 %v4322
  %v4357 = vunpack.c.l.b16 %v4323
  %v4358 = vunpack.c.l.b16 %v4324
  %v4359 = vunpack.c.l.b16 %v4325
  %v4360 = vunpack.c.l.b16 %v4326
  %v4361 = vunpack.c.l.b16 %v4327
  %v4362 = vunpack.c.l.b16 %v4328
  %v4363 = vunpack.c.l.b16 %v4329
  %v4364 = vunpack.c.l.b16 %v4330
  %v4365 = vunpack.c.l.b16 %v4331
  %v4366 = vunpack.c.l.b16 %v4332
  %v4367 = vunpack.c.l.b16 %v4333
  %v4368 = vunpack.c.l.b16 %v4334
  %v4369 = vunpack.c.l.b16 %v4335
  %v4370 = vpack.c.b16 %v4355, %v4354
  %v4371 = vpack.c.b16 %v4357, %v4356
  %v4372 = vpack.c.b16 %v4359, %v4358
  %v4373 = vpack.c.b16 %v4361, %v4360
  %v4374 = vpack.c.b16 %v4363, %v4362
  %v4375 = vpack.c.b16 %v4365, %v4364
  %v4376 = vpack.c.b16 %v4367, %v4366
  %v4377 = vpack.c.b16 %v4369, %v4368
  %v4379 = vsel %vm21, %v4370, 0
  %v4382 = vsel %vm21, %v4371, 0
  %v4385 = vsel %vm21, %v4372, 0
  %v4388 = vsel %vm21, %v4373, 0
  %v4391 = vsel %vm21, %v4374, 0
  %v4394 = vsel %vm21, %v4375, 0
  %v4397 = vsel %vm21, %v4376, 0
  %v4400 = vsel %vm21, %v4377, 0
  %v4403 = vsel %vm2968, %v4337, 0
  %4405 = vmatprep.subr.bf16.mxu0 0
  %4406 = vmatpush1.bf16.msra.mxu0 %v4403
  %4407 = vmatprep.subr.bf16.mxu0 0
  %4408 = vmatpush1.bf16.msra.mxu0 0
  %4409 = vmatprep.subr.bf16.mxu0 0
  %4410 = vmatpush1.bf16.msra.mxu0 0
  %4411 = vmatprep.subr.bf16.mxu0 0
  %4412 = vmatpush1.bf16.msra.mxu0 0
  %4413 = vmatprep.subr.bf16.mxu0 0
  %4414 = vmatpush1.bf16.msra.mxu0 0
  %4415 = vmatprep.subr.bf16.mxu0 0
  %4416 = vmatpush1.bf16.msra.mxu0 0
  %4417 = vmatprep.subr.bf16.mxu0 0
  %4418 = vmatpush1.bf16.msra.mxu0 0
  %4419 = vmatprep.subr.bf16.mxu0 0
  %4420 = vmatpush1.bf16.msra.mxu0 0
  %4421 = vmatprep.subr.bf16.mxu0 0
  %4422 = vmatpush1.bf16.msra.mxu0 0
  %4423 = vmatprep.subr.bf16.mxu0 0
  %4424 = vmatpush1.bf16.msra.mxu0 0
  %4425 = vmatprep.subr.bf16.mxu0 0
  %4426 = vmatpush1.bf16.msra.mxu0 0
  %4427 = vmatprep.subr.bf16.mxu0 0
  %4428 = vmatpush1.bf16.msra.mxu0 0
  %4429 = vmatprep.subr.bf16.mxu0 0
  %4430 = vmatpush1.bf16.msra.mxu0 0
  %4431 = vmatprep.subr.bf16.mxu0 0
  %4432 = vmatpush1.bf16.msra.mxu0 0
  %4433 = vmatprep.subr.bf16.mxu0 0
  %4434 = vmatpush1.bf16.msra.mxu0 0
  %4435 = vmatprep.subr.bf16.mxu0 0
  %4436 = vmatpush1.bf16.msra.mxu0 0
  %4437 = vmatprep.mubr.bf16.mxu0 0
  %4438 = vmatmul.mubr.bf16.gmra.mrb[0].mxu0 %v4379
  %v4439 = vpop.f32.mrb[0].mxu0
  %v4440 = vadd.f32 0.0, %v4439
  %v4441 = vpop.f32.mrb[0].mxu0
  %v4442 = vpop.f32.mrb[0].mxu0
  %v4443 = vadd.f32 0.0, %v4442
  %v4444 = vpop.f32.mrb[0].mxu0
  %4445 = vmatprep.mubr.bf16.mxu0 0
  %4446 = vmatmul.mubr.bf16.gmra.mrb[0].mxu0 %v4382
  %v4447 = vpop.f32.mrb[0].mxu0
  %v4448 = vadd.f32 0.0, %v4447
  %v4449 = vpop.f32.mrb[0].mxu0
  %v4450 = vpop.f32.mrb[0].mxu0
  %v4451 = vadd.f32 0.0, %v4450
  %v4452 = vpop.f32.mrb[0].mxu0
  %4453 = vmatprep.mubr.bf16.mxu0 0
  %4454 = vmatmul.mubr.bf16.gmra.mrb[0].mxu0 %v4385
  %v4455 = vpop.f32.mrb[0].mxu0
  %v4456 = vadd.f32 0.0, %v4455
  %v4457 = vpop.f32.mrb[0].mxu0
  %v4458 = vpop.f32.mrb[0].mxu0
  %v4459 = vadd.f32 0.0, %v4458
  %v4460 = vpop.f32.mrb[0].mxu0
  %4461 = vmatprep.mubr.bf16.mxu0 0
  %4462 = vmatmul.mubr.bf16.gmra.mrb[0].mxu0 %v4388
  %v4463 = vpop.f32.mrb[0].mxu0
  %v4464 = vadd.f32 0.0, %v4463
  %v4465 = vpop.f32.mrb[0].mxu0
  %v4466 = vpop.f32.mrb[0].mxu0
  %v4467 = vadd.f32 0.0, %v4466
  %v4468 = vpop.f32.mrb[0].mxu0
  %4469 = vmatprep.mubr.bf16.mxu0 0
  %4470 = vmatmul.mubr.bf16.gmra.mrb[0].mxu0 %v4391
  %v4471 = vpop.f32.mrb[0].mxu0
  %v4472 = vadd.f32 0.0, %v4471
  %v4473 = vpop.f32.mrb[0].mxu0
  %v4474 = vpop.f32.mrb[0].mxu0
  %v4475 = vadd.f32 0.0, %v4474
  %v4476 = vpop.f32.mrb[0].mxu0
  %4477 = vmatprep.mubr.bf16.mxu0 0
  %4478 = vmatmul.mubr.bf16.gmra.mrb[0].mxu0 %v4394
  %v4479 = vpop.f32.mrb[0].mxu0
  %v4480 = vadd.f32 0.0, %v4479
  %v4481 = vpop.f32.mrb[0].mxu0
  %v4482 = vpop.f32.mrb[0].mxu0
  %v4483 = vadd.f32 0.0, %v4482
  %v4484 = vpop.f32.mrb[0].mxu0
  %4485 = vmatprep.mubr.bf16.mxu0 0
  %4486 = vmatmul.mubr.bf16.gmra.mrb[0].mxu0 %v4397
  %v4487 = vpop.f32.mrb[0].mxu0
  %v4488 = vadd.f32 0.0, %v4487
  %v4489 = vpop.f32.mrb[0].mxu0
  %v4490 = vpop.f32.mrb[0].mxu0
  %v4491 = vadd.f32 0.0, %v4490
  %v4492 = vpop.f32.mrb[0].mxu0
  %4493 = vmatprep.mubr.bf16.mxu0 0
  %4494 = vmatmul.mubr.bf16.gmra.mrb[0].mxu0 %v4400
  %v4495 = vpop.f32.mrb[0].mxu0
  %v4496 = vadd.f32 0.0, %v4495
  %v4497 = vpop.f32.mrb[0].mxu0
  %v4498 = vpop.f32.mrb[0].mxu0
  %v4499 = vadd.f32 0.0, %v4498
  %v4500 = vpop.f32.mrb[0].mxu0
  %4501 = vdwg.mxu0
  %v4502 = vadd.f32 %v4288, %v4440
  %v4503 = vadd.f32 %v4289, %v4443
  %v4504 = vadd.f32 %v4290, %v4448
  %v4505 = vadd.f32 %v4291, %v4451
  %v4506 = vadd.f32 %v4292, %v4456
  %v4507 = vadd.f32 %v4293, %v4459
  %v4508 = vadd.f32 %v4294, %v4464
  %v4509 = vadd.f32 %v4295, %v4467
  %v4510 = vadd.f32 %v4296, %v4472
  %v4511 = vadd.f32 %v4297, %v4475
  %v4512 = vadd.f32 %v4298, %v4480
  %v4513 = vadd.f32 %v4299, %v4483
  %v4514 = vadd.f32 %v4300, %v4488
  %v4515 = vadd.f32 %v4301, %v4491
  %v4516 = vadd.f32 %v4302, %v4496
  %v4517 = vadd.f32 %v4303, %v4499
  %v4518 = vld [vmem:[%s4089 + $0x2] sm:$0xff]
  %v4519 = vld [vmem:[%s4089 + $0x12] sm:$0xff]
  %v4520 = vld [vmem:[%s4089 + $0x22] sm:$0xff]
  %v4521 = vld [vmem:[%s4089 + $0x32] sm:$0xff]
  %v4522 = vld [vmem:[%s4089 + $0x42] sm:$0xff]
  %v4523 = vld [vmem:[%s4089 + $0x52] sm:$0xff]
  %v4524 = vld [vmem:[%s4089 + $0x62] sm:$0xff]
  %v4525 = vld [vmem:[%s4089 + $0x72] sm:$0xff]
  %v4526 = vld [vmem:[%s4089 + $0xa2] sm:$0xff]
  %v4527 = vld [vmem:[%s4089 + $0xb2] sm:$0xff]
  %v4528 = vld [vmem:[%s4089 + $0xc2] sm:$0xff]
  %v4529 = vld [vmem:[%s4089 + $0xd2] sm:$0xff]
  %v4530 = vld [vmem:[%s4089 + $0xe2] sm:$0xff]
  %v4531 = vld [vmem:[%s4089 + $0xf2] sm:$0xff]
  %v4532 = vld [vmem:[%s4089 + $0x102] sm:$0xff]
  %v4533 = vld [vmem:[%s4089 + $0x112] sm:$0xff]
  %v4534 = vpack.c.bf16 %v4518, %v4518
  %v4535 = vpack.c.bf16 %v4519, %v4519
  %v4536 = vpack.c.bf16 %v4520, %v4520
  %v4537 = vpack.c.bf16 %v4521, %v4521
  %v4538 = vpack.c.bf16 %v4522, %v4522
  %v4539 = vpack.c.bf16 %v4523, %v4523
  %v4540 = vpack.c.bf16 %v4524, %v4524
  %v4541 = vpack.c.bf16 %v4525, %v4525
  %v4542 = vpack.c.bf16 %v4526, %v4526
  %v4543 = vpack.c.bf16 %v4527, %v4527
  %v4544 = vpack.c.bf16 %v4528, %v4528
  %v4545 = vpack.c.bf16 %v4529, %v4529
  %v4546 = vpack.c.bf16 %v4530, %v4530
  %v4547 = vpack.c.bf16 %v4531, %v4531
  %v4548 = vpack.c.bf16 %v4532, %v4532
  %v4549 = vpack.c.bf16 %v4533, %v4533
  %s4550 = scalar_lea.vmem %s1, 16
  %v4551 = vld [vmem:[%s4550] sm:$0x3]
  %v4568 = vunpack.c.l.b16 %v4534
  %v4569 = vunpack.c.l.b16 %v4535
  %v4570 = vunpack.c.l.b16 %v4536
  %v4571 = vunpack.c.l.b16 %v4537
  %v4572 = vunpack.c.l.b16 %v4538
  %v4573 = vunpack.c.l.b16 %v4539
  %v4574 = vunpack.c.l.b16 %v4540
  %v4575 = vunpack.c.l.b16 %v4541
  %v4576 = vunpack.c.l.b16 %v4542
  %v4577 = vunpack.c.l.b16 %v4543
  %v4578 = vunpack.c.l.b16 %v4544
  %v4579 = vunpack.c.l.b16 %v4545
  %v4580 = vunpack.c.l.b16 %v4546
  %v4581 = vunpack.c.l.b16 %v4547
  %v4582 = vunpack.c.l.b16 %v4548
  %v4583 = vunpack.c.l.b16 %v4549
  %v4584 = vpack.c.b16 %v4569, %v4568
  %v4585 = vpack.c.b16 %v4571, %v4570
  %v4586 = vpack.c.b16 %v4573, %v4572
  %v4587 = vpack.c.b16 %v4575, %v4574
  %v4588 = vpack.c.b16 %v4577, %v4576
  %v4589 = vpack.c.b16 %v4579, %v4578
  %v4590 = vpack.c.b16 %v4581, %v4580
  %v4591 = vpack.c.b16 %v4583, %v4582
  %v4593 = vsel %vm21, %v4584, 0
  %v4596 = vsel %vm21, %v4585, 0
  %v4599 = vsel %vm21, %v4586, 0
  %v4602 = vsel %vm21, %v4587, 0
  %v4605 = vsel %vm21, %v4588, 0
  %v4608 = vsel %vm21, %v4589, 0
  %v4611 = vsel %vm21, %v4590, 0
  %v4614 = vsel %vm21, %v4591, 0
  %v4617 = vsel %vm2968, %v4551, 0
  %4619 = vmatprep.subr.bf16.mxu0 0
  %4620 = vmatpush1.bf16.msra.mxu0 %v4617
  %4621 = vmatprep.subr.bf16.mxu0 0
  %4622 = vmatpush1.bf16.msra.mxu0 0
  %4623 = vmatprep.subr.bf16.mxu0 0
  %4624 = vmatpush1.bf16.msra.mxu0 0
  %4625 = vmatprep.subr.bf16.mxu0 0
  %4626 = vmatpush1.bf16.msra.mxu0 0
  %4627 = vmatprep.subr.bf16.mxu0 0
  %4628 = vmatpush1.bf16.msra.mxu0 0
  %4629 = vmatprep.subr.bf16.mxu0 0
  %4630 = vmatpush1.bf16.msra.mxu0 0
  %4631 = vmatprep.subr.bf16.mxu0 0
  %4632 = vmatpush1.bf16.msra.mxu0 0
  %4633 = vmatprep.subr.bf16.mxu0 0
  %4634 = vmatpush1.bf16.msra.mxu0 0
  %4635 = vmatprep.subr.bf16.mxu0 0
  %4636 = vmatpush1.bf16.msra.mxu0 0
  %4637 = vmatprep.subr.bf16.mxu0 0
  %4638 = vmatpush1.bf16.msra.mxu0 0
  %4639 = vmatprep.subr.bf16.mxu0 0
  %4640 = vmatpush1.bf16.msra.mxu0 0
  %4641 = vmatprep.subr.bf16.mxu0 0
  %4642 = vmatpush1.bf16.msra.mxu0 0
  %4643 = vmatprep.subr.bf16.mxu0 0
  %4644 = vmatpush1.bf16.msra.mxu0 0
  %4645 = vmatprep.subr.bf16.mxu0 0
  %4646 = vmatpush1.bf16.msra.mxu0 0
  %4647 = vmatprep.subr.bf16.mxu0 0
  %4648 = vmatpush1.bf16.msra.mxu0 0
  %4649 = vmatprep.subr.bf16.mxu0 0
  %4650 = vmatpush1.bf16.msra.mxu0 0
  %4651 = vmatprep.mubr.bf16.mxu0 0
  %4652 = vmatmul.mubr.bf16.gmra.mrb[0].mxu0 %v4593
  %v4653 = vpop.f32.mrb[0].mxu0
  %v4654 = vadd.f32 0.0, %v4653
  %v4655 = vpop.f32.mrb[0].mxu0
  %v4656 = vpop.f32.mrb[0].mxu0
  %v4657 = vadd.f32 0.0, %v4656
  %v4658 = vpop.f32.mrb[0].mxu0
  %4659 = vmatprep.mubr.bf16.mxu0 0
  %4660 = vmatmul.mubr.bf16.gmra.mrb[0].mxu0 %v4596
  %v4661 = vpop.f32.mrb[0].mxu0
  %v4662 = vadd.f32 0.0, %v4661
  %v4663 = vpop.f32.mrb[0].mxu0
  %v4664 = vpop.f32.mrb[0].mxu0
  %v4665 = vadd.f32 0.0, %v4664
  %v4666 = vpop.f32.mrb[0].mxu0
  %4667 = vmatprep.mubr.bf16.mxu0 0
  %4668 = vmatmul.mubr.bf16.gmra.mrb[0].mxu0 %v4599
  %v4669 = vpop.f32.mrb[0].mxu0
  %v4670 = vadd.f32 0.0, %v4669
  %v4671 = vpop.f32.mrb[0].mxu0
  %v4672 = vpop.f32.mrb[0].mxu0
  %v4673 = vadd.f32 0.0, %v4672
  %v4674 = vpop.f32.mrb[0].mxu0
  %4675 = vmatprep.mubr.bf16.mxu0 0
  %4676 = vmatmul.mubr.bf16.gmra.mrb[0].mxu0 %v4602
  %v4677 = vpop.f32.mrb[0].mxu0
  %v4678 = vadd.f32 0.0, %v4677
  %v4679 = vpop.f32.mrb[0].mxu0
  %v4680 = vpop.f32.mrb[0].mxu0
  %v4681 = vadd.f32 0.0, %v4680
  %v4682 = vpop.f32.mrb[0].mxu0
  %4683 = vmatprep.mubr.bf16.mxu0 0
  %4684 = vmatmul.mubr.bf16.gmra.mrb[0].mxu0 %v4605
  %v4685 = vpop.f32.mrb[0].mxu0
  %v4686 = vadd.f32 0.0, %v4685
  %v4687 = vpop.f32.mrb[0].mxu0
  %v4688 = vpop.f32.mrb[0].mxu0
  %v4689 = vadd.f32 0.0, %v4688
  %v4690 = vpop.f32.mrb[0].mxu0
  %4691 = vmatprep.mubr.bf16.mxu0 0
  %4692 = vmatmul.mubr.bf16.gmra.mrb[0].mxu0 %v4608
  %v4693 = vpop.f32.mrb[0].mxu0
  %v4694 = vadd.f32 0.0, %v4693
  %v4695 = vpop.f32.mrb[0].mxu0
  %v4696 = vpop.f32.mrb[0].mxu0
  %v4697 = vadd.f32 0.0, %v4696
  %v4698 = vpop.f32.mrb[0].mxu0
  %4699 = vmatprep.mubr.bf16.mxu0 0
  %4700 = vmatmul.mubr.bf16.gmra.mrb[0].mxu0 %v4611
  %v4701 = vpop.f32.mrb[0].mxu0
  %v4702 = vadd.f32 0.0, %v4701
  %v4703 = vpop.f32.mrb[0].mxu0
  %v4704 = vpop.f32.mrb[0].mxu0
  %v4705 = vadd.f32 0.0, %v4704
  %v4706 = vpop.f32.mrb[0].mxu0
  %4707 = vmatprep.mubr.bf16.mxu0 0
  %4708 = vmatmul.mubr.bf16.gmra.mrb[0].mxu0 %v4614
  %v4709 = vpop.f32.mrb[0].mxu0
  %v4710 = vadd.f32 0.0, %v4709
  %v4711 = vpop.f32.mrb[0].mxu0
  %v4712 = vpop.f32.mrb[0].mxu0
  %v4713 = vadd.f32 0.0, %v4712
  %v4714 = vpop.f32.mrb[0].mxu0
  %4715 = vdwg.mxu0
  %v4716 = vadd.f32 %v4502, %v4654
  %v4717 = vadd.f32 %v4503, %v4657
  %v4718 = vadd.f32 %v4504, %v4662
  %v4719 = vadd.f32 %v4505, %v4665
  %v4720 = vadd.f32 %v4506, %v4670
  %v4721 = vadd.f32 %v4507, %v4673
  %v4722 = vadd.f32 %v4508, %v4678
  %v4723 = vadd.f32 %v4509, %v4681
  %v4724 = vadd.f32 %v4510, %v4686
  %v4725 = vadd.f32 %v4511, %v4689
  %v4726 = vadd.f32 %v4512, %v4694
  %v4727 = vadd.f32 %v4513, %v4697
  %v4728 = vadd.f32 %v4514, %v4702
  %v4729 = vadd.f32 %v4515, %v4705
  %v4730 = vadd.f32 %v4516, %v4710
  %v4731 = vadd.f32 %v4517, %v4713
  %v4732 = vld [vmem:[%s2] sm:$0x1]
  %v4734 = vlaneseq
  %v4735 = vshrl.u32 %v4734, 7
  %v4736 = vsub.s32 0, %v4735
  %v4737 = vrot.slane %v4732, %v4736
  %v4739 = vadd.f32 %v4716, %v4737
  %v4740 = vadd.f32 %v4717, %v4737
  %v4741 = vadd.f32 %v4718, %v4737
  %v4742 = vadd.f32 %v4719, %v4737
  %v4743 = vadd.f32 %v4720, %v4737
  %v4744 = vadd.f32 %v4721, %v4737
  %v4745 = vadd.f32 %v4722, %v4737
  %v4746 = vadd.f32 %v4723, %v4737
  %v4747 = vadd.f32 %v4724, %v4737
  %v4748 = vadd.f32 %v4725, %v4737
  %v4749 = vadd.f32 %v4726, %v4737
  %v4750 = vadd.f32 %v4727, %v4737
  %v4751 = vadd.f32 %v4728, %v4737
  %v4752 = vadd.f32 %v4729, %v4737
  %v4753 = vadd.f32 %v4730, %v4737
  %v4754 = vadd.f32 %v4731, %v4737
  %v4755 = vmax.f32 %v4739, 0.0
  %v4756 = vmax.f32 %v4740, 0.0
  %v4757 = vmax.f32 %v4741, 0.0
  %v4758 = vmax.f32 %v4742, 0.0
  %v4759 = vmax.f32 %v4743, 0.0
  %v4760 = vmax.f32 %v4744, 0.0
  %v4761 = vmax.f32 %v4745, 0.0
  %v4762 = vmax.f32 %v4746, 0.0
  %v4763 = vmax.f32 %v4747, 0.0
  %v4764 = vmax.f32 %v4748, 0.0
  %v4765 = vmax.f32 %v4749, 0.0
  %v4766 = vmax.f32 %v4750, 0.0
  %v4767 = vmax.f32 %v4751, 0.0
  %v4768 = vmax.f32 %v4752, 0.0
  %v4769 = vmax.f32 %v4753, 0.0
  %v4770 = vmax.f32 %v4754, 0.0
  %s4771 = scalar_lea.vmem [#allocation3], 16
  %4772 = vst.msk [vmem:[%s4771 + $0x1] sm:$0xff] %vm73, %v4755
  %4773 = vst.msk [vmem:[%s4771 + $0x11] sm:$0xff] %vm73, %v4756
  %4774 = vst.msk [vmem:[%s4771 + $0x21] sm:$0xff] %vm73, %v4757
  %4775 = vst.msk [vmem:[%s4771 + $0x31] sm:$0xff] %vm73, %v4758
  %4776 = vst.msk [vmem:[%s4771 + $0x41] sm:$0xff] %vm73, %v4759
  %4777 = vst.msk [vmem:[%s4771 + $0x51] sm:$0xff] %vm73, %v4760
  %4778 = vst.msk [vmem:[%s4771 + $0x61] sm:$0xff] %vm73, %v4761
  %4779 = vst.msk [vmem:[%s4771 + $0x71] sm:$0xff] %vm73, %v4762
  %4780 = vst.msk [vmem:[%s4771 + $0xa1] sm:$0xff] %vm73, %v4763
  %4781 = vst.msk [vmem:[%s4771 + $0xb1] sm:$0xff] %vm73, %v4764
  %4782 = vst.msk [vmem:[%s4771 + $0xc1] sm:$0xff] %vm73, %v4765
  %4783 = vst.msk [vmem:[%s4771 + $0xd1] sm:$0xff] %vm73, %v4766
  %4784 = vst.msk [vmem:[%s4771 + $0xe1] sm:$0xff] %vm73, %v4767
  %4785 = vst.msk [vmem:[%s4771 + $0xf1] sm:$0xff] %vm73, %v4768
  %4786 = vst.msk [vmem:[%s4771 + $0x101] sm:$0xff] %vm73, %v4769
  %4787 = vst.msk [vmem:[%s4771 + $0x111] sm:$0xff] %vm73, %v4770
  %v4788 = vld [vmem:[#allocation3] sm:$0xff]
  %v4789 = vld [vmem:[#allocation3 + $0x10] sm:$0xff]
  %v4790 = vld [vmem:[#allocation3 + $0x20] sm:$0xff]
  %v4791 = vld [vmem:[#allocation3 + $0x30] sm:$0xff]
  %v4792 = vld [vmem:[#allocation3 + $0x40] sm:$0xff]
  %v4793 = vld [vmem:[#allocation3 + $0x50] sm:$0xff]
  %v4794 = vld [vmem:[#allocation3 + $0x60] sm:$0xff]
  %v4795 = vld [vmem:[#allocation3 + $0x70] sm:$0xff]
  %v4796 = vld [vmem:[#allocation3 + $0xa0] sm:$0xff]
  %v4797 = vld [vmem:[#allocation3 + $0xb0] sm:$0xff]
  %v4798 = vld [vmem:[#allocation3 + $0xc0] sm:$0xff]
  %v4799 = vld [vmem:[#allocation3 + $0xd0] sm:$0xff]
  %v4800 = vld [vmem:[#allocation3 + $0xe0] sm:$0xff]
  %v4801 = vld [vmem:[#allocation3 + $0xf0] sm:$0xff]
  %v4802 = vld [vmem:[#allocation3 + $0x100] sm:$0xff]
  %v4803 = vld [vmem:[#allocation3 + $0x110] sm:$0xff]
  %v4804 = vpack.c.bf16 %v4788, %v4788
  %v4805 = vpack.c.bf16 %v4789, %v4789
  %v4806 = vpack.c.bf16 %v4790, %v4790
  %v4807 = vpack.c.bf16 %v4791, %v4791
  %v4808 = vpack.c.bf16 %v4792, %v4792
  %v4809 = vpack.c.bf16 %v4793, %v4793
  %v4810 = vpack.c.bf16 %v4794, %v4794
  %v4811 = vpack.c.bf16 %v4795, %v4795
  %v4812 = vpack.c.bf16 %v4796, %v4796
  %v4813 = vpack.c.bf16 %v4797, %v4797
  %v4814 = vpack.c.bf16 %v4798, %v4798
  %v4815 = vpack.c.bf16 %v4799, %v4799
  %v4816 = vpack.c.bf16 %v4800, %v4800
  %v4817 = vpack.c.bf16 %v4801, %v4801
  %v4818 = vpack.c.bf16 %v4802, %v4802
  %v4819 = vpack.c.bf16 %v4803, %v4803
  %v4820 = vld [vmem:[%s3] sm:$0xf]
  %v4821 = vld [vmem:[#allocation3 + $0x1] sm:$0xff]
  %v4822 = vld [vmem:[#allocation3 + $0x11] sm:$0xff]
  %v4823 = vld [vmem:[#allocation3 + $0x21] sm:$0xff]
  %v4824 = vld [vmem:[#allocation3 + $0x31] sm:$0xff]
  %v4825 = vld [vmem:[#allocation3 + $0x41] sm:$0xff]
  %v4826 = vld [vmem:[#allocation3 + $0x51] sm:$0xff]
  %v4827 = vld [vmem:[#allocation3 + $0x61] sm:$0xff]
  %v4828 = vld [vmem:[#allocation3 + $0x71] sm:$0xff]
  %v4829 = vld [vmem:[#allocation3 + $0xa1] sm:$0xff]
  %v4830 = vld [vmem:[#allocation3 + $0xb1] sm:$0xff]
  %v4831 = vld [vmem:[#allocation3 + $0xc1] sm:$0xff]
  %v4832 = vld [vmem:[#allocation3 + $0xd1] sm:$0xff]
  %v4833 = vld [vmem:[#allocation3 + $0xe1] sm:$0xff]
  %v4834 = vld [vmem:[#allocation3 + $0xf1] sm:$0xff]
  %v4835 = vld [vmem:[#allocation3 + $0x101] sm:$0xff]
  %v4836 = vld [vmem:[#allocation3 + $0x111] sm:$0xff]
  %v4837 = vpack.c.bf16 %v4821, %v4821
  %v4838 = vpack.c.bf16 %v4822, %v4822
  %v4839 = vpack.c.bf16 %v4823, %v4823
  %v4840 = vpack.c.bf16 %v4824, %v4824
  %v4841 = vpack.c.bf16 %v4825, %v4825
  %v4842 = vpack.c.bf16 %v4826, %v4826
  %v4843 = vpack.c.bf16 %v4827, %v4827
  %v4844 = vpack.c.bf16 %v4828, %v4828
  %v4845 = vpack.c.bf16 %v4829, %v4829
  %v4846 = vpack.c.bf16 %v4830, %v4830
  %v4847 = vpack.c.bf16 %v4831, %v4831
  %v4848 = vpack.c.bf16 %v4832, %v4832
  %v4849 = vpack.c.bf16 %v4833, %v4833
  %v4850 = vpack.c.bf16 %v4834, %v4834
  %v4851 = vpack.c.bf16 %v4835, %v4835
  %v4852 = vpack.c.bf16 %v4836, %v4836
  %s4853 = scalar_lea.vmem %s3, 4
  %v4854 = vld [vmem:[%s4853] sm:$0xf]
  %v4871 = vunpack.c.l.b16 %v4837
  %v4872 = vunpack.c.l.b16 %v4838
  %v4873 = vunpack.c.l.b16 %v4839
  %v4874 = vunpack.c.l.b16 %v4840
  %v4875 = vunpack.c.l.b16 %v4841
  %v4876 = vunpack.c.l.b16 %v4842
  %v4877 = vunpack.c.l.b16 %v4843
  %v4878 = vunpack.c.l.b16 %v4844
  %v4879 = vunpack.c.l.b16 %v4845
  %v4880 = vunpack.c.l.b16 %v4846
  %v4881 = vunpack.c.l.b16 %v4847
  %v4882 = vunpack.c.l.b16 %v4848
  %v4883 = vunpack.c.l.b16 %v4849
  %v4884 = vunpack.c.l.b16 %v4850
  %v4885 = vunpack.c.l.b16 %v4851
  %v4886 = vunpack.c.l.b16 %v4852
  %v4887 = vpack.c.b16 %v4872, %v4871
  %v4888 = vpack.c.b16 %v4874, %v4873
  %v4889 = vpack.c.b16 %v4876, %v4875
  %v4890 = vpack.c.b16 %v4878, %v4877
  %v4891 = vpack.c.b16 %v4880, %v4879
  %v4892 = vpack.c.b16 %v4882, %v4881
  %v4893 = vpack.c.b16 %v4884, %v4883
  %v4894 = vpack.c.b16 %v4886, %v4885
  %v4896 = vsel %vm73, %v4887, 0
  %v4899 = vsel %vm73, %v4888, 0
  %v4902 = vsel %vm73, %v4889, 0
  %v4905 = vsel %vm73, %v4890, 0
  %v4908 = vsel %vm73, %v4891, 0
  %v4911 = vsel %vm73, %v4892, 0
  %v4914 = vsel %vm73, %v4893, 0
  %v4917 = vsel %vm73, %v4894, 0
  %vm4919 = vcmask 1043456
  %v4921 = vsel %vm4919, %v4854, 0
  %4923 = vmatprep.subr.bf16.mxu0 0
  %4924 = vmatpush1.bf16.msra.mxu0 %v4921
  %4925 = vmatprep.subr.bf16.mxu0 0
  %4926 = vmatpush1.bf16.msra.mxu0 0
  %4927 = vmatprep.subr.bf16.mxu0 0
  %4928 = vmatpush1.bf16.msra.mxu0 0
  %4929 = vmatprep.subr.bf16.mxu0 0
  %4930 = vmatpush1.bf16.msra.mxu0 0
  %4931 = vmatprep.subr.bf16.mxu0 0
  %4932 = vmatpush1.bf16.msra.mxu0 0
  %4933 = vmatprep.subr.bf16.mxu0 0
  %4934 = vmatpush1.bf16.msra.mxu0 0
  %4935 = vmatprep.subr.bf16.mxu0 0
  %4936 = vmatpush1.bf16.msra.mxu0 0
  %4937 = vmatprep.subr.bf16.mxu0 0
  %4938 = vmatpush1.bf16.msra.mxu0 0
  %4939 = vmatprep.subr.bf16.mxu0 0
  %4940 = vmatpush1.bf16.msra.mxu0 0
  %4941 = vmatprep.subr.bf16.mxu0 0
  %4942 = vmatpush1.bf16.msra.mxu0 0
  %4943 = vmatprep.subr.bf16.mxu0 0
  %4944 = vmatpush1.bf16.msra.mxu0 0
  %4945 = vmatprep.subr.bf16.mxu0 0
  %4946 = vmatpush1.bf16.msra.mxu0 0
  %4947 = vmatprep.subr.bf16.mxu0 0
  %4948 = vmatpush1.bf16.msra.mxu0 0
  %4949 = vmatprep.subr.bf16.mxu0 0
  %4950 = vmatpush1.bf16.msra.mxu0 0
  %4951 = vmatprep.subr.bf16.mxu0 0
  %4952 = vmatpush1.bf16.msra.mxu0 0
  %4953 = vmatprep.subr.bf16.mxu0 0
  %4954 = vmatpush1.bf16.msra.mxu0 0
  %4955 = vmatprep.mubr.bf16.mxu0 0
  %4956 = vmatmul.mubr.bf16.gmra.mrb[0].mxu0 %v4896
  %v4957 = vpop.f32.mrb[0].mxu0
  %v4958 = vadd.f32 0.0, %v4957
  %v4959 = vpop.f32.mrb[0].mxu0
  %v4960 = vpop.f32.mrb[0].mxu0
  %v4961 = vadd.f32 0.0, %v4960
  %v4962 = vpop.f32.mrb[0].mxu0
  %4963 = vmatprep.mubr.bf16.mxu0 0
  %4964 = vmatmul.mubr.bf16.gmra.mrb[0].mxu0 %v4899
  %v4965 = vpop.f32.mrb[0].mxu0
  %v4966 = vadd.f32 0.0, %v4965
  %v4967 = vpop.f32.mrb[0].mxu0
  %v4968 = vpop.f32.mrb[0].mxu0
  %v4969 = vadd.f32 0.0, %v4968
  %v4970 = vpop.f32.mrb[0].mxu0
  %4971 = vmatprep.mubr.bf16.mxu0 0
  %4972 = vmatmul.mubr.bf16.gmra.mrb[0].mxu0 %v4902
  %v4973 = vpop.f32.mrb[0].mxu0
  %v4974 = vadd.f32 0.0, %v4973
  %v4975 = vpop.f32.mrb[0].mxu0
  %v4976 = vpop.f32.mrb[0].mxu0
  %v4977 = vadd.f32 0.0, %v4976
  %v4978 = vpop.f32.mrb[0].mxu0
  %4979 = vmatprep.mubr.bf16.mxu0 0
  %4980 = vmatmul.mubr.bf16.gmra.mrb[0].mxu0 %v4905
  %v4981 = vpop.f32.mrb[0].mxu0
  %v4982 = vadd.f32 0.0, %v4981
  %v4983 = vpop.f32.mrb[0].mxu0
  %v4984 = vpop.f32.mrb[0].mxu0
  %v4985 = vadd.f32 0.0, %v4984
  %v4986 = vpop.f32.mrb[0].mxu0
  %4987 = vmatprep.mubr.bf16.mxu0 0
  %4988 = vmatmul.mubr.bf16.gmra.mrb[0].mxu0 %v4908
  %v4989 = vpop.f32.mrb[0].mxu0
  %v4990 = vadd.f32 0.0, %v4989
  %v4991 = vpop.f32.mrb[0].mxu0
  %v4992 = vpop.f32.mrb[0].mxu0
  %v4993 = vadd.f32 0.0, %v4992
  %v4994 = vpop.f32.mrb[0].mxu0
  %4995 = vmatprep.mubr.bf16.mxu0 0
  %4996 = vmatmul.mubr.bf16.gmra.mrb[0].mxu0 %v4911
  %v4997 = vpop.f32.mrb[0].mxu0
  %v4998 = vadd.f32 0.0, %v4997
  %v4999 = vpop.f32.mrb[0].mxu0
  %v5000 = vpop.f32.mrb[0].mxu0
  %v5001 = vadd.f32 0.0, %v5000
  %v5002 = vpop.f32.mrb[0].mxu0
  %5003 = vmatprep.mubr.bf16.mxu0 0
  %5004 = vmatmul.mubr.bf16.gmra.mrb[0].mxu0 %v4914
  %v5005 = vpop.f32.mrb[0].mxu0
  %v5006 = vadd.f32 0.0, %v5005
  %v5007 = vpop.f32.mrb[0].mxu0
  %v5008 = vpop.f32.mrb[0].mxu0
  %v5009 = vadd.f32 0.0, %v5008
  %v5010 = vpop.f32.mrb[0].mxu0
  %5011 = vmatprep.mubr.bf16.mxu0 0
  %5012 = vmatmul.mubr.bf16.gmra.mrb[0].mxu0 %v4917
  %v5013 = vpop.f32.mrb[0].mxu0
  %v5014 = vadd.f32 0.0, %v5013
  %v5015 = vpop.f32.mrb[0].mxu0
  %v5016 = vpop.f32.mrb[0].mxu0
  %v5017 = vadd.f32 0.0, %v5016
  %v5018 = vpop.f32.mrb[0].mxu0
  %5019 = vdwg.mxu0
  %v5036 = vunpack.c.l.b16 %v4804
  %v5037 = vunpack.c.l.b16 %v4805
  %v5038 = vunpack.c.l.b16 %v4806
  %v5039 = vunpack.c.l.b16 %v4807
  %v5040 = vunpack.c.l.b16 %v4808
  %v5041 = vunpack.c.l.b16 %v4809
  %v5042 = vunpack.c.l.b16 %v4810
  %v5043 = vunpack.c.l.b16 %v4811
  %v5044 = vunpack.c.l.b16 %v4812
  %v5045 = vunpack.c.l.b16 %v4813
  %v5046 = vunpack.c.l.b16 %v4814
  %v5047 = vunpack.c.l.b16 %v4815
  %v5048 = vunpack.c.l.b16 %v4816
  %v5049 = vunpack.c.l.b16 %v4817
  %v5050 = vunpack.c.l.b16 %v4818
  %v5051 = vunpack.c.l.b16 %v4819
  %v5052 = vpack.c.b16 %v5037, %v5036
  %v5053 = vpack.c.b16 %v5039, %v5038
  %v5054 = vpack.c.b16 %v5041, %v5040
  %v5055 = vpack.c.b16 %v5043, %v5042
  %v5056 = vpack.c.b16 %v5045, %v5044
  %v5057 = vpack.c.b16 %v5047, %v5046
  %v5058 = vpack.c.b16 %v5049, %v5048
  %v5059 = vpack.c.b16 %v5051, %v5050
  %v5061 = vsel %vm73, %v5052, 0
  %v5064 = vsel %vm73, %v5053, 0
  %v5067 = vsel %vm73, %v5054, 0
  %v5070 = vsel %vm73, %v5055, 0
  %v5073 = vsel %vm73, %v5056, 0
  %v5076 = vsel %vm73, %v5057, 0
  %v5079 = vsel %vm73, %v5058, 0
  %v5082 = vsel %vm73, %v5059, 0
  %v5085 = vsel %vm4919, %v4820, 0
  %5087 = vmatprep.subr.bf16.mxu0 0
  %5088 = vmatpush1.bf16.msra.mxu0 %v5085
  %5089 = vmatprep.subr.bf16.mxu0 0
  %5090 = vmatpush1.bf16.msra.mxu0 0
  %5091 = vmatprep.subr.bf16.mxu0 0
  %5092 = vmatpush1.bf16.msra.mxu0 0
  %5093 = vmatprep.subr.bf16.mxu0 0
  %5094 = vmatpush1.bf16.msra.mxu0 0
  %5095 = vmatprep.subr.bf16.mxu0 0
  %5096 = vmatpush1.bf16.msra.mxu0 0
  %5097 = vmatprep.subr.bf16.mxu0 0
  %5098 = vmatpush1.bf16.msra.mxu0 0
  %5099 = vmatprep.subr.bf16.mxu0 0
  %5100 = vmatpush1.bf16.msra.mxu0 0
  %5101 = vmatprep.subr.bf16.mxu0 0
  %5102 = vmatpush1.bf16.msra.mxu0 0
  %5103 = vmatprep.subr.bf16.mxu0 0
  %5104 = vmatpush1.bf16.msra.mxu0 0
  %5105 = vmatprep.subr.bf16.mxu0 0
  %5106 = vmatpush1.bf16.msra.mxu0 0
  %5107 = vmatprep.subr.bf16.mxu0 0
  %5108 = vmatpush1.bf16.msra.mxu0 0
  %5109 = vmatprep.subr.bf16.mxu0 0
  %5110 = vmatpush1.bf16.msra.mxu0 0
  %5111 = vmatprep.subr.bf16.mxu0 0
  %5112 = vmatpush1.bf16.msra.mxu0 0
  %5113 = vmatprep.subr.bf16.mxu0 0
  %5114 = vmatpush1.bf16.msra.mxu0 0
  %5115 = vmatprep.subr.bf16.mxu0 0
  %5116 = vmatpush1.bf16.msra.mxu0 0
  %5117 = vmatprep.subr.bf16.mxu0 0
  %5118 = vmatpush1.bf16.msra.mxu0 0
  %5119 = vmatprep.mubr.bf16.mxu0 0
  %5120 = vmatmul.mubr.bf16.gmra.mrb[0].mxu0 %v5061
  %v5121 = vpop.f32.mrb[0].mxu0
  %v5122 = vadd.f32 %v4958, %v5121
  %v5123 = vpop.f32.mrb[0].mxu0
  %v5124 = vpop.f32.mrb[0].mxu0
  %v5125 = vadd.f32 %v4961, %v5124
  %v5126 = vpop.f32.mrb[0].mxu0
  %5127 = vmatprep.mubr.bf16.mxu0 0
  %5128 = vmatmul.mubr.bf16.gmra.mrb[0].mxu0 %v5064
  %v5129 = vpop.f32.mrb[0].mxu0
  %v5130 = vadd.f32 %v4966, %v5129
  %v5131 = vpop.f32.mrb[0].mxu0
  %v5132 = vpop.f32.mrb[0].mxu0
  %v5133 = vadd.f32 %v4969, %v5132
  %v5134 = vpop.f32.mrb[0].mxu0
  %5135 = vmatprep.mubr.bf16.mxu0 0
  %5136 = vmatmul.mubr.bf16.gmra.mrb[0].mxu0 %v5067
  %v5137 = vpop.f32.mrb[0].mxu0
  %v5138 = vadd.f32 %v4974, %v5137
  %v5139 = vpop.f32.mrb[0].mxu0
  %v5140 = vpop.f32.mrb[0].mxu0
  %v5141 = vadd.f32 %v4977, %v5140
  %v5142 = vpop.f32.mrb[0].mxu0
  %5143 = vmatprep.mubr.bf16.mxu0 0
  %5144 = vmatmul.mubr.bf16.gmra.mrb[0].mxu0 %v5070
  %v5145 = vpop.f32.mrb[0].mxu0
  %v5146 = vadd.f32 %v4982, %v5145
  %v5147 = vpop.f32.mrb[0].mxu0
  %v5148 = vpop.f32.mrb[0].mxu0
  %v5149 = vadd.f32 %v4985, %v5148
  %v5150 = vpop.f32.mrb[0].mxu0
  %5151 = vmatprep.mubr.bf16.mxu0 0
  %5152 = vmatmul.mubr.bf16.gmra.mrb[0].mxu0 %v5073
  %v5153 = vpop.f32.mrb[0].mxu0
  %v5154 = vadd.f32 %v4990, %v5153
  %v5155 = vpop.f32.mrb[0].mxu0
  %v5156 = vpop.f32.mrb[0].mxu0
  %v5157 = vadd.f32 %v4993, %v5156
  %v5158 = vpop.f32.mrb[0].mxu0
  %5159 = vmatprep.mubr.bf16.mxu0 0
  %5160 = vmatmul.mubr.bf16.gmra.mrb[0].mxu0 %v5076
  %v5161 = vpop.f32.mrb[0].mxu0
  %v5162 = vadd.f32 %v4998, %v5161
  %v5163 = vpop.f32.mrb[0].mxu0
  %v5164 = vpop.f32.mrb[0].mxu0
  %v5165 = vadd.f32 %v5001, %v5164
  %v5166 = vpop.f32.mrb[0].mxu0
  %5167 = vmatprep.mubr.bf16.mxu0 0
  %5168 = vmatmul.mubr.bf16.gmra.mrb[0].mxu0 %v5079
  %v5169 = vpop.f32.mrb[0].mxu0
  %v5170 = vadd.f32 %v5006, %v5169
  %v5171 = vpop.f32.mrb[0].mxu0
  %v5172 = vpop.f32.mrb[0].mxu0
  %v5173 = vadd.f32 %v5009, %v5172
  %v5174 = vpop.f32.mrb[0].mxu0
  %5175 = vmatprep.mubr.bf16.mxu0 0
  %5176 = vmatmul.mubr.bf16.gmra.mrb[0].mxu0 %v5082
  %v5177 = vpop.f32.mrb[0].mxu0
  %v5178 = vadd.f32 %v5014, %v5177
  %v5179 = vpop.f32.mrb[0].mxu0
  %v5180 = vpop.f32.mrb[0].mxu0
  %v5181 = vadd.f32 %v5017, %v5180
  %v5182 = vpop.f32.mrb[0].mxu0
  %5183 = vdwg.mxu0
  %v5184 = vld [vmem:[#allocation3 + $0x2] sm:$0xff]
  %v5185 = vld [vmem:[#allocation3 + $0x12] sm:$0xff]
  %v5186 = vld [vmem:[#allocation3 + $0x22] sm:$0xff]
  %v5187 = vld [vmem:[#allocation3 + $0x32] sm:$0xff]
  %v5188 = vld [vmem:[#allocation3 + $0x42] sm:$0xff]
  %v5189 = vld [vmem:[#allocation3 + $0x52] sm:$0xff]
  %v5190 = vld [vmem:[#allocation3 + $0x62] sm:$0xff]
  %v5191 = vld [vmem:[#allocation3 + $0x72] sm:$0xff]
  %v5192 = vld [vmem:[#allocation3 + $0xa2] sm:$0xff]
  %v5193 = vld [vmem:[#allocation3 + $0xb2] sm:$0xff]
  %v5194 = vld [vmem:[#allocation3 + $0xc2] sm:$0xff]
  %v5195 = vld [vmem:[#allocation3 + $0xd2] sm:$0xff]
  %v5196 = vld [vmem:[#allocation3 + $0xe2] sm:$0xff]
  %v5197 = vld [vmem:[#allocation3 + $0xf2] sm:$0xff]
  %v5198 = vld [vmem:[#allocation3 + $0x102] sm:$0xff]
  %v5199 = vld [vmem:[#allocation3 + $0x112] sm:$0xff]
  %v5200 = vpack.c.bf16 %v5184, %v5184
  %v5201 = vpack.c.bf16 %v5185, %v5185
  %v5202 = vpack.c.bf16 %v5186, %v5186
  %v5203 = vpack.c.bf16 %v5187, %v5187
  %v5204 = vpack.c.bf16 %v5188, %v5188
  %v5205 = vpack.c.bf16 %v5189, %v5189
  %v5206 = vpack.c.bf16 %v5190, %v5190
  %v5207 = vpack.c.bf16 %v5191, %v5191
  %v5208 = vpack.c.bf16 %v5192, %v5192
  %v5209 = vpack.c.bf16 %v5193, %v5193
  %v5210 = vpack.c.bf16 %v5194, %v5194
  %v5211 = vpack.c.bf16 %v5195, %v5195
  %v5212 = vpack.c.bf16 %v5196, %v5196
  %v5213 = vpack.c.bf16 %v5197, %v5197
  %v5214 = vpack.c.bf16 %v5198, %v5198
  %v5215 = vpack.c.bf16 %v5199, %v5199
  %s5216 = scalar_lea.vmem %s3, 8
  %v5217 = vld [vmem:[%s5216] sm:$0xf]
  %v5234 = vunpack.c.l.b16 %v5200
  %v5235 = vunpack.c.l.b16 %v5201
  %v5236 = vunpack.c.l.b16 %v5202
  %v5237 = vunpack.c.l.b16 %v5203
  %v5238 = vunpack.c.l.b16 %v5204
  %v5239 = vunpack.c.l.b16 %v5205
  %v5240 = vunpack.c.l.b16 %v5206
  %v5241 = vunpack.c.l.b16 %v5207
  %v5242 = vunpack.c.l.b16 %v5208
  %v5243 = vunpack.c.l.b16 %v5209
  %v5244 = vunpack.c.l.b16 %v5210
  %v5245 = vunpack.c.l.b16 %v5211
  %v5246 = vunpack.c.l.b16 %v5212
  %v5247 = vunpack.c.l.b16 %v5213
  %v5248 = vunpack.c.l.b16 %v5214
  %v5249 = vunpack.c.l.b16 %v5215
  %v5250 = vpack.c.b16 %v5235, %v5234
  %v5251 = vpack.c.b16 %v5237, %v5236
  %v5252 = vpack.c.b16 %v5239, %v5238
  %v5253 = vpack.c.b16 %v5241, %v5240
  %v5254 = vpack.c.b16 %v5243, %v5242
  %v5255 = vpack.c.b16 %v5245, %v5244
  %v5256 = vpack.c.b16 %v5247, %v5246
  %v5257 = vpack.c.b16 %v5249, %v5248
  %v5259 = vsel %vm73, %v5250, 0
  %v5262 = vsel %vm73, %v5251, 0
  %v5265 = vsel %vm73, %v5252, 0
  %v5268 = vsel %vm73, %v5253, 0
  %v5271 = vsel %vm73, %v5254, 0
  %v5274 = vsel %vm73, %v5255, 0
  %v5277 = vsel %vm73, %v5256, 0
  %v5280 = vsel %vm73, %v5257, 0
  %v5283 = vsel %vm4919, %v5217, 0
  %5285 = vmatprep.subr.bf16.mxu0 0
  %5286 = vmatpush1.bf16.msra.mxu0 %v5283
  %5287 = vmatprep.subr.bf16.mxu0 0
  %5288 = vmatpush1.bf16.msra.mxu0 0
  %5289 = vmatprep.subr.bf16.mxu0 0
  %5290 = vmatpush1.bf16.msra.mxu0 0
  %5291 = vmatprep.subr.bf16.mxu0 0
  %5292 = vmatpush1.bf16.msra.mxu0 0
  %5293 = vmatprep.subr.bf16.mxu0 0
  %5294 = vmatpush1.bf16.msra.mxu0 0
  %5295 = vmatprep.subr.bf16.mxu0 0
  %5296 = vmatpush1.bf16.msra.mxu0 0
  %5297 = vmatprep.subr.bf16.mxu0 0
  %5298 = vmatpush1.bf16.msra.mxu0 0
  %5299 = vmatprep.subr.bf16.mxu0 0
  %5300 = vmatpush1.bf16.msra.mxu0 0
  %5301 = vmatprep.subr.bf16.mxu0 0
  %5302 = vmatpush1.bf16.msra.mxu0 0
  %5303 = vmatprep.subr.bf16.mxu0 0
  %5304 = vmatpush1.bf16.msra.mxu0 0
  %5305 = vmatprep.subr.bf16.mxu0 0
  %5306 = vmatpush1.bf16.msra.mxu0 0
  %5307 = vmatprep.subr.bf16.mxu0 0
  %5308 = vmatpush1.bf16.msra.mxu0 0
  %5309 = vmatprep.subr.bf16.mxu0 0
  %5310 = vmatpush1.bf16.msra.mxu0 0
  %5311 = vmatprep.subr.bf16.mxu0 0
  %5312 = vmatpush1.bf16.msra.mxu0 0
  %5313 = vmatprep.subr.bf16.mxu0 0
  %5314 = vmatpush1.bf16.msra.mxu0 0
  %5315 = vmatprep.subr.bf16.mxu0 0
  %5316 = vmatpush1.bf16.msra.mxu0 0
  %5317 = vmatprep.mubr.bf16.mxu0 0
  %5318 = vmatmul.mubr.bf16.gmra.mrb[0].mxu0 %v5259
  %v5319 = vpop.f32.mrb[0].mxu0
  %v5320 = vadd.f32 0.0, %v5319
  %v5321 = vpop.f32.mrb[0].mxu0
  %v5322 = vpop.f32.mrb[0].mxu0
  %v5323 = vadd.f32 0.0, %v5322
  %v5324 = vpop.f32.mrb[0].mxu0
  %5325 = vmatprep.mubr.bf16.mxu0 0
  %5326 = vmatmul.mubr.bf16.gmra.mrb[0].mxu0 %v5262
  %v5327 = vpop.f32.mrb[0].mxu0
  %v5328 = vadd.f32 0.0, %v5327
  %v5329 = vpop.f32.mrb[0].mxu0
  %v5330 = vpop.f32.mrb[0].mxu0
  %v5331 = vadd.f32 0.0, %v5330
  %v5332 = vpop.f32.mrb[0].mxu0
  %5333 = vmatprep.mubr.bf16.mxu0 0
  %5334 = vmatmul.mubr.bf16.gmra.mrb[0].mxu0 %v5265
  %v5335 = vpop.f32.mrb[0].mxu0
  %v5336 = vadd.f32 0.0, %v5335
  %v5337 = vpop.f32.mrb[0].mxu0
  %v5338 = vpop.f32.mrb[0].mxu0
  %v5339 = vadd.f32 0.0, %v5338
  %v5340 = vpop.f32.mrb[0].mxu0
  %5341 = vmatprep.mubr.bf16.mxu0 0
  %5342 = vmatmul.mubr.bf16.gmra.mrb[0].mxu0 %v5268
  %v5343 = vpop.f32.mrb[0].mxu0
  %v5344 = vadd.f32 0.0, %v5343
  %v5345 = vpop.f32.mrb[0].mxu0
  %v5346 = vpop.f32.mrb[0].mxu0
  %v5347 = vadd.f32 0.0, %v5346
  %v5348 = vpop.f32.mrb[0].mxu0
  %5349 = vmatprep.mubr.bf16.mxu0 0
  %5350 = vmatmul.mubr.bf16.gmra.mrb[0].mxu0 %v5271
  %v5351 = vpop.f32.mrb[0].mxu0
  %v5352 = vadd.f32 0.0, %v5351
  %v5353 = vpop.f32.mrb[0].mxu0
  %v5354 = vpop.f32.mrb[0].mxu0
  %v5355 = vadd.f32 0.0, %v5354
  %v5356 = vpop.f32.mrb[0].mxu0
  %5357 = vmatprep.mubr.bf16.mxu0 0
  %5358 = vmatmul.mubr.bf16.gmra.mrb[0].mxu0 %v5274
  %v5359 = vpop.f32.mrb[0].mxu0
  %v5360 = vadd.f32 0.0, %v5359
  %v5361 = vpop.f32.mrb[0].mxu0
  %v5362 = vpop.f32.mrb[0].mxu0
  %v5363 = vadd.f32 0.0, %v5362
  %v5364 = vpop.f32.mrb[0].mxu0
  %5365 = vmatprep.mubr.bf16.mxu0 0
  %5366 = vmatmul.mubr.bf16.gmra.mrb[0].mxu0 %v5277
  %v5367 = vpop.f32.mrb[0].mxu0
  %v5368 = vadd.f32 0.0, %v5367
  %v5369 = vpop.f32.mrb[0].mxu0
  %v5370 = vpop.f32.mrb[0].mxu0
  %v5371 = vadd.f32 0.0, %v5370
  %v5372 = vpop.f32.mrb[0].mxu0
  %5373 = vmatprep.mubr.bf16.mxu0 0
  %5374 = vmatmul.mubr.bf16.gmra.mrb[0].mxu0 %v5280
  %v5375 = vpop.f32.mrb[0].mxu0
  %v5376 = vadd.f32 0.0, %v5375
  %v5377 = vpop.f32.mrb[0].mxu0
  %v5378 = vpop.f32.mrb[0].mxu0
  %v5379 = vadd.f32 0.0, %v5378
  %v5380 = vpop.f32.mrb[0].mxu0
  %5381 = vdwg.mxu0
  %v5382 = vadd.f32 %v5122, %v5320
  %v5383 = vadd.f32 %v5125, %v5323
  %v5384 = vadd.f32 %v5130, %v5328
  %v5385 = vadd.f32 %v5133, %v5331
  %v5386 = vadd.f32 %v5138, %v5336
  %v5387 = vadd.f32 %v5141, %v5339
  %v5388 = vadd.f32 %v5146, %v5344
  %v5389 = vadd.f32 %v5149, %v5347
  %v5390 = vadd.f32 %v5154, %v5352
  %v5391 = vadd.f32 %v5157, %v5355
  %v5392 = vadd.f32 %v5162, %v5360
  %v5393 = vadd.f32 %v5165, %v5363
  %v5394 = vadd.f32 %v5170, %v5368
  %v5395 = vadd.f32 %v5173, %v5371
  %v5396 = vadd.f32 %v5178, %v5376
  %v5397 = vadd.f32 %v5181, %v5379
  %v5398 = vld [vmem:[%s4771] sm:$0xff]
  %v5399 = vld [vmem:[%s4771 + $0x10] sm:$0xff]
  %v5400 = vld [vmem:[%s4771 + $0x20] sm:$0xff]
  %v5401 = vld [vmem:[%s4771 + $0x30] sm:$0xff]
  %v5402 = vld [vmem:[%s4771 + $0x40] sm:$0xff]
  %v5403 = vld [vmem:[%s4771 + $0x50] sm:$0xff]
  %v5404 = vld [vmem:[%s4771 + $0x60] sm:$0xff]
  %v5405 = vld [vmem:[%s4771 + $0x70] sm:$0xff]
  %v5406 = vld [vmem:[%s4771 + $0xa0] sm:$0xff]
  %v5407 = vld [vmem:[%s4771 + $0xb0] sm:$0xff]
  %v5408 = vld [vmem:[%s4771 + $0xc0] sm:$0xff]
  %v5409 = vld [vmem:[%s4771 + $0xd0] sm:$0xff]
  %v5410 = vld [vmem:[%s4771 + $0xe0] sm:$0xff]
  %v5411 = vld [vmem:[%s4771 + $0xf0] sm:$0xff]
  %v5412 = vld [vmem:[%s4771 + $0x100] sm:$0xff]
  %v5413 = vld [vmem:[%s4771 + $0x110] sm:$0xff]
  %v5414 = vpack.c.bf16 %v5398, %v5398
  %v5415 = vpack.c.bf16 %v5399, %v5399
  %v5416 = vpack.c.bf16 %v5400, %v5400
  %v5417 = vpack.c.bf16 %v5401, %v5401
  %v5418 = vpack.c.bf16 %v5402, %v5402
  %v5419 = vpack.c.bf16 %v5403, %v5403
  %v5420 = vpack.c.bf16 %v5404, %v5404
  %v5421 = vpack.c.bf16 %v5405, %v5405
  %v5422 = vpack.c.bf16 %v5406, %v5406
  %v5423 = vpack.c.bf16 %v5407, %v5407
  %v5424 = vpack.c.bf16 %v5408, %v5408
  %v5425 = vpack.c.bf16 %v5409, %v5409
  %v5426 = vpack.c.bf16 %v5410, %v5410
  %v5427 = vpack.c.bf16 %v5411, %v5411
  %v5428 = vpack.c.bf16 %v5412, %v5412
  %v5429 = vpack.c.bf16 %v5413, %v5413
  %s5430 = scalar_lea.vmem %s3, 12
  %v5431 = vld [vmem:[%s5430] sm:$0xf]
  %v5448 = vunpack.c.l.b16 %v5414
  %v5449 = vunpack.c.l.b16 %v5415
  %v5450 = vunpack.c.l.b16 %v5416
  %v5451 = vunpack.c.l.b16 %v5417
  %v5452 = vunpack.c.l.b16 %v5418
  %v5453 = vunpack.c.l.b16 %v5419
  %v5454 = vunpack.c.l.b16 %v5420
  %v5455 = vunpack.c.l.b16 %v5421
  %v5456 = vunpack.c.l.b16 %v5422
  %v5457 = vunpack.c.l.b16 %v5423
  %v5458 = vunpack.c.l.b16 %v5424
  %v5459 = vunpack.c.l.b16 %v5425
  %v5460 = vunpack.c.l.b16 %v5426
  %v5461 = vunpack.c.l.b16 %v5427
  %v5462 = vunpack.c.l.b16 %v5428
  %v5463 = vunpack.c.l.b16 %v5429
  %v5464 = vpack.c.b16 %v5449, %v5448
  %v5465 = vpack.c.b16 %v5451, %v5450
  %v5466 = vpack.c.b16 %v5453, %v5452
  %v5467 = vpack.c.b16 %v5455, %v5454
  %v5468 = vpack.c.b16 %v5457, %v5456
  %v5469 = vpack.c.b16 %v5459, %v5458
  %v5470 = vpack.c.b16 %v5461, %v5460
  %v5471 = vpack.c.b16 %v5463, %v5462
  %v5473 = vsel %vm73, %v5464, 0
  %v5476 = vsel %vm73, %v5465, 0
  %v5479 = vsel %vm73, %v5466, 0
  %v5482 = vsel %vm73, %v5467, 0
  %v5485 = vsel %vm73, %v5468, 0
  %v5488 = vsel %vm73, %v5469, 0
  %v5491 = vsel %vm73, %v5470, 0
  %v5494 = vsel %vm73, %v5471, 0
  %v5497 = vsel %vm4919, %v5431, 0
  %5499 = vmatprep.subr.bf16.mxu0 0
  %5500 = vmatpush1.bf16.msra.mxu0 %v5497
  %5501 = vmatprep.subr.bf16.mxu0 0
  %5502 = vmatpush1.bf16.msra.mxu0 0
  %5503 = vmatprep.subr.bf16.mxu0 0
  %5504 = vmatpush1.bf16.msra.mxu0 0
  %5505 = vmatprep.subr.bf16.mxu0 0
  %5506 = vmatpush1.bf16.msra.mxu0 0
  %5507 = vmatprep.subr.bf16.mxu0 0
  %5508 = vmatpush1.bf16.msra.mxu0 0
  %5509 = vmatprep.subr.bf16.mxu0 0
  %5510 = vmatpush1.bf16.msra.mxu0 0
  %5511 = vmatprep.subr.bf16.mxu0 0
  %5512 = vmatpush1.bf16.msra.mxu0 0
  %5513 = vmatprep.subr.bf16.mxu0 0
  %5514 = vmatpush1.bf16.msra.mxu0 0
  %5515 = vmatprep.subr.bf16.mxu0 0
  %5516 = vmatpush1.bf16.msra.mxu0 0
  %5517 = vmatprep.subr.bf16.mxu0 0
  %5518 = vmatpush1.bf16.msra.mxu0 0
  %5519 = vmatprep.subr.bf16.mxu0 0
  %5520 = vmatpush1.bf16.msra.mxu0 0
  %5521 = vmatprep.subr.bf16.mxu0 0
  %5522 = vmatpush1.bf16.msra.mxu0 0
  %5523 = vmatprep.subr.bf16.mxu0 0
  %5524 = vmatpush1.bf16.msra.mxu0 0
  %5525 = vmatprep.subr.bf16.mxu0 0
  %5526 = vmatpush1.bf16.msra.mxu0 0
  %5527 = vmatprep.subr.bf16.mxu0 0
  %5528 = vmatpush1.bf16.msra.mxu0 0
  %5529 = vmatprep.subr.bf16.mxu0 0
  %5530 = vmatpush1.bf16.msra.mxu0 0
  %5531 = vmatprep.mubr.bf16.mxu0 0
  %5532 = vmatmul.mubr.bf16.gmra.mrb[0].mxu0 %v5473
  %v5533 = vpop.f32.mrb[0].mxu0
  %v5534 = vadd.f32 0.0, %v5533
  %v5535 = vpop.f32.mrb[0].mxu0
  %v5536 = vpop.f32.mrb[0].mxu0
  %v5537 = vadd.f32 0.0, %v5536
  %v5538 = vpop.f32.mrb[0].mxu0
  %5539 = vmatprep.mubr.bf16.mxu0 0
  %5540 = vmatmul.mubr.bf16.gmra.mrb[0].mxu0 %v5476
  %v5541 = vpop.f32.mrb[0].mxu0
  %v5542 = vadd.f32 0.0, %v5541
  %v5543 = vpop.f32.mrb[0].mxu0
  %v5544 = vpop.f32.mrb[0].mxu0
  %v5545 = vadd.f32 0.0, %v5544
  %v5546 = vpop.f32.mrb[0].mxu0
  %5547 = vmatprep.mubr.bf16.mxu0 0
  %5548 = vmatmul.mubr.bf16.gmra.mrb[0].mxu0 %v5479
  %v5549 = vpop.f32.mrb[0].mxu0
  %v5550 = vadd.f32 0.0, %v5549
  %v5551 = vpop.f32.mrb[0].mxu0
  %v5552 = vpop.f32.mrb[0].mxu0
  %v5553 = vadd.f32 0.0, %v5552
  %v5554 = vpop.f32.mrb[0].mxu0
  %5555 = vmatprep.mubr.bf16.mxu0 0
  %5556 = vmatmul.mubr.bf16.gmra.mrb[0].mxu0 %v5482
  %v5557 = vpop.f32.mrb[0].mxu0
  %v5558 = vadd.f32 0.0, %v5557
  %v5559 = vpop.f32.mrb[0].mxu0
  %v5560 = vpop.f32.mrb[0].mxu0
  %v5561 = vadd.f32 0.0, %v5560
  %v5562 = vpop.f32.mrb[0].mxu0
  %5563 = vmatprep.mubr.bf16.mxu0 0
  %5564 = vmatmul.mubr.bf16.gmra.mrb[0].mxu0 %v5485
  %v5565 = vpop.f32.mrb[0].mxu0
  %v5566 = vadd.f32 0.0, %v5565
  %v5567 = vpop.f32.mrb[0].mxu0
  %v5568 = vpop.f32.mrb[0].mxu0
  %v5569 = vadd.f32 0.0, %v5568
  %v5570 = vpop.f32.mrb[0].mxu0
  %5571 = vmatprep.mubr.bf16.mxu0 0
  %5572 = vmatmul.mubr.bf16.gmra.mrb[0].mxu0 %v5488
  %v5573 = vpop.f32.mrb[0].mxu0
  %v5574 = vadd.f32 0.0, %v5573
  %v5575 = vpop.f32.mrb[0].mxu0
  %v5576 = vpop.f32.mrb[0].mxu0
  %v5577 = vadd.f32 0.0, %v5576
  %v5578 = vpop.f32.mrb[0].mxu0
  %5579 = vmatprep.mubr.bf16.mxu0 0
  %5580 = vmatmul.mubr.bf16.gmra.mrb[0].mxu0 %v5491
  %v5581 = vpop.f32.mrb[0].mxu0
  %v5582 = vadd.f32 0.0, %v5581
  %v5583 = vpop.f32.mrb[0].mxu0
  %v5584 = vpop.f32.mrb[0].mxu0
  %v5585 = vadd.f32 0.0, %v5584
  %v5586 = vpop.f32.mrb[0].mxu0
  %5587 = vmatprep.mubr.bf16.mxu0 0
  %5588 = vmatmul.mubr.bf16.gmra.mrb[0].mxu0 %v5494
  %v5589 = vpop.f32.mrb[0].mxu0
  %v5590 = vadd.f32 0.0, %v5589
  %v5591 = vpop.f32.mrb[0].mxu0
  %v5592 = vpop.f32.mrb[0].mxu0
  %v5593 = vadd.f32 0.0, %v5592
  %v5594 = vpop.f32.mrb[0].mxu0
  %5595 = vdwg.mxu0
  %v5596 = vadd.f32 %v5382, %v5534
  %v5597 = vadd.f32 %v5383, %v5537
  %v5598 = vadd.f32 %v5384, %v5542
  %v5599 = vadd.f32 %v5385, %v5545
  %v5600 = vadd.f32 %v5386, %v5550
  %v5601 = vadd.f32 %v5387, %v5553
  %v5602 = vadd.f32 %v5388, %v5558
  %v5603 = vadd.f32 %v5389, %v5561
  %v5604 = vadd.f32 %v5390, %v5566
  %v5605 = vadd.f32 %v5391, %v5569
  %v5606 = vadd.f32 %v5392, %v5574
  %v5607 = vadd.f32 %v5393, %v5577
  %v5608 = vadd.f32 %v5394, %v5582
  %v5609 = vadd.f32 %v5395, %v5585
  %v5610 = vadd.f32 %v5396, %v5590
  %v5611 = vadd.f32 %v5397, %v5593
  %v5612 = vld [vmem:[%s4771 + $0x1] sm:$0xff]
  %v5613 = vld [vmem:[%s4771 + $0x11] sm:$0xff]
  %v5614 = vld [vmem:[%s4771 + $0x21] sm:$0xff]
  %v5615 = vld [vmem:[%s4771 + $0x31] sm:$0xff]
  %v5616 = vld [vmem:[%s4771 + $0x41] sm:$0xff]
  %v5617 = vld [vmem:[%s4771 + $0x51] sm:$0xff]
  %v5618 = vld [vmem:[%s4771 + $0x61] sm:$0xff]
  %v5619 = vld [vmem:[%s4771 + $0x71] sm:$0xff]
  %v5620 = vld [vmem:[%s4771 + $0xa1] sm:$0xff]
  %v5621 = vld [vmem:[%s4771 + $0xb1] sm:$0xff]
  %v5622 = vld [vmem:[%s4771 + $0xc1] sm:$0xff]
  %v5623 = vld [vmem:[%s4771 + $0xd1] sm:$0xff]
  %v5624 = vld [vmem:[%s4771 + $0xe1] sm:$0xff]
  %v5625 = vld [vmem:[%s4771 + $0xf1] sm:$0xff]
  %v5626 = vld [vmem:[%s4771 + $0x101] sm:$0xff]
  %v5627 = vld [vmem:[%s4771 + $0x111] sm:$0xff]
  %v5628 = vpack.c.bf16 %v5612, %v5612
  %v5629 = vpack.c.bf16 %v5613, %v5613
  %v5630 = vpack.c.bf16 %v5614, %v5614
  %v5631 = vpack.c.bf16 %v5615, %v5615
  %v5632 = vpack.c.bf16 %v5616, %v5616
  %v5633 = vpack.c.bf16 %v5617, %v5617
  %v5634 = vpack.c.bf16 %v5618, %v5618
  %v5635 = vpack.c.bf16 %v5619, %v5619
  %v5636 = vpack.c.bf16 %v5620, %v5620
  %v5637 = vpack.c.bf16 %v5621, %v5621
  %v5638 = vpack.c.bf16 %v5622, %v5622
  %v5639 = vpack.c.bf16 %v5623, %v5623
  %v5640 = vpack.c.bf16 %v5624, %v5624
  %v5641 = vpack.c.bf16 %v5625, %v5625
  %v5642 = vpack.c.bf16 %v5626, %v5626
  %v5643 = vpack.c.bf16 %v5627, %v5627
  %s5644 = scalar_lea.vmem %s3, 16
  %v5645 = vld [vmem:[%s5644] sm:$0xf]
  %v5662 = vunpack.c.l.b16 %v5628
  %v5663 = vunpack.c.l.b16 %v5629
  %v5664 = vunpack.c.l.b16 %v5630
  %v5665 = vunpack.c.l.b16 %v5631
  %v5666 = vunpack.c.l.b16 %v5632
  %v5667 = vunpack.c.l.b16 %v5633
  %v5668 = vunpack.c.l.b16 %v5634
  %v5669 = vunpack.c.l.b16 %v5635
  %v5670 = vunpack.c.l.b16 %v5636
  %v5671 = vunpack.c.l.b16 %v5637
  %v5672 = vunpack.c.l.b16 %v5638
  %v5673 = vunpack.c.l.b16 %v5639
  %v5674 = vunpack.c.l.b16 %v5640
  %v5675 = vunpack.c.l.b16 %v5641
  %v5676 = vunpack.c.l.b16 %v5642
  %v5677 = vunpack.c.l.b16 %v5643
  %v5678 = vpack.c.b16 %v5663, %v5662
  %v5679 = vpack.c.b16 %v5665, %v5664
  %v5680 = vpack.c.b16 %v5667, %v5666
  %v5681 = vpack.c.b16 %v5669, %v5668
  %v5682 = vpack.c.b16 %v5671, %v5670
  %v5683 = vpack.c.b16 %v5673, %v5672
  %v5684 = vpack.c.b16 %v5675, %v5674
  %v5685 = vpack.c.b16 %v5677, %v5676
  %v5687 = vsel %vm73, %v5678, 0
  %v5690 = vsel %vm73, %v5679, 0
  %v5693 = vsel %vm73, %v5680, 0
  %v5696 = vsel %vm73, %v5681, 0
  %v5699 = vsel %vm73, %v5682, 0
  %v5702 = vsel %vm73, %v5683, 0
  %v5705 = vsel %vm73, %v5684, 0
  %v5708 = vsel %vm73, %v5685, 0
  %v5711 = vsel %vm4919, %v5645, 0
  %5713 = vmatprep.subr.bf16.mxu0 0
  %5714 = vmatpush1.bf16.msra.mxu0 %v5711
  %5715 = vmatprep.subr.bf16.mxu0 0
  %5716 = vmatpush1.bf16.msra.mxu0 0
  %5717 = vmatprep.subr.bf16.mxu0 0
  %5718 = vmatpush1.bf16.msra.mxu0 0
  %5719 = vmatprep.subr.bf16.mxu0 0
  %5720 = vmatpush1.bf16.msra.mxu0 0
  %5721 = vmatprep.subr.bf16.mxu0 0
  %5722 = vmatpush1.bf16.msra.mxu0 0
  %5723 = vmatprep.subr.bf16.mxu0 0
  %5724 = vmatpush1.bf16.msra.mxu0 0
  %5725 = vmatprep.subr.bf16.mxu0 0
  %5726 = vmatpush1.bf16.msra.mxu0 0
  %5727 = vmatprep.subr.bf16.mxu0 0
  %5728 = vmatpush1.bf16.msra.mxu0 0
  %5729 = vmatprep.subr.bf16.mxu0 0
  %5730 = vmatpush1.bf16.msra.mxu0 0
  %5731 = vmatprep.subr.bf16.mxu0 0
  %5732 = vmatpush1.bf16.msra.mxu0 0
  %5733 = vmatprep.subr.bf16.mxu0 0
  %5734 = vmatpush1.bf16.msra.mxu0 0
  %5735 = vmatprep.subr.bf16.mxu0 0
  %5736 = vmatpush1.bf16.msra.mxu0 0
  %5737 = vmatprep.subr.bf16.mxu0 0
  %5738 = vmatpush1.bf16.msra.mxu0 0
  %5739 = vmatprep.subr.bf16.mxu0 0
  %5740 = vmatpush1.bf16.msra.mxu0 0
  %5741 = vmatprep.subr.bf16.mxu0 0
  %5742 = vmatpush1.bf16.msra.mxu0 0
  %5743 = vmatprep.subr.bf16.mxu0 0
  %5744 = vmatpush1.bf16.msra.mxu0 0
  %5745 = vmatprep.mubr.bf16.mxu0 0
  %5746 = vmatmul.mubr.bf16.gmra.mrb[0].mxu0 %v5687
  %v5747 = vpop.f32.mrb[0].mxu0
  %v5748 = vadd.f32 0.0, %v5747
  %v5749 = vpop.f32.mrb[0].mxu0
  %v5750 = vpop.f32.mrb[0].mxu0
  %v5751 = vadd.f32 0.0, %v5750
  %v5752 = vpop.f32.mrb[0].mxu0
  %5753 = vmatprep.mubr.bf16.mxu0 0
  %5754 = vmatmul.mubr.bf16.gmra.mrb[0].mxu0 %v5690
  %v5755 = vpop.f32.mrb[0].mxu0
  %v5756 = vadd.f32 0.0, %v5755
  %v5757 = vpop.f32.mrb[0].mxu0
  %v5758 = vpop.f32.mrb[0].mxu0
  %v5759 = vadd.f32 0.0, %v5758
  %v5760 = vpop.f32.mrb[0].mxu0
  %5761 = vmatprep.mubr.bf16.mxu0 0
  %5762 = vmatmul.mubr.bf16.gmra.mrb[0].mxu0 %v5693
  %v5763 = vpop.f32.mrb[0].mxu0
  %v5764 = vadd.f32 0.0, %v5763
  %v5765 = vpop.f32.mrb[0].mxu0
  %v5766 = vpop.f32.mrb[0].mxu0
  %v5767 = vadd.f32 0.0, %v5766
  %v5768 = vpop.f32.mrb[0].mxu0
  %5769 = vmatprep.mubr.bf16.mxu0 0
  %5770 = vmatmul.mubr.bf16.gmra.mrb[0].mxu0 %v5696
  %v5771 = vpop.f32.mrb[0].mxu0
  %v5772 = vadd.f32 0.0, %v5771
  %v5773 = vpop.f32.mrb[0].mxu0
  %v5774 = vpop.f32.mrb[0].mxu0
  %v5775 = vadd.f32 0.0, %v5774
  %v5776 = vpop.f32.mrb[0].mxu0
  %5777 = vmatprep.mubr.bf16.mxu0 0
  %5778 = vmatmul.mubr.bf16.gmra.mrb[0].mxu0 %v5699
  %v5779 = vpop.f32.mrb[0].mxu0
  %v5780 = vadd.f32 0.0, %v5779
  %v5781 = vpop.f32.mrb[0].mxu0
  %v5782 = vpop.f32.mrb[0].mxu0
  %v5783 = vadd.f32 0.0, %v5782
  %v5784 = vpop.f32.mrb[0].mxu0
  %5785 = vmatprep.mubr.bf16.mxu0 0
  %5786 = vmatmul.mubr.bf16.gmra.mrb[0].mxu0 %v5702
  %v5787 = vpop.f32.mrb[0].mxu0
  %v5788 = vadd.f32 0.0, %v5787
  %v5789 = vpop.f32.mrb[0].mxu0
  %v5790 = vpop.f32.mrb[0].mxu0
  %v5791 = vadd.f32 0.0, %v5790
  %v5792 = vpop.f32.mrb[0].mxu0
  %5793 = vmatprep.mubr.bf16.mxu0 0
  %5794 = vmatmul.mubr.bf16.gmra.mrb[0].mxu0 %v5705
  %v5795 = vpop.f32.mrb[0].mxu0
  %v5796 = vadd.f32 0.0, %v5795
  %v5797 = vpop.f32.mrb[0].mxu0
  %v5798 = vpop.f32.mrb[0].mxu0
  %v5799 = vadd.f32 0.0, %v5798
  %v5800 = vpop.f32.mrb[0].mxu0
  %5801 = vmatprep.mubr.bf16.mxu0 0
  %5802 = vmatmul.mubr.bf16.gmra.mrb[0].mxu0 %v5708
  %v5803 = vpop.f32.mrb[0].mxu0
  %v5804 = vadd.f32 0.0, %v5803
  %v5805 = vpop.f32.mrb[0].mxu0
  %v5806 = vpop.f32.mrb[0].mxu0
  %v5807 = vadd.f32 0.0, %v5806
  %v5808 = vpop.f32.mrb[0].mxu0
  %5809 = vdwg.mxu0
  %v5810 = vadd.f32 %v5596, %v5748
  %v5811 = vadd.f32 %v5597, %v5751
  %v5812 = vadd.f32 %v5598, %v5756
  %v5813 = vadd.f32 %v5599, %v5759
  %v5814 = vadd.f32 %v5600, %v5764
  %v5815 = vadd.f32 %v5601, %v5767
  %v5816 = vadd.f32 %v5602, %v5772
  %v5817 = vadd.f32 %v5603, %v5775
  %v5818 = vadd.f32 %v5604, %v5780
  %v5819 = vadd.f32 %v5605, %v5783
  %v5820 = vadd.f32 %v5606, %v5788
  %v5821 = vadd.f32 %v5607, %v5791
  %v5822 = vadd.f32 %v5608, %v5796
  %v5823 = vadd.f32 %v5609, %v5799
  %v5824 = vadd.f32 %v5610, %v5804
  %v5825 = vadd.f32 %v5611, %v5807
  %v5826 = vld [vmem:[%s4771 + $0x2] sm:$0xff]
  %v5827 = vld [vmem:[%s4771 + $0x12] sm:$0xff]
  %v5828 = vld [vmem:[%s4771 + $0x22] sm:$0xff]
  %v5829 = vld [vmem:[%s4771 + $0x32] sm:$0xff]
  %v5830 = vld [vmem:[%s4771 + $0x42] sm:$0xff]
  %v5831 = vld [vmem:[%s4771 + $0x52] sm:$0xff]
  %v5832 = vld [vmem:[%s4771 + $0x62] sm:$0xff]
  %v5833 = vld [vmem:[%s4771 + $0x72] sm:$0xff]
  %v5834 = vld [vmem:[%s4771 + $0xa2] sm:$0xff]
  %v5835 = vld [vmem:[%s4771 + $0xb2] sm:$0xff]
  %v5836 = vld [vmem:[%s4771 + $0xc2] sm:$0xff]
  %v5837 = vld [vmem:[%s4771 + $0xd2] sm:$0xff]
  %v5838 = vld [vmem:[%s4771 + $0xe2] sm:$0xff]
  %v5839 = vld [vmem:[%s4771 + $0xf2] sm:$0xff]
  %v5840 = vld [vmem:[%s4771 + $0x102] sm:$0xff]
  %v5841 = vld [vmem:[%s4771 + $0x112] sm:$0xff]
  %v5842 = vpack.c.bf16 %v5826, %v5826
  %v5843 = vpack.c.bf16 %v5827, %v5827
  %v5844 = vpack.c.bf16 %v5828, %v5828
  %v5845 = vpack.c.bf16 %v5829, %v5829
  %v5846 = vpack.c.bf16 %v5830, %v5830
  %v5847 = vpack.c.bf16 %v5831, %v5831
  %v5848 = vpack.c.bf16 %v5832, %v5832
  %v5849 = vpack.c.bf16 %v5833, %v5833
  %v5850 = vpack.c.bf16 %v5834, %v5834
  %v5851 = vpack.c.bf16 %v5835, %v5835
  %v5852 = vpack.c.bf16 %v5836, %v5836
  %v5853 = vpack.c.bf16 %v5837, %v5837
  %v5854 = vpack.c.bf16 %v5838, %v5838
  %v5855 = vpack.c.bf16 %v5839, %v5839
  %v5856 = vpack.c.bf16 %v5840, %v5840
  %v5857 = vpack.c.bf16 %v5841, %v5841
  %s5858 = scalar_lea.vmem %s3, 20
  %v5859 = vld [vmem:[%s5858] sm:$0xf]
  %v5876 = vunpack.c.l.b16 %v5842
  %v5877 = vunpack.c.l.b16 %v5843
  %v5878 = vunpack.c.l.b16 %v5844
  %v5879 = vunpack.c.l.b16 %v5845
  %v5880 = vunpack.c.l.b16 %v5846
  %v5881 = vunpack.c.l.b16 %v5847
  %v5882 = vunpack.c.l.b16 %v5848
  %v5883 = vunpack.c.l.b16 %v5849
  %v5884 = vunpack.c.l.b16 %v5850
  %v5885 = vunpack.c.l.b16 %v5851
  %v5886 = vunpack.c.l.b16 %v5852
  %v5887 = vunpack.c.l.b16 %v5853
  %v5888 = vunpack.c.l.b16 %v5854
  %v5889 = vunpack.c.l.b16 %v5855
  %v5890 = vunpack.c.l.b16 %v5856
  %v5891 = vunpack.c.l.b16 %v5857
  %v5892 = vpack.c.b16 %v5877, %v5876
  %v5893 = vpack.c.b16 %v5879, %v5878
  %v5894 = vpack.c.b16 %v5881, %v5880
  %v5895 = vpack.c.b16 %v5883, %v5882
  %v5896 = vpack.c.b16 %v5885, %v5884
  %v5897 = vpack.c.b16 %v5887, %v5886
  %v5898 = vpack.c.b16 %v5889, %v5888
  %v5899 = vpack.c.b16 %v5891, %v5890
  %v5901 = vsel %vm73, %v5892, 0
  %v5904 = vsel %vm73, %v5893, 0
  %v5907 = vsel %vm73, %v5894, 0
  %v5910 = vsel %vm73, %v5895, 0
  %v5913 = vsel %vm73, %v5896, 0
  %v5916 = vsel %vm73, %v5897, 0
  %v5919 = vsel %vm73, %v5898, 0
  %v5922 = vsel %vm73, %v5899, 0
  %v5925 = vsel %vm4919, %v5859, 0
  %5927 = vmatprep.subr.bf16.mxu0 0
  %5928 = vmatpush1.bf16.msra.mxu0 %v5925
  %5929 = vmatprep.subr.bf16.mxu0 0
  %5930 = vmatpush1.bf16.msra.mxu0 0
  %5931 = vmatprep.subr.bf16.mxu0 0
  %5932 = vmatpush1.bf16.msra.mxu0 0
  %5933 = vmatprep.subr.bf16.mxu0 0
  %5934 = vmatpush1.bf16.msra.mxu0 0
  %5935 = vmatprep.subr.bf16.mxu0 0
  %5936 = vmatpush1.bf16.msra.mxu0 0
  %5937 = vmatprep.subr.bf16.mxu0 0
  %5938 = vmatpush1.bf16.msra.mxu0 0
  %5939 = vmatprep.subr.bf16.mxu0 0
  %5940 = vmatpush1.bf16.msra.mxu0 0
  %5941 = vmatprep.subr.bf16.mxu0 0
  %5942 = vmatpush1.bf16.msra.mxu0 0
  %5943 = vmatprep.subr.bf16.mxu0 0
  %5944 = vmatpush1.bf16.msra.mxu0 0
  %5945 = vmatprep.subr.bf16.mxu0 0
  %5946 = vmatpush1.bf16.msra.mxu0 0
  %5947 = vmatprep.subr.bf16.mxu0 0
  %5948 = vmatpush1.bf16.msra.mxu0 0
  %5949 = vmatprep.subr.bf16.mxu0 0
  %5950 = vmatpush1.bf16.msra.mxu0 0
  %5951 = vmatprep.subr.bf16.mxu0 0
  %5952 = vmatpush1.bf16.msra.mxu0 0
  %5953 = vmatprep.subr.bf16.mxu0 0
  %5954 = vmatpush1.bf16.msra.mxu0 0
  %5955 = vmatprep.subr.bf16.mxu0 0
  %5956 = vmatpush1.bf16.msra.mxu0 0
  %5957 = vmatprep.subr.bf16.mxu0 0
  %5958 = vmatpush1.bf16.msra.mxu0 0
  %5959 = vmatprep.mubr.bf16.mxu0 0
  %5960 = vmatmul.mubr.bf16.gmra.mrb[0].mxu0 %v5901
  %v5961 = vpop.f32.mrb[0].mxu0
  %v5962 = vadd.f32 0.0, %v5961
  %v5963 = vpop.f32.mrb[0].mxu0
  %v5964 = vpop.f32.mrb[0].mxu0
  %v5965 = vadd.f32 0.0, %v5964
  %v5966 = vpop.f32.mrb[0].mxu0
  %5967 = vmatprep.mubr.bf16.mxu0 0
  %5968 = vmatmul.mubr.bf16.gmra.mrb[0].mxu0 %v5904
  %v5969 = vpop.f32.mrb[0].mxu0
  %v5970 = vadd.f32 0.0, %v5969
  %v5971 = vpop.f32.mrb[0].mxu0
  %v5972 = vpop.f32.mrb[0].mxu0
  %v5973 = vadd.f32 0.0, %v5972
  %v5974 = vpop.f32.mrb[0].mxu0
  %5975 = vmatprep.mubr.bf16.mxu0 0
  %5976 = vmatmul.mubr.bf16.gmra.mrb[0].mxu0 %v5907
  %v5977 = vpop.f32.mrb[0].mxu0
  %v5978 = vadd.f32 0.0, %v5977
  %v5979 = vpop.f32.mrb[0].mxu0
  %v5980 = vpop.f32.mrb[0].mxu0
  %v5981 = vadd.f32 0.0, %v5980
  %v5982 = vpop.f32.mrb[0].mxu0
  %5983 = vmatprep.mubr.bf16.mxu0 0
  %5984 = vmatmul.mubr.bf16.gmra.mrb[0].mxu0 %v5910
  %v5985 = vpop.f32.mrb[0].mxu0
  %v5986 = vadd.f32 0.0, %v5985
  %v5987 = vpop.f32.mrb[0].mxu0
  %v5988 = vpop.f32.mrb[0].mxu0
  %v5989 = vadd.f32 0.0, %v5988
  %v5990 = vpop.f32.mrb[0].mxu0
  %5991 = vmatprep.mubr.bf16.mxu0 0
  %5992 = vmatmul.mubr.bf16.gmra.mrb[0].mxu0 %v5913
  %v5993 = vpop.f32.mrb[0].mxu0
  %v5994 = vadd.f32 0.0, %v5993
  %v5995 = vpop.f32.mrb[0].mxu0
  %v5996 = vpop.f32.mrb[0].mxu0
  %v5997 = vadd.f32 0.0, %v5996
  %v5998 = vpop.f32.mrb[0].mxu0
  %5999 = vmatprep.mubr.bf16.mxu0 0
  %6000 = vmatmul.mubr.bf16.gmra.mrb[0].mxu0 %v5916
  %v6001 = vpop.f32.mrb[0].mxu0
  %v6002 = vadd.f32 0.0, %v6001
  %v6003 = vpop.f32.mrb[0].mxu0
  %v6004 = vpop.f32.mrb[0].mxu0
  %v6005 = vadd.f32 0.0, %v6004
  %v6006 = vpop.f32.mrb[0].mxu0
  %6007 = vmatprep.mubr.bf16.mxu0 0
  %6008 = vmatmul.mubr.bf16.gmra.mrb[0].mxu0 %v5919
  %v6009 = vpop.f32.mrb[0].mxu0
  %v6010 = vadd.f32 0.0, %v6009
  %v6011 = vpop.f32.mrb[0].mxu0
  %v6012 = vpop.f32.mrb[0].mxu0
  %v6013 = vadd.f32 0.0, %v6012
  %v6014 = vpop.f32.mrb[0].mxu0
  %6015 = vmatprep.mubr.bf16.mxu0 0
  %6016 = vmatmul.mubr.bf16.gmra.mrb[0].mxu0 %v5922
  %v6017 = vpop.f32.mrb[0].mxu0
  %v6018 = vadd.f32 0.0, %v6017
  %v6019 = vpop.f32.mrb[0].mxu0
  %v6020 = vpop.f32.mrb[0].mxu0
  %v6021 = vadd.f32 0.0, %v6020
  %v6022 = vpop.f32.mrb[0].mxu0
  %6023 = vdwg.mxu0
  %v6024 = vadd.f32 %v5810, %v5962
  %v6025 = vadd.f32 %v5811, %v5965
  %v6026 = vadd.f32 %v5812, %v5970
  %v6027 = vadd.f32 %v5813, %v5973
  %v6028 = vadd.f32 %v5814, %v5978
  %v6029 = vadd.f32 %v5815, %v5981
  %v6030 = vadd.f32 %v5816, %v5986
  %v6031 = vadd.f32 %v5817, %v5989
  %v6032 = vadd.f32 %v5818, %v5994
  %v6033 = vadd.f32 %v5819, %v5997
  %v6034 = vadd.f32 %v5820, %v6002
  %v6035 = vadd.f32 %v5821, %v6005
  %v6036 = vadd.f32 %v5822, %v6010
  %v6037 = vadd.f32 %v5823, %v6013
  %v6038 = vadd.f32 %v5824, %v6018
  %v6039 = vadd.f32 %v5825, %v6021
  %s6040 = scalar_lea.vmem [#allocation3], 32
  %v6041 = vld [vmem:[%s6040] sm:$0xff]
  %v6042 = vld [vmem:[%s6040 + $0x10] sm:$0xff]
  %v6043 = vld [vmem:[%s6040 + $0x20] sm:$0xff]
  %v6044 = vld [vmem:[%s6040 + $0x30] sm:$0xff]
  %v6045 = vld [vmem:[%s6040 + $0x40] sm:$0xff]
  %v6046 = vld [vmem:[%s6040 + $0x50] sm:$0xff]
  %v6047 = vld [vmem:[%s6040 + $0x60] sm:$0xff]
  %v6048 = vld [vmem:[%s6040 + $0x70] sm:$0xff]
  %v6049 = vld [vmem:[%s6040 + $0xa0] sm:$0xff]
  %v6050 = vld [vmem:[%s6040 + $0xb0] sm:$0xff]
  %v6051 = vld [vmem:[%s6040 + $0xc0] sm:$0xff]
  %v6052 = vld [vmem:[%s6040 + $0xd0] sm:$0xff]
  %v6053 = vld [vmem:[%s6040 + $0xe0] sm:$0xff]
  %v6054 = vld [vmem:[%s6040 + $0xf0] sm:$0xff]
  %v6055 = vld [vmem:[%s6040 + $0x100] sm:$0xff]
  %v6056 = vld [vmem:[%s6040 + $0x110] sm:$0xff]
  %v6057 = vpack.c.bf16 %v6041, %v6041
  %v6058 = vpack.c.bf16 %v6042, %v6042
  %v6059 = vpack.c.bf16 %v6043, %v6043
  %v6060 = vpack.c.bf16 %v6044, %v6044
  %v6061 = vpack.c.bf16 %v6045, %v6045
  %v6062 = vpack.c.bf16 %v6046, %v6046
  %v6063 = vpack.c.bf16 %v6047, %v6047
  %v6064 = vpack.c.bf16 %v6048, %v6048
  %v6065 = vpack.c.bf16 %v6049, %v6049
  %v6066 = vpack.c.bf16 %v6050, %v6050
  %v6067 = vpack.c.bf16 %v6051, %v6051
  %v6068 = vpack.c.bf16 %v6052, %v6052
  %v6069 = vpack.c.bf16 %v6053, %v6053
  %v6070 = vpack.c.bf16 %v6054, %v6054
  %v6071 = vpack.c.bf16 %v6055, %v6055
  %v6072 = vpack.c.bf16 %v6056, %v6056
  %s6073 = scalar_lea.vmem %s3, 24
  %v6074 = vld [vmem:[%s6073] sm:$0xf]
  %v6091 = vunpack.c.l.b16 %v6057
  %v6092 = vunpack.c.l.b16 %v6058
  %v6093 = vunpack.c.l.b16 %v6059
  %v6094 = vunpack.c.l.b16 %v6060
  %v6095 = vunpack.c.l.b16 %v6061
  %v6096 = vunpack.c.l.b16 %v6062
  %v6097 = vunpack.c.l.b16 %v6063
  %v6098 = vunpack.c.l.b16 %v6064
  %v6099 = vunpack.c.l.b16 %v6065
  %v6100 = vunpack.c.l.b16 %v6066
  %v6101 = vunpack.c.l.b16 %v6067
  %v6102 = vunpack.c.l.b16 %v6068
  %v6103 = vunpack.c.l.b16 %v6069
  %v6104 = vunpack.c.l.b16 %v6070
  %v6105 = vunpack.c.l.b16 %v6071
  %v6106 = vunpack.c.l.b16 %v6072
  %v6107 = vpack.c.b16 %v6092, %v6091
  %v6108 = vpack.c.b16 %v6094, %v6093
  %v6109 = vpack.c.b16 %v6096, %v6095
  %v6110 = vpack.c.b16 %v6098, %v6097
  %v6111 = vpack.c.b16 %v6100, %v6099
  %v6112 = vpack.c.b16 %v6102, %v6101
  %v6113 = vpack.c.b16 %v6104, %v6103
  %v6114 = vpack.c.b16 %v6106, %v6105
  %v6116 = vsel %vm73, %v6107, 0
  %v6119 = vsel %vm73, %v6108, 0
  %v6122 = vsel %vm73, %v6109, 0
  %v6125 = vsel %vm73, %v6110, 0
  %v6128 = vsel %vm73, %v6111, 0
  %v6131 = vsel %vm73, %v6112, 0
  %v6134 = vsel %vm73, %v6113, 0
  %v6137 = vsel %vm73, %v6114, 0
  %v6140 = vsel %vm4919, %v6074, 0
  %6142 = vmatprep.subr.bf16.mxu0 0
  %6143 = vmatpush1.bf16.msra.mxu0 %v6140
  %6144 = vmatprep.subr.bf16.mxu0 0
  %6145 = vmatpush1.bf16.msra.mxu0 0
  %6146 = vmatprep.subr.bf16.mxu0 0
  %6147 = vmatpush1.bf16.msra.mxu0 0
  %6148 = vmatprep.subr.bf16.mxu0 0
  %6149 = vmatpush1.bf16.msra.mxu0 0
  %6150 = vmatprep.subr.bf16.mxu0 0
  %6151 = vmatpush1.bf16.msra.mxu0 0
  %6152 = vmatprep.subr.bf16.mxu0 0
  %6153 = vmatpush1.bf16.msra.mxu0 0
  %6154 = vmatprep.subr.bf16.mxu0 0
  %6155 = vmatpush1.bf16.msra.mxu0 0
  %6156 = vmatprep.subr.bf16.mxu0 0
  %6157 = vmatpush1.bf16.msra.mxu0 0
  %6158 = vmatprep.subr.bf16.mxu0 0
  %6159 = vmatpush1.bf16.msra.mxu0 0
  %6160 = vmatprep.subr.bf16.mxu0 0
  %6161 = vmatpush1.bf16.msra.mxu0 0
  %6162 = vmatprep.subr.bf16.mxu0 0
  %6163 = vmatpush1.bf16.msra.mxu0 0
  %6164 = vmatprep.subr.bf16.mxu0 0
  %6165 = vmatpush1.bf16.msra.mxu0 0
  %6166 = vmatprep.subr.bf16.mxu0 0
  %6167 = vmatpush1.bf16.msra.mxu0 0
  %6168 = vmatprep.subr.bf16.mxu0 0
  %6169 = vmatpush1.bf16.msra.mxu0 0
  %6170 = vmatprep.subr.bf16.mxu0 0
  %6171 = vmatpush1.bf16.msra.mxu0 0
  %6172 = vmatprep.subr.bf16.mxu0 0
  %6173 = vmatpush1.bf16.msra.mxu0 0
  %6174 = vmatprep.mubr.bf16.mxu0 0
  %6175 = vmatmul.mubr.bf16.gmra.mrb[0].mxu0 %v6116
  %v6176 = vpop.f32.mrb[0].mxu0
  %v6177 = vadd.f32 0.0, %v6176
  %v6178 = vpop.f32.mrb[0].mxu0
  %v6179 = vpop.f32.mrb[0].mxu0
  %v6180 = vadd.f32 0.0, %v6179
  %v6181 = vpop.f32.mrb[0].mxu0
  %6182 = vmatprep.mubr.bf16.mxu0 0
  %6183 = vmatmul.mubr.bf16.gmra.mrb[0].mxu0 %v6119
  %v6184 = vpop.f32.mrb[0].mxu0
  %v6185 = vadd.f32 0.0, %v6184
  %v6186 = vpop.f32.mrb[0].mxu0
  %v6187 = vpop.f32.mrb[0].mxu0
  %v6188 = vadd.f32 0.0, %v6187
  %v6189 = vpop.f32.mrb[0].mxu0
  %6190 = vmatprep.mubr.bf16.mxu0 0
  %6191 = vmatmul.mubr.bf16.gmra.mrb[0].mxu0 %v6122
  %v6192 = vpop.f32.mrb[0].mxu0
  %v6193 = vadd.f32 0.0, %v6192
  %v6194 = vpop.f32.mrb[0].mxu0
  %v6195 = vpop.f32.mrb[0].mxu0
  %v6196 = vadd.f32 0.0, %v6195
  %v6197 = vpop.f32.mrb[0].mxu0
  %6198 = vmatprep.mubr.bf16.mxu0 0
  %6199 = vmatmul.mubr.bf16.gmra.mrb[0].mxu0 %v6125
  %v6200 = vpop.f32.mrb[0].mxu0
  %v6201 = vadd.f32 0.0, %v6200
  %v6202 = vpop.f32.mrb[0].mxu0
  %v6203 = vpop.f32.mrb[0].mxu0
  %v6204 = vadd.f32 0.0, %v6203
  %v6205 = vpop.f32.mrb[0].mxu0
  %6206 = vmatprep.mubr.bf16.mxu0 0
  %6207 = vmatmul.mubr.bf16.gmra.mrb[0].mxu0 %v6128
  %v6208 = vpop.f32.mrb[0].mxu0
  %v6209 = vadd.f32 0.0, %v6208
  %v6210 = vpop.f32.mrb[0].mxu0
  %v6211 = vpop.f32.mrb[0].mxu0
  %v6212 = vadd.f32 0.0, %v6211
  %v6213 = vpop.f32.mrb[0].mxu0
  %6214 = vmatprep.mubr.bf16.mxu0 0
  %6215 = vmatmul.mubr.bf16.gmra.mrb[0].mxu0 %v6131
  %v6216 = vpop.f32.mrb[0].mxu0
  %v6217 = vadd.f32 0.0, %v6216
  %v6218 = vpop.f32.mrb[0].mxu0
  %v6219 = vpop.f32.mrb[0].mxu0
  %v6220 = vadd.f32 0.0, %v6219
  %v6221 = vpop.f32.mrb[0].mxu0
  %6222 = vmatprep.mubr.bf16.mxu0 0
  %6223 = vmatmul.mubr.bf16.gmra.mrb[0].mxu0 %v6134
  %v6224 = vpop.f32.mrb[0].mxu0
  %v6225 = vadd.f32 0.0, %v6224
  %v6226 = vpop.f32.mrb[0].mxu0
  %v6227 = vpop.f32.mrb[0].mxu0
  %v6228 = vadd.f32 0.0, %v6227
  %v6229 = vpop.f32.mrb[0].mxu0
  %6230 = vmatprep.mubr.bf16.mxu0 0
  %6231 = vmatmul.mubr.bf16.gmra.mrb[0].mxu0 %v6137
  %v6232 = vpop.f32.mrb[0].mxu0
  %v6233 = vadd.f32 0.0, %v6232
  %v6234 = vpop.f32.mrb[0].mxu0
  %v6235 = vpop.f32.mrb[0].mxu0
  %v6236 = vadd.f32 0.0, %v6235
  %v6237 = vpop.f32.mrb[0].mxu0
  %6238 = vdwg.mxu0
  %v6239 = vadd.f32 %v6024, %v6177
  %v6240 = vadd.f32 %v6025, %v6180
  %v6241 = vadd.f32 %v6026, %v6185
  %v6242 = vadd.f32 %v6027, %v6188
  %v6243 = vadd.f32 %v6028, %v6193
  %v6244 = vadd.f32 %v6029, %v6196
  %v6245 = vadd.f32 %v6030, %v6201
  %v6246 = vadd.f32 %v6031, %v6204
  %v6247 = vadd.f32 %v6032, %v6209
  %v6248 = vadd.f32 %v6033, %v6212
  %v6249 = vadd.f32 %v6034, %v6217
  %v6250 = vadd.f32 %v6035, %v6220
  %v6251 = vadd.f32 %v6036, %v6225
  %v6252 = vadd.f32 %v6037, %v6228
  %v6253 = vadd.f32 %v6038, %v6233
  %v6254 = vadd.f32 %v6039, %v6236
  %v6255 = vld [vmem:[%s6040 + $0x1] sm:$0xff]
  %v6256 = vld [vmem:[%s6040 + $0x11] sm:$0xff]
  %v6257 = vld [vmem:[%s6040 + $0x21] sm:$0xff]
  %v6258 = vld [vmem:[%s6040 + $0x31] sm:$0xff]
  %v6259 = vld [vmem:[%s6040 + $0x41] sm:$0xff]
  %v6260 = vld [vmem:[%s6040 + $0x51] sm:$0xff]
  %v6261 = vld [vmem:[%s6040 + $0x61] sm:$0xff]
  %v6262 = vld [vmem:[%s6040 + $0x71] sm:$0xff]
  %v6263 = vld [vmem:[%s6040 + $0xa1] sm:$0xff]
  %v6264 = vld [vmem:[%s6040 + $0xb1] sm:$0xff]
  %v6265 = vld [vmem:[%s6040 + $0xc1] sm:$0xff]
  %v6266 = vld [vmem:[%s6040 + $0xd1] sm:$0xff]
  %v6267 = vld [vmem:[%s6040 + $0xe1] sm:$0xff]
  %v6268 = vld [vmem:[%s6040 + $0xf1] sm:$0xff]
  %v6269 = vld [vmem:[%s6040 + $0x101] sm:$0xff]
  %v6270 = vld [vmem:[%s6040 + $0x111] sm:$0xff]
  %v6271 = vpack.c.bf16 %v6255, %v6255
  %v6272 = vpack.c.bf16 %v6256, %v6256
  %v6273 = vpack.c.bf16 %v6257, %v6257
  %v6274 = vpack.c.bf16 %v6258, %v6258
  %v6275 = vpack.c.bf16 %v6259, %v6259
  %v6276 = vpack.c.bf16 %v6260, %v6260
  %v6277 = vpack.c.bf16 %v6261, %v6261
  %v6278 = vpack.c.bf16 %v6262, %v6262
  %v6279 = vpack.c.bf16 %v6263, %v6263
  %v6280 = vpack.c.bf16 %v6264, %v6264
  %v6281 = vpack.c.bf16 %v6265, %v6265
  %v6282 = vpack.c.bf16 %v6266, %v6266
  %v6283 = vpack.c.bf16 %v6267, %v6267
  %v6284 = vpack.c.bf16 %v6268, %v6268
  %v6285 = vpack.c.bf16 %v6269, %v6269
  %v6286 = vpack.c.bf16 %v6270, %v6270
  %s6287 = scalar_lea.vmem %s3, 28
  %v6288 = vld [vmem:[%s6287] sm:$0xf]
  %v6305 = vunpack.c.l.b16 %v6271
  %v6306 = vunpack.c.l.b16 %v6272
  %v6307 = vunpack.c.l.b16 %v6273
  %v6308 = vunpack.c.l.b16 %v6274
  %v6309 = vunpack.c.l.b16 %v6275
  %v6310 = vunpack.c.l.b16 %v6276
  %v6311 = vunpack.c.l.b16 %v6277
  %v6312 = vunpack.c.l.b16 %v6278
  %v6313 = vunpack.c.l.b16 %v6279
  %v6314 = vunpack.c.l.b16 %v6280
  %v6315 = vunpack.c.l.b16 %v6281
  %v6316 = vunpack.c.l.b16 %v6282
  %v6317 = vunpack.c.l.b16 %v6283
  %v6318 = vunpack.c.l.b16 %v6284
  %v6319 = vunpack.c.l.b16 %v6285
  %v6320 = vunpack.c.l.b16 %v6286
  %v6321 = vpack.c.b16 %v6306, %v6305
  %v6322 = vpack.c.b16 %v6308, %v6307
  %v6323 = vpack.c.b16 %v6310, %v6309
  %v6324 = vpack.c.b16 %v6312, %v6311
  %v6325 = vpack.c.b16 %v6314, %v6313
  %v6326 = vpack.c.b16 %v6316, %v6315
  %v6327 = vpack.c.b16 %v6318, %v6317
  %v6328 = vpack.c.b16 %v6320, %v6319
  %v6330 = vsel %vm73, %v6321, 0
  %v6333 = vsel %vm73, %v6322, 0
  %v6336 = vsel %vm73, %v6323, 0
  %v6339 = vsel %vm73, %v6324, 0
  %v6342 = vsel %vm73, %v6325, 0
  %v6345 = vsel %vm73, %v6326, 0
  %v6348 = vsel %vm73, %v6327, 0
  %v6351 = vsel %vm73, %v6328, 0
  %v6354 = vsel %vm4919, %v6288, 0
  %6356 = vmatprep.subr.bf16.mxu0 0
  %6357 = vmatpush1.bf16.msra.mxu0 %v6354
  %6358 = vmatprep.subr.bf16.mxu0 0
  %6359 = vmatpush1.bf16.msra.mxu0 0
  %6360 = vmatprep.subr.bf16.mxu0 0
  %6361 = vmatpush1.bf16.msra.mxu0 0
  %6362 = vmatprep.subr.bf16.mxu0 0
  %6363 = vmatpush1.bf16.msra.mxu0 0
  %6364 = vmatprep.subr.bf16.mxu0 0
  %6365 = vmatpush1.bf16.msra.mxu0 0
  %6366 = vmatprep.subr.bf16.mxu0 0
  %6367 = vmatpush1.bf16.msra.mxu0 0
  %6368 = vmatprep.subr.bf16.mxu0 0
  %6369 = vmatpush1.bf16.msra.mxu0 0
  %6370 = vmatprep.subr.bf16.mxu0 0
  %6371 = vmatpush1.bf16.msra.mxu0 0
  %6372 = vmatprep.subr.bf16.mxu0 0
  %6373 = vmatpush1.bf16.msra.mxu0 0
  %6374 = vmatprep.subr.bf16.mxu0 0
  %6375 = vmatpush1.bf16.msra.mxu0 0
  %6376 = vmatprep.subr.bf16.mxu0 0
  %6377 = vmatpush1.bf16.msra.mxu0 0
  %6378 = vmatprep.subr.bf16.mxu0 0
  %6379 = vmatpush1.bf16.msra.mxu0 0
  %6380 = vmatprep.subr.bf16.mxu0 0
  %6381 = vmatpush1.bf16.msra.mxu0 0
  %6382 = vmatprep.subr.bf16.mxu0 0
  %6383 = vmatpush1.bf16.msra.mxu0 0
  %6384 = vmatprep.subr.bf16.mxu0 0
  %6385 = vmatpush1.bf16.msra.mxu0 0
  %6386 = vmatprep.subr.bf16.mxu0 0
  %6387 = vmatpush1.bf16.msra.mxu0 0
  %6388 = vmatprep.mubr.bf16.mxu0 0
  %6389 = vmatmul.mubr.bf16.gmra.mrb[0].mxu0 %v6330
  %v6390 = vpop.f32.mrb[0].mxu0
  %v6391 = vadd.f32 0.0, %v6390
  %v6392 = vpop.f32.mrb[0].mxu0
  %v6393 = vpop.f32.mrb[0].mxu0
  %v6394 = vadd.f32 0.0, %v6393
  %v6395 = vpop.f32.mrb[0].mxu0
  %6396 = vmatprep.mubr.bf16.mxu0 0
  %6397 = vmatmul.mubr.bf16.gmra.mrb[0].mxu0 %v6333
  %v6398 = vpop.f32.mrb[0].mxu0
  %v6399 = vadd.f32 0.0, %v6398
  %v6400 = vpop.f32.mrb[0].mxu0
  %v6401 = vpop.f32.mrb[0].mxu0
  %v6402 = vadd.f32 0.0, %v6401
  %v6403 = vpop.f32.mrb[0].mxu0
  %6404 = vmatprep.mubr.bf16.mxu0 0
  %6405 = vmatmul.mubr.bf16.gmra.mrb[0].mxu0 %v6336
  %v6406 = vpop.f32.mrb[0].mxu0
  %v6407 = vadd.f32 0.0, %v6406
  %v6408 = vpop.f32.mrb[0].mxu0
  %v6409 = vpop.f32.mrb[0].mxu0
  %v6410 = vadd.f32 0.0, %v6409
  %v6411 = vpop.f32.mrb[0].mxu0
  %6412 = vmatprep.mubr.bf16.mxu0 0
  %6413 = vmatmul.mubr.bf16.gmra.mrb[0].mxu0 %v6339
  %v6414 = vpop.f32.mrb[0].mxu0
  %v6415 = vadd.f32 0.0, %v6414
  %v6416 = vpop.f32.mrb[0].mxu0
  %v6417 = vpop.f32.mrb[0].mxu0
  %v6418 = vadd.f32 0.0, %v6417
  %v6419 = vpop.f32.mrb[0].mxu0
  %6420 = vmatprep.mubr.bf16.mxu0 0
  %6421 = vmatmul.mubr.bf16.gmra.mrb[0].mxu0 %v6342
  %v6422 = vpop.f32.mrb[0].mxu0
  %v6423 = vadd.f32 0.0, %v6422
  %v6424 = vpop.f32.mrb[0].mxu0
  %v6425 = vpop.f32.mrb[0].mxu0
  %v6426 = vadd.f32 0.0, %v6425
  %v6427 = vpop.f32.mrb[0].mxu0
  %6428 = vmatprep.mubr.bf16.mxu0 0
  %6429 = vmatmul.mubr.bf16.gmra.mrb[0].mxu0 %v6345
  %v6430 = vpop.f32.mrb[0].mxu0
  %v6431 = vadd.f32 0.0, %v6430
  %v6432 = vpop.f32.mrb[0].mxu0
  %v6433 = vpop.f32.mrb[0].mxu0
  %v6434 = vadd.f32 0.0, %v6433
  %v6435 = vpop.f32.mrb[0].mxu0
  %6436 = vmatprep.mubr.bf16.mxu0 0
  %6437 = vmatmul.mubr.bf16.gmra.mrb[0].mxu0 %v6348
  %v6438 = vpop.f32.mrb[0].mxu0
  %v6439 = vadd.f32 0.0, %v6438
  %v6440 = vpop.f32.mrb[0].mxu0
  %v6441 = vpop.f32.mrb[0].mxu0
  %v6442 = vadd.f32 0.0, %v6441
  %v6443 = vpop.f32.mrb[0].mxu0
  %6444 = vmatprep.mubr.bf16.mxu0 0
  %6445 = vmatmul.mubr.bf16.gmra.mrb[0].mxu0 %v6351
  %v6446 = vpop.f32.mrb[0].mxu0
  %v6447 = vadd.f32 0.0, %v6446
  %v6448 = vpop.f32.mrb[0].mxu0
  %v6449 = vpop.f32.mrb[0].mxu0
  %v6450 = vadd.f32 0.0, %v6449
  %v6451 = vpop.f32.mrb[0].mxu0
  %6452 = vdwg.mxu0
  %v6453 = vadd.f32 %v6239, %v6391
  %v6454 = vadd.f32 %v6240, %v6394
  %v6455 = vadd.f32 %v6241, %v6399
  %v6456 = vadd.f32 %v6242, %v6402
  %v6457 = vadd.f32 %v6243, %v6407
  %v6458 = vadd.f32 %v6244, %v6410
  %v6459 = vadd.f32 %v6245, %v6415
  %v6460 = vadd.f32 %v6246, %v6418
  %v6461 = vadd.f32 %v6247, %v6423
  %v6462 = vadd.f32 %v6248, %v6426
  %v6463 = vadd.f32 %v6249, %v6431
  %v6464 = vadd.f32 %v6250, %v6434
  %v6465 = vadd.f32 %v6251, %v6439
  %v6466 = vadd.f32 %v6252, %v6442
  %v6467 = vadd.f32 %v6253, %v6447
  %v6468 = vadd.f32 %v6254, %v6450
  %v6469 = vld [vmem:[%s6040 + $0x2] sm:$0xff]
  %v6470 = vld [vmem:[%s6040 + $0x12] sm:$0xff]
  %v6471 = vld [vmem:[%s6040 + $0x22] sm:$0xff]
  %v6472 = vld [vmem:[%s6040 + $0x32] sm:$0xff]
  %v6473 = vld [vmem:[%s6040 + $0x42] sm:$0xff]
  %v6474 = vld [vmem:[%s6040 + $0x52] sm:$0xff]
  %v6475 = vld [vmem:[%s6040 + $0x62] sm:$0xff]
  %v6476 = vld [vmem:[%s6040 + $0x72] sm:$0xff]
  %v6477 = vld [vmem:[%s6040 + $0xa2] sm:$0xff]
  %v6478 = vld [vmem:[%s6040 + $0xb2] sm:$0xff]
  %v6479 = vld [vmem:[%s6040 + $0xc2] sm:$0xff]
  %v6480 = vld [vmem:[%s6040 + $0xd2] sm:$0xff]
  %v6481 = vld [vmem:[%s6040 + $0xe2] sm:$0xff]
  %v6482 = vld [vmem:[%s6040 + $0xf2] sm:$0xff]
  %v6483 = vld [vmem:[%s6040 + $0x102] sm:$0xff]
  %v6484 = vld [vmem:[%s6040 + $0x112] sm:$0xff]
  %v6485 = vpack.c.bf16 %v6469, %v6469
  %v6486 = vpack.c.bf16 %v6470, %v6470
  %v6487 = vpack.c.bf16 %v6471, %v6471
  %v6488 = vpack.c.bf16 %v6472, %v6472
  %v6489 = vpack.c.bf16 %v6473, %v6473
  %v6490 = vpack.c.bf16 %v6474, %v6474
  %v6491 = vpack.c.bf16 %v6475, %v6475
  %v6492 = vpack.c.bf16 %v6476, %v6476
  %v6493 = vpack.c.bf16 %v6477, %v6477
  %v6494 = vpack.c.bf16 %v6478, %v6478
  %v6495 = vpack.c.bf16 %v6479, %v6479
  %v6496 = vpack.c.bf16 %v6480, %v6480
  %v6497 = vpack.c.bf16 %v6481, %v6481
  %v6498 = vpack.c.bf16 %v6482, %v6482
  %v6499 = vpack.c.bf16 %v6483, %v6483
  %v6500 = vpack.c.bf16 %v6484, %v6484
  %s6501 = scalar_lea.vmem %s3, 32
  %v6502 = vld [vmem:[%s6501] sm:$0xf]
  %v6519 = vunpack.c.l.b16 %v6485
  %v6520 = vunpack.c.l.b16 %v6486
  %v6521 = vunpack.c.l.b16 %v6487
  %v6522 = vunpack.c.l.b16 %v6488
  %v6523 = vunpack.c.l.b16 %v6489
  %v6524 = vunpack.c.l.b16 %v6490
  %v6525 = vunpack.c.l.b16 %v6491
  %v6526 = vunpack.c.l.b16 %v6492
  %v6527 = vunpack.c.l.b16 %v6493
  %v6528 = vunpack.c.l.b16 %v6494
  %v6529 = vunpack.c.l.b16 %v6495
  %v6530 = vunpack.c.l.b16 %v6496
  %v6531 = vunpack.c.l.b16 %v6497
  %v6532 = vunpack.c.l.b16 %v6498
  %v6533 = vunpack.c.l.b16 %v6499
  %v6534 = vunpack.c.l.b16 %v6500
  %v6535 = vpack.c.b16 %v6520, %v6519
  %v6536 = vpack.c.b16 %v6522, %v6521
  %v6537 = vpack.c.b16 %v6524, %v6523
  %v6538 = vpack.c.b16 %v6526, %v6525
  %v6539 = vpack.c.b16 %v6528, %v6527
  %v6540 = vpack.c.b16 %v6530, %v6529
  %v6541 = vpack.c.b16 %v6532, %v6531
  %v6542 = vpack.c.b16 %v6534, %v6533
  %v6544 = vsel %vm73, %v6535, 0
  %v6547 = vsel %vm73, %v6536, 0
  %v6550 = vsel %vm73, %v6537, 0
  %v6553 = vsel %vm73, %v6538, 0
  %v6556 = vsel %vm73, %v6539, 0
  %v6559 = vsel %vm73, %v6540, 0
  %v6562 = vsel %vm73, %v6541, 0
  %v6565 = vsel %vm73, %v6542, 0
  %v6568 = vsel %vm4919, %v6502, 0
  %6570 = vmatprep.subr.bf16.mxu0 0
  %6571 = vmatpush1.bf16.msra.mxu0 %v6568
  %6572 = vmatprep.subr.bf16.mxu0 0
  %6573 = vmatpush1.bf16.msra.mxu0 0
  %6574 = vmatprep.subr.bf16.mxu0 0
  %6575 = vmatpush1.bf16.msra.mxu0 0
  %6576 = vmatprep.subr.bf16.mxu0 0
  %6577 = vmatpush1.bf16.msra.mxu0 0
  %6578 = vmatprep.subr.bf16.mxu0 0
  %6579 = vmatpush1.bf16.msra.mxu0 0
  %6580 = vmatprep.subr.bf16.mxu0 0
  %6581 = vmatpush1.bf16.msra.mxu0 0
  %6582 = vmatprep.subr.bf16.mxu0 0
  %6583 = vmatpush1.bf16.msra.mxu0 0
  %6584 = vmatprep.subr.bf16.mxu0 0
  %6585 = vmatpush1.bf16.msra.mxu0 0
  %6586 = vmatprep.subr.bf16.mxu0 0
  %6587 = vmatpush1.bf16.msra.mxu0 0
  %6588 = vmatprep.subr.bf16.mxu0 0
  %6589 = vmatpush1.bf16.msra.mxu0 0
  %6590 = vmatprep.subr.bf16.mxu0 0
  %6591 = vmatpush1.bf16.msra.mxu0 0
  %6592 = vmatprep.subr.bf16.mxu0 0
  %6593 = vmatpush1.bf16.msra.mxu0 0
  %6594 = vmatprep.subr.bf16.mxu0 0
  %6595 = vmatpush1.bf16.msra.mxu0 0
  %6596 = vmatprep.subr.bf16.mxu0 0
  %6597 = vmatpush1.bf16.msra.mxu0 0
  %6598 = vmatprep.subr.bf16.mxu0 0
  %6599 = vmatpush1.bf16.msra.mxu0 0
  %6600 = vmatprep.subr.bf16.mxu0 0
  %6601 = vmatpush1.bf16.msra.mxu0 0
  %6602 = vmatprep.mubr.bf16.mxu0 0
  %6603 = vmatmul.mubr.bf16.gmra.mrb[0].mxu0 %v6544
  %v6604 = vpop.f32.mrb[0].mxu0
  %v6605 = vadd.f32 0.0, %v6604
  %v6606 = vpop.f32.mrb[0].mxu0
  %v6607 = vpop.f32.mrb[0].mxu0
  %v6608 = vadd.f32 0.0, %v6607
  %v6609 = vpop.f32.mrb[0].mxu0
  %6610 = vmatprep.mubr.bf16.mxu0 0
  %6611 = vmatmul.mubr.bf16.gmra.mrb[0].mxu0 %v6547
  %v6612 = vpop.f32.mrb[0].mxu0
  %v6613 = vadd.f32 0.0, %v6612
  %v6614 = vpop.f32.mrb[0].mxu0
  %v6615 = vpop.f32.mrb[0].mxu0
  %v6616 = vadd.f32 0.0, %v6615
  %v6617 = vpop.f32.mrb[0].mxu0
  %6618 = vmatprep.mubr.bf16.mxu0 0
  %6619 = vmatmul.mubr.bf16.gmra.mrb[0].mxu0 %v6550
  %v6620 = vpop.f32.mrb[0].mxu0
  %v6621 = vadd.f32 0.0, %v6620
  %v6622 = vpop.f32.mrb[0].mxu0
  %v6623 = vpop.f32.mrb[0].mxu0
  %v6624 = vadd.f32 0.0, %v6623
  %v6625 = vpop.f32.mrb[0].mxu0
  %6626 = vmatprep.mubr.bf16.mxu0 0
  %6627 = vmatmul.mubr.bf16.gmra.mrb[0].mxu0 %v6553
  %v6628 = vpop.f32.mrb[0].mxu0
  %v6629 = vadd.f32 0.0, %v6628
  %v6630 = vpop.f32.mrb[0].mxu0
  %v6631 = vpop.f32.mrb[0].mxu0
  %v6632 = vadd.f32 0.0, %v6631
  %v6633 = vpop.f32.mrb[0].mxu0
  %6634 = vmatprep.mubr.bf16.mxu0 0
  %6635 = vmatmul.mubr.bf16.gmra.mrb[0].mxu0 %v6556
  %v6636 = vpop.f32.mrb[0].mxu0
  %v6637 = vadd.f32 0.0, %v6636
  %v6638 = vpop.f32.mrb[0].mxu0
  %v6639 = vpop.f32.mrb[0].mxu0
  %v6640 = vadd.f32 0.0, %v6639
  %v6641 = vpop.f32.mrb[0].mxu0
  %6642 = vmatprep.mubr.bf16.mxu0 0
  %6643 = vmatmul.mubr.bf16.gmra.mrb[0].mxu0 %v6559
  %v6644 = vpop.f32.mrb[0].mxu0
  %v6645 = vadd.f32 0.0, %v6644
  %v6646 = vpop.f32.mrb[0].mxu0
  %v6647 = vpop.f32.mrb[0].mxu0
  %v6648 = vadd.f32 0.0, %v6647
  %v6649 = vpop.f32.mrb[0].mxu0
  %6650 = vmatprep.mubr.bf16.mxu0 0
  %6651 = vmatmul.mubr.bf16.gmra.mrb[0].mxu0 %v6562
  %v6652 = vpop.f32.mrb[0].mxu0
  %v6653 = vadd.f32 0.0, %v6652
  %v6654 = vpop.f32.mrb[0].mxu0
  %v6655 = vpop.f32.mrb[0].mxu0
  %v6656 = vadd.f32 0.0, %v6655
  %v6657 = vpop.f32.mrb[0].mxu0
  %6658 = vmatprep.mubr.bf16.mxu0 0
  %6659 = vmatmul.mubr.bf16.gmra.mrb[0].mxu0 %v6565
  %v6660 = vpop.f32.mrb[0].mxu0
  %v6661 = vadd.f32 0.0, %v6660
  %v6662 = vpop.f32.mrb[0].mxu0
  %v6663 = vpop.f32.mrb[0].mxu0
  %v6664 = vadd.f32 0.0, %v6663
  %v6665 = vpop.f32.mrb[0].mxu0
  %6666 = vdwg.mxu0
  %v6667 = vadd.f32 %v6453, %v6605
  %v6668 = vadd.f32 %v6454, %v6608
  %v6669 = vadd.f32 %v6455, %v6613
  %v6670 = vadd.f32 %v6456, %v6616
  %v6671 = vadd.f32 %v6457, %v6621
  %v6672 = vadd.f32 %v6458, %v6624
  %v6673 = vadd.f32 %v6459, %v6629
  %v6674 = vadd.f32 %v6460, %v6632
  %v6675 = vadd.f32 %v6461, %v6637
  %v6676 = vadd.f32 %v6462, %v6640
  %v6677 = vadd.f32 %v6463, %v6645
  %v6678 = vadd.f32 %v6464, %v6648
  %v6679 = vadd.f32 %v6465, %v6653
  %v6680 = vadd.f32 %v6466, %v6656
  %v6681 = vadd.f32 %v6467, %v6661
  %v6682 = vadd.f32 %v6468, %v6664
  %v6683 = vld [vmem:[%s4] sm:$0x1]
  %v6685 = vlaneseq
  %v6686 = vshrl.u32 %v6685, 7
  %v6687 = vsub.s32 0, %v6686
  %v6688 = vrot.slane %v6683, %v6687
  %v6690 = vadd.f32 %v6667, %v6688
  %v6691 = vadd.f32 %v6668, %v6688
  %v6692 = vadd.f32 %v6669, %v6688
  %v6693 = vadd.f32 %v6670, %v6688
  %v6694 = vadd.f32 %v6671, %v6688
  %v6695 = vadd.f32 %v6672, %v6688
  %v6696 = vadd.f32 %v6673, %v6688
  %v6697 = vadd.f32 %v6674, %v6688
  %v6698 = vadd.f32 %v6675, %v6688
  %v6699 = vadd.f32 %v6676, %v6688
  %v6700 = vadd.f32 %v6677, %v6688
  %v6701 = vadd.f32 %v6678, %v6688
  %v6702 = vadd.f32 %v6679, %v6688
  %v6703 = vadd.f32 %v6680, %v6688
  %v6704 = vadd.f32 %v6681, %v6688
  %v6705 = vadd.f32 %v6682, %v6688
  %v6706 = vmax.f32 %v6690, 0.0
  %v6707 = vmax.f32 %v6691, 0.0
  %v6708 = vmax.f32 %v6692, 0.0
  %v6709 = vmax.f32 %v6693, 0.0
  %v6710 = vmax.f32 %v6694, 0.0
  %v6711 = vmax.f32 %v6695, 0.0
  %v6712 = vmax.f32 %v6696, 0.0
  %v6713 = vmax.f32 %v6697, 0.0
  %v6714 = vmax.f32 %v6698, 0.0
  %v6715 = vmax.f32 %v6699, 0.0
  %v6716 = vmax.f32 %v6700, 0.0
  %v6717 = vmax.f32 %v6701, 0.0
  %v6718 = vmax.f32 %v6702, 0.0
  %v6719 = vmax.f32 %v6703, 0.0
  %v6720 = vmax.f32 %v6704, 0.0
  %v6721 = vmax.f32 %v6705, 0.0
  %6722 = vst.msk [vmem:[%s5] sm:$0xff] %vm73, %v6706
  %6723 = vst.msk [vmem:[%s5 + $0x8] sm:$0xff] %vm73, %v6707
  %6724 = vst.msk [vmem:[%s5 + $0x10] sm:$0xff] %vm73, %v6708
  %6725 = vst.msk [vmem:[%s5 + $0x18] sm:$0xff] %vm73, %v6709
  %6726 = vst.msk [vmem:[%s5 + $0x20] sm:$0xff] %vm73, %v6710
  %6727 = vst.msk [vmem:[%s5 + $0x28] sm:$0xff] %vm73, %v6711
  %6728 = vst.msk [vmem:[%s5 + $0x30] sm:$0xff] %vm73, %v6712
  %6729 = vst.msk [vmem:[%s5 + $0x38] sm:$0xff] %vm73, %v6713
  %6730 = vst.msk [vmem:[%s5 + $0x40] sm:$0xff] %vm73, %v6714
  %6731 = vst.msk [vmem:[%s5 + $0x48] sm:$0xff] %vm73, %v6715
  %6732 = vst.msk [vmem:[%s5 + $0x50] sm:$0xff] %vm73, %v6716
  %6733 = vst.msk [vmem:[%s5 + $0x58] sm:$0xff] %vm73, %v6717
  %6734 = vst.msk [vmem:[%s5 + $0x60] sm:$0xff] %vm73, %v6718
  %6735 = vst.msk [vmem:[%s5 + $0x68] sm:$0xff] %vm73, %v6719
  %6736 = vst.msk [vmem:[%s5 + $0x70] sm:$0xff] %vm73, %v6720
  %6737 = vst.msk [vmem:[%s5 + $0x78] sm:$0xff] %vm73, %v6721
  // Predicated region
  $region22: #{down_forward.1} parent=0 // pred_check
    _
  $region23: #{down_forward.1} parent=0 // pred_check_branch
    %6739 = sbr.rel (0) target = $region25
  $region24: #{down_forward.1} parent=0 // pred_region
    _
  $region25: #{down_forward.1} parent=0 // pred_fallthru
    _
  // Predicated region
  $region26: #{down_forward.1} parent=0 // pred_check
    _
  $region27: #{down_forward.1} parent=0 // pred_check_branch
    %6741 = sbr.rel (0) target = $region29
  $region28: #{down_forward.1} parent=0 // pred_region
    _
  $region29: #{down_forward.1} parent=0 // pred_fallthru
    _

</llo_original>
